<compile_context>
chip_gen: v6e
topology: v6e:2x2x1
jax: 0.10.0
libtpu: 0.0.40
codegen_flags: <defaults>
</compile_context>

<pallas_src>
import functools
import math

import jax
import jax.numpy as jnp
import numpy as np
from jax.experimental import pallas as pl
from jax.experimental.pallas import tpu as pltpu

# f32 accuracy for the pure-JAX reference as well (default matmul precision on
# TPU is single-pass bf16, which would dominate the comparison error).
jax.config.update("jax_default_matmul_precision", "highest")

# ---- module hyperparameters (from the PyTorch source) ----
BLOCK_SIZE = 8                    # block_size (max T, size of the causal tril buffer)
N_EMBD = 32                       # n_embd
NUM_HEADS = 4
HEAD_SIZE = N_EMBD // NUM_HEADS   # 8, so concat(heads) has width n_embd

_HI = jax.lax.Precision.HIGHEST


def _mha_kernel(x_ref, wqkv_ref, wp_ref, b_ref, o_ref, *, B, T):
    """All heads + output projection in one kernel invocation (no grid)."""
    C = N_EMBD
    H = NUM_HEADS
    hs = HEAD_SIZE

    x = x_ref[...]          # (B*T, C)   float32
    wqkv = wqkv_ref[...]    # (C, 3*C)   columns: [q heads (pre-scaled) | k heads | v heads]
    wp = wp_ref[...]        # (C, C)     output-projection weight, pre-transposed
    bias = b_ref[...]       # (1, C)

    # One fused QKV matmul on the MXU: (B*T, C) @ (C, 3C) -> (B*T, 3C).
    # Softmax scale is already folded into the Q columns of wqkv.
    qkv = jnp.dot(x, wqkv, preferred_element_type=jnp.float32, precision=_HI)

    # Stack heads on the LEADING axis -> (H*B, T, hs) so a single batched
    # einsum + single mask/softmax covers every head.
    def gather_heads(block_off):
        return jnp.concatenate(
            [qkv[:, block_off + h * hs: block_off + (h + 1) * hs].reshape(B, T, hs)
             for h in range(H)],
            axis=0)                                            # (H*B, T, hs)

    q = gather_heads(0)
    k = gather_heads(C)
    v = gather_heads(2 * C)

    # Batched scores over all (head, batch) pairs: (H*B, T, T).
    s = jnp.einsum("bqd,bkd->bqk", q, k,
                   preferred_element_type=jnp.float32, precision=_HI)

    # Causal mask built once (keep col <= row); diagonal always kept -> the
    # row max is finite and exp(-inf - m) == 0 is safe.
    row = jax.lax.broadcasted_iota(jnp.int32, (T, T), 0)
    col = jax.lax.broadcasted_iota(jnp.int32, (T, T), 1)
    s = jnp.where((col <= row)[None, :, :], s, -jnp.inf)

    # Exact softmax (kernel is launch/DMA-bound; every compute slot has slack,
    # so the approximate EUP reciprocal buys nothing and costs accuracy).
    m = jnp.max(s, axis=-1, keepdims=True)
    p = jnp.exp(s - m)
    w = p / jnp.sum(p, axis=-1, keepdims=True)

    # Weighted values, batched over all heads: (H*B, T, hs).
    attn = jnp.einsum("bqk,bkd->bqd", w, v,
                      preferred_element_type=jnp.float32, precision=_HI)

    # Re-assemble the head-concatenated activation (head h -> columns
    # h*hs:(h+1)*hs, matching torch.cat(..., dim=-1)) and do ONE K=32
    # projection matmul + bias straight into the output ref.
    attn2d = jnp.concatenate(
        [attn[h * B:(h + 1) * B].reshape(B * T, hs) for h in range(H)],
        axis=-1)                                               # (B*T, C)
    out = jnp.dot(attn2d, wp, preferred_element_type=jnp.float32,
                  precision=_HI) + bias
    o_ref[...] = out.astype(o_ref.dtype)


def pack_mha_params(wq, wk, wv, w_proj, b_proj):
    """Pack per-head weights ONCE (init time), not per forward call.

    wq/wk/wv: (H, C, head_size)  -- per-head projections (already "x @ W" form)
    w_proj:   (n_embd, n_embd)   -- PyTorch Linear weight (out_features, in_features)
    b_proj:   (n_embd,)
    """
    H, C, hs = wq.shape
    assert H * hs == C == N_EMBD

    # NOTE: the PyTorch source scales scores by C**-0.5 with C = n_embd
    # (NOT head_size); fold it into the Q columns so the kernel skips the mul.
    scale = 1.0 / math.sqrt(C)

    def stack(w):                                   # (H, C, hs) -> (C, H*hs)
        return jnp.transpose(w, (1, 0, 2)).reshape(C, H * hs)

    w_qkv = jnp.concatenate([stack(wq) * scale, stack(wk), stack(wv)],
                            axis=-1)                # (C, 3C)
    wp_t = jnp.transpose(w_proj)                    # (C, C);  out = attn @ W^T + b
    bias2d = b_proj.reshape(1, C)                   # (1, C)
    return w_qkv, wp_t, bias2d


@jax.jit
def multi_head_attention(x, w_qkv, wp_t, bias2d):
    """x: (B, T, C=n_embd) float32; packed params from pack_mha_params()."""
    B, T, C = x.shape
    assert C == N_EMBD and T <= BLOCK_SIZE
    x2d = x.reshape(B * T, C)                       # flatten batch for 2-D matmuls

    kernel = functools.partial(_mha_kernel, B=B, T=T)
    out2d = pl.pallas_call(
        kernel,
        out_shape=jax.ShapeDtypeStruct((B * T, C), x.dtype),
        in_specs=[pl.BlockSpec(memory_space=pltpu.MemorySpace.VMEM)] * 4,
        out_specs=pl.BlockSpec(memory_space=pltpu.MemorySpace.VMEM),
    )(x2d, w_qkv, wp_t, bias2d)
    return out2d.reshape(B, T, C)


def _reference(x, wq, wk, wv, w_proj, b_proj):
    """Pure-JAX reference mirroring the PyTorch forward."""
    B, T, C = x.shape
    outs = []
    for h in range(wq.shape[0]):
        q = x @ wq[h]
        k = x @ wk[h]
        v = x @ wv[h]
        w = (q @ jnp.swapaxes(k, -2, -1)) * (C ** -0.5)
        tril = jnp.tril(jnp.ones((T, T)))
        w = jnp.where(tril == 0, -jnp.inf, w)
        w = jax.nn.softmax(w, axis=-1)
        outs.append(w @ v)
    cat = jnp.concatenate(outs, axis=-1)
    return cat @ w_proj.T + b_proj


if __name__ == "__main__":
    B, T, C = 2, BLOCK_SIZE, N_EMBD   # x = torch.randn(B, T, C)

    key = jax.random.PRNGKey(0)
    kx, kq, kk, kv, kp, kb = jax.random.split(key, 6)

    x = jax.random.normal(kx, (B, T, C), dtype=jnp.float32)

    # deterministic synthetic parameters (PyTorch-Linear-like scale)
    s_head = 1.0 / math.sqrt(N_EMBD)
    wq = jax.random.uniform(kq, (NUM_HEADS, C, HEAD_SIZE), jnp.float32, -s_head, s_head)
    wk = jax.random.uniform(kk, (NUM_HEADS, C, HEAD_SIZE), jnp.float32, -s_head, s_head)
    wv = jax.random.uniform(kv, (NUM_HEADS, C, HEAD_SIZE), jnp.float32, -s_head, s_head)
    w_proj = jax.random.uniform(kp, (N_EMBD, N_EMBD), jnp.float32, -s_head, s_head)
    b_proj = jax.random.uniform(kb, (N_EMBD,), jnp.float32, -s_head, s_head)

    # Pack weights ONCE (init time); the per-call path is reshape + pallas_call.
    w_qkv, wp_t, bias2d = pack_mha_params(wq, wk, wv, w_proj, b_proj)
    w_qkv, wp_t, bias2d = jax.block_until_ready((w_qkv, wp_t, bias2d))

    out = multi_head_attention(x, w_qkv, wp_t, bias2d)
    out = jax.block_until_ready(out)

    ref = _reference(x, wq, wk, wv, w_proj, b_proj)
    # Exact softmax + precision=HIGHEST matmuls -> tight tolerance restored.
    np.testing.assert_allclose(np.asarray(out), np.asarray(ref), rtol=1e-5, atol=1e-5)

    print("KERNEL_OK")
</pallas_src>

<mosaic_0001>
module attributes {stable_mosaic.version = 11 : i64} {
  func.func @_mha_kernel(%arg0: memref<16x32xf32, #tpu.memory_space<vmem>>, %arg1: memref<32x96xf32, #tpu.memory_space<vmem>>, %arg2: memref<32x32xf32, #tpu.memory_space<vmem>>, %arg3: memref<1x32xf32, #tpu.memory_space<vmem>>, %arg4: memref<16x32xf32, #tpu.memory_space<vmem>>) attributes {dimension_semantics = [], scalar_prefetch = 0 : i64, scratch_operands = 0 : i64, tpu.core_type = #tpu.core_type<tc>} {
    %c0 = arith.constant 0 : index
    %c0_0 = arith.constant 0 : index
    %0 = vector.load %arg0[%c0, %c0_0] : memref<16x32xf32, #tpu.memory_space<vmem>>, vector<16x32xf32>
    %c0_1 = arith.constant 0 : index
    %c0_2 = arith.constant 0 : index
    %1 = vector.load %arg1[%c0_1, %c0_2] : memref<32x96xf32, #tpu.memory_space<vmem>>, vector<32x96xf32>
    %c0_3 = arith.constant 0 : index
    %c0_4 = arith.constant 0 : index
    %2 = vector.load %arg2[%c0_3, %c0_4] : memref<32x32xf32, #tpu.memory_space<vmem>>, vector<32x32xf32>
    %c0_5 = arith.constant 0 : index
    %c0_6 = arith.constant 0 : index
    %3 = vector.load %arg3[%c0_5, %c0_6] : memref<1x32xf32, #tpu.memory_space<vmem>>, vector<1x32xf32>
    %cst = arith.constant dense<0.000000e+00> : vector<16x96xf32>
    %4 = tpu.matmul %0, %1, %cst {dimension_numbers = #tpu.dot_dimension_numbers<[1], [0], [0], [1], [0, 0, 1, 1], [], []>, precision = #tpu.contract_precision<fp32>} : vector<16x32xf32>, vector<32x96xf32>, vector<16x96xf32> -> vector<16x96xf32>
    %5 = vector.extract_strided_slice %4 {offsets = [0, 0], sizes = [16, 8], strides = [1, 1]} : vector<16x96xf32> to vector<16x8xf32>
    %6 = vector.shape_cast %5 : vector<16x8xf32> to vector<2x8x8xf32>
    %7 = vector.extract_strided_slice %4 {offsets = [0, 8], sizes = [16, 8], strides = [1, 1]} : vector<16x96xf32> to vector<16x8xf32>
    %8 = vector.shape_cast %7 : vector<16x8xf32> to vector<2x8x8xf32>
    %9 = vector.extract_strided_slice %4 {offsets = [0, 16], sizes = [16, 8], strides = [1, 1]} : vector<16x96xf32> to vector<16x8xf32>
    %10 = vector.shape_cast %9 : vector<16x8xf32> to vector<2x8x8xf32>
    %11 = vector.extract_strided_slice %4 {offsets = [0, 24], sizes = [16, 8], strides = [1, 1]} : vector<16x96xf32> to vector<16x8xf32>
    %12 = vector.shape_cast %11 : vector<16x8xf32> to vector<2x8x8xf32>
    %13 = tpu.concatenate %6, %8, %10, %12 in 0 : vector<2x8x8xf32>, vector<2x8x8xf32>, vector<2x8x8xf32>, vector<2x8x8xf32> -> vector<8x8x8xf32>
    %14 = vector.extract_strided_slice %4 {offsets = [0, 32], sizes = [16, 8], strides = [1, 1]} : vector<16x96xf32> to vector<16x8xf32>
    %15 = vector.shape_cast %14 : vector<16x8xf32> to vector<2x8x8xf32>
    %16 = vector.extract_strided_slice %4 {offsets = [0, 40], sizes = [16, 8], strides = [1, 1]} : vector<16x96xf32> to vector<16x8xf32>
    %17 = vector.shape_cast %16 : vector<16x8xf32> to vector<2x8x8xf32>
    %18 = vector.extract_strided_slice %4 {offsets = [0, 48], sizes = [16, 8], strides = [1, 1]} : vector<16x96xf32> to vector<16x8xf32>
    %19 = vector.shape_cast %18 : vector<16x8xf32> to vector<2x8x8xf32>
    %20 = vector.extract_strided_slice %4 {offsets = [0, 56], sizes = [16, 8], strides = [1, 1]} : vector<16x96xf32> to vector<16x8xf32>
    %21 = vector.shape_cast %20 : vector<16x8xf32> to vector<2x8x8xf32>
    %22 = tpu.concatenate %15, %17, %19, %21 in 0 : vector<2x8x8xf32>, vector<2x8x8xf32>, vector<2x8x8xf32>, vector<2x8x8xf32> -> vector<8x8x8xf32>
    %23 = vector.extract_strided_slice %4 {offsets = [0, 64], sizes = [16, 8], strides = [1, 1]} : vector<16x96xf32> to vector<16x8xf32>
    %24 = vector.shape_cast %23 : vector<16x8xf32> to vector<2x8x8xf32>
    %25 = vector.extract_strided_slice %4 {offsets = [0, 72], sizes = [16, 8], strides = [1, 1]} : vector<16x96xf32> to vector<16x8xf32>
    %26 = vector.shape_cast %25 : vector<16x8xf32> to vector<2x8x8xf32>
    %27 = vector.extract_strided_slice %4 {offsets = [0, 80], sizes = [16, 8], strides = [1, 1]} : vector<16x96xf32> to vector<16x8xf32>
    %28 = vector.shape_cast %27 : vector<16x8xf32> to vector<2x8x8xf32>
    %29 = vector.extract_strided_slice %4 {offsets = [0, 88], sizes = [16, 8], strides = [1, 1]} : vector<16x96xf32> to vector<16x8xf32>
    %30 = vector.shape_cast %29 : vector<16x8xf32> to vector<2x8x8xf32>
    %31 = tpu.concatenate %24, %26, %28, %30 in 0 : vector<2x8x8xf32>, vector<2x8x8xf32>, vector<2x8x8xf32>, vector<2x8x8xf32> -> vector<8x8x8xf32>
    "tpu.trace_start"() <{level = 10 : i32, message = "bqd,bkd->bqk"}> : () -> ()
    %cst_7 = arith.constant dense<0.000000e+00> : vector<8x8x8xf32>
    %32 = tpu.matmul %13, %22, %cst_7 {dimension_numbers = #tpu.dot_dimension_numbers<[2], [2], [1], [1], [0, 0, 0, 1, 1, 1], [0], [0]>, precision = #tpu.contract_precision<fp32>} : vector<8x8x8xf32>, vector<8x8x8xf32>, vector<8x8x8xf32> -> vector<8x8x8xf32>
    "tpu.trace_stop"() : () -> ()
    %33 = tpu.iota {dimensions = array<i32: 0>} : vector<8x8xi32>
    %34 = tpu.iota {dimensions = array<i32: 1>} : vector<8x8xi32>
    %35 = arith.cmpi sle, %34, %33 : vector<8x8xi32>
    %36 = vector.shape_cast %35 : vector<8x8xi1> to vector<1x8x8xi1>
    %cst_8 = arith.constant 0xFF800000 : f32
    %37 = vector.shape_cast %36 : vector<1x8x8xi1> to vector<1x8x8xi1>
    %38 = vector.broadcast %37 : vector<1x8x8xi1> to vector<8x8x8xi1>
    %39 = vector.broadcast %cst_8 : f32 to vector<8x8x8xf32>
    %40 = arith.select %38, %32, %39 : vector<8x8x8xi1>, vector<8x8x8xf32>
    %cst_9 = arith.constant dense<0xFF800000> : vector<8x8xf32>
    %41 = vector.multi_reduction <maximumf>, %40, %cst_9 [2] : vector<8x8x8xf32> to vector<8x8xf32>
    %42 = vector.shape_cast %41 : vector<8x8xf32> to vector<8x8x1xf32>
    %43 = vector.broadcast %42 : vector<8x8x1xf32> to vector<8x8x8xf32>
    %44 = arith.subf %40, %43 : vector<8x8x8xf32>
    %45 = math.exp %44 : vector<8x8x8xf32>
    %cst_10 = arith.constant dense<0.000000e+00> : vector<8x8xf32>
    %46 = vector.multi_reduction <add>, %45, %cst_10 [2] : vector<8x8x8xf32> to vector<8x8xf32>
    %47 = vector.shape_cast %46 : vector<8x8xf32> to vector<8x8x1xf32>
    %48 = vector.broadcast %47 : vector<8x8x1xf32> to vector<8x8x8xf32>
    %49 = arith.divf %45, %48 : vector<8x8x8xf32>
    "tpu.trace_start"() <{level = 10 : i32, message = "bqk,bkd->bqd"}> : () -> ()
    %cst_11 = arith.constant dense<0.000000e+00> : vector<8x8x8xf32>
    %50 = tpu.matmul %49, %31, %cst_11 {dimension_numbers = #tpu.dot_dimension_numbers<[2], [1], [1], [2], [0, 0, 0, 1, 1, 2], [0], [0]>, precision = #tpu.contract_precision<fp32>} : vector<8x8x8xf32>, vector<8x8x8xf32>, vector<8x8x8xf32> -> vector<8x8x8xf32>
    "tpu.trace_stop"() : () -> ()
    %51 = vector.extract_strided_slice %50 {offsets = [0, 0, 0], sizes = [2, 8, 8], strides = [1, 1, 1]} : vector<8x8x8xf32> to vector<2x8x8xf32>
    %52 = vector.shape_cast %51 : vector<2x8x8xf32> to vector<16x8xf32>
    %53 = vector.extract_strided_slice %50 {offsets = [2, 0, 0], sizes = [2, 8, 8], strides = [1, 1, 1]} : vector<8x8x8xf32> to vector<2x8x8xf32>
    %54 = vector.shape_cast %53 : vector<2x8x8xf32> to vector<16x8xf32>
    %55 = vector.extract_strided_slice %50 {offsets = [4, 0, 0], sizes = [2, 8, 8], strides = [1, 1, 1]} : vector<8x8x8xf32> to vector<2x8x8xf32>
    %56 = vector.shape_cast %55 : vector<2x8x8xf32> to vector<16x8xf32>
    %57 = vector.extract_strided_slice %50 {offsets = [6, 0, 0], sizes = [2, 8, 8], strides = [1, 1, 1]} : vector<8x8x8xf32> to vector<2x8x8xf32>
    %58 = vector.shape_cast %57 : vector<2x8x8xf32> to vector<16x8xf32>
    %59 = tpu.concatenate %52, %54, %56, %58 in 1 : vector<16x8xf32>, vector<16x8xf32>, vector<16x8xf32>, vector<16x8xf32> -> vector<16x32xf32>
    %cst_12 = arith.constant dense<0.000000e+00> : vector<16x32xf32>
    %60 = tpu.matmul %59, %2, %cst_12 {dimension_numbers = #tpu.dot_dimension_numbers<[1], [0], [0], [1], [0, 0, 1, 1], [], []>, precision = #tpu.contract_precision<fp32>} : vector<16x32xf32>, vector<32x32xf32>, vector<16x32xf32> -> vector<16x32xf32>
    %61 = vector.broadcast %3 : vector<1x32xf32> to vector<16x32xf32>
    %62 = arith.addf %60, %61 : vector<16x32xf32>
    %c0_13 = arith.constant 0 : index
    %c0_14 = arith.constant 0 : index
    %63 = vector.load %arg4[%c0_13, %c0_14] : memref<16x32xf32, #tpu.memory_space<vmem>>, vector<16x32xf32>
    tpu.vector_store %arg4[%c0_13, %c0_14], %62 {strides = array<i32>} : memref<16x32xf32, #tpu.memory_space<vmem>>, vector<16x32xf32>,
    return
  }
}

</mosaic_0001>

<llo_original>
// kernel: multi_head_attention.1
$region0: #{multi_head_attention.1}
  #allocation0 [shape = 'u32[]', space=smem, size = 0x4, offset = 0x4, fixed_abs, tag = 'smem constant byte address 0x4 - core index']
  #allocation1 [shape = 'u32[144,128]{1,0:T(1,128)}', space=vmem, size = 0x12000, scoped, tag = 'internal scratch']
  %s0 = inlined_call_operand.hbm [shape: f32[16,32], index: 0, kind: input, shape index: {}]
  %s1 = inlined_call_operand.hbm [shape: f32[32,96], index: 1, kind: input, shape index: {}]
  %s2 = inlined_call_operand.hbm [shape: f32[32,32], index: 2, kind: input, shape index: {}]
  %s3 = inlined_call_operand.vmem [shape: f32[1,32], index: 3, kind: input, shape index: {}]
  %s4 = inlined_call_operand.hbm [shape: f32[16,32], index: 4, kind: output, shape index: {}]
  %s5 = sld [smem:[#allocation0]]
  $region38: #{multi_head_attention.1} parent=0
    _
  %s7 = ssub.s32 1, %s5
  %s8 = scalar_select 0, %s7, %s5
  $region1: #{multi_head_attention.1} parent=0
    #allocation2 [shape = 'u8[8192]{0}', space=vmem, size = 0x2000, scoped, tag = 'input window, operand 0, single buffered']
    #allocation3 [shape = 's32[1]{0}', space=sflag, size = 0x4, scoped, tag = 'scoped memory for multi_head_attention.1']
    #allocation4 [shape = 's32[1]{0}', space=sflag, size = 0x4, scoped, tag = 'scoped memory for multi_head_attention.1']
    #allocation5 [shape = 'u8[16384]{0}', space=vmem, size = 0x4000, scoped, tag = 'input window, operand 1, single buffered']
    #allocation6 [shape = 's32[1]{0}', space=sflag, size = 0x4, scoped, tag = 'scoped memory for multi_head_attention.1']
    #allocation7 [shape = 'u8[16384]{0}', space=vmem, size = 0x4000, scoped, tag = 'input window, operand 2, single buffered']
    #allocation8 [shape = 'u8[8192]{0}', space=vmem, size = 0x2000, scoped, tag = 'output window, operand 0, single buffered']
    %9 = vsyncpa [#allocation3], 0
    %10 = vsyncpa [#allocation6], 0
    %11 = vsyncpa [#allocation4], 0
    // Predicated region
    $region2: #{multi_head_attention.1} parent=1 // pred_check
      _
    $region3: #{multi_head_attention.1} parent=1 // pred_check_branch
      %13 = sbr.rel (0) target = $region5
    $region4: #{multi_head_attention.1} parent=1 // pred_region
      %s15 = ssub.s32 256, 256
      %16 = vsyncadd [#allocation3], %s15
      %s17 = sshll.u32 [#allocation2], 4
      %s18 = int_to_ptr.vmem [resolvable:$true] %s17
      %23 = dma.hbm_to_vmem [thread:$0]  %s0, 256, %s18, [#allocation3], 128, 128, 8
    $region5: #{multi_head_attention.1} parent=1 // pred_fallthru
      _
    // Predicated region
    $region6: #{multi_head_attention.1} parent=1 // pred_check
      _
    $region7: #{multi_head_attention.1} parent=1 // pred_check_branch
      %25 = sbr.rel (0) target = $region9
    $region8: #{multi_head_attention.1} parent=1 // pred_region
      %s27 = ssub.s32 512, 512
      %28 = vsyncadd [#allocation6], %s27
      %s29 = sshll.u32 [#allocation5], 4
      %s30 = int_to_ptr.vmem [resolvable:$true] %s29
      %35 = dma.hbm_to_vmem [thread:$0]  %s1, 512, %s30, [#allocation6], 128, 128, 8
    $region9: #{multi_head_attention.1} parent=1 // pred_fallthru
      _
    // Predicated region
    $region10: #{multi_head_attention.1} parent=1 // pred_check
      _
    $region11: #{multi_head_attention.1} parent=1 // pred_check_branch
      %37 = sbr.rel (0) target = $region13
    $region12: #{multi_head_attention.1} parent=1 // pred_region
      %s39 = ssub.s32 512, 512
      %40 = vsyncadd [#allocation6], %s39
      %s41 = sshll.u32 [#allocation7], 4
      %s42 = int_to_ptr.vmem [resolvable:$true] %s41
      %47 = dma.hbm_to_vmem [thread:$0]  %s2, 512, %s42, [#allocation6], 128, 128, 8
    $region13: #{multi_head_attention.1} parent=1 // pred_fallthru
      _
    // Predicated region
    $region14: #{multi_head_attention.1} parent=1 // pred_check
      _
    $region15: #{multi_head_attention.1} parent=1 // pred_check_branch
      %49 = sbr.rel (0) target = $region17
    $region16: #{multi_head_attention.1} parent=1 // pred_region
      _
    $region17: #{multi_head_attention.1} parent=1 // pred_fallthru
      _
    // Predicated region
    $region18: #{multi_head_attention.1} parent=1 // pred_check
      _
    $region19: #{multi_head_attention.1} parent=1 // pred_check_branch
      %51 = sbr.rel (0) target = $region21
    $region20: #{multi_head_attention.1} parent=1 // pred_region
      %52 = dma.done [#allocation3], 256
    $region21: #{multi_head_attention.1} parent=1 // pred_fallthru
      _
    // Predicated region
    $region22: #{multi_head_attention.1} parent=1 // pred_check
      _
    $region23: #{multi_head_attention.1} parent=1 // pred_check_branch
      %54 = sbr.rel (0) target = $region25
    $region24: #{multi_head_attention.1} parent=1 // pred_region
      %55 = dma.done [#allocation6], 512
    $region25: #{multi_head_attention.1} parent=1 // pred_fallthru
      _
    // Predicated region
    $region26: #{multi_head_attention.1} parent=1 // pred_check
      _
    $region27: #{multi_head_attention.1} parent=1 // pred_check_branch
      %57 = sbr.rel (0) target = $region29
    $region28: #{multi_head_attention.1} parent=1 // pred_region
      %58 = dma.done [#allocation6], 512
    $region29: #{multi_head_attention.1} parent=1 // pred_fallthru
      _
    %v59 = vld [vmem:[#allocation2] sm:$0xff]
    %v60 = vld [vmem:[#allocation2 + $0x8] sm:$0xff]
    %v61 = vld [vmem:[#allocation5] sm:$0xff]
    %v62 = vld [vmem:[#allocation5 + $0x8] sm:$0xff]
    %v63 = vld [vmem:[#allocation5 + $0x10] sm:$0xff]
    %v64 = vld [vmem:[#allocation5 + $0x18] sm:$0xff]
    %v65 = vld [vmem:[#allocation7] sm:$0xff]
    %v66 = vld [vmem:[#allocation7 + $0x8] sm:$0xff]
    %v67 = vld [vmem:[#allocation7 + $0x10] sm:$0xff]
    %v68 = vld [vmem:[#allocation7 + $0x18] sm:$0xff]
    %v69 = vld [vmem:[%s3] sm:$0x1]
    %vm70 = vcmask 261120
    %v72 = vsel %vm70, %v59, 0
    %v75 = vsel %vm70, %v60, 0
    %77 = vmatprep.subr.mxu0 0.0
    %78 = vmatpush1.msra.mxu0 0.0
    %79 = vmatprep.subr.mxu0 0.0
    %80 = vmatpush1.msra.mxu0 0.0
    %81 = vmatprep.subr.mxu0 0.0
    %82 = vmatpush1.msra.mxu0 0.0
    %83 = vmatprep.subr.mxu0 0.0
    %84 = vmatpush1.msra.mxu0 0.0
    %85 = vmatprep.subr.mxu0 0.0
    %86 = vmatpush1.msra.mxu0 0.0
    %87 = vmatprep.subr.mxu0 0.0
    %88 = vmatpush1.msra.mxu0 0.0
    %89 = vmatprep.subr.mxu0 0.0
    %90 = vmatpush1.msra.mxu0 0.0
    %91 = vmatprep.subr.mxu0 0.0
    %92 = vmatpush1.msra.mxu0 0.0
    %93 = vmatprep.subr.mxu0 0.0
    %94 = vmatpush1.msra.mxu0 0.0
    %95 = vmatprep.subr.mxu0 0.0
    %96 = vmatpush1.msra.mxu0 0.0
    %97 = vmatprep.subr.mxu0 0.0
    %98 = vmatpush1.msra.mxu0 0.0
    %99 = vmatprep.subr.mxu0 0.0
    %100 = vmatpush1.msra.mxu0 0.0
    %101 = vmatprep.subr.mxu0 0.0
    %v102 = vand.u32 %v64, 4294901760
    %103 = vmatpush1.msra.mxu0 %v102
    %104 = vmatprep.subr.mxu0 0.0
    %v105 = vand.u32 %v63, 4294901760
    %106 = vmatpush1.msra.mxu0 %v105
    %107 = vmatprep.subr.mxu0 0.0
    %v108 = vand.u32 %v62, 4294901760
    %109 = vmatpush1.msra.mxu0 %v108
    %110 = vmatprep.subr.mxu0 0.0
    %v111 = vand.u32 %v61, 4294901760
    %112 = vmatpush1.msra.mxu0 %v111
    %113 = vmatprep.subr.mxu0 0.0
    %114 = vmatpush2.msra.mxu0 0.0
    %115 = vmatprep.subr.mxu0 0.0
    %116 = vmatpush2.msra.mxu0 0.0
    %117 = vmatprep.subr.mxu0 0.0
    %118 = vmatpush2.msra.mxu0 0.0
    %119 = vmatprep.subr.mxu0 0.0
    %120 = vmatpush2.msra.mxu0 0.0
    %121 = vmatprep.subr.mxu0 0.0
    %122 = vmatpush2.msra.mxu0 0.0
    %123 = vmatprep.subr.mxu0 0.0
    %124 = vmatpush2.msra.mxu0 0.0
    %125 = vmatprep.subr.mxu0 0.0
    %126 = vmatpush2.msra.mxu0 0.0
    %127 = vmatprep.subr.mxu0 0.0
    %128 = vmatpush2.msra.mxu0 0.0
    %129 = vmatprep.subr.mxu0 0.0
    %130 = vmatpush2.msra.mxu0 0.0
    %131 = vmatprep.subr.mxu0 0.0
    %132 = vmatpush2.msra.mxu0 0.0
    %133 = vmatprep.subr.mxu0 0.0
    %134 = vmatpush2.msra.mxu0 0.0
    %135 = vmatprep.subr.mxu0 0.0
    %136 = vmatpush2.msra.mxu0 0.0
    %137 = vmatprep.subr.mxu0 0.0
    %138 = vmatpush2.msra.mxu0 0.0
    %139 = vmatprep.subr.mxu0 0.0
    %140 = vmatpush2.msra.mxu0 0.0
    %141 = vmatprep.subr.mxu0 0.0
    %142 = vmatpush2.msra.mxu0 0.0
    %143 = vmatprep.subr.mxu0 0.0
    %144 = vmatpush2.msra.mxu0 0.0
    %145 = vmatprep.mubr.f32.mxu0 0.0
    %v146 = vand.u32 %v72, 4294901760
    %v147 = vsub.f32 %v72, %v146
    %v148 = vand.u32 %v147, 4294901760
    %v149 = vsub.f32 %v147, %v148
    %v150 = vand.u32 %v149, 4294901760
    %151 = vmatmul.mubr.f32.gmra.mxu0 %v150
    %v152 = vpop.f32.mrf.mxu0
    %v153 = vadd.f32 0.0, %v152
    %v154 = vpop.f32.mrf.mxu0
    %155 = vmatprep.mubr.f32.mxu0 0.0
    %v156 = vand.u32 %v75, 4294901760
    %v157 = vsub.f32 %v75, %v156
    %v158 = vand.u32 %v157, 4294901760
    %v159 = vsub.f32 %v157, %v158
    %v160 = vand.u32 %v159, 4294901760
    %161 = vmatmul.mubr.f32.gmra.mxu0 %v160
    %v162 = vpop.f32.mrf.mxu0
    %v163 = vadd.f32 0.0, %v162
    %v164 = vpop.f32.mrf.mxu0
    %165 = vdwg.mxu0
    %166 = vmatprep.subr.mxu0 0.0
    %167 = vmatpush1.msra.mxu0 0.0
    %168 = vmatprep.subr.mxu0 0.0
    %169 = vmatpush1.msra.mxu0 0.0
    %170 = vmatprep.subr.mxu0 0.0
    %171 = vmatpush1.msra.mxu0 0.0
    %172 = vmatprep.subr.mxu0 0.0
    %173 = vmatpush1.msra.mxu0 0.0
    %174 = vmatprep.subr.mxu0 0.0
    %175 = vmatpush1.msra.mxu0 0.0
    %176 = vmatprep.subr.mxu0 0.0
    %177 = vmatpush1.msra.mxu0 0.0
    %178 = vmatprep.subr.mxu0 0.0
    %179 = vmatpush1.msra.mxu0 0.0
    %180 = vmatprep.subr.mxu0 0.0
    %181 = vmatpush1.msra.mxu0 0.0
    %182 = vmatprep.subr.mxu0 0.0
    %183 = vmatpush1.msra.mxu0 0.0
    %184 = vmatprep.subr.mxu0 0.0
    %185 = vmatpush1.msra.mxu0 0.0
    %186 = vmatprep.subr.mxu0 0.0
    %187 = vmatpush1.msra.mxu0 0.0
    %188 = vmatprep.subr.mxu0 0.0
    %189 = vmatpush1.msra.mxu0 0.0
    %190 = vmatprep.subr.mxu0 0.0
    %v191 = vand.u32 %v64, 4294901760
    %v192 = vsub.f32 %v64, %v191
    %v193 = vand.u32 %v192, 4294901760
    %v194 = vsub.f32 %v192, %v193
    %v195 = vand.u32 %v194, 4294901760
    %196 = vmatpush1.msra.mxu0 %v195
    %197 = vmatprep.subr.mxu0 0.0
    %v198 = vand.u32 %v63, 4294901760
    %v199 = vsub.f32 %v63, %v198
    %v200 = vand.u32 %v199, 4294901760
    %v201 = vsub.f32 %v199, %v200
    %v202 = vand.u32 %v201, 4294901760
    %203 = vmatpush1.msra.mxu0 %v202
    %204 = vmatprep.subr.mxu0 0.0
    %v205 = vand.u32 %v62, 4294901760
    %v206 = vsub.f32 %v62, %v205
    %v207 = vand.u32 %v206, 4294901760
    %v208 = vsub.f32 %v206, %v207
    %v209 = vand.u32 %v208, 4294901760
    %210 = vmatpush1.msra.mxu0 %v209
    %211 = vmatprep.subr.mxu0 0.0
    %v212 = vand.u32 %v61, 4294901760
    %v213 = vsub.f32 %v61, %v212
    %v214 = vand.u32 %v213, 4294901760
    %v215 = vsub.f32 %v213, %v214
    %v216 = vand.u32 %v215, 4294901760
    %217 = vmatpush1.msra.mxu0 %v216
    %218 = vmatprep.subr.mxu0 0.0
    %219 = vmatpush2.msra.mxu0 0.0
    %220 = vmatprep.subr.mxu0 0.0
    %221 = vmatpush2.msra.mxu0 0.0
    %222 = vmatprep.subr.mxu0 0.0
    %223 = vmatpush2.msra.mxu0 0.0
    %224 = vmatprep.subr.mxu0 0.0
    %225 = vmatpush2.msra.mxu0 0.0
    %226 = vmatprep.subr.mxu0 0.0
    %227 = vmatpush2.msra.mxu0 0.0
    %228 = vmatprep.subr.mxu0 0.0
    %229 = vmatpush2.msra.mxu0 0.0
    %230 = vmatprep.subr.mxu0 0.0
    %231 = vmatpush2.msra.mxu0 0.0
    %232 = vmatprep.subr.mxu0 0.0
    %233 = vmatpush2.msra.mxu0 0.0
    %234 = vmatprep.subr.mxu0 0.0
    %235 = vmatpush2.msra.mxu0 0.0
    %236 = vmatprep.subr.mxu0 0.0
    %237 = vmatpush2.msra.mxu0 0.0
    %238 = vmatprep.subr.mxu0 0.0
    %239 = vmatpush2.msra.mxu0 0.0
    %240 = vmatprep.subr.mxu0 0.0
    %241 = vmatpush2.msra.mxu0 0.0
    %242 = vmatprep.subr.mxu0 0.0
    %243 = vmatpush2.msra.mxu0 0.0
    %244 = vmatprep.subr.mxu0 0.0
    %245 = vmatpush2.msra.mxu0 0.0
    %246 = vmatprep.subr.mxu0 0.0
    %247 = vmatpush2.msra.mxu0 0.0
    %248 = vmatprep.subr.mxu0 0.0
    %249 = vmatpush2.msra.mxu0 0.0
    %250 = vmatprep.mubr.f32.mxu0 0.0
    %v251 = vand.u32 %v72, 4294901760
    %252 = vmatmul.mubr.f32.gmra.mxu0 %v251
    %v253 = vpop.f32.mrf.mxu0
    %v254 = vadd.f32 %v153, %v253
    %v255 = vpop.f32.mrf.mxu0
    %256 = vmatprep.mubr.f32.mxu0 0.0
    %v257 = vand.u32 %v75, 4294901760
    %258 = vmatmul.mubr.f32.gmra.mxu0 %v257
    %v259 = vpop.f32.mrf.mxu0
    %v260 = vadd.f32 %v163, %v259
    %v261 = vpop.f32.mrf.mxu0
    %262 = vdwg.mxu0
    %263 = vmatprep.subr.mxu0 0.0
    %264 = vmatpush1.msra.mxu0 0.0
    %265 = vmatprep.subr.mxu0 0.0
    %266 = vmatpush1.msra.mxu0 0.0
    %267 = vmatprep.subr.mxu0 0.0
    %268 = vmatpush1.msra.mxu0 0.0
    %269 = vmatprep.subr.mxu0 0.0
    %270 = vmatpush1.msra.mxu0 0.0
    %271 = vmatprep.subr.mxu0 0.0
    %272 = vmatpush1.msra.mxu0 0.0
    %273 = vmatprep.subr.mxu0 0.0
    %274 = vmatpush1.msra.mxu0 0.0
    %275 = vmatprep.subr.mxu0 0.0
    %276 = vmatpush1.msra.mxu0 0.0
    %277 = vmatprep.subr.mxu0 0.0
    %278 = vmatpush1.msra.mxu0 0.0
    %279 = vmatprep.subr.mxu0 0.0
    %280 = vmatpush1.msra.mxu0 0.0
    %281 = vmatprep.subr.mxu0 0.0
    %282 = vmatpush1.msra.mxu0 0.0
    %283 = vmatprep.subr.mxu0 0.0
    %284 = vmatpush1.msra.mxu0 0.0
    %285 = vmatprep.subr.mxu0 0.0
    %286 = vmatpush1.msra.mxu0 0.0
    %287 = vmatprep.subr.mxu0 0.0
    %v288 = vand.u32 %v64, 4294901760
    %v289 = vsub.f32 %v64, %v288
    %290 = vmatpush1.msra.mxu0 %v289
    %291 = vmatprep.subr.mxu0 0.0
    %v292 = vand.u32 %v63, 4294901760
    %v293 = vsub.f32 %v63, %v292
    %294 = vmatpush1.msra.mxu0 %v293
    %295 = vmatprep.subr.mxu0 0.0
    %v296 = vand.u32 %v62, 4294901760
    %v297 = vsub.f32 %v62, %v296
    %298 = vmatpush1.msra.mxu0 %v297
    %299 = vmatprep.subr.mxu0 0.0
    %v300 = vand.u32 %v61, 4294901760
    %v301 = vsub.f32 %v61, %v300
    %302 = vmatpush1.msra.mxu0 %v301
    %303 = vmatprep.subr.mxu0 0.0
    %304 = vmatpush2.msra.mxu0 0.0
    %305 = vmatprep.subr.mxu0 0.0
    %306 = vmatpush2.msra.mxu0 0.0
    %307 = vmatprep.subr.mxu0 0.0
    %308 = vmatpush2.msra.mxu0 0.0
    %309 = vmatprep.subr.mxu0 0.0
    %310 = vmatpush2.msra.mxu0 0.0
    %311 = vmatprep.subr.mxu0 0.0
    %312 = vmatpush2.msra.mxu0 0.0
    %313 = vmatprep.subr.mxu0 0.0
    %314 = vmatpush2.msra.mxu0 0.0
    %315 = vmatprep.subr.mxu0 0.0
    %316 = vmatpush2.msra.mxu0 0.0
    %317 = vmatprep.subr.mxu0 0.0
    %318 = vmatpush2.msra.mxu0 0.0
    %319 = vmatprep.subr.mxu0 0.0
    %320 = vmatpush2.msra.mxu0 0.0
    %321 = vmatprep.subr.mxu0 0.0
    %322 = vmatpush2.msra.mxu0 0.0
    %323 = vmatprep.subr.mxu0 0.0
    %324 = vmatpush2.msra.mxu0 0.0
    %325 = vmatprep.subr.mxu0 0.0
    %326 = vmatpush2.msra.mxu0 0.0
    %327 = vmatprep.subr.mxu0 0.0
    %328 = vmatpush2.msra.mxu0 0.0
    %329 = vmatprep.subr.mxu0 0.0
    %330 = vmatpush2.msra.mxu0 0.0
    %331 = vmatprep.subr.mxu0 0.0
    %332 = vmatpush2.msra.mxu0 0.0
    %333 = vmatprep.subr.mxu0 0.0
    %334 = vmatpush2.msra.mxu0 0.0
    %335 = vmatprep.mubr.f32.mxu0 0.0
    %v336 = vand.u32 %v72, 4294901760
    %v337 = vsub.f32 %v72, %v336
    %338 = vmatmul.mubr.f32.gmra.mxu0 %v337
    %v339 = vpop.f32.mrf.mxu0
    %v340 = vadd.f32 %v254, %v339
    %v341 = vpop.f32.mrf.mxu0
    %342 = vmatprep.mubr.f32.mxu0 0.0
    %v343 = vand.u32 %v75, 4294901760
    %v344 = vsub.f32 %v75, %v343
    %345 = vmatmul.mubr.f32.gmra.mxu0 %v344
    %v346 = vpop.f32.mrf.mxu0
    %v347 = vadd.f32 %v260, %v346
    %v348 = vpop.f32.mrf.mxu0
    %349 = vdwg.mxu0
    %350 = vmatprep.subr.mxu0 0.0
    %351 = vmatpush1.msra.mxu0 0.0
    %352 = vmatprep.subr.mxu0 0.0
    %353 = vmatpush1.msra.mxu0 0.0
    %354 = vmatprep.subr.mxu0 0.0
    %355 = vmatpush1.msra.mxu0 0.0
    %356 = vmatprep.subr.mxu0 0.0
    %357 = vmatpush1.msra.mxu0 0.0
    %358 = vmatprep.subr.mxu0 0.0
    %359 = vmatpush1.msra.mxu0 0.0
    %360 = vmatprep.subr.mxu0 0.0
    %361 = vmatpush1.msra.mxu0 0.0
    %362 = vmatprep.subr.mxu0 0.0
    %363 = vmatpush1.msra.mxu0 0.0
    %364 = vmatprep.subr.mxu0 0.0
    %365 = vmatpush1.msra.mxu0 0.0
    %366 = vmatprep.subr.mxu0 0.0
    %367 = vmatpush1.msra.mxu0 0.0
    %368 = vmatprep.subr.mxu0 0.0
    %369 = vmatpush1.msra.mxu0 0.0
    %370 = vmatprep.subr.mxu0 0.0
    %371 = vmatpush1.msra.mxu0 0.0
    %372 = vmatprep.subr.mxu0 0.0
    %373 = vmatpush1.msra.mxu0 0.0
    %374 = vmatprep.subr.mxu0 0.0
    %v375 = vand.u32 %v64, 4294901760
    %376 = vmatpush1.msra.mxu0 %v375
    %377 = vmatprep.subr.mxu0 0.0
    %v378 = vand.u32 %v63, 4294901760
    %379 = vmatpush1.msra.mxu0 %v378
    %380 = vmatprep.subr.mxu0 0.0
    %v381 = vand.u32 %v62, 4294901760
    %382 = vmatpush1.msra.mxu0 %v381
    %383 = vmatprep.subr.mxu0 0.0
    %v384 = vand.u32 %v61, 4294901760
    %385 = vmatpush1.msra.mxu0 %v384
    %386 = vmatprep.subr.mxu0 0.0
    %387 = vmatpush2.msra.mxu0 0.0
    %388 = vmatprep.subr.mxu0 0.0
    %389 = vmatpush2.msra.mxu0 0.0
    %390 = vmatprep.subr.mxu0 0.0
    %391 = vmatpush2.msra.mxu0 0.0
    %392 = vmatprep.subr.mxu0 0.0
    %393 = vmatpush2.msra.mxu0 0.0
    %394 = vmatprep.subr.mxu0 0.0
    %395 = vmatpush2.msra.mxu0 0.0
    %396 = vmatprep.subr.mxu0 0.0
    %397 = vmatpush2.msra.mxu0 0.0
    %398 = vmatprep.subr.mxu0 0.0
    %399 = vmatpush2.msra.mxu0 0.0
    %400 = vmatprep.subr.mxu0 0.0
    %401 = vmatpush2.msra.mxu0 0.0
    %402 = vmatprep.subr.mxu0 0.0
    %403 = vmatpush2.msra.mxu0 0.0
    %404 = vmatprep.subr.mxu0 0.0
    %405 = vmatpush2.msra.mxu0 0.0
    %406 = vmatprep.subr.mxu0 0.0
    %407 = vmatpush2.msra.mxu0 0.0
    %408 = vmatprep.subr.mxu0 0.0
    %409 = vmatpush2.msra.mxu0 0.0
    %410 = vmatprep.subr.mxu0 0.0
    %411 = vmatpush2.msra.mxu0 0.0
    %412 = vmatprep.subr.mxu0 0.0
    %413 = vmatpush2.msra.mxu0 0.0
    %414 = vmatprep.subr.mxu0 0.0
    %415 = vmatpush2.msra.mxu0 0.0
    %416 = vmatprep.subr.mxu0 0.0
    %417 = vmatpush2.msra.mxu0 0.0
    %418 = vmatprep.mubr.f32.mxu0 0.0
    %v419 = vand.u32 %v72, 4294901760
    %v420 = vsub.f32 %v72, %v419
    %v421 = vand.u32 %v420, 4294901760
    %422 = vmatmul.mubr.f32.gmra.mxu0 %v421
    %v423 = vpop.f32.mrf.mxu0
    %v424 = vadd.f32 %v340, %v423
    %v425 = vpop.f32.mrf.mxu0
    %426 = vmatprep.mubr.f32.mxu0 0.0
    %v427 = vand.u32 %v75, 4294901760
    %v428 = vsub.f32 %v75, %v427
    %v429 = vand.u32 %v428, 4294901760
    %430 = vmatmul.mubr.f32.gmra.mxu0 %v429
    %v431 = vpop.f32.mrf.mxu0
    %v432 = vadd.f32 %v347, %v431
    %v433 = vpop.f32.mrf.mxu0
    %434 = vdwg.mxu0
    %435 = vmatprep.subr.mxu0 0.0
    %436 = vmatpush1.msra.mxu0 0.0
    %437 = vmatprep.subr.mxu0 0.0
    %438 = vmatpush1.msra.mxu0 0.0
    %439 = vmatprep.subr.mxu0 0.0
    %440 = vmatpush1.msra.mxu0 0.0
    %441 = vmatprep.subr.mxu0 0.0
    %442 = vmatpush1.msra.mxu0 0.0
    %443 = vmatprep.subr.mxu0 0.0
    %444 = vmatpush1.msra.mxu0 0.0
    %445 = vmatprep.subr.mxu0 0.0
    %446 = vmatpush1.msra.mxu0 0.0
    %447 = vmatprep.subr.mxu0 0.0
    %448 = vmatpush1.msra.mxu0 0.0
    %449 = vmatprep.subr.mxu0 0.0
    %450 = vmatpush1.msra.mxu0 0.0
    %451 = vmatprep.subr.mxu0 0.0
    %452 = vmatpush1.msra.mxu0 0.0
    %453 = vmatprep.subr.mxu0 0.0
    %454 = vmatpush1.msra.mxu0 0.0
    %455 = vmatprep.subr.mxu0 0.0
    %456 = vmatpush1.msra.mxu0 0.0
    %457 = vmatprep.subr.mxu0 0.0
    %458 = vmatpush1.msra.mxu0 0.0
    %459 = vmatprep.subr.mxu0 0.0
    %v460 = vand.u32 %v64, 4294901760
    %v461 = vsub.f32 %v64, %v460
    %v462 = vand.u32 %v461, 4294901760
    %463 = vmatpush1.msra.mxu0 %v462
    %464 = vmatprep.subr.mxu0 0.0
    %v465 = vand.u32 %v63, 4294901760
    %v466 = vsub.f32 %v63, %v465
    %v467 = vand.u32 %v466, 4294901760
    %468 = vmatpush1.msra.mxu0 %v467
    %469 = vmatprep.subr.mxu0 0.0
    %v470 = vand.u32 %v62, 4294901760
    %v471 = vsub.f32 %v62, %v470
    %v472 = vand.u32 %v471, 4294901760
    %473 = vmatpush1.msra.mxu0 %v472
    %474 = vmatprep.subr.mxu0 0.0
    %v475 = vand.u32 %v61, 4294901760
    %v476 = vsub.f32 %v61, %v475
    %v477 = vand.u32 %v476, 4294901760
    %478 = vmatpush1.msra.mxu0 %v477
    %479 = vmatprep.subr.mxu0 0.0
    %480 = vmatpush2.msra.mxu0 0.0
    %481 = vmatprep.subr.mxu0 0.0
    %482 = vmatpush2.msra.mxu0 0.0
    %483 = vmatprep.subr.mxu0 0.0
    %484 = vmatpush2.msra.mxu0 0.0
    %485 = vmatprep.subr.mxu0 0.0
    %486 = vmatpush2.msra.mxu0 0.0
    %487 = vmatprep.subr.mxu0 0.0
    %488 = vmatpush2.msra.mxu0 0.0
    %489 = vmatprep.subr.mxu0 0.0
    %490 = vmatpush2.msra.mxu0 0.0
    %491 = vmatprep.subr.mxu0 0.0
    %492 = vmatpush2.msra.mxu0 0.0
    %493 = vmatprep.subr.mxu0 0.0
    %494 = vmatpush2.msra.mxu0 0.0
    %495 = vmatprep.subr.mxu0 0.0
    %496 = vmatpush2.msra.mxu0 0.0
    %497 = vmatprep.subr.mxu0 0.0
    %498 = vmatpush2.msra.mxu0 0.0
    %499 = vmatprep.subr.mxu0 0.0
    %500 = vmatpush2.msra.mxu0 0.0
    %501 = vmatprep.subr.mxu0 0.0
    %502 = vmatpush2.msra.mxu0 0.0
    %503 = vmatprep.subr.mxu0 0.0
    %504 = vmatpush2.msra.mxu0 0.0
    %505 = vmatprep.subr.mxu0 0.0
    %506 = vmatpush2.msra.mxu0 0.0
    %507 = vmatprep.subr.mxu0 0.0
    %508 = vmatpush2.msra.mxu0 0.0
    %509 = vmatprep.subr.mxu0 0.0
    %510 = vmatpush2.msra.mxu0 0.0
    %511 = vmatprep.mubr.f32.mxu0 0.0
    %v512 = vand.u32 %v72, 4294901760
    %513 = vmatmul.mubr.f32.gmra.mxu0 %v512
    %v514 = vpop.f32.mrf.mxu0
    %v515 = vadd.f32 %v424, %v514
    %v516 = vpop.f32.mrf.mxu0
    %517 = vmatprep.mubr.f32.mxu0 0.0
    %v518 = vand.u32 %v75, 4294901760
    %519 = vmatmul.mubr.f32.gmra.mxu0 %v518
    %v520 = vpop.f32.mrf.mxu0
    %v521 = vadd.f32 %v432, %v520
    %v522 = vpop.f32.mrf.mxu0
    %523 = vdwg.mxu0
    %524 = vmatprep.subr.mxu0 0.0
    %525 = vmatpush1.msra.mxu0 0.0
    %526 = vmatprep.subr.mxu0 0.0
    %527 = vmatpush1.msra.mxu0 0.0
    %528 = vmatprep.subr.mxu0 0.0
    %529 = vmatpush1.msra.mxu0 0.0
    %530 = vmatprep.subr.mxu0 0.0
    %531 = vmatpush1.msra.mxu0 0.0
    %532 = vmatprep.subr.mxu0 0.0
    %533 = vmatpush1.msra.mxu0 0.0
    %534 = vmatprep.subr.mxu0 0.0
    %535 = vmatpush1.msra.mxu0 0.0
    %536 = vmatprep.subr.mxu0 0.0
    %537 = vmatpush1.msra.mxu0 0.0
    %538 = vmatprep.subr.mxu0 0.0
    %539 = vmatpush1.msra.mxu0 0.0
    %540 = vmatprep.subr.mxu0 0.0
    %541 = vmatpush1.msra.mxu0 0.0
    %542 = vmatprep.subr.mxu0 0.0
    %543 = vmatpush1.msra.mxu0 0.0
    %544 = vmatprep.subr.mxu0 0.0
    %545 = vmatpush1.msra.mxu0 0.0
    %546 = vmatprep.subr.mxu0 0.0
    %547 = vmatpush1.msra.mxu0 0.0
    %548 = vmatprep.subr.mxu0 0.0
    %v549 = vand.u32 %v64, 4294901760
    %550 = vmatpush1.msra.mxu0 %v549
    %551 = vmatprep.subr.mxu0 0.0
    %v552 = vand.u32 %v63, 4294901760
    %553 = vmatpush1.msra.mxu0 %v552
    %554 = vmatprep.subr.mxu0 0.0
    %v555 = vand.u32 %v62, 4294901760
    %556 = vmatpush1.msra.mxu0 %v555
    %557 = vmatprep.subr.mxu0 0.0
    %v558 = vand.u32 %v61, 4294901760
    %559 = vmatpush1.msra.mxu0 %v558
    %560 = vmatprep.subr.mxu0 0.0
    %561 = vmatpush2.msra.mxu0 0.0
    %562 = vmatprep.subr.mxu0 0.0
    %563 = vmatpush2.msra.mxu0 0.0
    %564 = vmatprep.subr.mxu0 0.0
    %565 = vmatpush2.msra.mxu0 0.0
    %566 = vmatprep.subr.mxu0 0.0
    %567 = vmatpush2.msra.mxu0 0.0
    %568 = vmatprep.subr.mxu0 0.0
    %569 = vmatpush2.msra.mxu0 0.0
    %570 = vmatprep.subr.mxu0 0.0
    %571 = vmatpush2.msra.mxu0 0.0
    %572 = vmatprep.subr.mxu0 0.0
    %573 = vmatpush2.msra.mxu0 0.0
    %574 = vmatprep.subr.mxu0 0.0
    %575 = vmatpush2.msra.mxu0 0.0
    %576 = vmatprep.subr.mxu0 0.0
    %577 = vmatpush2.msra.mxu0 0.0
    %578 = vmatprep.subr.mxu0 0.0
    %579 = vmatpush2.msra.mxu0 0.0
    %580 = vmatprep.subr.mxu0 0.0
    %581 = vmatpush2.msra.mxu0 0.0
    %582 = vmatprep.subr.mxu0 0.0
    %583 = vmatpush2.msra.mxu0 0.0
    %584 = vmatprep.subr.mxu0 0.0
    %585 = vmatpush2.msra.mxu0 0.0
    %586 = vmatprep.subr.mxu0 0.0
    %587 = vmatpush2.msra.mxu0 0.0
    %588 = vmatprep.subr.mxu0 0.0
    %589 = vmatpush2.msra.mxu0 0.0
    %590 = vmatprep.subr.mxu0 0.0
    %591 = vmatpush2.msra.mxu0 0.0
    %592 = vmatprep.mubr.f32.mxu0 0.0
    %v593 = vand.u32 %v72, 4294901760
    %594 = vmatmul.mubr.f32.gmra.mxu0 %v593
    %v595 = vpop.f32.mrf.mxu0
    %v596 = vadd.f32 %v515, %v595
    %v597 = vpop.f32.mrf.mxu0
    %598 = vmatprep.mubr.f32.mxu0 0.0
    %v599 = vand.u32 %v75, 4294901760
    %600 = vmatmul.mubr.f32.gmra.mxu0 %v599
    %v601 = vpop.f32.mrf.mxu0
    %v602 = vadd.f32 %v521, %v601
    %v603 = vpop.f32.mrf.mxu0
    %604 = vdwg.mxu0
    %607 = vrot.lane.b32.xlu0 %v596, 120
    %v608 = vpop.permute.xlu0 %607
    %609 = vrot.lane.b32.xlu0 %v602, 120
    %v610 = vpop.permute.xlu0 %609
    %611 = vrot.lane.b32.xlu0 %v596, 112
    %v612 = vpop.permute.xlu0 %611
    %613 = vrot.lane.b32.xlu0 %v602, 112
    %v614 = vpop.permute.xlu0 %613
    %615 = vrot.lane.b32.xlu0 %v596, 104
    %v616 = vpop.permute.xlu0 %615
    %617 = vrot.lane.b32.xlu0 %v602, 104
    %v618 = vpop.permute.xlu0 %617
    %619 = vrot.lane.b32.xlu0 %v596, 96
    %v620 = vpop.permute.xlu0 %619
    %vm621 = vcmask 64512
    %v622 = vsel %vm621, %v596, 0
    %v624 = vsel %vm621, %v620, 0
    %626 = vmatprep.subr.mxu0 0.0
    %627 = vmatpush1.xpose.msra.mxu0 0.0
    %628 = vmatprep.subr.mxu0 0.0
    %629 = vmatpush1.xpose.msra.mxu0 0.0
    %630 = vmatprep.subr.mxu0 0.0
    %631 = vmatpush1.xpose.msra.mxu0 0.0
    %632 = vmatprep.subr.mxu0 0.0
    %633 = vmatpush1.xpose.msra.mxu0 0.0
    %634 = vmatprep.subr.mxu0 0.0
    %635 = vmatpush1.xpose.msra.mxu0 0.0
    %636 = vmatprep.subr.mxu0 0.0
    %637 = vmatpush1.xpose.msra.mxu0 0.0
    %638 = vmatprep.subr.mxu0 0.0
    %639 = vmatpush1.xpose.msra.mxu0 0.0
    %640 = vmatprep.subr.mxu0 0.0
    %641 = vmatpush1.xpose.msra.mxu0 0.0
    %642 = vmatprep.subr.mxu0 0.0
    %643 = vmatpush1.xpose.msra.mxu0 0.0
    %644 = vmatprep.subr.mxu0 0.0
    %645 = vmatpush1.xpose.msra.mxu0 0.0
    %646 = vmatprep.subr.mxu0 0.0
    %647 = vmatpush1.xpose.msra.mxu0 0.0
    %648 = vmatprep.subr.mxu0 0.0
    %649 = vmatpush1.xpose.msra.mxu0 0.0
    %650 = vmatprep.subr.mxu0 0.0
    %651 = vmatpush1.xpose.msra.mxu0 0.0
    %652 = vmatprep.subr.mxu0 0.0
    %653 = vmatpush1.xpose.msra.mxu0 0.0
    %654 = vmatprep.subr.mxu0 0.0
    %655 = vmatpush1.xpose.msra.mxu0 0.0
    %656 = vmatprep.subr.mxu0 0.0
    %v657 = vand.u32 %v624, 4294901760
    %658 = vmatpush1.xpose.msra.mxu0 %v657
    %659 = vmatprep.subr.mxu0 0.0
    %660 = vmatpush2.xpose.msra.mxu0 0.0
    %661 = vmatprep.subr.mxu0 0.0
    %662 = vmatpush2.xpose.msra.mxu0 0.0
    %663 = vmatprep.subr.mxu0 0.0
    %664 = vmatpush2.xpose.msra.mxu0 0.0
    %665 = vmatprep.subr.mxu0 0.0
    %666 = vmatpush2.xpose.msra.mxu0 0.0
    %667 = vmatprep.subr.mxu0 0.0
    %668 = vmatpush2.xpose.msra.mxu0 0.0
    %669 = vmatprep.subr.mxu0 0.0
    %670 = vmatpush2.xpose.msra.mxu0 0.0
    %671 = vmatprep.subr.mxu0 0.0
    %672 = vmatpush2.xpose.msra.mxu0 0.0
    %673 = vmatprep.subr.mxu0 0.0
    %674 = vmatpush2.xpose.msra.mxu0 0.0
    %675 = vmatprep.subr.mxu0 0.0
    %676 = vmatpush2.xpose.msra.mxu0 0.0
    %677 = vmatprep.subr.mxu0 0.0
    %678 = vmatpush2.xpose.msra.mxu0 0.0
    %679 = vmatprep.subr.mxu0 0.0
    %680 = vmatpush2.xpose.msra.mxu0 0.0
    %681 = vmatprep.subr.mxu0 0.0
    %682 = vmatpush2.xpose.msra.mxu0 0.0
    %683 = vmatprep.subr.mxu0 0.0
    %684 = vmatpush2.xpose.msra.mxu0 0.0
    %685 = vmatprep.subr.mxu0 0.0
    %686 = vmatpush2.xpose.msra.mxu0 0.0
    %687 = vmatprep.subr.mxu0 0.0
    %688 = vmatpush2.xpose.msra.mxu0 0.0
    %689 = vmatprep.subr.mxu0 0.0
    %690 = vmatpush2.xpose.msra.mxu0 0.0
    %691 = vmatprep.mubr.f32.mxu0 0.0
    %v692 = vand.u32 %v622, 4294901760
    %v693 = vsub.f32 %v622, %v692
    %v694 = vand.u32 %v693, 4294901760
    %v695 = vsub.f32 %v693, %v694
    %v696 = vand.u32 %v695, 4294901760
    %697 = vmatmul.mubr.f32.gmra.mxu0 %v696
    %v698 = vpop.f32.mrf.mxu0
    %v699 = vadd.f32 0.0, %v698
    %v700 = vpop.f32.mrf.mxu0
    %701 = vdwg.mxu0
    %702 = vmatprep.subr.mxu0 0.0
    %703 = vmatpush1.xpose.msra.mxu0 0.0
    %704 = vmatprep.subr.mxu0 0.0
    %705 = vmatpush1.xpose.msra.mxu0 0.0
    %706 = vmatprep.subr.mxu0 0.0
    %707 = vmatpush1.xpose.msra.mxu0 0.0
    %708 = vmatprep.subr.mxu0 0.0
    %709 = vmatpush1.xpose.msra.mxu0 0.0
    %710 = vmatprep.subr.mxu0 0.0
    %711 = vmatpush1.xpose.msra.mxu0 0.0
    %712 = vmatprep.subr.mxu0 0.0
    %713 = vmatpush1.xpose.msra.mxu0 0.0
    %714 = vmatprep.subr.mxu0 0.0
    %715 = vmatpush1.xpose.msra.mxu0 0.0
    %716 = vmatprep.subr.mxu0 0.0
    %717 = vmatpush1.xpose.msra.mxu0 0.0
    %718 = vmatprep.subr.mxu0 0.0
    %719 = vmatpush1.xpose.msra.mxu0 0.0
    %720 = vmatprep.subr.mxu0 0.0
    %721 = vmatpush1.xpose.msra.mxu0 0.0
    %722 = vmatprep.subr.mxu0 0.0
    %723 = vmatpush1.xpose.msra.mxu0 0.0
    %724 = vmatprep.subr.mxu0 0.0
    %725 = vmatpush1.xpose.msra.mxu0 0.0
    %726 = vmatprep.subr.mxu0 0.0
    %727 = vmatpush1.xpose.msra.mxu0 0.0
    %728 = vmatprep.subr.mxu0 0.0
    %729 = vmatpush1.xpose.msra.mxu0 0.0
    %730 = vmatprep.subr.mxu0 0.0
    %731 = vmatpush1.xpose.msra.mxu0 0.0
    %732 = vmatprep.subr.mxu0 0.0
    %v733 = vand.u32 %v624, 4294901760
    %v734 = vsub.f32 %v624, %v733
    %v735 = vand.u32 %v734, 4294901760
    %v736 = vsub.f32 %v734, %v735
    %v737 = vand.u32 %v736, 4294901760
    %738 = vmatpush1.xpose.msra.mxu0 %v737
    %739 = vmatprep.subr.mxu0 0.0
    %740 = vmatpush2.xpose.msra.mxu0 0.0
    %741 = vmatprep.subr.mxu0 0.0
    %742 = vmatpush2.xpose.msra.mxu0 0.0
    %743 = vmatprep.subr.mxu0 0.0
    %744 = vmatpush2.xpose.msra.mxu0 0.0
    %745 = vmatprep.subr.mxu0 0.0
    %746 = vmatpush2.xpose.msra.mxu0 0.0
    %747 = vmatprep.subr.mxu0 0.0
    %748 = vmatpush2.xpose.msra.mxu0 0.0
    %749 = vmatprep.subr.mxu0 0.0
    %750 = vmatpush2.xpose.msra.mxu0 0.0
    %751 = vmatprep.subr.mxu0 0.0
    %752 = vmatpush2.xpose.msra.mxu0 0.0
    %753 = vmatprep.subr.mxu0 0.0
    %754 = vmatpush2.xpose.msra.mxu0 0.0
    %755 = vmatprep.subr.mxu0 0.0
    %756 = vmatpush2.xpose.msra.mxu0 0.0
    %757 = vmatprep.subr.mxu0 0.0
    %758 = vmatpush2.xpose.msra.mxu0 0.0
    %759 = vmatprep.subr.mxu0 0.0
    %760 = vmatpush2.xpose.msra.mxu0 0.0
    %761 = vmatprep.subr.mxu0 0.0
    %762 = vmatpush2.xpose.msra.mxu0 0.0
    %763 = vmatprep.subr.mxu0 0.0
    %764 = vmatpush2.xpose.msra.mxu0 0.0
    %765 = vmatprep.subr.mxu0 0.0
    %766 = vmatpush2.xpose.msra.mxu0 0.0
    %767 = vmatprep.subr.mxu0 0.0
    %768 = vmatpush2.xpose.msra.mxu0 0.0
    %769 = vmatprep.subr.mxu0 0.0
    %770 = vmatpush2.xpose.msra.mxu0 0.0
    %771 = vmatprep.mubr.f32.mxu0 0.0
    %v772 = vand.u32 %v622, 4294901760
    %773 = vmatmul.mubr.f32.gmra.mxu0 %v772
    %v774 = vpop.f32.mrf.mxu0
    %v775 = vadd.f32 %v699, %v774
    %v776 = vpop.f32.mrf.mxu0
    %777 = vdwg.mxu0
    %778 = vmatprep.subr.mxu0 0.0
    %779 = vmatpush1.xpose.msra.mxu0 0.0
    %780 = vmatprep.subr.mxu0 0.0
    %781 = vmatpush1.xpose.msra.mxu0 0.0
    %782 = vmatprep.subr.mxu0 0.0
    %783 = vmatpush1.xpose.msra.mxu0 0.0
    %784 = vmatprep.subr.mxu0 0.0
    %785 = vmatpush1.xpose.msra.mxu0 0.0
    %786 = vmatprep.subr.mxu0 0.0
    %787 = vmatpush1.xpose.msra.mxu0 0.0
    %788 = vmatprep.subr.mxu0 0.0
    %789 = vmatpush1.xpose.msra.mxu0 0.0
    %790 = vmatprep.subr.mxu0 0.0
    %791 = vmatpush1.xpose.msra.mxu0 0.0
    %792 = vmatprep.subr.mxu0 0.0
    %793 = vmatpush1.xpose.msra.mxu0 0.0
    %794 = vmatprep.subr.mxu0 0.0
    %795 = vmatpush1.xpose.msra.mxu0 0.0
    %796 = vmatprep.subr.mxu0 0.0
    %797 = vmatpush1.xpose.msra.mxu0 0.0
    %798 = vmatprep.subr.mxu0 0.0
    %799 = vmatpush1.xpose.msra.mxu0 0.0
    %800 = vmatprep.subr.mxu0 0.0
    %801 = vmatpush1.xpose.msra.mxu0 0.0
    %802 = vmatprep.subr.mxu0 0.0
    %803 = vmatpush1.xpose.msra.mxu0 0.0
    %804 = vmatprep.subr.mxu0 0.0
    %805 = vmatpush1.xpose.msra.mxu0 0.0
    %806 = vmatprep.subr.mxu0 0.0
    %807 = vmatpush1.xpose.msra.mxu0 0.0
    %808 = vmatprep.subr.mxu0 0.0
    %v809 = vand.u32 %v624, 4294901760
    %v810 = vsub.f32 %v624, %v809
    %811 = vmatpush1.xpose.msra.mxu0 %v810
    %812 = vmatprep.subr.mxu0 0.0
    %813 = vmatpush2.xpose.msra.mxu0 0.0
    %814 = vmatprep.subr.mxu0 0.0
    %815 = vmatpush2.xpose.msra.mxu0 0.0
    %816 = vmatprep.subr.mxu0 0.0
    %817 = vmatpush2.xpose.msra.mxu0 0.0
    %818 = vmatprep.subr.mxu0 0.0
    %819 = vmatpush2.xpose.msra.mxu0 0.0
    %820 = vmatprep.subr.mxu0 0.0
    %821 = vmatpush2.xpose.msra.mxu0 0.0
    %822 = vmatprep.subr.mxu0 0.0
    %823 = vmatpush2.xpose.msra.mxu0 0.0
    %824 = vmatprep.subr.mxu0 0.0
    %825 = vmatpush2.xpose.msra.mxu0 0.0
    %826 = vmatprep.subr.mxu0 0.0
    %827 = vmatpush2.xpose.msra.mxu0 0.0
    %828 = vmatprep.subr.mxu0 0.0
    %829 = vmatpush2.xpose.msra.mxu0 0.0
    %830 = vmatprep.subr.mxu0 0.0
    %831 = vmatpush2.xpose.msra.mxu0 0.0
    %832 = vmatprep.subr.mxu0 0.0
    %833 = vmatpush2.xpose.msra.mxu0 0.0
    %834 = vmatprep.subr.mxu0 0.0
    %835 = vmatpush2.xpose.msra.mxu0 0.0
    %836 = vmatprep.subr.mxu0 0.0
    %837 = vmatpush2.xpose.msra.mxu0 0.0
    %838 = vmatprep.subr.mxu0 0.0
    %839 = vmatpush2.xpose.msra.mxu0 0.0
    %840 = vmatprep.subr.mxu0 0.0
    %841 = vmatpush2.xpose.msra.mxu0 0.0
    %842 = vmatprep.subr.mxu0 0.0
    %843 = vmatpush2.xpose.msra.mxu0 0.0
    %844 = vmatprep.mubr.f32.mxu0 0.0
    %v845 = vand.u32 %v622, 4294901760
    %v846 = vsub.f32 %v622, %v845
    %847 = vmatmul.mubr.f32.gmra.mxu0 %v846
    %v848 = vpop.f32.mrf.mxu0
    %v849 = vadd.f32 %v775, %v848
    %v850 = vpop.f32.mrf.mxu0
    %851 = vdwg.mxu0
    %852 = vmatprep.subr.mxu0 0.0
    %853 = vmatpush1.xpose.msra.mxu0 0.0
    %854 = vmatprep.subr.mxu0 0.0
    %855 = vmatpush1.xpose.msra.mxu0 0.0
    %856 = vmatprep.subr.mxu0 0.0
    %857 = vmatpush1.xpose.msra.mxu0 0.0
    %858 = vmatprep.subr.mxu0 0.0
    %859 = vmatpush1.xpose.msra.mxu0 0.0
    %860 = vmatprep.subr.mxu0 0.0
    %861 = vmatpush1.xpose.msra.mxu0 0.0
    %862 = vmatprep.subr.mxu0 0.0
    %863 = vmatpush1.xpose.msra.mxu0 0.0
    %864 = vmatprep.subr.mxu0 0.0
    %865 = vmatpush1.xpose.msra.mxu0 0.0
    %866 = vmatprep.subr.mxu0 0.0
    %867 = vmatpush1.xpose.msra.mxu0 0.0
    %868 = vmatprep.subr.mxu0 0.0
    %869 = vmatpush1.xpose.msra.mxu0 0.0
    %870 = vmatprep.subr.mxu0 0.0
    %871 = vmatpush1.xpose.msra.mxu0 0.0
    %872 = vmatprep.subr.mxu0 0.0
    %873 = vmatpush1.xpose.msra.mxu0 0.0
    %874 = vmatprep.subr.mxu0 0.0
    %875 = vmatpush1.xpose.msra.mxu0 0.0
    %876 = vmatprep.subr.mxu0 0.0
    %877 = vmatpush1.xpose.msra.mxu0 0.0
    %878 = vmatprep.subr.mxu0 0.0
    %879 = vmatpush1.xpose.msra.mxu0 0.0
    %880 = vmatprep.subr.mxu0 0.0
    %881 = vmatpush1.xpose.msra.mxu0 0.0
    %882 = vmatprep.subr.mxu0 0.0
    %v883 = vand.u32 %v624, 4294901760
    %884 = vmatpush1.xpose.msra.mxu0 %v883
    %885 = vmatprep.subr.mxu0 0.0
    %886 = vmatpush2.xpose.msra.mxu0 0.0
    %887 = vmatprep.subr.mxu0 0.0
    %888 = vmatpush2.xpose.msra.mxu0 0.0
    %889 = vmatprep.subr.mxu0 0.0
    %890 = vmatpush2.xpose.msra.mxu0 0.0
    %891 = vmatprep.subr.mxu0 0.0
    %892 = vmatpush2.xpose.msra.mxu0 0.0
    %893 = vmatprep.subr.mxu0 0.0
    %894 = vmatpush2.xpose.msra.mxu0 0.0
    %895 = vmatprep.subr.mxu0 0.0
    %896 = vmatpush2.xpose.msra.mxu0 0.0
    %897 = vmatprep.subr.mxu0 0.0
    %898 = vmatpush2.xpose.msra.mxu0 0.0
    %899 = vmatprep.subr.mxu0 0.0
    %900 = vmatpush2.xpose.msra.mxu0 0.0
    %901 = vmatprep.subr.mxu0 0.0
    %902 = vmatpush2.xpose.msra.mxu0 0.0
    %903 = vmatprep.subr.mxu0 0.0
    %904 = vmatpush2.xpose.msra.mxu0 0.0
    %905 = vmatprep.subr.mxu0 0.0
    %906 = vmatpush2.xpose.msra.mxu0 0.0
    %907 = vmatprep.subr.mxu0 0.0
    %908 = vmatpush2.xpose.msra.mxu0 0.0
    %909 = vmatprep.subr.mxu0 0.0
    %910 = vmatpush2.xpose.msra.mxu0 0.0
    %911 = vmatprep.subr.mxu0 0.0
    %912 = vmatpush2.xpose.msra.mxu0 0.0
    %913 = vmatprep.subr.mxu0 0.0
    %914 = vmatpush2.xpose.msra.mxu0 0.0
    %915 = vmatprep.subr.mxu0 0.0
    %916 = vmatpush2.xpose.msra.mxu0 0.0
    %917 = vmatprep.mubr.f32.mxu0 0.0
    %v918 = vand.u32 %v622, 4294901760
    %v919 = vsub.f32 %v622, %v918
    %v920 = vand.u32 %v919, 4294901760
    %921 = vmatmul.mubr.f32.gmra.mxu0 %v920
    %v922 = vpop.f32.mrf.mxu0
    %v923 = vadd.f32 %v849, %v922
    %v924 = vpop.f32.mrf.mxu0
    %925 = vdwg.mxu0
    %926 = vmatprep.subr.mxu0 0.0
    %927 = vmatpush1.xpose.msra.mxu0 0.0
    %928 = vmatprep.subr.mxu0 0.0
    %929 = vmatpush1.xpose.msra.mxu0 0.0
    %930 = vmatprep.subr.mxu0 0.0
    %931 = vmatpush1.xpose.msra.mxu0 0.0
    %932 = vmatprep.subr.mxu0 0.0
    %933 = vmatpush1.xpose.msra.mxu0 0.0
    %934 = vmatprep.subr.mxu0 0.0
    %935 = vmatpush1.xpose.msra.mxu0 0.0
    %936 = vmatprep.subr.mxu0 0.0
    %937 = vmatpush1.xpose.msra.mxu0 0.0
    %938 = vmatprep.subr.mxu0 0.0
    %939 = vmatpush1.xpose.msra.mxu0 0.0
    %940 = vmatprep.subr.mxu0 0.0
    %941 = vmatpush1.xpose.msra.mxu0 0.0
    %942 = vmatprep.subr.mxu0 0.0
    %943 = vmatpush1.xpose.msra.mxu0 0.0
    %944 = vmatprep.subr.mxu0 0.0
    %945 = vmatpush1.xpose.msra.mxu0 0.0
    %946 = vmatprep.subr.mxu0 0.0
    %947 = vmatpush1.xpose.msra.mxu0 0.0
    %948 = vmatprep.subr.mxu0 0.0
    %949 = vmatpush1.xpose.msra.mxu0 0.0
    %950 = vmatprep.subr.mxu0 0.0
    %951 = vmatpush1.xpose.msra.mxu0 0.0
    %952 = vmatprep.subr.mxu0 0.0
    %953 = vmatpush1.xpose.msra.mxu0 0.0
    %954 = vmatprep.subr.mxu0 0.0
    %955 = vmatpush1.xpose.msra.mxu0 0.0
    %956 = vmatprep.subr.mxu0 0.0
    %v957 = vand.u32 %v624, 4294901760
    %v958 = vsub.f32 %v624, %v957
    %v959 = vand.u32 %v958, 4294901760
    %960 = vmatpush1.xpose.msra.mxu0 %v959
    %961 = vmatprep.subr.mxu0 0.0
    %962 = vmatpush2.xpose.msra.mxu0 0.0
    %963 = vmatprep.subr.mxu0 0.0
    %964 = vmatpush2.xpose.msra.mxu0 0.0
    %965 = vmatprep.subr.mxu0 0.0
    %966 = vmatpush2.xpose.msra.mxu0 0.0
    %967 = vmatprep.subr.mxu0 0.0
    %968 = vmatpush2.xpose.msra.mxu0 0.0
    %969 = vmatprep.subr.mxu0 0.0
    %970 = vmatpush2.xpose.msra.mxu0 0.0
    %971 = vmatprep.subr.mxu0 0.0
    %972 = vmatpush2.xpose.msra.mxu0 0.0
    %973 = vmatprep.subr.mxu0 0.0
    %974 = vmatpush2.xpose.msra.mxu0 0.0
    %975 = vmatprep.subr.mxu0 0.0
    %976 = vmatpush2.xpose.msra.mxu0 0.0
    %977 = vmatprep.subr.mxu0 0.0
    %978 = vmatpush2.xpose.msra.mxu0 0.0
    %979 = vmatprep.subr.mxu0 0.0
    %980 = vmatpush2.xpose.msra.mxu0 0.0
    %981 = vmatprep.subr.mxu0 0.0
    %982 = vmatpush2.xpose.msra.mxu0 0.0
    %983 = vmatprep.subr.mxu0 0.0
    %984 = vmatpush2.xpose.msra.mxu0 0.0
    %985 = vmatprep.subr.mxu0 0.0
    %986 = vmatpush2.xpose.msra.mxu0 0.0
    %987 = vmatprep.subr.mxu0 0.0
    %988 = vmatpush2.xpose.msra.mxu0 0.0
    %989 = vmatprep.subr.mxu0 0.0
    %990 = vmatpush2.xpose.msra.mxu0 0.0
    %991 = vmatprep.subr.mxu0 0.0
    %992 = vmatpush2.xpose.msra.mxu0 0.0
    %993 = vmatprep.mubr.f32.mxu0 0.0
    %v994 = vand.u32 %v622, 4294901760
    %995 = vmatmul.mubr.f32.gmra.mxu0 %v994
    %v996 = vpop.f32.mrf.mxu0
    %v997 = vadd.f32 %v923, %v996
    %v998 = vpop.f32.mrf.mxu0
    %999 = vdwg.mxu0
    %1000 = vmatprep.subr.mxu0 0.0
    %1001 = vmatpush1.xpose.msra.mxu0 0.0
    %1002 = vmatprep.subr.mxu0 0.0
    %1003 = vmatpush1.xpose.msra.mxu0 0.0
    %1004 = vmatprep.subr.mxu0 0.0
    %1005 = vmatpush1.xpose.msra.mxu0 0.0
    %1006 = vmatprep.subr.mxu0 0.0
    %1007 = vmatpush1.xpose.msra.mxu0 0.0
    %1008 = vmatprep.subr.mxu0 0.0
    %1009 = vmatpush1.xpose.msra.mxu0 0.0
    %1010 = vmatprep.subr.mxu0 0.0
    %1011 = vmatpush1.xpose.msra.mxu0 0.0
    %1012 = vmatprep.subr.mxu0 0.0
    %1013 = vmatpush1.xpose.msra.mxu0 0.0
    %1014 = vmatprep.subr.mxu0 0.0
    %1015 = vmatpush1.xpose.msra.mxu0 0.0
    %1016 = vmatprep.subr.mxu0 0.0
    %1017 = vmatpush1.xpose.msra.mxu0 0.0
    %1018 = vmatprep.subr.mxu0 0.0
    %1019 = vmatpush1.xpose.msra.mxu0 0.0
    %1020 = vmatprep.subr.mxu0 0.0
    %1021 = vmatpush1.xpose.msra.mxu0 0.0
    %1022 = vmatprep.subr.mxu0 0.0
    %1023 = vmatpush1.xpose.msra.mxu0 0.0
    %1024 = vmatprep.subr.mxu0 0.0
    %1025 = vmatpush1.xpose.msra.mxu0 0.0
    %1026 = vmatprep.subr.mxu0 0.0
    %1027 = vmatpush1.xpose.msra.mxu0 0.0
    %1028 = vmatprep.subr.mxu0 0.0
    %1029 = vmatpush1.xpose.msra.mxu0 0.0
    %1030 = vmatprep.subr.mxu0 0.0
    %v1031 = vand.u32 %v624, 4294901760
    %1032 = vmatpush1.xpose.msra.mxu0 %v1031
    %1033 = vmatprep.subr.mxu0 0.0
    %1034 = vmatpush2.xpose.msra.mxu0 0.0
    %1035 = vmatprep.subr.mxu0 0.0
    %1036 = vmatpush2.xpose.msra.mxu0 0.0
    %1037 = vmatprep.subr.mxu0 0.0
    %1038 = vmatpush2.xpose.msra.mxu0 0.0
    %1039 = vmatprep.subr.mxu0 0.0
    %1040 = vmatpush2.xpose.msra.mxu0 0.0
    %1041 = vmatprep.subr.mxu0 0.0
    %1042 = vmatpush2.xpose.msra.mxu0 0.0
    %1043 = vmatprep.subr.mxu0 0.0
    %1044 = vmatpush2.xpose.msra.mxu0 0.0
    %1045 = vmatprep.subr.mxu0 0.0
    %1046 = vmatpush2.xpose.msra.mxu0 0.0
    %1047 = vmatprep.subr.mxu0 0.0
    %1048 = vmatpush2.xpose.msra.mxu0 0.0
    %1049 = vmatprep.subr.mxu0 0.0
    %1050 = vmatpush2.xpose.msra.mxu0 0.0
    %1051 = vmatprep.subr.mxu0 0.0
    %1052 = vmatpush2.xpose.msra.mxu0 0.0
    %1053 = vmatprep.subr.mxu0 0.0
    %1054 = vmatpush2.xpose.msra.mxu0 0.0
    %1055 = vmatprep.subr.mxu0 0.0
    %1056 = vmatpush2.xpose.msra.mxu0 0.0
    %1057 = vmatprep.subr.mxu0 0.0
    %1058 = vmatpush2.xpose.msra.mxu0 0.0
    %1059 = vmatprep.subr.mxu0 0.0
    %1060 = vmatpush2.xpose.msra.mxu0 0.0
    %1061 = vmatprep.subr.mxu0 0.0
    %1062 = vmatpush2.xpose.msra.mxu0 0.0
    %1063 = vmatprep.subr.mxu0 0.0
    %1064 = vmatpush2.xpose.msra.mxu0 0.0
    %1065 = vmatprep.mubr.f32.mxu0 0.0
    %v1066 = vand.u32 %v622, 4294901760
    %1067 = vmatmul.mubr.f32.gmra.mxu0 %v1066
    %v1068 = vpop.f32.mrf.mxu0
    %v1069 = vadd.f32 %v997, %v1068
    %v1070 = vpop.f32.mrf.mxu0
    %1071 = vdwg.mxu0
    %1072 = vrot.lane.b32.xlu0 %v602, 96
    %v1073 = vpop.permute.xlu0 %1072
    %v1074 = vsel %vm621, %v602, 0
    %v1076 = vsel %vm621, %v1073, 0
    %1078 = vmatprep.subr.mxu0 0.0
    %1079 = vmatpush1.xpose.msra.mxu0 0.0
    %1080 = vmatprep.subr.mxu0 0.0
    %1081 = vmatpush1.xpose.msra.mxu0 0.0
    %1082 = vmatprep.subr.mxu0 0.0
    %1083 = vmatpush1.xpose.msra.mxu0 0.0
    %1084 = vmatprep.subr.mxu0 0.0
    %1085 = vmatpush1.xpose.msra.mxu0 0.0
    %1086 = vmatprep.subr.mxu0 0.0
    %1087 = vmatpush1.xpose.msra.mxu0 0.0
    %1088 = vmatprep.subr.mxu0 0.0
    %1089 = vmatpush1.xpose.msra.mxu0 0.0
    %1090 = vmatprep.subr.mxu0 0.0
    %1091 = vmatpush1.xpose.msra.mxu0 0.0
    %1092 = vmatprep.subr.mxu0 0.0
    %1093 = vmatpush1.xpose.msra.mxu0 0.0
    %1094 = vmatprep.subr.mxu0 0.0
    %1095 = vmatpush1.xpose.msra.mxu0 0.0
    %1096 = vmatprep.subr.mxu0 0.0
    %1097 = vmatpush1.xpose.msra.mxu0 0.0
    %1098 = vmatprep.subr.mxu0 0.0
    %1099 = vmatpush1.xpose.msra.mxu0 0.0
    %1100 = vmatprep.subr.mxu0 0.0
    %1101 = vmatpush1.xpose.msra.mxu0 0.0
    %1102 = vmatprep.subr.mxu0 0.0
    %1103 = vmatpush1.xpose.msra.mxu0 0.0
    %1104 = vmatprep.subr.mxu0 0.0
    %1105 = vmatpush1.xpose.msra.mxu0 0.0
    %1106 = vmatprep.subr.mxu0 0.0
    %1107 = vmatpush1.xpose.msra.mxu0 0.0
    %1108 = vmatprep.subr.mxu0 0.0
    %v1109 = vand.u32 %v1076, 4294901760
    %1110 = vmatpush1.xpose.msra.mxu0 %v1109
    %1111 = vmatprep.subr.mxu0 0.0
    %1112 = vmatpush2.xpose.msra.mxu0 0.0
    %1113 = vmatprep.subr.mxu0 0.0
    %1114 = vmatpush2.xpose.msra.mxu0 0.0
    %1115 = vmatprep.subr.mxu0 0.0
    %1116 = vmatpush2.xpose.msra.mxu0 0.0
    %1117 = vmatprep.subr.mxu0 0.0
    %1118 = vmatpush2.xpose.msra.mxu0 0.0
    %1119 = vmatprep.subr.mxu0 0.0
    %1120 = vmatpush2.xpose.msra.mxu0 0.0
    %1121 = vmatprep.subr.mxu0 0.0
    %1122 = vmatpush2.xpose.msra.mxu0 0.0
    %1123 = vmatprep.subr.mxu0 0.0
    %1124 = vmatpush2.xpose.msra.mxu0 0.0
    %1125 = vmatprep.subr.mxu0 0.0
    %1126 = vmatpush2.xpose.msra.mxu0 0.0
    %1127 = vmatprep.subr.mxu0 0.0
    %1128 = vmatpush2.xpose.msra.mxu0 0.0
    %1129 = vmatprep.subr.mxu0 0.0
    %1130 = vmatpush2.xpose.msra.mxu0 0.0
    %1131 = vmatprep.subr.mxu0 0.0
    %1132 = vmatpush2.xpose.msra.mxu0 0.0
    %1133 = vmatprep.subr.mxu0 0.0
    %1134 = vmatpush2.xpose.msra.mxu0 0.0
    %1135 = vmatprep.subr.mxu0 0.0
    %1136 = vmatpush2.xpose.msra.mxu0 0.0
    %1137 = vmatprep.subr.mxu0 0.0
    %1138 = vmatpush2.xpose.msra.mxu0 0.0
    %1139 = vmatprep.subr.mxu0 0.0
    %1140 = vmatpush2.xpose.msra.mxu0 0.0
    %1141 = vmatprep.subr.mxu0 0.0
    %1142 = vmatpush2.xpose.msra.mxu0 0.0
    %1143 = vmatprep.mubr.f32.mxu0 0.0
    %v1144 = vand.u32 %v1074, 4294901760
    %v1145 = vsub.f32 %v1074, %v1144
    %v1146 = vand.u32 %v1145, 4294901760
    %v1147 = vsub.f32 %v1145, %v1146
    %v1148 = vand.u32 %v1147, 4294901760
    %1149 = vmatmul.mubr.f32.gmra.mxu0 %v1148
    %v1150 = vpop.f32.mrf.mxu0
    %v1151 = vadd.f32 0.0, %v1150
    %v1152 = vpop.f32.mrf.mxu0
    %1153 = vdwg.mxu0
    %1154 = vmatprep.subr.mxu0 0.0
    %1155 = vmatpush1.xpose.msra.mxu0 0.0
    %1156 = vmatprep.subr.mxu0 0.0
    %1157 = vmatpush1.xpose.msra.mxu0 0.0
    %1158 = vmatprep.subr.mxu0 0.0
    %1159 = vmatpush1.xpose.msra.mxu0 0.0
    %1160 = vmatprep.subr.mxu0 0.0
    %1161 = vmatpush1.xpose.msra.mxu0 0.0
    %1162 = vmatprep.subr.mxu0 0.0
    %1163 = vmatpush1.xpose.msra.mxu0 0.0
    %1164 = vmatprep.subr.mxu0 0.0
    %1165 = vmatpush1.xpose.msra.mxu0 0.0
    %1166 = vmatprep.subr.mxu0 0.0
    %1167 = vmatpush1.xpose.msra.mxu0 0.0
    %1168 = vmatprep.subr.mxu0 0.0
    %1169 = vmatpush1.xpose.msra.mxu0 0.0
    %1170 = vmatprep.subr.mxu0 0.0
    %1171 = vmatpush1.xpose.msra.mxu0 0.0
    %1172 = vmatprep.subr.mxu0 0.0
    %1173 = vmatpush1.xpose.msra.mxu0 0.0
    %1174 = vmatprep.subr.mxu0 0.0
    %1175 = vmatpush1.xpose.msra.mxu0 0.0
    %1176 = vmatprep.subr.mxu0 0.0
    %1177 = vmatpush1.xpose.msra.mxu0 0.0
    %1178 = vmatprep.subr.mxu0 0.0
    %1179 = vmatpush1.xpose.msra.mxu0 0.0
    %1180 = vmatprep.subr.mxu0 0.0
    %1181 = vmatpush1.xpose.msra.mxu0 0.0
    %1182 = vmatprep.subr.mxu0 0.0
    %1183 = vmatpush1.xpose.msra.mxu0 0.0
    %1184 = vmatprep.subr.mxu0 0.0
    %v1185 = vand.u32 %v1076, 4294901760
    %v1186 = vsub.f32 %v1076, %v1185
    %v1187 = vand.u32 %v1186, 4294901760
    %v1188 = vsub.f32 %v1186, %v1187
    %v1189 = vand.u32 %v1188, 4294901760
    %1190 = vmatpush1.xpose.msra.mxu0 %v1189
    %1191 = vmatprep.subr.mxu0 0.0
    %1192 = vmatpush2.xpose.msra.mxu0 0.0
    %1193 = vmatprep.subr.mxu0 0.0
    %1194 = vmatpush2.xpose.msra.mxu0 0.0
    %1195 = vmatprep.subr.mxu0 0.0
    %1196 = vmatpush2.xpose.msra.mxu0 0.0
    %1197 = vmatprep.subr.mxu0 0.0
    %1198 = vmatpush2.xpose.msra.mxu0 0.0
    %1199 = vmatprep.subr.mxu0 0.0
    %1200 = vmatpush2.xpose.msra.mxu0 0.0
    %1201 = vmatprep.subr.mxu0 0.0
    %1202 = vmatpush2.xpose.msra.mxu0 0.0
    %1203 = vmatprep.subr.mxu0 0.0
    %1204 = vmatpush2.xpose.msra.mxu0 0.0
    %1205 = vmatprep.subr.mxu0 0.0
    %1206 = vmatpush2.xpose.msra.mxu0 0.0
    %1207 = vmatprep.subr.mxu0 0.0
    %1208 = vmatpush2.xpose.msra.mxu0 0.0
    %1209 = vmatprep.subr.mxu0 0.0
    %1210 = vmatpush2.xpose.msra.mxu0 0.0
    %1211 = vmatprep.subr.mxu0 0.0
    %1212 = vmatpush2.xpose.msra.mxu0 0.0
    %1213 = vmatprep.subr.mxu0 0.0
    %1214 = vmatpush2.xpose.msra.mxu0 0.0
    %1215 = vmatprep.subr.mxu0 0.0
    %1216 = vmatpush2.xpose.msra.mxu0 0.0
    %1217 = vmatprep.subr.mxu0 0.0
    %1218 = vmatpush2.xpose.msra.mxu0 0.0
    %1219 = vmatprep.subr.mxu0 0.0
    %1220 = vmatpush2.xpose.msra.mxu0 0.0
    %1221 = vmatprep.subr.mxu0 0.0
    %1222 = vmatpush2.xpose.msra.mxu0 0.0
    %1223 = vmatprep.mubr.f32.mxu0 0.0
    %v1224 = vand.u32 %v1074, 4294901760
    %1225 = vmatmul.mubr.f32.gmra.mxu0 %v1224
    %v1226 = vpop.f32.mrf.mxu0
    %v1227 = vadd.f32 %v1151, %v1226
    %v1228 = vpop.f32.mrf.mxu0
    %1229 = vdwg.mxu0
    %1230 = vmatprep.subr.mxu0 0.0
    %1231 = vmatpush1.xpose.msra.mxu0 0.0
    %1232 = vmatprep.subr.mxu0 0.0
    %1233 = vmatpush1.xpose.msra.mxu0 0.0
    %1234 = vmatprep.subr.mxu0 0.0
    %1235 = vmatpush1.xpose.msra.mxu0 0.0
    %1236 = vmatprep.subr.mxu0 0.0
    %1237 = vmatpush1.xpose.msra.mxu0 0.0
    %1238 = vmatprep.subr.mxu0 0.0
    %1239 = vmatpush1.xpose.msra.mxu0 0.0
    %1240 = vmatprep.subr.mxu0 0.0
    %1241 = vmatpush1.xpose.msra.mxu0 0.0
    %1242 = vmatprep.subr.mxu0 0.0
    %1243 = vmatpush1.xpose.msra.mxu0 0.0
    %1244 = vmatprep.subr.mxu0 0.0
    %1245 = vmatpush1.xpose.msra.mxu0 0.0
    %1246 = vmatprep.subr.mxu0 0.0
    %1247 = vmatpush1.xpose.msra.mxu0 0.0
    %1248 = vmatprep.subr.mxu0 0.0
    %1249 = vmatpush1.xpose.msra.mxu0 0.0
    %1250 = vmatprep.subr.mxu0 0.0
    %1251 = vmatpush1.xpose.msra.mxu0 0.0
    %1252 = vmatprep.subr.mxu0 0.0
    %1253 = vmatpush1.xpose.msra.mxu0 0.0
    %1254 = vmatprep.subr.mxu0 0.0
    %1255 = vmatpush1.xpose.msra.mxu0 0.0
    %1256 = vmatprep.subr.mxu0 0.0
    %1257 = vmatpush1.xpose.msra.mxu0 0.0
    %1258 = vmatprep.subr.mxu0 0.0
    %1259 = vmatpush1.xpose.msra.mxu0 0.0
    %1260 = vmatprep.subr.mxu0 0.0
    %v1261 = vand.u32 %v1076, 4294901760
    %v1262 = vsub.f32 %v1076, %v1261
    %1263 = vmatpush1.xpose.msra.mxu0 %v1262
    %1264 = vmatprep.subr.mxu0 0.0
    %1265 = vmatpush2.xpose.msra.mxu0 0.0
    %1266 = vmatprep.subr.mxu0 0.0
    %1267 = vmatpush2.xpose.msra.mxu0 0.0
    %1268 = vmatprep.subr.mxu0 0.0
    %1269 = vmatpush2.xpose.msra.mxu0 0.0
    %1270 = vmatprep.subr.mxu0 0.0
    %1271 = vmatpush2.xpose.msra.mxu0 0.0
    %1272 = vmatprep.subr.mxu0 0.0
    %1273 = vmatpush2.xpose.msra.mxu0 0.0
    %1274 = vmatprep.subr.mxu0 0.0
    %1275 = vmatpush2.xpose.msra.mxu0 0.0
    %1276 = vmatprep.subr.mxu0 0.0
    %1277 = vmatpush2.xpose.msra.mxu0 0.0
    %1278 = vmatprep.subr.mxu0 0.0
    %1279 = vmatpush2.xpose.msra.mxu0 0.0
    %1280 = vmatprep.subr.mxu0 0.0
    %1281 = vmatpush2.xpose.msra.mxu0 0.0
    %1282 = vmatprep.subr.mxu0 0.0
    %1283 = vmatpush2.xpose.msra.mxu0 0.0
    %1284 = vmatprep.subr.mxu0 0.0
    %1285 = vmatpush2.xpose.msra.mxu0 0.0
    %1286 = vmatprep.subr.mxu0 0.0
    %1287 = vmatpush2.xpose.msra.mxu0 0.0
    %1288 = vmatprep.subr.mxu0 0.0
    %1289 = vmatpush2.xpose.msra.mxu0 0.0
    %1290 = vmatprep.subr.mxu0 0.0
    %1291 = vmatpush2.xpose.msra.mxu0 0.0
    %1292 = vmatprep.subr.mxu0 0.0
    %1293 = vmatpush2.xpose.msra.mxu0 0.0
    %1294 = vmatprep.subr.mxu0 0.0
    %1295 = vmatpush2.xpose.msra.mxu0 0.0
    %1296 = vmatprep.mubr.f32.mxu0 0.0
    %v1297 = vand.u32 %v1074, 4294901760
    %v1298 = vsub.f32 %v1074, %v1297
    %1299 = vmatmul.mubr.f32.gmra.mxu0 %v1298
    %v1300 = vpop.f32.mrf.mxu0
    %v1301 = vadd.f32 %v1227, %v1300
    %v1302 = vpop.f32.mrf.mxu0
    %1303 = vdwg.mxu0
    %1304 = vmatprep.subr.mxu0 0.0
    %1305 = vmatpush1.xpose.msra.mxu0 0.0
    %1306 = vmatprep.subr.mxu0 0.0
    %1307 = vmatpush1.xpose.msra.mxu0 0.0
    %1308 = vmatprep.subr.mxu0 0.0
    %1309 = vmatpush1.xpose.msra.mxu0 0.0
    %1310 = vmatprep.subr.mxu0 0.0
    %1311 = vmatpush1.xpose.msra.mxu0 0.0
    %1312 = vmatprep.subr.mxu0 0.0
    %1313 = vmatpush1.xpose.msra.mxu0 0.0
    %1314 = vmatprep.subr.mxu0 0.0
    %1315 = vmatpush1.xpose.msra.mxu0 0.0
    %1316 = vmatprep.subr.mxu0 0.0
    %1317 = vmatpush1.xpose.msra.mxu0 0.0
    %1318 = vmatprep.subr.mxu0 0.0
    %1319 = vmatpush1.xpose.msra.mxu0 0.0
    %1320 = vmatprep.subr.mxu0 0.0
    %1321 = vmatpush1.xpose.msra.mxu0 0.0
    %1322 = vmatprep.subr.mxu0 0.0
    %1323 = vmatpush1.xpose.msra.mxu0 0.0
    %1324 = vmatprep.subr.mxu0 0.0
    %1325 = vmatpush1.xpose.msra.mxu0 0.0
    %1326 = vmatprep.subr.mxu0 0.0
    %1327 = vmatpush1.xpose.msra.mxu0 0.0
    %1328 = vmatprep.subr.mxu0 0.0
    %1329 = vmatpush1.xpose.msra.mxu0 0.0
    %1330 = vmatprep.subr.mxu0 0.0
    %1331 = vmatpush1.xpose.msra.mxu0 0.0
    %1332 = vmatprep.subr.mxu0 0.0
    %1333 = vmatpush1.xpose.msra.mxu0 0.0
    %1334 = vmatprep.subr.mxu0 0.0
    %v1335 = vand.u32 %v1076, 4294901760
    %1336 = vmatpush1.xpose.msra.mxu0 %v1335
    %1337 = vmatprep.subr.mxu0 0.0
    %1338 = vmatpush2.xpose.msra.mxu0 0.0
    %1339 = vmatprep.subr.mxu0 0.0
    %1340 = vmatpush2.xpose.msra.mxu0 0.0
    %1341 = vmatprep.subr.mxu0 0.0
    %1342 = vmatpush2.xpose.msra.mxu0 0.0
    %1343 = vmatprep.subr.mxu0 0.0
    %1344 = vmatpush2.xpose.msra.mxu0 0.0
    %1345 = vmatprep.subr.mxu0 0.0
    %1346 = vmatpush2.xpose.msra.mxu0 0.0
    %1347 = vmatprep.subr.mxu0 0.0
    %1348 = vmatpush2.xpose.msra.mxu0 0.0
    %1349 = vmatprep.subr.mxu0 0.0
    %1350 = vmatpush2.xpose.msra.mxu0 0.0
    %1351 = vmatprep.subr.mxu0 0.0
    %1352 = vmatpush2.xpose.msra.mxu0 0.0
    %1353 = vmatprep.subr.mxu0 0.0
    %1354 = vmatpush2.xpose.msra.mxu0 0.0
    %1355 = vmatprep.subr.mxu0 0.0
    %1356 = vmatpush2.xpose.msra.mxu0 0.0
    %1357 = vmatprep.subr.mxu0 0.0
    %1358 = vmatpush2.xpose.msra.mxu0 0.0
    %1359 = vmatprep.subr.mxu0 0.0
    %1360 = vmatpush2.xpose.msra.mxu0 0.0
    %1361 = vmatprep.subr.mxu0 0.0
    %1362 = vmatpush2.xpose.msra.mxu0 0.0
    %1363 = vmatprep.subr.mxu0 0.0
    %1364 = vmatpush2.xpose.msra.mxu0 0.0
    %1365 = vmatprep.subr.mxu0 0.0
    %1366 = vmatpush2.xpose.msra.mxu0 0.0
    %1367 = vmatprep.subr.mxu0 0.0
    %1368 = vmatpush2.xpose.msra.mxu0 0.0
    %1369 = vmatprep.mubr.f32.mxu0 0.0
    %v1370 = vand.u32 %v1074, 4294901760
    %v1371 = vsub.f32 %v1074, %v1370
    %v1372 = vand.u32 %v1371, 4294901760
    %1373 = vmatmul.mubr.f32.gmra.mxu0 %v1372
    %v1374 = vpop.f32.mrf.mxu0
    %v1375 = vadd.f32 %v1301, %v1374
    %v1376 = vpop.f32.mrf.mxu0
    %1377 = vdwg.mxu0
    %1378 = vmatprep.subr.mxu0 0.0
    %1379 = vmatpush1.xpose.msra.mxu0 0.0
    %1380 = vmatprep.subr.mxu0 0.0
    %1381 = vmatpush1.xpose.msra.mxu0 0.0
    %1382 = vmatprep.subr.mxu0 0.0
    %1383 = vmatpush1.xpose.msra.mxu0 0.0
    %1384 = vmatprep.subr.mxu0 0.0
    %1385 = vmatpush1.xpose.msra.mxu0 0.0
    %1386 = vmatprep.subr.mxu0 0.0
    %1387 = vmatpush1.xpose.msra.mxu0 0.0
    %1388 = vmatprep.subr.mxu0 0.0
    %1389 = vmatpush1.xpose.msra.mxu0 0.0
    %1390 = vmatprep.subr.mxu0 0.0
    %1391 = vmatpush1.xpose.msra.mxu0 0.0
    %1392 = vmatprep.subr.mxu0 0.0
    %1393 = vmatpush1.xpose.msra.mxu0 0.0
    %1394 = vmatprep.subr.mxu0 0.0
    %1395 = vmatpush1.xpose.msra.mxu0 0.0
    %1396 = vmatprep.subr.mxu0 0.0
    %1397 = vmatpush1.xpose.msra.mxu0 0.0
    %1398 = vmatprep.subr.mxu0 0.0
    %1399 = vmatpush1.xpose.msra.mxu0 0.0
    %1400 = vmatprep.subr.mxu0 0.0
    %1401 = vmatpush1.xpose.msra.mxu0 0.0
    %1402 = vmatprep.subr.mxu0 0.0
    %1403 = vmatpush1.xpose.msra.mxu0 0.0
    %1404 = vmatprep.subr.mxu0 0.0
    %1405 = vmatpush1.xpose.msra.mxu0 0.0
    %1406 = vmatprep.subr.mxu0 0.0
    %1407 = vmatpush1.xpose.msra.mxu0 0.0
    %1408 = vmatprep.subr.mxu0 0.0
    %v1409 = vand.u32 %v1076, 4294901760
    %v1410 = vsub.f32 %v1076, %v1409
    %v1411 = vand.u32 %v1410, 4294901760
    %1412 = vmatpush1.xpose.msra.mxu0 %v1411
    %1413 = vmatprep.subr.mxu0 0.0
    %1414 = vmatpush2.xpose.msra.mxu0 0.0
    %1415 = vmatprep.subr.mxu0 0.0
    %1416 = vmatpush2.xpose.msra.mxu0 0.0
    %1417 = vmatprep.subr.mxu0 0.0
    %1418 = vmatpush2.xpose.msra.mxu0 0.0
    %1419 = vmatprep.subr.mxu0 0.0
    %1420 = vmatpush2.xpose.msra.mxu0 0.0
    %1421 = vmatprep.subr.mxu0 0.0
    %1422 = vmatpush2.xpose.msra.mxu0 0.0
    %1423 = vmatprep.subr.mxu0 0.0
    %1424 = vmatpush2.xpose.msra.mxu0 0.0
    %1425 = vmatprep.subr.mxu0 0.0
    %1426 = vmatpush2.xpose.msra.mxu0 0.0
    %1427 = vmatprep.subr.mxu0 0.0
    %1428 = vmatpush2.xpose.msra.mxu0 0.0
    %1429 = vmatprep.subr.mxu0 0.0
    %1430 = vmatpush2.xpose.msra.mxu0 0.0
    %1431 = vmatprep.subr.mxu0 0.0
    %1432 = vmatpush2.xpose.msra.mxu0 0.0
    %1433 = vmatprep.subr.mxu0 0.0
    %1434 = vmatpush2.xpose.msra.mxu0 0.0
    %1435 = vmatprep.subr.mxu0 0.0
    %1436 = vmatpush2.xpose.msra.mxu0 0.0
    %1437 = vmatprep.subr.mxu0 0.0
    %1438 = vmatpush2.xpose.msra.mxu0 0.0
    %1439 = vmatprep.subr.mxu0 0.0
    %1440 = vmatpush2.xpose.msra.mxu0 0.0
    %1441 = vmatprep.subr.mxu0 0.0
    %1442 = vmatpush2.xpose.msra.mxu0 0.0
    %1443 = vmatprep.subr.mxu0 0.0
    %1444 = vmatpush2.xpose.msra.mxu0 0.0
    %1445 = vmatprep.mubr.f32.mxu0 0.0
    %v1446 = vand.u32 %v1074, 4294901760
    %1447 = vmatmul.mubr.f32.gmra.mxu0 %v1446
    %v1448 = vpop.f32.mrf.mxu0
    %v1449 = vadd.f32 %v1375, %v1448
    %v1450 = vpop.f32.mrf.mxu0
    %1451 = vdwg.mxu0
    %1452 = vmatprep.subr.mxu0 0.0
    %1453 = vmatpush1.xpose.msra.mxu0 0.0
    %1454 = vmatprep.subr.mxu0 0.0
    %1455 = vmatpush1.xpose.msra.mxu0 0.0
    %1456 = vmatprep.subr.mxu0 0.0
    %1457 = vmatpush1.xpose.msra.mxu0 0.0
    %1458 = vmatprep.subr.mxu0 0.0
    %1459 = vmatpush1.xpose.msra.mxu0 0.0
    %1460 = vmatprep.subr.mxu0 0.0
    %1461 = vmatpush1.xpose.msra.mxu0 0.0
    %1462 = vmatprep.subr.mxu0 0.0
    %1463 = vmatpush1.xpose.msra.mxu0 0.0
    %1464 = vmatprep.subr.mxu0 0.0
    %1465 = vmatpush1.xpose.msra.mxu0 0.0
    %1466 = vmatprep.subr.mxu0 0.0
    %1467 = vmatpush1.xpose.msra.mxu0 0.0
    %1468 = vmatprep.subr.mxu0 0.0
    %1469 = vmatpush1.xpose.msra.mxu0 0.0
    %1470 = vmatprep.subr.mxu0 0.0
    %1471 = vmatpush1.xpose.msra.mxu0 0.0
    %1472 = vmatprep.subr.mxu0 0.0
    %1473 = vmatpush1.xpose.msra.mxu0 0.0
    %1474 = vmatprep.subr.mxu0 0.0
    %1475 = vmatpush1.xpose.msra.mxu0 0.0
    %1476 = vmatprep.subr.mxu0 0.0
    %1477 = vmatpush1.xpose.msra.mxu0 0.0
    %1478 = vmatprep.subr.mxu0 0.0
    %1479 = vmatpush1.xpose.msra.mxu0 0.0
    %1480 = vmatprep.subr.mxu0 0.0
    %1481 = vmatpush1.xpose.msra.mxu0 0.0
    %1482 = vmatprep.subr.mxu0 0.0
    %v1483 = vand.u32 %v1076, 4294901760
    %1484 = vmatpush1.xpose.msra.mxu0 %v1483
    %1485 = vmatprep.subr.mxu0 0.0
    %1486 = vmatpush2.xpose.msra.mxu0 0.0
    %1487 = vmatprep.subr.mxu0 0.0
    %1488 = vmatpush2.xpose.msra.mxu0 0.0
    %1489 = vmatprep.subr.mxu0 0.0
    %1490 = vmatpush2.xpose.msra.mxu0 0.0
    %1491 = vmatprep.subr.mxu0 0.0
    %1492 = vmatpush2.xpose.msra.mxu0 0.0
    %1493 = vmatprep.subr.mxu0 0.0
    %1494 = vmatpush2.xpose.msra.mxu0 0.0
    %1495 = vmatprep.subr.mxu0 0.0
    %1496 = vmatpush2.xpose.msra.mxu0 0.0
    %1497 = vmatprep.subr.mxu0 0.0
    %1498 = vmatpush2.xpose.msra.mxu0 0.0
    %1499 = vmatprep.subr.mxu0 0.0
    %1500 = vmatpush2.xpose.msra.mxu0 0.0
    %1501 = vmatprep.subr.mxu0 0.0
    %1502 = vmatpush2.xpose.msra.mxu0 0.0
    %1503 = vmatprep.subr.mxu0 0.0
    %1504 = vmatpush2.xpose.msra.mxu0 0.0
    %1505 = vmatprep.subr.mxu0 0.0
    %1506 = vmatpush2.xpose.msra.mxu0 0.0
    %1507 = vmatprep.subr.mxu0 0.0
    %1508 = vmatpush2.xpose.msra.mxu0 0.0
    %1509 = vmatprep.subr.mxu0 0.0
    %1510 = vmatpush2.xpose.msra.mxu0 0.0
    %1511 = vmatprep.subr.mxu0 0.0
    %1512 = vmatpush2.xpose.msra.mxu0 0.0
    %1513 = vmatprep.subr.mxu0 0.0
    %1514 = vmatpush2.xpose.msra.mxu0 0.0
    %1515 = vmatprep.subr.mxu0 0.0
    %1516 = vmatpush2.xpose.msra.mxu0 0.0
    %1517 = vmatprep.mubr.f32.mxu0 0.0
    %v1518 = vand.u32 %v1074, 4294901760
    %1519 = vmatmul.mubr.f32.gmra.mxu0 %v1518
    %v1520 = vpop.f32.mrf.mxu0
    %v1521 = vadd.f32 %v1449, %v1520
    %v1522 = vpop.f32.mrf.mxu0
    %1523 = vdwg.mxu0
    %1524 = vrot.lane.b32.xlu0 %v608, 96
    %v1525 = vpop.permute.xlu0 %1524
    %v1526 = vsel %vm621, %v608, 0
    %v1528 = vsel %vm621, %v1525, 0
    %1530 = vmatprep.subr.mxu0 0.0
    %1531 = vmatpush1.xpose.msra.mxu0 0.0
    %1532 = vmatprep.subr.mxu0 0.0
    %1533 = vmatpush1.xpose.msra.mxu0 0.0
    %1534 = vmatprep.subr.mxu0 0.0
    %1535 = vmatpush1.xpose.msra.mxu0 0.0
    %1536 = vmatprep.subr.mxu0 0.0
    %1537 = vmatpush1.xpose.msra.mxu0 0.0
    %1538 = vmatprep.subr.mxu0 0.0
    %1539 = vmatpush1.xpose.msra.mxu0 0.0
    %1540 = vmatprep.subr.mxu0 0.0
    %1541 = vmatpush1.xpose.msra.mxu0 0.0
    %1542 = vmatprep.subr.mxu0 0.0
    %1543 = vmatpush1.xpose.msra.mxu0 0.0
    %1544 = vmatprep.subr.mxu0 0.0
    %1545 = vmatpush1.xpose.msra.mxu0 0.0
    %1546 = vmatprep.subr.mxu0 0.0
    %1547 = vmatpush1.xpose.msra.mxu0 0.0
    %1548 = vmatprep.subr.mxu0 0.0
    %1549 = vmatpush1.xpose.msra.mxu0 0.0
    %1550 = vmatprep.subr.mxu0 0.0
    %1551 = vmatpush1.xpose.msra.mxu0 0.0
    %1552 = vmatprep.subr.mxu0 0.0
    %1553 = vmatpush1.xpose.msra.mxu0 0.0
    %1554 = vmatprep.subr.mxu0 0.0
    %1555 = vmatpush1.xpose.msra.mxu0 0.0
    %1556 = vmatprep.subr.mxu0 0.0
    %1557 = vmatpush1.xpose.msra.mxu0 0.0
    %1558 = vmatprep.subr.mxu0 0.0
    %1559 = vmatpush1.xpose.msra.mxu0 0.0
    %1560 = vmatprep.subr.mxu0 0.0
    %v1561 = vand.u32 %v1528, 4294901760
    %1562 = vmatpush1.xpose.msra.mxu0 %v1561
    %1563 = vmatprep.subr.mxu0 0.0
    %1564 = vmatpush2.xpose.msra.mxu0 0.0
    %1565 = vmatprep.subr.mxu0 0.0
    %1566 = vmatpush2.xpose.msra.mxu0 0.0
    %1567 = vmatprep.subr.mxu0 0.0
    %1568 = vmatpush2.xpose.msra.mxu0 0.0
    %1569 = vmatprep.subr.mxu0 0.0
    %1570 = vmatpush2.xpose.msra.mxu0 0.0
    %1571 = vmatprep.subr.mxu0 0.0
    %1572 = vmatpush2.xpose.msra.mxu0 0.0
    %1573 = vmatprep.subr.mxu0 0.0
    %1574 = vmatpush2.xpose.msra.mxu0 0.0
    %1575 = vmatprep.subr.mxu0 0.0
    %1576 = vmatpush2.xpose.msra.mxu0 0.0
    %1577 = vmatprep.subr.mxu0 0.0
    %1578 = vmatpush2.xpose.msra.mxu0 0.0
    %1579 = vmatprep.subr.mxu0 0.0
    %1580 = vmatpush2.xpose.msra.mxu0 0.0
    %1581 = vmatprep.subr.mxu0 0.0
    %1582 = vmatpush2.xpose.msra.mxu0 0.0
    %1583 = vmatprep.subr.mxu0 0.0
    %1584 = vmatpush2.xpose.msra.mxu0 0.0
    %1585 = vmatprep.subr.mxu0 0.0
    %1586 = vmatpush2.xpose.msra.mxu0 0.0
    %1587 = vmatprep.subr.mxu0 0.0
    %1588 = vmatpush2.xpose.msra.mxu0 0.0
    %1589 = vmatprep.subr.mxu0 0.0
    %1590 = vmatpush2.xpose.msra.mxu0 0.0
    %1591 = vmatprep.subr.mxu0 0.0
    %1592 = vmatpush2.xpose.msra.mxu0 0.0
    %1593 = vmatprep.subr.mxu0 0.0
    %1594 = vmatpush2.xpose.msra.mxu0 0.0
    %1595 = vmatprep.mubr.f32.mxu0 0.0
    %v1596 = vand.u32 %v1526, 4294901760
    %v1597 = vsub.f32 %v1526, %v1596
    %v1598 = vand.u32 %v1597, 4294901760
    %v1599 = vsub.f32 %v1597, %v1598
    %v1600 = vand.u32 %v1599, 4294901760
    %1601 = vmatmul.mubr.f32.gmra.mxu0 %v1600
    %v1602 = vpop.f32.mrf.mxu0
    %v1603 = vadd.f32 0.0, %v1602
    %v1604 = vpop.f32.mrf.mxu0
    %1605 = vdwg.mxu0
    %1606 = vmatprep.subr.mxu0 0.0
    %1607 = vmatpush1.xpose.msra.mxu0 0.0
    %1608 = vmatprep.subr.mxu0 0.0
    %1609 = vmatpush1.xpose.msra.mxu0 0.0
    %1610 = vmatprep.subr.mxu0 0.0
    %1611 = vmatpush1.xpose.msra.mxu0 0.0
    %1612 = vmatprep.subr.mxu0 0.0
    %1613 = vmatpush1.xpose.msra.mxu0 0.0
    %1614 = vmatprep.subr.mxu0 0.0
    %1615 = vmatpush1.xpose.msra.mxu0 0.0
    %1616 = vmatprep.subr.mxu0 0.0
    %1617 = vmatpush1.xpose.msra.mxu0 0.0
    %1618 = vmatprep.subr.mxu0 0.0
    %1619 = vmatpush1.xpose.msra.mxu0 0.0
    %1620 = vmatprep.subr.mxu0 0.0
    %1621 = vmatpush1.xpose.msra.mxu0 0.0
    %1622 = vmatprep.subr.mxu0 0.0
    %1623 = vmatpush1.xpose.msra.mxu0 0.0
    %1624 = vmatprep.subr.mxu0 0.0
    %1625 = vmatpush1.xpose.msra.mxu0 0.0
    %1626 = vmatprep.subr.mxu0 0.0
    %1627 = vmatpush1.xpose.msra.mxu0 0.0
    %1628 = vmatprep.subr.mxu0 0.0
    %1629 = vmatpush1.xpose.msra.mxu0 0.0
    %1630 = vmatprep.subr.mxu0 0.0
    %1631 = vmatpush1.xpose.msra.mxu0 0.0
    %1632 = vmatprep.subr.mxu0 0.0
    %1633 = vmatpush1.xpose.msra.mxu0 0.0
    %1634 = vmatprep.subr.mxu0 0.0
    %1635 = vmatpush1.xpose.msra.mxu0 0.0
    %1636 = vmatprep.subr.mxu0 0.0
    %v1637 = vand.u32 %v1528, 4294901760
    %v1638 = vsub.f32 %v1528, %v1637
    %v1639 = vand.u32 %v1638, 4294901760
    %v1640 = vsub.f32 %v1638, %v1639
    %v1641 = vand.u32 %v1640, 4294901760
    %1642 = vmatpush1.xpose.msra.mxu0 %v1641
    %1643 = vmatprep.subr.mxu0 0.0
    %1644 = vmatpush2.xpose.msra.mxu0 0.0
    %1645 = vmatprep.subr.mxu0 0.0
    %1646 = vmatpush2.xpose.msra.mxu0 0.0
    %1647 = vmatprep.subr.mxu0 0.0
    %1648 = vmatpush2.xpose.msra.mxu0 0.0
    %1649 = vmatprep.subr.mxu0 0.0
    %1650 = vmatpush2.xpose.msra.mxu0 0.0
    %1651 = vmatprep.subr.mxu0 0.0
    %1652 = vmatpush2.xpose.msra.mxu0 0.0
    %1653 = vmatprep.subr.mxu0 0.0
    %1654 = vmatpush2.xpose.msra.mxu0 0.0
    %1655 = vmatprep.subr.mxu0 0.0
    %1656 = vmatpush2.xpose.msra.mxu0 0.0
    %1657 = vmatprep.subr.mxu0 0.0
    %1658 = vmatpush2.xpose.msra.mxu0 0.0
    %1659 = vmatprep.subr.mxu0 0.0
    %1660 = vmatpush2.xpose.msra.mxu0 0.0
    %1661 = vmatprep.subr.mxu0 0.0
    %1662 = vmatpush2.xpose.msra.mxu0 0.0
    %1663 = vmatprep.subr.mxu0 0.0
    %1664 = vmatpush2.xpose.msra.mxu0 0.0
    %1665 = vmatprep.subr.mxu0 0.0
    %1666 = vmatpush2.xpose.msra.mxu0 0.0
    %1667 = vmatprep.subr.mxu0 0.0
    %1668 = vmatpush2.xpose.msra.mxu0 0.0
    %1669 = vmatprep.subr.mxu0 0.0
    %1670 = vmatpush2.xpose.msra.mxu0 0.0
    %1671 = vmatprep.subr.mxu0 0.0
    %1672 = vmatpush2.xpose.msra.mxu0 0.0
    %1673 = vmatprep.subr.mxu0 0.0
    %1674 = vmatpush2.xpose.msra.mxu0 0.0
    %1675 = vmatprep.mubr.f32.mxu0 0.0
    %v1676 = vand.u32 %v1526, 4294901760
    %1677 = vmatmul.mubr.f32.gmra.mxu0 %v1676
    %v1678 = vpop.f32.mrf.mxu0
    %v1679 = vadd.f32 %v1603, %v1678
    %v1680 = vpop.f32.mrf.mxu0
    %1681 = vdwg.mxu0
    %1682 = vmatprep.subr.mxu0 0.0
    %1683 = vmatpush1.xpose.msra.mxu0 0.0
    %1684 = vmatprep.subr.mxu0 0.0
    %1685 = vmatpush1.xpose.msra.mxu0 0.0
    %1686 = vmatprep.subr.mxu0 0.0
    %1687 = vmatpush1.xpose.msra.mxu0 0.0
    %1688 = vmatprep.subr.mxu0 0.0
    %1689 = vmatpush1.xpose.msra.mxu0 0.0
    %1690 = vmatprep.subr.mxu0 0.0
    %1691 = vmatpush1.xpose.msra.mxu0 0.0
    %1692 = vmatprep.subr.mxu0 0.0
    %1693 = vmatpush1.xpose.msra.mxu0 0.0
    %1694 = vmatprep.subr.mxu0 0.0
    %1695 = vmatpush1.xpose.msra.mxu0 0.0
    %1696 = vmatprep.subr.mxu0 0.0
    %1697 = vmatpush1.xpose.msra.mxu0 0.0
    %1698 = vmatprep.subr.mxu0 0.0
    %1699 = vmatpush1.xpose.msra.mxu0 0.0
    %1700 = vmatprep.subr.mxu0 0.0
    %1701 = vmatpush1.xpose.msra.mxu0 0.0
    %1702 = vmatprep.subr.mxu0 0.0
    %1703 = vmatpush1.xpose.msra.mxu0 0.0
    %1704 = vmatprep.subr.mxu0 0.0
    %1705 = vmatpush1.xpose.msra.mxu0 0.0
    %1706 = vmatprep.subr.mxu0 0.0
    %1707 = vmatpush1.xpose.msra.mxu0 0.0
    %1708 = vmatprep.subr.mxu0 0.0
    %1709 = vmatpush1.xpose.msra.mxu0 0.0
    %1710 = vmatprep.subr.mxu0 0.0
    %1711 = vmatpush1.xpose.msra.mxu0 0.0
    %1712 = vmatprep.subr.mxu0 0.0
    %v1713 = vand.u32 %v1528, 4294901760
    %v1714 = vsub.f32 %v1528, %v1713
    %1715 = vmatpush1.xpose.msra.mxu0 %v1714
    %1716 = vmatprep.subr.mxu0 0.0
    %1717 = vmatpush2.xpose.msra.mxu0 0.0
    %1718 = vmatprep.subr.mxu0 0.0
    %1719 = vmatpush2.xpose.msra.mxu0 0.0
    %1720 = vmatprep.subr.mxu0 0.0
    %1721 = vmatpush2.xpose.msra.mxu0 0.0
    %1722 = vmatprep.subr.mxu0 0.0
    %1723 = vmatpush2.xpose.msra.mxu0 0.0
    %1724 = vmatprep.subr.mxu0 0.0
    %1725 = vmatpush2.xpose.msra.mxu0 0.0
    %1726 = vmatprep.subr.mxu0 0.0
    %1727 = vmatpush2.xpose.msra.mxu0 0.0
    %1728 = vmatprep.subr.mxu0 0.0
    %1729 = vmatpush2.xpose.msra.mxu0 0.0
    %1730 = vmatprep.subr.mxu0 0.0
    %1731 = vmatpush2.xpose.msra.mxu0 0.0
    %1732 = vmatprep.subr.mxu0 0.0
    %1733 = vmatpush2.xpose.msra.mxu0 0.0
    %1734 = vmatprep.subr.mxu0 0.0
    %1735 = vmatpush2.xpose.msra.mxu0 0.0
    %1736 = vmatprep.subr.mxu0 0.0
    %1737 = vmatpush2.xpose.msra.mxu0 0.0
    %1738 = vmatprep.subr.mxu0 0.0
    %1739 = vmatpush2.xpose.msra.mxu0 0.0
    %1740 = vmatprep.subr.mxu0 0.0
    %1741 = vmatpush2.xpose.msra.mxu0 0.0
    %1742 = vmatprep.subr.mxu0 0.0
    %1743 = vmatpush2.xpose.msra.mxu0 0.0
    %1744 = vmatprep.subr.mxu0 0.0
    %1745 = vmatpush2.xpose.msra.mxu0 0.0
    %1746 = vmatprep.subr.mxu0 0.0
    %1747 = vmatpush2.xpose.msra.mxu0 0.0
    %1748 = vmatprep.mubr.f32.mxu0 0.0
    %v1749 = vand.u32 %v1526, 4294901760
    %v1750 = vsub.f32 %v1526, %v1749
    %1751 = vmatmul.mubr.f32.gmra.mxu0 %v1750
    %v1752 = vpop.f32.mrf.mxu0
    %v1753 = vadd.f32 %v1679, %v1752
    %v1754 = vpop.f32.mrf.mxu0
    %1755 = vdwg.mxu0
    %1756 = vmatprep.subr.mxu0 0.0
    %1757 = vmatpush1.xpose.msra.mxu0 0.0
    %1758 = vmatprep.subr.mxu0 0.0
    %1759 = vmatpush1.xpose.msra.mxu0 0.0
    %1760 = vmatprep.subr.mxu0 0.0
    %1761 = vmatpush1.xpose.msra.mxu0 0.0
    %1762 = vmatprep.subr.mxu0 0.0
    %1763 = vmatpush1.xpose.msra.mxu0 0.0
    %1764 = vmatprep.subr.mxu0 0.0
    %1765 = vmatpush1.xpose.msra.mxu0 0.0
    %1766 = vmatprep.subr.mxu0 0.0
    %1767 = vmatpush1.xpose.msra.mxu0 0.0
    %1768 = vmatprep.subr.mxu0 0.0
    %1769 = vmatpush1.xpose.msra.mxu0 0.0
    %1770 = vmatprep.subr.mxu0 0.0
    %1771 = vmatpush1.xpose.msra.mxu0 0.0
    %1772 = vmatprep.subr.mxu0 0.0
    %1773 = vmatpush1.xpose.msra.mxu0 0.0
    %1774 = vmatprep.subr.mxu0 0.0
    %1775 = vmatpush1.xpose.msra.mxu0 0.0
    %1776 = vmatprep.subr.mxu0 0.0
    %1777 = vmatpush1.xpose.msra.mxu0 0.0
    %1778 = vmatprep.subr.mxu0 0.0
    %1779 = vmatpush1.xpose.msra.mxu0 0.0
    %1780 = vmatprep.subr.mxu0 0.0
    %1781 = vmatpush1.xpose.msra.mxu0 0.0
    %1782 = vmatprep.subr.mxu0 0.0
    %1783 = vmatpush1.xpose.msra.mxu0 0.0
    %1784 = vmatprep.subr.mxu0 0.0
    %1785 = vmatpush1.xpose.msra.mxu0 0.0
    %1786 = vmatprep.subr.mxu0 0.0
    %v1787 = vand.u32 %v1528, 4294901760
    %1788 = vmatpush1.xpose.msra.mxu0 %v1787
    %1789 = vmatprep.subr.mxu0 0.0
    %1790 = vmatpush2.xpose.msra.mxu0 0.0
    %1791 = vmatprep.subr.mxu0 0.0
    %1792 = vmatpush2.xpose.msra.mxu0 0.0
    %1793 = vmatprep.subr.mxu0 0.0
    %1794 = vmatpush2.xpose.msra.mxu0 0.0
    %1795 = vmatprep.subr.mxu0 0.0
    %1796 = vmatpush2.xpose.msra.mxu0 0.0
    %1797 = vmatprep.subr.mxu0 0.0
    %1798 = vmatpush2.xpose.msra.mxu0 0.0
    %1799 = vmatprep.subr.mxu0 0.0
    %1800 = vmatpush2.xpose.msra.mxu0 0.0
    %1801 = vmatprep.subr.mxu0 0.0
    %1802 = vmatpush2.xpose.msra.mxu0 0.0
    %1803 = vmatprep.subr.mxu0 0.0
    %1804 = vmatpush2.xpose.msra.mxu0 0.0
    %1805 = vmatprep.subr.mxu0 0.0
    %1806 = vmatpush2.xpose.msra.mxu0 0.0
    %1807 = vmatprep.subr.mxu0 0.0
    %1808 = vmatpush2.xpose.msra.mxu0 0.0
    %1809 = vmatprep.subr.mxu0 0.0
    %1810 = vmatpush2.xpose.msra.mxu0 0.0
    %1811 = vmatprep.subr.mxu0 0.0
    %1812 = vmatpush2.xpose.msra.mxu0 0.0
    %1813 = vmatprep.subr.mxu0 0.0
    %1814 = vmatpush2.xpose.msra.mxu0 0.0
    %1815 = vmatprep.subr.mxu0 0.0
    %1816 = vmatpush2.xpose.msra.mxu0 0.0
    %1817 = vmatprep.subr.mxu0 0.0
    %1818 = vmatpush2.xpose.msra.mxu0 0.0
    %1819 = vmatprep.subr.mxu0 0.0
    %1820 = vmatpush2.xpose.msra.mxu0 0.0
    %1821 = vmatprep.mubr.f32.mxu0 0.0
    %v1822 = vand.u32 %v1526, 4294901760
    %v1823 = vsub.f32 %v1526, %v1822
    %v1824 = vand.u32 %v1823, 4294901760
    %1825 = vmatmul.mubr.f32.gmra.mxu0 %v1824
    %v1826 = vpop.f32.mrf.mxu0
    %v1827 = vadd.f32 %v1753, %v1826
    %v1828 = vpop.f32.mrf.mxu0
    %1829 = vdwg.mxu0
    %1830 = vmatprep.subr.mxu0 0.0
    %1831 = vmatpush1.xpose.msra.mxu0 0.0
    %1832 = vmatprep.subr.mxu0 0.0
    %1833 = vmatpush1.xpose.msra.mxu0 0.0
    %1834 = vmatprep.subr.mxu0 0.0
    %1835 = vmatpush1.xpose.msra.mxu0 0.0
    %1836 = vmatprep.subr.mxu0 0.0
    %1837 = vmatpush1.xpose.msra.mxu0 0.0
    %1838 = vmatprep.subr.mxu0 0.0
    %1839 = vmatpush1.xpose.msra.mxu0 0.0
    %1840 = vmatprep.subr.mxu0 0.0
    %1841 = vmatpush1.xpose.msra.mxu0 0.0
    %1842 = vmatprep.subr.mxu0 0.0
    %1843 = vmatpush1.xpose.msra.mxu0 0.0
    %1844 = vmatprep.subr.mxu0 0.0
    %1845 = vmatpush1.xpose.msra.mxu0 0.0
    %1846 = vmatprep.subr.mxu0 0.0
    %1847 = vmatpush1.xpose.msra.mxu0 0.0
    %1848 = vmatprep.subr.mxu0 0.0
    %1849 = vmatpush1.xpose.msra.mxu0 0.0
    %1850 = vmatprep.subr.mxu0 0.0
    %1851 = vmatpush1.xpose.msra.mxu0 0.0
    %1852 = vmatprep.subr.mxu0 0.0
    %1853 = vmatpush1.xpose.msra.mxu0 0.0
    %1854 = vmatprep.subr.mxu0 0.0
    %1855 = vmatpush1.xpose.msra.mxu0 0.0
    %1856 = vmatprep.subr.mxu0 0.0
    %1857 = vmatpush1.xpose.msra.mxu0 0.0
    %1858 = vmatprep.subr.mxu0 0.0
    %1859 = vmatpush1.xpose.msra.mxu0 0.0
    %1860 = vmatprep.subr.mxu0 0.0
    %v1861 = vand.u32 %v1528, 4294901760
    %v1862 = vsub.f32 %v1528, %v1861
    %v1863 = vand.u32 %v1862, 4294901760
    %1864 = vmatpush1.xpose.msra.mxu0 %v1863
    %1865 = vmatprep.subr.mxu0 0.0
    %1866 = vmatpush2.xpose.msra.mxu0 0.0
    %1867 = vmatprep.subr.mxu0 0.0
    %1868 = vmatpush2.xpose.msra.mxu0 0.0
    %1869 = vmatprep.subr.mxu0 0.0
    %1870 = vmatpush2.xpose.msra.mxu0 0.0
    %1871 = vmatprep.subr.mxu0 0.0
    %1872 = vmatpush2.xpose.msra.mxu0 0.0
    %1873 = vmatprep.subr.mxu0 0.0
    %1874 = vmatpush2.xpose.msra.mxu0 0.0
    %1875 = vmatprep.subr.mxu0 0.0
    %1876 = vmatpush2.xpose.msra.mxu0 0.0
    %1877 = vmatprep.subr.mxu0 0.0
    %1878 = vmatpush2.xpose.msra.mxu0 0.0
    %1879 = vmatprep.subr.mxu0 0.0
    %1880 = vmatpush2.xpose.msra.mxu0 0.0
    %1881 = vmatprep.subr.mxu0 0.0
    %1882 = vmatpush2.xpose.msra.mxu0 0.0
    %1883 = vmatprep.subr.mxu0 0.0
    %1884 = vmatpush2.xpose.msra.mxu0 0.0
    %1885 = vmatprep.subr.mxu0 0.0
    %1886 = vmatpush2.xpose.msra.mxu0 0.0
    %1887 = vmatprep.subr.mxu0 0.0
    %1888 = vmatpush2.xpose.msra.mxu0 0.0
    %1889 = vmatprep.subr.mxu0 0.0
    %1890 = vmatpush2.xpose.msra.mxu0 0.0
    %1891 = vmatprep.subr.mxu0 0.0
    %1892 = vmatpush2.xpose.msra.mxu0 0.0
    %1893 = vmatprep.subr.mxu0 0.0
    %1894 = vmatpush2.xpose.msra.mxu0 0.0
    %1895 = vmatprep.subr.mxu0 0.0
    %1896 = vmatpush2.xpose.msra.mxu0 0.0
    %1897 = vmatprep.mubr.f32.mxu0 0.0
    %v1898 = vand.u32 %v1526, 4294901760
    %1899 = vmatmul.mubr.f32.gmra.mxu0 %v1898
    %v1900 = vpop.f32.mrf.mxu0
    %v1901 = vadd.f32 %v1827, %v1900
    %v1902 = vpop.f32.mrf.mxu0
    %1903 = vdwg.mxu0
    %1904 = vmatprep.subr.mxu0 0.0
    %1905 = vmatpush1.xpose.msra.mxu0 0.0
    %1906 = vmatprep.subr.mxu0 0.0
    %1907 = vmatpush1.xpose.msra.mxu0 0.0
    %1908 = vmatprep.subr.mxu0 0.0
    %1909 = vmatpush1.xpose.msra.mxu0 0.0
    %1910 = vmatprep.subr.mxu0 0.0
    %1911 = vmatpush1.xpose.msra.mxu0 0.0
    %1912 = vmatprep.subr.mxu0 0.0
    %1913 = vmatpush1.xpose.msra.mxu0 0.0
    %1914 = vmatprep.subr.mxu0 0.0
    %1915 = vmatpush1.xpose.msra.mxu0 0.0
    %1916 = vmatprep.subr.mxu0 0.0
    %1917 = vmatpush1.xpose.msra.mxu0 0.0
    %1918 = vmatprep.subr.mxu0 0.0
    %1919 = vmatpush1.xpose.msra.mxu0 0.0
    %1920 = vmatprep.subr.mxu0 0.0
    %1921 = vmatpush1.xpose.msra.mxu0 0.0
    %1922 = vmatprep.subr.mxu0 0.0
    %1923 = vmatpush1.xpose.msra.mxu0 0.0
    %1924 = vmatprep.subr.mxu0 0.0
    %1925 = vmatpush1.xpose.msra.mxu0 0.0
    %1926 = vmatprep.subr.mxu0 0.0
    %1927 = vmatpush1.xpose.msra.mxu0 0.0
    %1928 = vmatprep.subr.mxu0 0.0
    %1929 = vmatpush1.xpose.msra.mxu0 0.0
    %1930 = vmatprep.subr.mxu0 0.0
    %1931 = vmatpush1.xpose.msra.mxu0 0.0
    %1932 = vmatprep.subr.mxu0 0.0
    %1933 = vmatpush1.xpose.msra.mxu0 0.0
    %1934 = vmatprep.subr.mxu0 0.0
    %v1935 = vand.u32 %v1528, 4294901760
    %1936 = vmatpush1.xpose.msra.mxu0 %v1935
    %1937 = vmatprep.subr.mxu0 0.0
    %1938 = vmatpush2.xpose.msra.mxu0 0.0
    %1939 = vmatprep.subr.mxu0 0.0
    %1940 = vmatpush2.xpose.msra.mxu0 0.0
    %1941 = vmatprep.subr.mxu0 0.0
    %1942 = vmatpush2.xpose.msra.mxu0 0.0
    %1943 = vmatprep.subr.mxu0 0.0
    %1944 = vmatpush2.xpose.msra.mxu0 0.0
    %1945 = vmatprep.subr.mxu0 0.0
    %1946 = vmatpush2.xpose.msra.mxu0 0.0
    %1947 = vmatprep.subr.mxu0 0.0
    %1948 = vmatpush2.xpose.msra.mxu0 0.0
    %1949 = vmatprep.subr.mxu0 0.0
    %1950 = vmatpush2.xpose.msra.mxu0 0.0
    %1951 = vmatprep.subr.mxu0 0.0
    %1952 = vmatpush2.xpose.msra.mxu0 0.0
    %1953 = vmatprep.subr.mxu0 0.0
    %1954 = vmatpush2.xpose.msra.mxu0 0.0
    %1955 = vmatprep.subr.mxu0 0.0
    %1956 = vmatpush2.xpose.msra.mxu0 0.0
    %1957 = vmatprep.subr.mxu0 0.0
    %1958 = vmatpush2.xpose.msra.mxu0 0.0
    %1959 = vmatprep.subr.mxu0 0.0
    %1960 = vmatpush2.xpose.msra.mxu0 0.0
    %1961 = vmatprep.subr.mxu0 0.0
    %1962 = vmatpush2.xpose.msra.mxu0 0.0
    %1963 = vmatprep.subr.mxu0 0.0
    %1964 = vmatpush2.xpose.msra.mxu0 0.0
    %1965 = vmatprep.subr.mxu0 0.0
    %1966 = vmatpush2.xpose.msra.mxu0 0.0
    %1967 = vmatprep.subr.mxu0 0.0
    %1968 = vmatpush2.xpose.msra.mxu0 0.0
    %1969 = vmatprep.mubr.f32.mxu0 0.0
    %v1970 = vand.u32 %v1526, 4294901760
    %1971 = vmatmul.mubr.f32.gmra.mxu0 %v1970
    %v1972 = vpop.f32.mrf.mxu0
    %v1973 = vadd.f32 %v1901, %v1972
    %v1974 = vpop.f32.mrf.mxu0
    %1975 = vdwg.mxu0
    %1976 = vrot.lane.b32.xlu0 %v610, 96
    %v1977 = vpop.permute.xlu0 %1976
    %v1978 = vsel %vm621, %v610, 0
    %v1980 = vsel %vm621, %v1977, 0
    %1982 = vmatprep.subr.mxu0 0.0
    %1983 = vmatpush1.xpose.msra.mxu0 0.0
    %1984 = vmatprep.subr.mxu0 0.0
    %1985 = vmatpush1.xpose.msra.mxu0 0.0
    %1986 = vmatprep.subr.mxu0 0.0
    %1987 = vmatpush1.xpose.msra.mxu0 0.0
    %1988 = vmatprep.subr.mxu0 0.0
    %1989 = vmatpush1.xpose.msra.mxu0 0.0
    %1990 = vmatprep.subr.mxu0 0.0
    %1991 = vmatpush1.xpose.msra.mxu0 0.0
    %1992 = vmatprep.subr.mxu0 0.0
    %1993 = vmatpush1.xpose.msra.mxu0 0.0
    %1994 = vmatprep.subr.mxu0 0.0
    %1995 = vmatpush1.xpose.msra.mxu0 0.0
    %1996 = vmatprep.subr.mxu0 0.0
    %1997 = vmatpush1.xpose.msra.mxu0 0.0
    %1998 = vmatprep.subr.mxu0 0.0
    %1999 = vmatpush1.xpose.msra.mxu0 0.0
    %2000 = vmatprep.subr.mxu0 0.0
    %2001 = vmatpush1.xpose.msra.mxu0 0.0
    %2002 = vmatprep.subr.mxu0 0.0
    %2003 = vmatpush1.xpose.msra.mxu0 0.0
    %2004 = vmatprep.subr.mxu0 0.0
    %2005 = vmatpush1.xpose.msra.mxu0 0.0
    %2006 = vmatprep.subr.mxu0 0.0
    %2007 = vmatpush1.xpose.msra.mxu0 0.0
    %2008 = vmatprep.subr.mxu0 0.0
    %2009 = vmatpush1.xpose.msra.mxu0 0.0
    %2010 = vmatprep.subr.mxu0 0.0
    %2011 = vmatpush1.xpose.msra.mxu0 0.0
    %2012 = vmatprep.subr.mxu0 0.0
    %v2013 = vand.u32 %v1980, 4294901760
    %2014 = vmatpush1.xpose.msra.mxu0 %v2013
    %2015 = vmatprep.subr.mxu0 0.0
    %2016 = vmatpush2.xpose.msra.mxu0 0.0
    %2017 = vmatprep.subr.mxu0 0.0
    %2018 = vmatpush2.xpose.msra.mxu0 0.0
    %2019 = vmatprep.subr.mxu0 0.0
    %2020 = vmatpush2.xpose.msra.mxu0 0.0
    %2021 = vmatprep.subr.mxu0 0.0
    %2022 = vmatpush2.xpose.msra.mxu0 0.0
    %2023 = vmatprep.subr.mxu0 0.0
    %2024 = vmatpush2.xpose.msra.mxu0 0.0
    %2025 = vmatprep.subr.mxu0 0.0
    %2026 = vmatpush2.xpose.msra.mxu0 0.0
    %2027 = vmatprep.subr.mxu0 0.0
    %2028 = vmatpush2.xpose.msra.mxu0 0.0
    %2029 = vmatprep.subr.mxu0 0.0
    %2030 = vmatpush2.xpose.msra.mxu0 0.0
    %2031 = vmatprep.subr.mxu0 0.0
    %2032 = vmatpush2.xpose.msra.mxu0 0.0
    %2033 = vmatprep.subr.mxu0 0.0
    %2034 = vmatpush2.xpose.msra.mxu0 0.0
    %2035 = vmatprep.subr.mxu0 0.0
    %2036 = vmatpush2.xpose.msra.mxu0 0.0
    %2037 = vmatprep.subr.mxu0 0.0
    %2038 = vmatpush2.xpose.msra.mxu0 0.0
    %2039 = vmatprep.subr.mxu0 0.0
    %2040 = vmatpush2.xpose.msra.mxu0 0.0
    %2041 = vmatprep.subr.mxu0 0.0
    %2042 = vmatpush2.xpose.msra.mxu0 0.0
    %2043 = vmatprep.subr.mxu0 0.0
    %2044 = vmatpush2.xpose.msra.mxu0 0.0
    %2045 = vmatprep.subr.mxu0 0.0
    %2046 = vmatpush2.xpose.msra.mxu0 0.0
    %2047 = vmatprep.mubr.f32.mxu0 0.0
    %v2048 = vand.u32 %v1978, 4294901760
    %v2049 = vsub.f32 %v1978, %v2048
    %v2050 = vand.u32 %v2049, 4294901760
    %v2051 = vsub.f32 %v2049, %v2050
    %v2052 = vand.u32 %v2051, 4294901760
    %2053 = vmatmul.mubr.f32.gmra.mxu0 %v2052
    %v2054 = vpop.f32.mrf.mxu0
    %v2055 = vadd.f32 0.0, %v2054
    %v2056 = vpop.f32.mrf.mxu0
    %2057 = vdwg.mxu0
    %2058 = vmatprep.subr.mxu0 0.0
    %2059 = vmatpush1.xpose.msra.mxu0 0.0
    %2060 = vmatprep.subr.mxu0 0.0
    %2061 = vmatpush1.xpose.msra.mxu0 0.0
    %2062 = vmatprep.subr.mxu0 0.0
    %2063 = vmatpush1.xpose.msra.mxu0 0.0
    %2064 = vmatprep.subr.mxu0 0.0
    %2065 = vmatpush1.xpose.msra.mxu0 0.0
    %2066 = vmatprep.subr.mxu0 0.0
    %2067 = vmatpush1.xpose.msra.mxu0 0.0
    %2068 = vmatprep.subr.mxu0 0.0
    %2069 = vmatpush1.xpose.msra.mxu0 0.0
    %2070 = vmatprep.subr.mxu0 0.0
    %2071 = vmatpush1.xpose.msra.mxu0 0.0
    %2072 = vmatprep.subr.mxu0 0.0
    %2073 = vmatpush1.xpose.msra.mxu0 0.0
    %2074 = vmatprep.subr.mxu0 0.0
    %2075 = vmatpush1.xpose.msra.mxu0 0.0
    %2076 = vmatprep.subr.mxu0 0.0
    %2077 = vmatpush1.xpose.msra.mxu0 0.0
    %2078 = vmatprep.subr.mxu0 0.0
    %2079 = vmatpush1.xpose.msra.mxu0 0.0
    %2080 = vmatprep.subr.mxu0 0.0
    %2081 = vmatpush1.xpose.msra.mxu0 0.0
    %2082 = vmatprep.subr.mxu0 0.0
    %2083 = vmatpush1.xpose.msra.mxu0 0.0
    %2084 = vmatprep.subr.mxu0 0.0
    %2085 = vmatpush1.xpose.msra.mxu0 0.0
    %2086 = vmatprep.subr.mxu0 0.0
    %2087 = vmatpush1.xpose.msra.mxu0 0.0
    %2088 = vmatprep.subr.mxu0 0.0
    %v2089 = vand.u32 %v1980, 4294901760
    %v2090 = vsub.f32 %v1980, %v2089
    %v2091 = vand.u32 %v2090, 4294901760
    %v2092 = vsub.f32 %v2090, %v2091
    %v2093 = vand.u32 %v2092, 4294901760
    %2094 = vmatpush1.xpose.msra.mxu0 %v2093
    %2095 = vmatprep.subr.mxu0 0.0
    %2096 = vmatpush2.xpose.msra.mxu0 0.0
    %2097 = vmatprep.subr.mxu0 0.0
    %2098 = vmatpush2.xpose.msra.mxu0 0.0
    %2099 = vmatprep.subr.mxu0 0.0
    %2100 = vmatpush2.xpose.msra.mxu0 0.0
    %2101 = vmatprep.subr.mxu0 0.0
    %2102 = vmatpush2.xpose.msra.mxu0 0.0
    %2103 = vmatprep.subr.mxu0 0.0
    %2104 = vmatpush2.xpose.msra.mxu0 0.0
    %2105 = vmatprep.subr.mxu0 0.0
    %2106 = vmatpush2.xpose.msra.mxu0 0.0
    %2107 = vmatprep.subr.mxu0 0.0
    %2108 = vmatpush2.xpose.msra.mxu0 0.0
    %2109 = vmatprep.subr.mxu0 0.0
    %2110 = vmatpush2.xpose.msra.mxu0 0.0
    %2111 = vmatprep.subr.mxu0 0.0
    %2112 = vmatpush2.xpose.msra.mxu0 0.0
    %2113 = vmatprep.subr.mxu0 0.0
    %2114 = vmatpush2.xpose.msra.mxu0 0.0
    %2115 = vmatprep.subr.mxu0 0.0
    %2116 = vmatpush2.xpose.msra.mxu0 0.0
    %2117 = vmatprep.subr.mxu0 0.0
    %2118 = vmatpush2.xpose.msra.mxu0 0.0
    %2119 = vmatprep.subr.mxu0 0.0
    %2120 = vmatpush2.xpose.msra.mxu0 0.0
    %2121 = vmatprep.subr.mxu0 0.0
    %2122 = vmatpush2.xpose.msra.mxu0 0.0
    %2123 = vmatprep.subr.mxu0 0.0
    %2124 = vmatpush2.xpose.msra.mxu0 0.0
    %2125 = vmatprep.subr.mxu0 0.0
    %2126 = vmatpush2.xpose.msra.mxu0 0.0
    %2127 = vmatprep.mubr.f32.mxu0 0.0
    %v2128 = vand.u32 %v1978, 4294901760
    %2129 = vmatmul.mubr.f32.gmra.mxu0 %v2128
    %v2130 = vpop.f32.mrf.mxu0
    %v2131 = vadd.f32 %v2055, %v2130
    %v2132 = vpop.f32.mrf.mxu0
    %2133 = vdwg.mxu0
    %2134 = vmatprep.subr.mxu0 0.0
    %2135 = vmatpush1.xpose.msra.mxu0 0.0
    %2136 = vmatprep.subr.mxu0 0.0
    %2137 = vmatpush1.xpose.msra.mxu0 0.0
    %2138 = vmatprep.subr.mxu0 0.0
    %2139 = vmatpush1.xpose.msra.mxu0 0.0
    %2140 = vmatprep.subr.mxu0 0.0
    %2141 = vmatpush1.xpose.msra.mxu0 0.0
    %2142 = vmatprep.subr.mxu0 0.0
    %2143 = vmatpush1.xpose.msra.mxu0 0.0
    %2144 = vmatprep.subr.mxu0 0.0
    %2145 = vmatpush1.xpose.msra.mxu0 0.0
    %2146 = vmatprep.subr.mxu0 0.0
    %2147 = vmatpush1.xpose.msra.mxu0 0.0
    %2148 = vmatprep.subr.mxu0 0.0
    %2149 = vmatpush1.xpose.msra.mxu0 0.0
    %2150 = vmatprep.subr.mxu0 0.0
    %2151 = vmatpush1.xpose.msra.mxu0 0.0
    %2152 = vmatprep.subr.mxu0 0.0
    %2153 = vmatpush1.xpose.msra.mxu0 0.0
    %2154 = vmatprep.subr.mxu0 0.0
    %2155 = vmatpush1.xpose.msra.mxu0 0.0
    %2156 = vmatprep.subr.mxu0 0.0
    %2157 = vmatpush1.xpose.msra.mxu0 0.0
    %2158 = vmatprep.subr.mxu0 0.0
    %2159 = vmatpush1.xpose.msra.mxu0 0.0
    %2160 = vmatprep.subr.mxu0 0.0
    %2161 = vmatpush1.xpose.msra.mxu0 0.0
    %2162 = vmatprep.subr.mxu0 0.0
    %2163 = vmatpush1.xpose.msra.mxu0 0.0
    %2164 = vmatprep.subr.mxu0 0.0
    %v2165 = vand.u32 %v1980, 4294901760
    %v2166 = vsub.f32 %v1980, %v2165
    %2167 = vmatpush1.xpose.msra.mxu0 %v2166
    %2168 = vmatprep.subr.mxu0 0.0
    %2169 = vmatpush2.xpose.msra.mxu0 0.0
    %2170 = vmatprep.subr.mxu0 0.0
    %2171 = vmatpush2.xpose.msra.mxu0 0.0
    %2172 = vmatprep.subr.mxu0 0.0
    %2173 = vmatpush2.xpose.msra.mxu0 0.0
    %2174 = vmatprep.subr.mxu0 0.0
    %2175 = vmatpush2.xpose.msra.mxu0 0.0
    %2176 = vmatprep.subr.mxu0 0.0
    %2177 = vmatpush2.xpose.msra.mxu0 0.0
    %2178 = vmatprep.subr.mxu0 0.0
    %2179 = vmatpush2.xpose.msra.mxu0 0.0
    %2180 = vmatprep.subr.mxu0 0.0
    %2181 = vmatpush2.xpose.msra.mxu0 0.0
    %2182 = vmatprep.subr.mxu0 0.0
    %2183 = vmatpush2.xpose.msra.mxu0 0.0
    %2184 = vmatprep.subr.mxu0 0.0
    %2185 = vmatpush2.xpose.msra.mxu0 0.0
    %2186 = vmatprep.subr.mxu0 0.0
    %2187 = vmatpush2.xpose.msra.mxu0 0.0
    %2188 = vmatprep.subr.mxu0 0.0
    %2189 = vmatpush2.xpose.msra.mxu0 0.0
    %2190 = vmatprep.subr.mxu0 0.0
    %2191 = vmatpush2.xpose.msra.mxu0 0.0
    %2192 = vmatprep.subr.mxu0 0.0
    %2193 = vmatpush2.xpose.msra.mxu0 0.0
    %2194 = vmatprep.subr.mxu0 0.0
    %2195 = vmatpush2.xpose.msra.mxu0 0.0
    %2196 = vmatprep.subr.mxu0 0.0
    %2197 = vmatpush2.xpose.msra.mxu0 0.0
    %2198 = vmatprep.subr.mxu0 0.0
    %2199 = vmatpush2.xpose.msra.mxu0 0.0
    %2200 = vmatprep.mubr.f32.mxu0 0.0
    %v2201 = vand.u32 %v1978, 4294901760
    %v2202 = vsub.f32 %v1978, %v2201
    %2203 = vmatmul.mubr.f32.gmra.mxu0 %v2202
    %v2204 = vpop.f32.mrf.mxu0
    %v2205 = vadd.f32 %v2131, %v2204
    %v2206 = vpop.f32.mrf.mxu0
    %2207 = vdwg.mxu0
    %2208 = vmatprep.subr.mxu0 0.0
    %2209 = vmatpush1.xpose.msra.mxu0 0.0
    %2210 = vmatprep.subr.mxu0 0.0
    %2211 = vmatpush1.xpose.msra.mxu0 0.0
    %2212 = vmatprep.subr.mxu0 0.0
    %2213 = vmatpush1.xpose.msra.mxu0 0.0
    %2214 = vmatprep.subr.mxu0 0.0
    %2215 = vmatpush1.xpose.msra.mxu0 0.0
    %2216 = vmatprep.subr.mxu0 0.0
    %2217 = vmatpush1.xpose.msra.mxu0 0.0
    %2218 = vmatprep.subr.mxu0 0.0
    %2219 = vmatpush1.xpose.msra.mxu0 0.0
    %2220 = vmatprep.subr.mxu0 0.0
    %2221 = vmatpush1.xpose.msra.mxu0 0.0
    %2222 = vmatprep.subr.mxu0 0.0
    %2223 = vmatpush1.xpose.msra.mxu0 0.0
    %2224 = vmatprep.subr.mxu0 0.0
    %2225 = vmatpush1.xpose.msra.mxu0 0.0
    %2226 = vmatprep.subr.mxu0 0.0
    %2227 = vmatpush1.xpose.msra.mxu0 0.0
    %2228 = vmatprep.subr.mxu0 0.0
    %2229 = vmatpush1.xpose.msra.mxu0 0.0
    %2230 = vmatprep.subr.mxu0 0.0
    %2231 = vmatpush1.xpose.msra.mxu0 0.0
    %2232 = vmatprep.subr.mxu0 0.0
    %2233 = vmatpush1.xpose.msra.mxu0 0.0
    %2234 = vmatprep.subr.mxu0 0.0
    %2235 = vmatpush1.xpose.msra.mxu0 0.0
    %2236 = vmatprep.subr.mxu0 0.0
    %2237 = vmatpush1.xpose.msra.mxu0 0.0
    %2238 = vmatprep.subr.mxu0 0.0
    %v2239 = vand.u32 %v1980, 4294901760
    %2240 = vmatpush1.xpose.msra.mxu0 %v2239
    %2241 = vmatprep.subr.mxu0 0.0
    %2242 = vmatpush2.xpose.msra.mxu0 0.0
    %2243 = vmatprep.subr.mxu0 0.0
    %2244 = vmatpush2.xpose.msra.mxu0 0.0
    %2245 = vmatprep.subr.mxu0 0.0
    %2246 = vmatpush2.xpose.msra.mxu0 0.0
    %2247 = vmatprep.subr.mxu0 0.0
    %2248 = vmatpush2.xpose.msra.mxu0 0.0
    %2249 = vmatprep.subr.mxu0 0.0
    %2250 = vmatpush2.xpose.msra.mxu0 0.0
    %2251 = vmatprep.subr.mxu0 0.0
    %2252 = vmatpush2.xpose.msra.mxu0 0.0
    %2253 = vmatprep.subr.mxu0 0.0
    %2254 = vmatpush2.xpose.msra.mxu0 0.0
    %2255 = vmatprep.subr.mxu0 0.0
    %2256 = vmatpush2.xpose.msra.mxu0 0.0
    %2257 = vmatprep.subr.mxu0 0.0
    %2258 = vmatpush2.xpose.msra.mxu0 0.0
    %2259 = vmatprep.subr.mxu0 0.0
    %2260 = vmatpush2.xpose.msra.mxu0 0.0
    %2261 = vmatprep.subr.mxu0 0.0
    %2262 = vmatpush2.xpose.msra.mxu0 0.0
    %2263 = vmatprep.subr.mxu0 0.0
    %2264 = vmatpush2.xpose.msra.mxu0 0.0
    %2265 = vmatprep.subr.mxu0 0.0
    %2266 = vmatpush2.xpose.msra.mxu0 0.0
    %2267 = vmatprep.subr.mxu0 0.0
    %2268 = vmatpush2.xpose.msra.mxu0 0.0
    %2269 = vmatprep.subr.mxu0 0.0
    %2270 = vmatpush2.xpose.msra.mxu0 0.0
    %2271 = vmatprep.subr.mxu0 0.0
    %2272 = vmatpush2.xpose.msra.mxu0 0.0
    %2273 = vmatprep.mubr.f32.mxu0 0.0
    %v2274 = vand.u32 %v1978, 4294901760
    %v2275 = vsub.f32 %v1978, %v2274
    %v2276 = vand.u32 %v2275, 4294901760
    %2277 = vmatmul.mubr.f32.gmra.mxu0 %v2276
    %v2278 = vpop.f32.mrf.mxu0
    %v2279 = vadd.f32 %v2205, %v2278
    %v2280 = vpop.f32.mrf.mxu0
    %2281 = vdwg.mxu0
    %2282 = vmatprep.subr.mxu0 0.0
    %2283 = vmatpush1.xpose.msra.mxu0 0.0
    %2284 = vmatprep.subr.mxu0 0.0
    %2285 = vmatpush1.xpose.msra.mxu0 0.0
    %2286 = vmatprep.subr.mxu0 0.0
    %2287 = vmatpush1.xpose.msra.mxu0 0.0
    %2288 = vmatprep.subr.mxu0 0.0
    %2289 = vmatpush1.xpose.msra.mxu0 0.0
    %2290 = vmatprep.subr.mxu0 0.0
    %2291 = vmatpush1.xpose.msra.mxu0 0.0
    %2292 = vmatprep.subr.mxu0 0.0
    %2293 = vmatpush1.xpose.msra.mxu0 0.0
    %2294 = vmatprep.subr.mxu0 0.0
    %2295 = vmatpush1.xpose.msra.mxu0 0.0
    %2296 = vmatprep.subr.mxu0 0.0
    %2297 = vmatpush1.xpose.msra.mxu0 0.0
    %2298 = vmatprep.subr.mxu0 0.0
    %2299 = vmatpush1.xpose.msra.mxu0 0.0
    %2300 = vmatprep.subr.mxu0 0.0
    %2301 = vmatpush1.xpose.msra.mxu0 0.0
    %2302 = vmatprep.subr.mxu0 0.0
    %2303 = vmatpush1.xpose.msra.mxu0 0.0
    %2304 = vmatprep.subr.mxu0 0.0
    %2305 = vmatpush1.xpose.msra.mxu0 0.0
    %2306 = vmatprep.subr.mxu0 0.0
    %2307 = vmatpush1.xpose.msra.mxu0 0.0
    %2308 = vmatprep.subr.mxu0 0.0
    %2309 = vmatpush1.xpose.msra.mxu0 0.0
    %2310 = vmatprep.subr.mxu0 0.0
    %2311 = vmatpush1.xpose.msra.mxu0 0.0
    %2312 = vmatprep.subr.mxu0 0.0
    %v2313 = vand.u32 %v1980, 4294901760
    %v2314 = vsub.f32 %v1980, %v2313
    %v2315 = vand.u32 %v2314, 4294901760
    %2316 = vmatpush1.xpose.msra.mxu0 %v2315
    %2317 = vmatprep.subr.mxu0 0.0
    %2318 = vmatpush2.xpose.msra.mxu0 0.0
    %2319 = vmatprep.subr.mxu0 0.0
    %2320 = vmatpush2.xpose.msra.mxu0 0.0
    %2321 = vmatprep.subr.mxu0 0.0
    %2322 = vmatpush2.xpose.msra.mxu0 0.0
    %2323 = vmatprep.subr.mxu0 0.0
    %2324 = vmatpush2.xpose.msra.mxu0 0.0
    %2325 = vmatprep.subr.mxu0 0.0
    %2326 = vmatpush2.xpose.msra.mxu0 0.0
    %2327 = vmatprep.subr.mxu0 0.0
    %2328 = vmatpush2.xpose.msra.mxu0 0.0
    %2329 = vmatprep.subr.mxu0 0.0
    %2330 = vmatpush2.xpose.msra.mxu0 0.0
    %2331 = vmatprep.subr.mxu0 0.0
    %2332 = vmatpush2.xpose.msra.mxu0 0.0
    %2333 = vmatprep.subr.mxu0 0.0
    %2334 = vmatpush2.xpose.msra.mxu0 0.0
    %2335 = vmatprep.subr.mxu0 0.0
    %2336 = vmatpush2.xpose.msra.mxu0 0.0
    %2337 = vmatprep.subr.mxu0 0.0
    %2338 = vmatpush2.xpose.msra.mxu0 0.0
    %2339 = vmatprep.subr.mxu0 0.0
    %2340 = vmatpush2.xpose.msra.mxu0 0.0
    %2341 = vmatprep.subr.mxu0 0.0
    %2342 = vmatpush2.xpose.msra.mxu0 0.0
    %2343 = vmatprep.subr.mxu0 0.0
    %2344 = vmatpush2.xpose.msra.mxu0 0.0
    %2345 = vmatprep.subr.mxu0 0.0
    %2346 = vmatpush2.xpose.msra.mxu0 0.0
    %2347 = vmatprep.subr.mxu0 0.0
    %2348 = vmatpush2.xpose.msra.mxu0 0.0
    %2349 = vmatprep.mubr.f32.mxu0 0.0
    %v2350 = vand.u32 %v1978, 4294901760
    %2351 = vmatmul.mubr.f32.gmra.mxu0 %v2350
    %v2352 = vpop.f32.mrf.mxu0
    %v2353 = vadd.f32 %v2279, %v2352
    %v2354 = vpop.f32.mrf.mxu0
    %2355 = vdwg.mxu0
    %2356 = vmatprep.subr.mxu0 0.0
    %2357 = vmatpush1.xpose.msra.mxu0 0.0
    %2358 = vmatprep.subr.mxu0 0.0
    %2359 = vmatpush1.xpose.msra.mxu0 0.0
    %2360 = vmatprep.subr.mxu0 0.0
    %2361 = vmatpush1.xpose.msra.mxu0 0.0
    %2362 = vmatprep.subr.mxu0 0.0
    %2363 = vmatpush1.xpose.msra.mxu0 0.0
    %2364 = vmatprep.subr.mxu0 0.0
    %2365 = vmatpush1.xpose.msra.mxu0 0.0
    %2366 = vmatprep.subr.mxu0 0.0
    %2367 = vmatpush1.xpose.msra.mxu0 0.0
    %2368 = vmatprep.subr.mxu0 0.0
    %2369 = vmatpush1.xpose.msra.mxu0 0.0
    %2370 = vmatprep.subr.mxu0 0.0
    %2371 = vmatpush1.xpose.msra.mxu0 0.0
    %2372 = vmatprep.subr.mxu0 0.0
    %2373 = vmatpush1.xpose.msra.mxu0 0.0
    %2374 = vmatprep.subr.mxu0 0.0
    %2375 = vmatpush1.xpose.msra.mxu0 0.0
    %2376 = vmatprep.subr.mxu0 0.0
    %2377 = vmatpush1.xpose.msra.mxu0 0.0
    %2378 = vmatprep.subr.mxu0 0.0
    %2379 = vmatpush1.xpose.msra.mxu0 0.0
    %2380 = vmatprep.subr.mxu0 0.0
    %2381 = vmatpush1.xpose.msra.mxu0 0.0
    %2382 = vmatprep.subr.mxu0 0.0
    %2383 = vmatpush1.xpose.msra.mxu0 0.0
    %2384 = vmatprep.subr.mxu0 0.0
    %2385 = vmatpush1.xpose.msra.mxu0 0.0
    %2386 = vmatprep.subr.mxu0 0.0
    %v2387 = vand.u32 %v1980, 4294901760
    %2388 = vmatpush1.xpose.msra.mxu0 %v2387
    %2389 = vmatprep.subr.mxu0 0.0
    %2390 = vmatpush2.xpose.msra.mxu0 0.0
    %2391 = vmatprep.subr.mxu0 0.0
    %2392 = vmatpush2.xpose.msra.mxu0 0.0
    %2393 = vmatprep.subr.mxu0 0.0
    %2394 = vmatpush2.xpose.msra.mxu0 0.0
    %2395 = vmatprep.subr.mxu0 0.0
    %2396 = vmatpush2.xpose.msra.mxu0 0.0
    %2397 = vmatprep.subr.mxu0 0.0
    %2398 = vmatpush2.xpose.msra.mxu0 0.0
    %2399 = vmatprep.subr.mxu0 0.0
    %2400 = vmatpush2.xpose.msra.mxu0 0.0
    %2401 = vmatprep.subr.mxu0 0.0
    %2402 = vmatpush2.xpose.msra.mxu0 0.0
    %2403 = vmatprep.subr.mxu0 0.0
    %2404 = vmatpush2.xpose.msra.mxu0 0.0
    %2405 = vmatprep.subr.mxu0 0.0
    %2406 = vmatpush2.xpose.msra.mxu0 0.0
    %2407 = vmatprep.subr.mxu0 0.0
    %2408 = vmatpush2.xpose.msra.mxu0 0.0
    %2409 = vmatprep.subr.mxu0 0.0
    %2410 = vmatpush2.xpose.msra.mxu0 0.0
    %2411 = vmatprep.subr.mxu0 0.0
    %2412 = vmatpush2.xpose.msra.mxu0 0.0
    %2413 = vmatprep.subr.mxu0 0.0
    %2414 = vmatpush2.xpose.msra.mxu0 0.0
    %2415 = vmatprep.subr.mxu0 0.0
    %2416 = vmatpush2.xpose.msra.mxu0 0.0
    %2417 = vmatprep.subr.mxu0 0.0
    %2418 = vmatpush2.xpose.msra.mxu0 0.0
    %2419 = vmatprep.subr.mxu0 0.0
    %2420 = vmatpush2.xpose.msra.mxu0 0.0
    %2421 = vmatprep.mubr.f32.mxu0 0.0
    %v2422 = vand.u32 %v1978, 4294901760
    %2423 = vmatmul.mubr.f32.gmra.mxu0 %v2422
    %v2424 = vpop.f32.mrf.mxu0
    %v2425 = vadd.f32 %v2353, %v2424
    %v2426 = vpop.f32.mrf.mxu0
    %2427 = vdwg.mxu0
    %2428 = vrot.lane.b32.xlu0 %v612, 96
    %v2429 = vpop.permute.xlu0 %2428
    %v2430 = vsel %vm621, %v612, 0
    %v2432 = vsel %vm621, %v2429, 0
    %2434 = vmatprep.subr.mxu0 0.0
    %2435 = vmatpush1.xpose.msra.mxu0 0.0
    %2436 = vmatprep.subr.mxu0 0.0
    %2437 = vmatpush1.xpose.msra.mxu0 0.0
    %2438 = vmatprep.subr.mxu0 0.0
    %2439 = vmatpush1.xpose.msra.mxu0 0.0
    %2440 = vmatprep.subr.mxu0 0.0
    %2441 = vmatpush1.xpose.msra.mxu0 0.0
    %2442 = vmatprep.subr.mxu0 0.0
    %2443 = vmatpush1.xpose.msra.mxu0 0.0
    %2444 = vmatprep.subr.mxu0 0.0
    %2445 = vmatpush1.xpose.msra.mxu0 0.0
    %2446 = vmatprep.subr.mxu0 0.0
    %2447 = vmatpush1.xpose.msra.mxu0 0.0
    %2448 = vmatprep.subr.mxu0 0.0
    %2449 = vmatpush1.xpose.msra.mxu0 0.0
    %2450 = vmatprep.subr.mxu0 0.0
    %2451 = vmatpush1.xpose.msra.mxu0 0.0
    %2452 = vmatprep.subr.mxu0 0.0
    %2453 = vmatpush1.xpose.msra.mxu0 0.0
    %2454 = vmatprep.subr.mxu0 0.0
    %2455 = vmatpush1.xpose.msra.mxu0 0.0
    %2456 = vmatprep.subr.mxu0 0.0
    %2457 = vmatpush1.xpose.msra.mxu0 0.0
    %2458 = vmatprep.subr.mxu0 0.0
    %2459 = vmatpush1.xpose.msra.mxu0 0.0
    %2460 = vmatprep.subr.mxu0 0.0
    %2461 = vmatpush1.xpose.msra.mxu0 0.0
    %2462 = vmatprep.subr.mxu0 0.0
    %2463 = vmatpush1.xpose.msra.mxu0 0.0
    %2464 = vmatprep.subr.mxu0 0.0
    %v2465 = vand.u32 %v2432, 4294901760
    %2466 = vmatpush1.xpose.msra.mxu0 %v2465
    %2467 = vmatprep.subr.mxu0 0.0
    %2468 = vmatpush2.xpose.msra.mxu0 0.0
    %2469 = vmatprep.subr.mxu0 0.0
    %2470 = vmatpush2.xpose.msra.mxu0 0.0
    %2471 = vmatprep.subr.mxu0 0.0
    %2472 = vmatpush2.xpose.msra.mxu0 0.0
    %2473 = vmatprep.subr.mxu0 0.0
    %2474 = vmatpush2.xpose.msra.mxu0 0.0
    %2475 = vmatprep.subr.mxu0 0.0
    %2476 = vmatpush2.xpose.msra.mxu0 0.0
    %2477 = vmatprep.subr.mxu0 0.0
    %2478 = vmatpush2.xpose.msra.mxu0 0.0
    %2479 = vmatprep.subr.mxu0 0.0
    %2480 = vmatpush2.xpose.msra.mxu0 0.0
    %2481 = vmatprep.subr.mxu0 0.0
    %2482 = vmatpush2.xpose.msra.mxu0 0.0
    %2483 = vmatprep.subr.mxu0 0.0
    %2484 = vmatpush2.xpose.msra.mxu0 0.0
    %2485 = vmatprep.subr.mxu0 0.0
    %2486 = vmatpush2.xpose.msra.mxu0 0.0
    %2487 = vmatprep.subr.mxu0 0.0
    %2488 = vmatpush2.xpose.msra.mxu0 0.0
    %2489 = vmatprep.subr.mxu0 0.0
    %2490 = vmatpush2.xpose.msra.mxu0 0.0
    %2491 = vmatprep.subr.mxu0 0.0
    %2492 = vmatpush2.xpose.msra.mxu0 0.0
    %2493 = vmatprep.subr.mxu0 0.0
    %2494 = vmatpush2.xpose.msra.mxu0 0.0
    %2495 = vmatprep.subr.mxu0 0.0
    %2496 = vmatpush2.xpose.msra.mxu0 0.0
    %2497 = vmatprep.subr.mxu0 0.0
    %2498 = vmatpush2.xpose.msra.mxu0 0.0
    %2499 = vmatprep.mubr.f32.mxu0 0.0
    %v2500 = vand.u32 %v2430, 4294901760
    %v2501 = vsub.f32 %v2430, %v2500
    %v2502 = vand.u32 %v2501, 4294901760
    %v2503 = vsub.f32 %v2501, %v2502
    %v2504 = vand.u32 %v2503, 4294901760
    %2505 = vmatmul.mubr.f32.gmra.mxu0 %v2504
    %v2506 = vpop.f32.mrf.mxu0
    %v2507 = vadd.f32 0.0, %v2506
    %v2508 = vpop.f32.mrf.mxu0
    %2509 = vdwg.mxu0
    %2510 = vmatprep.subr.mxu0 0.0
    %2511 = vmatpush1.xpose.msra.mxu0 0.0
    %2512 = vmatprep.subr.mxu0 0.0
    %2513 = vmatpush1.xpose.msra.mxu0 0.0
    %2514 = vmatprep.subr.mxu0 0.0
    %2515 = vmatpush1.xpose.msra.mxu0 0.0
    %2516 = vmatprep.subr.mxu0 0.0
    %2517 = vmatpush1.xpose.msra.mxu0 0.0
    %2518 = vmatprep.subr.mxu0 0.0
    %2519 = vmatpush1.xpose.msra.mxu0 0.0
    %2520 = vmatprep.subr.mxu0 0.0
    %2521 = vmatpush1.xpose.msra.mxu0 0.0
    %2522 = vmatprep.subr.mxu0 0.0
    %2523 = vmatpush1.xpose.msra.mxu0 0.0
    %2524 = vmatprep.subr.mxu0 0.0
    %2525 = vmatpush1.xpose.msra.mxu0 0.0
    %2526 = vmatprep.subr.mxu0 0.0
    %2527 = vmatpush1.xpose.msra.mxu0 0.0
    %2528 = vmatprep.subr.mxu0 0.0
    %2529 = vmatpush1.xpose.msra.mxu0 0.0
    %2530 = vmatprep.subr.mxu0 0.0
    %2531 = vmatpush1.xpose.msra.mxu0 0.0
    %2532 = vmatprep.subr.mxu0 0.0
    %2533 = vmatpush1.xpose.msra.mxu0 0.0
    %2534 = vmatprep.subr.mxu0 0.0
    %2535 = vmatpush1.xpose.msra.mxu0 0.0
    %2536 = vmatprep.subr.mxu0 0.0
    %2537 = vmatpush1.xpose.msra.mxu0 0.0
    %2538 = vmatprep.subr.mxu0 0.0
    %2539 = vmatpush1.xpose.msra.mxu0 0.0
    %2540 = vmatprep.subr.mxu0 0.0
    %v2541 = vand.u32 %v2432, 4294901760
    %v2542 = vsub.f32 %v2432, %v2541
    %v2543 = vand.u32 %v2542, 4294901760
    %v2544 = vsub.f32 %v2542, %v2543
    %v2545 = vand.u32 %v2544, 4294901760
    %2546 = vmatpush1.xpose.msra.mxu0 %v2545
    %2547 = vmatprep.subr.mxu0 0.0
    %2548 = vmatpush2.xpose.msra.mxu0 0.0
    %2549 = vmatprep.subr.mxu0 0.0
    %2550 = vmatpush2.xpose.msra.mxu0 0.0
    %2551 = vmatprep.subr.mxu0 0.0
    %2552 = vmatpush2.xpose.msra.mxu0 0.0
    %2553 = vmatprep.subr.mxu0 0.0
    %2554 = vmatpush2.xpose.msra.mxu0 0.0
    %2555 = vmatprep.subr.mxu0 0.0
    %2556 = vmatpush2.xpose.msra.mxu0 0.0
    %2557 = vmatprep.subr.mxu0 0.0
    %2558 = vmatpush2.xpose.msra.mxu0 0.0
    %2559 = vmatprep.subr.mxu0 0.0
    %2560 = vmatpush2.xpose.msra.mxu0 0.0
    %2561 = vmatprep.subr.mxu0 0.0
    %2562 = vmatpush2.xpose.msra.mxu0 0.0
    %2563 = vmatprep.subr.mxu0 0.0
    %2564 = vmatpush2.xpose.msra.mxu0 0.0
    %2565 = vmatprep.subr.mxu0 0.0
    %2566 = vmatpush2.xpose.msra.mxu0 0.0
    %2567 = vmatprep.subr.mxu0 0.0
    %2568 = vmatpush2.xpose.msra.mxu0 0.0
    %2569 = vmatprep.subr.mxu0 0.0
    %2570 = vmatpush2.xpose.msra.mxu0 0.0
    %2571 = vmatprep.subr.mxu0 0.0
    %2572 = vmatpush2.xpose.msra.mxu0 0.0
    %2573 = vmatprep.subr.mxu0 0.0
    %2574 = vmatpush2.xpose.msra.mxu0 0.0
    %2575 = vmatprep.subr.mxu0 0.0
    %2576 = vmatpush2.xpose.msra.mxu0 0.0
    %2577 = vmatprep.subr.mxu0 0.0
    %2578 = vmatpush2.xpose.msra.mxu0 0.0
    %2579 = vmatprep.mubr.f32.mxu0 0.0
    %v2580 = vand.u32 %v2430, 4294901760
    %2581 = vmatmul.mubr.f32.gmra.mxu0 %v2580
    %v2582 = vpop.f32.mrf.mxu0
    %v2583 = vadd.f32 %v2507, %v2582
    %v2584 = vpop.f32.mrf.mxu0
    %2585 = vdwg.mxu0
    %2586 = vmatprep.subr.mxu0 0.0
    %2587 = vmatpush1.xpose.msra.mxu0 0.0
    %2588 = vmatprep.subr.mxu0 0.0
    %2589 = vmatpush1.xpose.msra.mxu0 0.0
    %2590 = vmatprep.subr.mxu0 0.0
    %2591 = vmatpush1.xpose.msra.mxu0 0.0
    %2592 = vmatprep.subr.mxu0 0.0
    %2593 = vmatpush1.xpose.msra.mxu0 0.0
    %2594 = vmatprep.subr.mxu0 0.0
    %2595 = vmatpush1.xpose.msra.mxu0 0.0
    %2596 = vmatprep.subr.mxu0 0.0
    %2597 = vmatpush1.xpose.msra.mxu0 0.0
    %2598 = vmatprep.subr.mxu0 0.0
    %2599 = vmatpush1.xpose.msra.mxu0 0.0
    %2600 = vmatprep.subr.mxu0 0.0
    %2601 = vmatpush1.xpose.msra.mxu0 0.0
    %2602 = vmatprep.subr.mxu0 0.0
    %2603 = vmatpush1.xpose.msra.mxu0 0.0
    %2604 = vmatprep.subr.mxu0 0.0
    %2605 = vmatpush1.xpose.msra.mxu0 0.0
    %2606 = vmatprep.subr.mxu0 0.0
    %2607 = vmatpush1.xpose.msra.mxu0 0.0
    %2608 = vmatprep.subr.mxu0 0.0
    %2609 = vmatpush1.xpose.msra.mxu0 0.0
    %2610 = vmatprep.subr.mxu0 0.0
    %2611 = vmatpush1.xpose.msra.mxu0 0.0
    %2612 = vmatprep.subr.mxu0 0.0
    %2613 = vmatpush1.xpose.msra.mxu0 0.0
    %2614 = vmatprep.subr.mxu0 0.0
    %2615 = vmatpush1.xpose.msra.mxu0 0.0
    %2616 = vmatprep.subr.mxu0 0.0
    %v2617 = vand.u32 %v2432, 4294901760
    %v2618 = vsub.f32 %v2432, %v2617
    %2619 = vmatpush1.xpose.msra.mxu0 %v2618
    %2620 = vmatprep.subr.mxu0 0.0
    %2621 = vmatpush2.xpose.msra.mxu0 0.0
    %2622 = vmatprep.subr.mxu0 0.0
    %2623 = vmatpush2.xpose.msra.mxu0 0.0
    %2624 = vmatprep.subr.mxu0 0.0
    %2625 = vmatpush2.xpose.msra.mxu0 0.0
    %2626 = vmatprep.subr.mxu0 0.0
    %2627 = vmatpush2.xpose.msra.mxu0 0.0
    %2628 = vmatprep.subr.mxu0 0.0
    %2629 = vmatpush2.xpose.msra.mxu0 0.0
    %2630 = vmatprep.subr.mxu0 0.0
    %2631 = vmatpush2.xpose.msra.mxu0 0.0
    %2632 = vmatprep.subr.mxu0 0.0
    %2633 = vmatpush2.xpose.msra.mxu0 0.0
    %2634 = vmatprep.subr.mxu0 0.0
    %2635 = vmatpush2.xpose.msra.mxu0 0.0
    %2636 = vmatprep.subr.mxu0 0.0
    %2637 = vmatpush2.xpose.msra.mxu0 0.0
    %2638 = vmatprep.subr.mxu0 0.0
    %2639 = vmatpush2.xpose.msra.mxu0 0.0
    %2640 = vmatprep.subr.mxu0 0.0
    %2641 = vmatpush2.xpose.msra.mxu0 0.0
    %2642 = vmatprep.subr.mxu0 0.0
    %2643 = vmatpush2.xpose.msra.mxu0 0.0
    %2644 = vmatprep.subr.mxu0 0.0
    %2645 = vmatpush2.xpose.msra.mxu0 0.0
    %2646 = vmatprep.subr.mxu0 0.0
    %2647 = vmatpush2.xpose.msra.mxu0 0.0
    %2648 = vmatprep.subr.mxu0 0.0
    %2649 = vmatpush2.xpose.msra.mxu0 0.0
    %2650 = vmatprep.subr.mxu0 0.0
    %2651 = vmatpush2.xpose.msra.mxu0 0.0
    %2652 = vmatprep.mubr.f32.mxu0 0.0
    %v2653 = vand.u32 %v2430, 4294901760
    %v2654 = vsub.f32 %v2430, %v2653
    %2655 = vmatmul.mubr.f32.gmra.mxu0 %v2654
    %v2656 = vpop.f32.mrf.mxu0
    %v2657 = vadd.f32 %v2583, %v2656
    %v2658 = vpop.f32.mrf.mxu0
    %2659 = vdwg.mxu0
    %2660 = vmatprep.subr.mxu0 0.0
    %2661 = vmatpush1.xpose.msra.mxu0 0.0
    %2662 = vmatprep.subr.mxu0 0.0
    %2663 = vmatpush1.xpose.msra.mxu0 0.0
    %2664 = vmatprep.subr.mxu0 0.0
    %2665 = vmatpush1.xpose.msra.mxu0 0.0
    %2666 = vmatprep.subr.mxu0 0.0
    %2667 = vmatpush1.xpose.msra.mxu0 0.0
    %2668 = vmatprep.subr.mxu0 0.0
    %2669 = vmatpush1.xpose.msra.mxu0 0.0
    %2670 = vmatprep.subr.mxu0 0.0
    %2671 = vmatpush1.xpose.msra.mxu0 0.0
    %2672 = vmatprep.subr.mxu0 0.0
    %2673 = vmatpush1.xpose.msra.mxu0 0.0
    %2674 = vmatprep.subr.mxu0 0.0
    %2675 = vmatpush1.xpose.msra.mxu0 0.0
    %2676 = vmatprep.subr.mxu0 0.0
    %2677 = vmatpush1.xpose.msra.mxu0 0.0
    %2678 = vmatprep.subr.mxu0 0.0
    %2679 = vmatpush1.xpose.msra.mxu0 0.0
    %2680 = vmatprep.subr.mxu0 0.0
    %2681 = vmatpush1.xpose.msra.mxu0 0.0
    %2682 = vmatprep.subr.mxu0 0.0
    %2683 = vmatpush1.xpose.msra.mxu0 0.0
    %2684 = vmatprep.subr.mxu0 0.0
    %2685 = vmatpush1.xpose.msra.mxu0 0.0
    %2686 = vmatprep.subr.mxu0 0.0
    %2687 = vmatpush1.xpose.msra.mxu0 0.0
    %2688 = vmatprep.subr.mxu0 0.0
    %2689 = vmatpush1.xpose.msra.mxu0 0.0
    %2690 = vmatprep.subr.mxu0 0.0
    %v2691 = vand.u32 %v2432, 4294901760
    %2692 = vmatpush1.xpose.msra.mxu0 %v2691
    %2693 = vmatprep.subr.mxu0 0.0
    %2694 = vmatpush2.xpose.msra.mxu0 0.0
    %2695 = vmatprep.subr.mxu0 0.0
    %2696 = vmatpush2.xpose.msra.mxu0 0.0
    %2697 = vmatprep.subr.mxu0 0.0
    %2698 = vmatpush2.xpose.msra.mxu0 0.0
    %2699 = vmatprep.subr.mxu0 0.0
    %2700 = vmatpush2.xpose.msra.mxu0 0.0
    %2701 = vmatprep.subr.mxu0 0.0
    %2702 = vmatpush2.xpose.msra.mxu0 0.0
    %2703 = vmatprep.subr.mxu0 0.0
    %2704 = vmatpush2.xpose.msra.mxu0 0.0
    %2705 = vmatprep.subr.mxu0 0.0
    %2706 = vmatpush2.xpose.msra.mxu0 0.0
    %2707 = vmatprep.subr.mxu0 0.0
    %2708 = vmatpush2.xpose.msra.mxu0 0.0
    %2709 = vmatprep.subr.mxu0 0.0
    %2710 = vmatpush2.xpose.msra.mxu0 0.0
    %2711 = vmatprep.subr.mxu0 0.0
    %2712 = vmatpush2.xpose.msra.mxu0 0.0
    %2713 = vmatprep.subr.mxu0 0.0
    %2714 = vmatpush2.xpose.msra.mxu0 0.0
    %2715 = vmatprep.subr.mxu0 0.0
    %2716 = vmatpush2.xpose.msra.mxu0 0.0
    %2717 = vmatprep.subr.mxu0 0.0
    %2718 = vmatpush2.xpose.msra.mxu0 0.0
    %2719 = vmatprep.subr.mxu0 0.0
    %2720 = vmatpush2.xpose.msra.mxu0 0.0
    %2721 = vmatprep.subr.mxu0 0.0
    %2722 = vmatpush2.xpose.msra.mxu0 0.0
    %2723 = vmatprep.subr.mxu0 0.0
    %2724 = vmatpush2.xpose.msra.mxu0 0.0
    %2725 = vmatprep.mubr.f32.mxu0 0.0
    %v2726 = vand.u32 %v2430, 4294901760
    %v2727 = vsub.f32 %v2430, %v2726
    %v2728 = vand.u32 %v2727, 4294901760
    %2729 = vmatmul.mubr.f32.gmra.mxu0 %v2728
    %v2730 = vpop.f32.mrf.mxu0
    %v2731 = vadd.f32 %v2657, %v2730
    %v2732 = vpop.f32.mrf.mxu0
    %2733 = vdwg.mxu0
    %2734 = vmatprep.subr.mxu0 0.0
    %2735 = vmatpush1.xpose.msra.mxu0 0.0
    %2736 = vmatprep.subr.mxu0 0.0
    %2737 = vmatpush1.xpose.msra.mxu0 0.0
    %2738 = vmatprep.subr.mxu0 0.0
    %2739 = vmatpush1.xpose.msra.mxu0 0.0
    %2740 = vmatprep.subr.mxu0 0.0
    %2741 = vmatpush1.xpose.msra.mxu0 0.0
    %2742 = vmatprep.subr.mxu0 0.0
    %2743 = vmatpush1.xpose.msra.mxu0 0.0
    %2744 = vmatprep.subr.mxu0 0.0
    %2745 = vmatpush1.xpose.msra.mxu0 0.0
    %2746 = vmatprep.subr.mxu0 0.0
    %2747 = vmatpush1.xpose.msra.mxu0 0.0
    %2748 = vmatprep.subr.mxu0 0.0
    %2749 = vmatpush1.xpose.msra.mxu0 0.0
    %2750 = vmatprep.subr.mxu0 0.0
    %2751 = vmatpush1.xpose.msra.mxu0 0.0
    %2752 = vmatprep.subr.mxu0 0.0
    %2753 = vmatpush1.xpose.msra.mxu0 0.0
    %2754 = vmatprep.subr.mxu0 0.0
    %2755 = vmatpush1.xpose.msra.mxu0 0.0
    %2756 = vmatprep.subr.mxu0 0.0
    %2757 = vmatpush1.xpose.msra.mxu0 0.0
    %2758 = vmatprep.subr.mxu0 0.0
    %2759 = vmatpush1.xpose.msra.mxu0 0.0
    %2760 = vmatprep.subr.mxu0 0.0
    %2761 = vmatpush1.xpose.msra.mxu0 0.0
    %2762 = vmatprep.subr.mxu0 0.0
    %2763 = vmatpush1.xpose.msra.mxu0 0.0
    %2764 = vmatprep.subr.mxu0 0.0
    %v2765 = vand.u32 %v2432, 4294901760
    %v2766 = vsub.f32 %v2432, %v2765
    %v2767 = vand.u32 %v2766, 4294901760
    %2768 = vmatpush1.xpose.msra.mxu0 %v2767
    %2769 = vmatprep.subr.mxu0 0.0
    %2770 = vmatpush2.xpose.msra.mxu0 0.0
    %2771 = vmatprep.subr.mxu0 0.0
    %2772 = vmatpush2.xpose.msra.mxu0 0.0
    %2773 = vmatprep.subr.mxu0 0.0
    %2774 = vmatpush2.xpose.msra.mxu0 0.0
    %2775 = vmatprep.subr.mxu0 0.0
    %2776 = vmatpush2.xpose.msra.mxu0 0.0
    %2777 = vmatprep.subr.mxu0 0.0
    %2778 = vmatpush2.xpose.msra.mxu0 0.0
    %2779 = vmatprep.subr.mxu0 0.0
    %2780 = vmatpush2.xpose.msra.mxu0 0.0
    %2781 = vmatprep.subr.mxu0 0.0
    %2782 = vmatpush2.xpose.msra.mxu0 0.0
    %2783 = vmatprep.subr.mxu0 0.0
    %2784 = vmatpush2.xpose.msra.mxu0 0.0
    %2785 = vmatprep.subr.mxu0 0.0
    %2786 = vmatpush2.xpose.msra.mxu0 0.0
    %2787 = vmatprep.subr.mxu0 0.0
    %2788 = vmatpush2.xpose.msra.mxu0 0.0
    %2789 = vmatprep.subr.mxu0 0.0
    %2790 = vmatpush2.xpose.msra.mxu0 0.0
    %2791 = vmatprep.subr.mxu0 0.0
    %2792 = vmatpush2.xpose.msra.mxu0 0.0
    %2793 = vmatprep.subr.mxu0 0.0
    %2794 = vmatpush2.xpose.msra.mxu0 0.0
    %2795 = vmatprep.subr.mxu0 0.0
    %2796 = vmatpush2.xpose.msra.mxu0 0.0
    %2797 = vmatprep.subr.mxu0 0.0
    %2798 = vmatpush2.xpose.msra.mxu0 0.0
    %2799 = vmatprep.subr.mxu0 0.0
    %2800 = vmatpush2.xpose.msra.mxu0 0.0
    %2801 = vmatprep.mubr.f32.mxu0 0.0
    %v2802 = vand.u32 %v2430, 4294901760
    %2803 = vmatmul.mubr.f32.gmra.mxu0 %v2802
    %v2804 = vpop.f32.mrf.mxu0
    %v2805 = vadd.f32 %v2731, %v2804
    %v2806 = vpop.f32.mrf.mxu0
    %2807 = vdwg.mxu0
    %2808 = vmatprep.subr.mxu0 0.0
    %2809 = vmatpush1.xpose.msra.mxu0 0.0
    %2810 = vmatprep.subr.mxu0 0.0
    %2811 = vmatpush1.xpose.msra.mxu0 0.0
    %2812 = vmatprep.subr.mxu0 0.0
    %2813 = vmatpush1.xpose.msra.mxu0 0.0
    %2814 = vmatprep.subr.mxu0 0.0
    %2815 = vmatpush1.xpose.msra.mxu0 0.0
    %2816 = vmatprep.subr.mxu0 0.0
    %2817 = vmatpush1.xpose.msra.mxu0 0.0
    %2818 = vmatprep.subr.mxu0 0.0
    %2819 = vmatpush1.xpose.msra.mxu0 0.0
    %2820 = vmatprep.subr.mxu0 0.0
    %2821 = vmatpush1.xpose.msra.mxu0 0.0
    %2822 = vmatprep.subr.mxu0 0.0
    %2823 = vmatpush1.xpose.msra.mxu0 0.0
    %2824 = vmatprep.subr.mxu0 0.0
    %2825 = vmatpush1.xpose.msra.mxu0 0.0
    %2826 = vmatprep.subr.mxu0 0.0
    %2827 = vmatpush1.xpose.msra.mxu0 0.0
    %2828 = vmatprep.subr.mxu0 0.0
    %2829 = vmatpush1.xpose.msra.mxu0 0.0
    %2830 = vmatprep.subr.mxu0 0.0
    %2831 = vmatpush1.xpose.msra.mxu0 0.0
    %2832 = vmatprep.subr.mxu0 0.0
    %2833 = vmatpush1.xpose.msra.mxu0 0.0
    %2834 = vmatprep.subr.mxu0 0.0
    %2835 = vmatpush1.xpose.msra.mxu0 0.0
    %2836 = vmatprep.subr.mxu0 0.0
    %2837 = vmatpush1.xpose.msra.mxu0 0.0
    %2838 = vmatprep.subr.mxu0 0.0
    %v2839 = vand.u32 %v2432, 4294901760
    %2840 = vmatpush1.xpose.msra.mxu0 %v2839
    %2841 = vmatprep.subr.mxu0 0.0
    %2842 = vmatpush2.xpose.msra.mxu0 0.0
    %2843 = vmatprep.subr.mxu0 0.0
    %2844 = vmatpush2.xpose.msra.mxu0 0.0
    %2845 = vmatprep.subr.mxu0 0.0
    %2846 = vmatpush2.xpose.msra.mxu0 0.0
    %2847 = vmatprep.subr.mxu0 0.0
    %2848 = vmatpush2.xpose.msra.mxu0 0.0
    %2849 = vmatprep.subr.mxu0 0.0
    %2850 = vmatpush2.xpose.msra.mxu0 0.0
    %2851 = vmatprep.subr.mxu0 0.0
    %2852 = vmatpush2.xpose.msra.mxu0 0.0
    %2853 = vmatprep.subr.mxu0 0.0
    %2854 = vmatpush2.xpose.msra.mxu0 0.0
    %2855 = vmatprep.subr.mxu0 0.0
    %2856 = vmatpush2.xpose.msra.mxu0 0.0
    %2857 = vmatprep.subr.mxu0 0.0
    %2858 = vmatpush2.xpose.msra.mxu0 0.0
    %2859 = vmatprep.subr.mxu0 0.0
    %2860 = vmatpush2.xpose.msra.mxu0 0.0
    %2861 = vmatprep.subr.mxu0 0.0
    %2862 = vmatpush2.xpose.msra.mxu0 0.0
    %2863 = vmatprep.subr.mxu0 0.0
    %2864 = vmatpush2.xpose.msra.mxu0 0.0
    %2865 = vmatprep.subr.mxu0 0.0
    %2866 = vmatpush2.xpose.msra.mxu0 0.0
    %2867 = vmatprep.subr.mxu0 0.0
    %2868 = vmatpush2.xpose.msra.mxu0 0.0
    %2869 = vmatprep.subr.mxu0 0.0
    %2870 = vmatpush2.xpose.msra.mxu0 0.0
    %2871 = vmatprep.subr.mxu0 0.0
    %2872 = vmatpush2.xpose.msra.mxu0 0.0
    %2873 = vmatprep.mubr.f32.mxu0 0.0
    %v2874 = vand.u32 %v2430, 4294901760
    %2875 = vmatmul.mubr.f32.gmra.mxu0 %v2874
    %v2876 = vpop.f32.mrf.mxu0
    %v2877 = vadd.f32 %v2805, %v2876
    %v2878 = vpop.f32.mrf.mxu0
    %2879 = vdwg.mxu0
    %2880 = vrot.lane.b32.xlu0 %v614, 96
    %v2881 = vpop.permute.xlu0 %2880
    %v2882 = vsel %vm621, %v614, 0
    %v2884 = vsel %vm621, %v2881, 0
    %2886 = vmatprep.subr.mxu0 0.0
    %2887 = vmatpush1.xpose.msra.mxu0 0.0
    %2888 = vmatprep.subr.mxu0 0.0
    %2889 = vmatpush1.xpose.msra.mxu0 0.0
    %2890 = vmatprep.subr.mxu0 0.0
    %2891 = vmatpush1.xpose.msra.mxu0 0.0
    %2892 = vmatprep.subr.mxu0 0.0
    %2893 = vmatpush1.xpose.msra.mxu0 0.0
    %2894 = vmatprep.subr.mxu0 0.0
    %2895 = vmatpush1.xpose.msra.mxu0 0.0
    %2896 = vmatprep.subr.mxu0 0.0
    %2897 = vmatpush1.xpose.msra.mxu0 0.0
    %2898 = vmatprep.subr.mxu0 0.0
    %2899 = vmatpush1.xpose.msra.mxu0 0.0
    %2900 = vmatprep.subr.mxu0 0.0
    %2901 = vmatpush1.xpose.msra.mxu0 0.0
    %2902 = vmatprep.subr.mxu0 0.0
    %2903 = vmatpush1.xpose.msra.mxu0 0.0
    %2904 = vmatprep.subr.mxu0 0.0
    %2905 = vmatpush1.xpose.msra.mxu0 0.0
    %2906 = vmatprep.subr.mxu0 0.0
    %2907 = vmatpush1.xpose.msra.mxu0 0.0
    %2908 = vmatprep.subr.mxu0 0.0
    %2909 = vmatpush1.xpose.msra.mxu0 0.0
    %2910 = vmatprep.subr.mxu0 0.0
    %2911 = vmatpush1.xpose.msra.mxu0 0.0
    %2912 = vmatprep.subr.mxu0 0.0
    %2913 = vmatpush1.xpose.msra.mxu0 0.0
    %2914 = vmatprep.subr.mxu0 0.0
    %2915 = vmatpush1.xpose.msra.mxu0 0.0
    %2916 = vmatprep.subr.mxu0 0.0
    %v2917 = vand.u32 %v2884, 4294901760
    %2918 = vmatpush1.xpose.msra.mxu0 %v2917
    %2919 = vmatprep.subr.mxu0 0.0
    %2920 = vmatpush2.xpose.msra.mxu0 0.0
    %2921 = vmatprep.subr.mxu0 0.0
    %2922 = vmatpush2.xpose.msra.mxu0 0.0
    %2923 = vmatprep.subr.mxu0 0.0
    %2924 = vmatpush2.xpose.msra.mxu0 0.0
    %2925 = vmatprep.subr.mxu0 0.0
    %2926 = vmatpush2.xpose.msra.mxu0 0.0
    %2927 = vmatprep.subr.mxu0 0.0
    %2928 = vmatpush2.xpose.msra.mxu0 0.0
    %2929 = vmatprep.subr.mxu0 0.0
    %2930 = vmatpush2.xpose.msra.mxu0 0.0
    %2931 = vmatprep.subr.mxu0 0.0
    %2932 = vmatpush2.xpose.msra.mxu0 0.0
    %2933 = vmatprep.subr.mxu0 0.0
    %2934 = vmatpush2.xpose.msra.mxu0 0.0
    %2935 = vmatprep.subr.mxu0 0.0
    %2936 = vmatpush2.xpose.msra.mxu0 0.0
    %2937 = vmatprep.subr.mxu0 0.0
    %2938 = vmatpush2.xpose.msra.mxu0 0.0
    %2939 = vmatprep.subr.mxu0 0.0
    %2940 = vmatpush2.xpose.msra.mxu0 0.0
    %2941 = vmatprep.subr.mxu0 0.0
    %2942 = vmatpush2.xpose.msra.mxu0 0.0
    %2943 = vmatprep.subr.mxu0 0.0
    %2944 = vmatpush2.xpose.msra.mxu0 0.0
    %2945 = vmatprep.subr.mxu0 0.0
    %2946 = vmatpush2.xpose.msra.mxu0 0.0
    %2947 = vmatprep.subr.mxu0 0.0
    %2948 = vmatpush2.xpose.msra.mxu0 0.0
    %2949 = vmatprep.subr.mxu0 0.0
    %2950 = vmatpush2.xpose.msra.mxu0 0.0
    %2951 = vmatprep.mubr.f32.mxu0 0.0
    %v2952 = vand.u32 %v2882, 4294901760
    %v2953 = vsub.f32 %v2882, %v2952
    %v2954 = vand.u32 %v2953, 4294901760
    %v2955 = vsub.f32 %v2953, %v2954
    %v2956 = vand.u32 %v2955, 4294901760
    %2957 = vmatmul.mubr.f32.gmra.mxu0 %v2956
    %v2958 = vpop.f32.mrf.mxu0
    %v2959 = vadd.f32 0.0, %v2958
    %v2960 = vpop.f32.mrf.mxu0
    %2961 = vdwg.mxu0
    %2962 = vmatprep.subr.mxu0 0.0
    %2963 = vmatpush1.xpose.msra.mxu0 0.0
    %2964 = vmatprep.subr.mxu0 0.0
    %2965 = vmatpush1.xpose.msra.mxu0 0.0
    %2966 = vmatprep.subr.mxu0 0.0
    %2967 = vmatpush1.xpose.msra.mxu0 0.0
    %2968 = vmatprep.subr.mxu0 0.0
    %2969 = vmatpush1.xpose.msra.mxu0 0.0
    %2970 = vmatprep.subr.mxu0 0.0
    %2971 = vmatpush1.xpose.msra.mxu0 0.0
    %2972 = vmatprep.subr.mxu0 0.0
    %2973 = vmatpush1.xpose.msra.mxu0 0.0
    %2974 = vmatprep.subr.mxu0 0.0
    %2975 = vmatpush1.xpose.msra.mxu0 0.0
    %2976 = vmatprep.subr.mxu0 0.0
    %2977 = vmatpush1.xpose.msra.mxu0 0.0
    %2978 = vmatprep.subr.mxu0 0.0
    %2979 = vmatpush1.xpose.msra.mxu0 0.0
    %2980 = vmatprep.subr.mxu0 0.0
    %2981 = vmatpush1.xpose.msra.mxu0 0.0
    %2982 = vmatprep.subr.mxu0 0.0
    %2983 = vmatpush1.xpose.msra.mxu0 0.0
    %2984 = vmatprep.subr.mxu0 0.0
    %2985 = vmatpush1.xpose.msra.mxu0 0.0
    %2986 = vmatprep.subr.mxu0 0.0
    %2987 = vmatpush1.xpose.msra.mxu0 0.0
    %2988 = vmatprep.subr.mxu0 0.0
    %2989 = vmatpush1.xpose.msra.mxu0 0.0
    %2990 = vmatprep.subr.mxu0 0.0
    %2991 = vmatpush1.xpose.msra.mxu0 0.0
    %2992 = vmatprep.subr.mxu0 0.0
    %v2993 = vand.u32 %v2884, 4294901760
    %v2994 = vsub.f32 %v2884, %v2993
    %v2995 = vand.u32 %v2994, 4294901760
    %v2996 = vsub.f32 %v2994, %v2995
    %v2997 = vand.u32 %v2996, 4294901760
    %2998 = vmatpush1.xpose.msra.mxu0 %v2997
    %2999 = vmatprep.subr.mxu0 0.0
    %3000 = vmatpush2.xpose.msra.mxu0 0.0
    %3001 = vmatprep.subr.mxu0 0.0
    %3002 = vmatpush2.xpose.msra.mxu0 0.0
    %3003 = vmatprep.subr.mxu0 0.0
    %3004 = vmatpush2.xpose.msra.mxu0 0.0
    %3005 = vmatprep.subr.mxu0 0.0
    %3006 = vmatpush2.xpose.msra.mxu0 0.0
    %3007 = vmatprep.subr.mxu0 0.0
    %3008 = vmatpush2.xpose.msra.mxu0 0.0
    %3009 = vmatprep.subr.mxu0 0.0
    %3010 = vmatpush2.xpose.msra.mxu0 0.0
    %3011 = vmatprep.subr.mxu0 0.0
    %3012 = vmatpush2.xpose.msra.mxu0 0.0
    %3013 = vmatprep.subr.mxu0 0.0
    %3014 = vmatpush2.xpose.msra.mxu0 0.0
    %3015 = vmatprep.subr.mxu0 0.0
    %3016 = vmatpush2.xpose.msra.mxu0 0.0
    %3017 = vmatprep.subr.mxu0 0.0
    %3018 = vmatpush2.xpose.msra.mxu0 0.0
    %3019 = vmatprep.subr.mxu0 0.0
    %3020 = vmatpush2.xpose.msra.mxu0 0.0
    %3021 = vmatprep.subr.mxu0 0.0
    %3022 = vmatpush2.xpose.msra.mxu0 0.0
    %3023 = vmatprep.subr.mxu0 0.0
    %3024 = vmatpush2.xpose.msra.mxu0 0.0
    %3025 = vmatprep.subr.mxu0 0.0
    %3026 = vmatpush2.xpose.msra.mxu0 0.0
    %3027 = vmatprep.subr.mxu0 0.0
    %3028 = vmatpush2.xpose.msra.mxu0 0.0
    %3029 = vmatprep.subr.mxu0 0.0
    %3030 = vmatpush2.xpose.msra.mxu0 0.0
    %3031 = vmatprep.mubr.f32.mxu0 0.0
    %v3032 = vand.u32 %v2882, 4294901760
    %3033 = vmatmul.mubr.f32.gmra.mxu0 %v3032
    %v3034 = vpop.f32.mrf.mxu0
    %v3035 = vadd.f32 %v2959, %v3034
    %v3036 = vpop.f32.mrf.mxu0
    %3037 = vdwg.mxu0
    %3038 = vmatprep.subr.mxu0 0.0
    %3039 = vmatpush1.xpose.msra.mxu0 0.0
    %3040 = vmatprep.subr.mxu0 0.0
    %3041 = vmatpush1.xpose.msra.mxu0 0.0
    %3042 = vmatprep.subr.mxu0 0.0
    %3043 = vmatpush1.xpose.msra.mxu0 0.0
    %3044 = vmatprep.subr.mxu0 0.0
    %3045 = vmatpush1.xpose.msra.mxu0 0.0
    %3046 = vmatprep.subr.mxu0 0.0
    %3047 = vmatpush1.xpose.msra.mxu0 0.0
    %3048 = vmatprep.subr.mxu0 0.0
    %3049 = vmatpush1.xpose.msra.mxu0 0.0
    %3050 = vmatprep.subr.mxu0 0.0
    %3051 = vmatpush1.xpose.msra.mxu0 0.0
    %3052 = vmatprep.subr.mxu0 0.0
    %3053 = vmatpush1.xpose.msra.mxu0 0.0
    %3054 = vmatprep.subr.mxu0 0.0
    %3055 = vmatpush1.xpose.msra.mxu0 0.0
    %3056 = vmatprep.subr.mxu0 0.0
    %3057 = vmatpush1.xpose.msra.mxu0 0.0
    %3058 = vmatprep.subr.mxu0 0.0
    %3059 = vmatpush1.xpose.msra.mxu0 0.0
    %3060 = vmatprep.subr.mxu0 0.0
    %3061 = vmatpush1.xpose.msra.mxu0 0.0
    %3062 = vmatprep.subr.mxu0 0.0
    %3063 = vmatpush1.xpose.msra.mxu0 0.0
    %3064 = vmatprep.subr.mxu0 0.0
    %3065 = vmatpush1.xpose.msra.mxu0 0.0
    %3066 = vmatprep.subr.mxu0 0.0
    %3067 = vmatpush1.xpose.msra.mxu0 0.0
    %3068 = vmatprep.subr.mxu0 0.0
    %v3069 = vand.u32 %v2884, 4294901760
    %v3070 = vsub.f32 %v2884, %v3069
    %3071 = vmatpush1.xpose.msra.mxu0 %v3070
    %3072 = vmatprep.subr.mxu0 0.0
    %3073 = vmatpush2.xpose.msra.mxu0 0.0
    %3074 = vmatprep.subr.mxu0 0.0
    %3075 = vmatpush2.xpose.msra.mxu0 0.0
    %3076 = vmatprep.subr.mxu0 0.0
    %3077 = vmatpush2.xpose.msra.mxu0 0.0
    %3078 = vmatprep.subr.mxu0 0.0
    %3079 = vmatpush2.xpose.msra.mxu0 0.0
    %3080 = vmatprep.subr.mxu0 0.0
    %3081 = vmatpush2.xpose.msra.mxu0 0.0
    %3082 = vmatprep.subr.mxu0 0.0
    %3083 = vmatpush2.xpose.msra.mxu0 0.0
    %3084 = vmatprep.subr.mxu0 0.0
    %3085 = vmatpush2.xpose.msra.mxu0 0.0
    %3086 = vmatprep.subr.mxu0 0.0
    %3087 = vmatpush2.xpose.msra.mxu0 0.0
    %3088 = vmatprep.subr.mxu0 0.0
    %3089 = vmatpush2.xpose.msra.mxu0 0.0
    %3090 = vmatprep.subr.mxu0 0.0
    %3091 = vmatpush2.xpose.msra.mxu0 0.0
    %3092 = vmatprep.subr.mxu0 0.0
    %3093 = vmatpush2.xpose.msra.mxu0 0.0
    %3094 = vmatprep.subr.mxu0 0.0
    %3095 = vmatpush2.xpose.msra.mxu0 0.0
    %3096 = vmatprep.subr.mxu0 0.0
    %3097 = vmatpush2.xpose.msra.mxu0 0.0
    %3098 = vmatprep.subr.mxu0 0.0
    %3099 = vmatpush2.xpose.msra.mxu0 0.0
    %3100 = vmatprep.subr.mxu0 0.0
    %3101 = vmatpush2.xpose.msra.mxu0 0.0
    %3102 = vmatprep.subr.mxu0 0.0
    %3103 = vmatpush2.xpose.msra.mxu0 0.0
    %3104 = vmatprep.mubr.f32.mxu0 0.0
    %v3105 = vand.u32 %v2882, 4294901760
    %v3106 = vsub.f32 %v2882, %v3105
    %3107 = vmatmul.mubr.f32.gmra.mxu0 %v3106
    %v3108 = vpop.f32.mrf.mxu0
    %v3109 = vadd.f32 %v3035, %v3108
    %v3110 = vpop.f32.mrf.mxu0
    %3111 = vdwg.mxu0
    %3112 = vmatprep.subr.mxu0 0.0
    %3113 = vmatpush1.xpose.msra.mxu0 0.0
    %3114 = vmatprep.subr.mxu0 0.0
    %3115 = vmatpush1.xpose.msra.mxu0 0.0
    %3116 = vmatprep.subr.mxu0 0.0
    %3117 = vmatpush1.xpose.msra.mxu0 0.0
    %3118 = vmatprep.subr.mxu0 0.0
    %3119 = vmatpush1.xpose.msra.mxu0 0.0
    %3120 = vmatprep.subr.mxu0 0.0
    %3121 = vmatpush1.xpose.msra.mxu0 0.0
    %3122 = vmatprep.subr.mxu0 0.0
    %3123 = vmatpush1.xpose.msra.mxu0 0.0
    %3124 = vmatprep.subr.mxu0 0.0
    %3125 = vmatpush1.xpose.msra.mxu0 0.0
    %3126 = vmatprep.subr.mxu0 0.0
    %3127 = vmatpush1.xpose.msra.mxu0 0.0
    %3128 = vmatprep.subr.mxu0 0.0
    %3129 = vmatpush1.xpose.msra.mxu0 0.0
    %3130 = vmatprep.subr.mxu0 0.0
    %3131 = vmatpush1.xpose.msra.mxu0 0.0
    %3132 = vmatprep.subr.mxu0 0.0
    %3133 = vmatpush1.xpose.msra.mxu0 0.0
    %3134 = vmatprep.subr.mxu0 0.0
    %3135 = vmatpush1.xpose.msra.mxu0 0.0
    %3136 = vmatprep.subr.mxu0 0.0
    %3137 = vmatpush1.xpose.msra.mxu0 0.0
    %3138 = vmatprep.subr.mxu0 0.0
    %3139 = vmatpush1.xpose.msra.mxu0 0.0
    %3140 = vmatprep.subr.mxu0 0.0
    %3141 = vmatpush1.xpose.msra.mxu0 0.0
    %3142 = vmatprep.subr.mxu0 0.0
    %v3143 = vand.u32 %v2884, 4294901760
    %3144 = vmatpush1.xpose.msra.mxu0 %v3143
    %3145 = vmatprep.subr.mxu0 0.0
    %3146 = vmatpush2.xpose.msra.mxu0 0.0
    %3147 = vmatprep.subr.mxu0 0.0
    %3148 = vmatpush2.xpose.msra.mxu0 0.0
    %3149 = vmatprep.subr.mxu0 0.0
    %3150 = vmatpush2.xpose.msra.mxu0 0.0
    %3151 = vmatprep.subr.mxu0 0.0
    %3152 = vmatpush2.xpose.msra.mxu0 0.0
    %3153 = vmatprep.subr.mxu0 0.0
    %3154 = vmatpush2.xpose.msra.mxu0 0.0
    %3155 = vmatprep.subr.mxu0 0.0
    %3156 = vmatpush2.xpose.msra.mxu0 0.0
    %3157 = vmatprep.subr.mxu0 0.0
    %3158 = vmatpush2.xpose.msra.mxu0 0.0
    %3159 = vmatprep.subr.mxu0 0.0
    %3160 = vmatpush2.xpose.msra.mxu0 0.0
    %3161 = vmatprep.subr.mxu0 0.0
    %3162 = vmatpush2.xpose.msra.mxu0 0.0
    %3163 = vmatprep.subr.mxu0 0.0
    %3164 = vmatpush2.xpose.msra.mxu0 0.0
    %3165 = vmatprep.subr.mxu0 0.0
    %3166 = vmatpush2.xpose.msra.mxu0 0.0
    %3167 = vmatprep.subr.mxu0 0.0
    %3168 = vmatpush2.xpose.msra.mxu0 0.0
    %3169 = vmatprep.subr.mxu0 0.0
    %3170 = vmatpush2.xpose.msra.mxu0 0.0
    %3171 = vmatprep.subr.mxu0 0.0
    %3172 = vmatpush2.xpose.msra.mxu0 0.0
    %3173 = vmatprep.subr.mxu0 0.0
    %3174 = vmatpush2.xpose.msra.mxu0 0.0
    %3175 = vmatprep.subr.mxu0 0.0
    %3176 = vmatpush2.xpose.msra.mxu0 0.0
    %3177 = vmatprep.mubr.f32.mxu0 0.0
    %v3178 = vand.u32 %v2882, 4294901760
    %v3179 = vsub.f32 %v2882, %v3178
    %v3180 = vand.u32 %v3179, 4294901760
    %3181 = vmatmul.mubr.f32.gmra.mxu0 %v3180
    %v3182 = vpop.f32.mrf.mxu0
    %v3183 = vadd.f32 %v3109, %v3182
    %v3184 = vpop.f32.mrf.mxu0
    %3185 = vdwg.mxu0
    %3186 = vmatprep.subr.mxu0 0.0
    %3187 = vmatpush1.xpose.msra.mxu0 0.0
    %3188 = vmatprep.subr.mxu0 0.0
    %3189 = vmatpush1.xpose.msra.mxu0 0.0
    %3190 = vmatprep.subr.mxu0 0.0
    %3191 = vmatpush1.xpose.msra.mxu0 0.0
    %3192 = vmatprep.subr.mxu0 0.0
    %3193 = vmatpush1.xpose.msra.mxu0 0.0
    %3194 = vmatprep.subr.mxu0 0.0
    %3195 = vmatpush1.xpose.msra.mxu0 0.0
    %3196 = vmatprep.subr.mxu0 0.0
    %3197 = vmatpush1.xpose.msra.mxu0 0.0
    %3198 = vmatprep.subr.mxu0 0.0
    %3199 = vmatpush1.xpose.msra.mxu0 0.0
    %3200 = vmatprep.subr.mxu0 0.0
    %3201 = vmatpush1.xpose.msra.mxu0 0.0
    %3202 = vmatprep.subr.mxu0 0.0
    %3203 = vmatpush1.xpose.msra.mxu0 0.0
    %3204 = vmatprep.subr.mxu0 0.0
    %3205 = vmatpush1.xpose.msra.mxu0 0.0
    %3206 = vmatprep.subr.mxu0 0.0
    %3207 = vmatpush1.xpose.msra.mxu0 0.0
    %3208 = vmatprep.subr.mxu0 0.0
    %3209 = vmatpush1.xpose.msra.mxu0 0.0
    %3210 = vmatprep.subr.mxu0 0.0
    %3211 = vmatpush1.xpose.msra.mxu0 0.0
    %3212 = vmatprep.subr.mxu0 0.0
    %3213 = vmatpush1.xpose.msra.mxu0 0.0
    %3214 = vmatprep.subr.mxu0 0.0
    %3215 = vmatpush1.xpose.msra.mxu0 0.0
    %3216 = vmatprep.subr.mxu0 0.0
    %v3217 = vand.u32 %v2884, 4294901760
    %v3218 = vsub.f32 %v2884, %v3217
    %v3219 = vand.u32 %v3218, 4294901760
    %3220 = vmatpush1.xpose.msra.mxu0 %v3219
    %3221 = vmatprep.subr.mxu0 0.0
    %3222 = vmatpush2.xpose.msra.mxu0 0.0
    %3223 = vmatprep.subr.mxu0 0.0
    %3224 = vmatpush2.xpose.msra.mxu0 0.0
    %3225 = vmatprep.subr.mxu0 0.0
    %3226 = vmatpush2.xpose.msra.mxu0 0.0
    %3227 = vmatprep.subr.mxu0 0.0
    %3228 = vmatpush2.xpose.msra.mxu0 0.0
    %3229 = vmatprep.subr.mxu0 0.0
    %3230 = vmatpush2.xpose.msra.mxu0 0.0
    %3231 = vmatprep.subr.mxu0 0.0
    %3232 = vmatpush2.xpose.msra.mxu0 0.0
    %3233 = vmatprep.subr.mxu0 0.0
    %3234 = vmatpush2.xpose.msra.mxu0 0.0
    %3235 = vmatprep.subr.mxu0 0.0
    %3236 = vmatpush2.xpose.msra.mxu0 0.0
    %3237 = vmatprep.subr.mxu0 0.0
    %3238 = vmatpush2.xpose.msra.mxu0 0.0
    %3239 = vmatprep.subr.mxu0 0.0
    %3240 = vmatpush2.xpose.msra.mxu0 0.0
    %3241 = vmatprep.subr.mxu0 0.0
    %3242 = vmatpush2.xpose.msra.mxu0 0.0
    %3243 = vmatprep.subr.mxu0 0.0
    %3244 = vmatpush2.xpose.msra.mxu0 0.0
    %3245 = vmatprep.subr.mxu0 0.0
    %3246 = vmatpush2.xpose.msra.mxu0 0.0
    %3247 = vmatprep.subr.mxu0 0.0
    %3248 = vmatpush2.xpose.msra.mxu0 0.0
    %3249 = vmatprep.subr.mxu0 0.0
    %3250 = vmatpush2.xpose.msra.mxu0 0.0
    %3251 = vmatprep.subr.mxu0 0.0
    %3252 = vmatpush2.xpose.msra.mxu0 0.0
    %3253 = vmatprep.mubr.f32.mxu0 0.0
    %v3254 = vand.u32 %v2882, 4294901760
    %3255 = vmatmul.mubr.f32.gmra.mxu0 %v3254
    %v3256 = vpop.f32.mrf.mxu0
    %v3257 = vadd.f32 %v3183, %v3256
    %v3258 = vpop.f32.mrf.mxu0
    %3259 = vdwg.mxu0
    %3260 = vmatprep.subr.mxu0 0.0
    %3261 = vmatpush1.xpose.msra.mxu0 0.0
    %3262 = vmatprep.subr.mxu0 0.0
    %3263 = vmatpush1.xpose.msra.mxu0 0.0
    %3264 = vmatprep.subr.mxu0 0.0
    %3265 = vmatpush1.xpose.msra.mxu0 0.0
    %3266 = vmatprep.subr.mxu0 0.0
    %3267 = vmatpush1.xpose.msra.mxu0 0.0
    %3268 = vmatprep.subr.mxu0 0.0
    %3269 = vmatpush1.xpose.msra.mxu0 0.0
    %3270 = vmatprep.subr.mxu0 0.0
    %3271 = vmatpush1.xpose.msra.mxu0 0.0
    %3272 = vmatprep.subr.mxu0 0.0
    %3273 = vmatpush1.xpose.msra.mxu0 0.0
    %3274 = vmatprep.subr.mxu0 0.0
    %3275 = vmatpush1.xpose.msra.mxu0 0.0
    %3276 = vmatprep.subr.mxu0 0.0
    %3277 = vmatpush1.xpose.msra.mxu0 0.0
    %3278 = vmatprep.subr.mxu0 0.0
    %3279 = vmatpush1.xpose.msra.mxu0 0.0
    %3280 = vmatprep.subr.mxu0 0.0
    %3281 = vmatpush1.xpose.msra.mxu0 0.0
    %3282 = vmatprep.subr.mxu0 0.0
    %3283 = vmatpush1.xpose.msra.mxu0 0.0
    %3284 = vmatprep.subr.mxu0 0.0
    %3285 = vmatpush1.xpose.msra.mxu0 0.0
    %3286 = vmatprep.subr.mxu0 0.0
    %3287 = vmatpush1.xpose.msra.mxu0 0.0
    %3288 = vmatprep.subr.mxu0 0.0
    %3289 = vmatpush1.xpose.msra.mxu0 0.0
    %3290 = vmatprep.subr.mxu0 0.0
    %v3291 = vand.u32 %v2884, 4294901760
    %3292 = vmatpush1.xpose.msra.mxu0 %v3291
    %3293 = vmatprep.subr.mxu0 0.0
    %3294 = vmatpush2.xpose.msra.mxu0 0.0
    %3295 = vmatprep.subr.mxu0 0.0
    %3296 = vmatpush2.xpose.msra.mxu0 0.0
    %3297 = vmatprep.subr.mxu0 0.0
    %3298 = vmatpush2.xpose.msra.mxu0 0.0
    %3299 = vmatprep.subr.mxu0 0.0
    %3300 = vmatpush2.xpose.msra.mxu0 0.0
    %3301 = vmatprep.subr.mxu0 0.0
    %3302 = vmatpush2.xpose.msra.mxu0 0.0
    %3303 = vmatprep.subr.mxu0 0.0
    %3304 = vmatpush2.xpose.msra.mxu0 0.0
    %3305 = vmatprep.subr.mxu0 0.0
    %3306 = vmatpush2.xpose.msra.mxu0 0.0
    %3307 = vmatprep.subr.mxu0 0.0
    %3308 = vmatpush2.xpose.msra.mxu0 0.0
    %3309 = vmatprep.subr.mxu0 0.0
    %3310 = vmatpush2.xpose.msra.mxu0 0.0
    %3311 = vmatprep.subr.mxu0 0.0
    %3312 = vmatpush2.xpose.msra.mxu0 0.0
    %3313 = vmatprep.subr.mxu0 0.0
    %3314 = vmatpush2.xpose.msra.mxu0 0.0
    %3315 = vmatprep.subr.mxu0 0.0
    %3316 = vmatpush2.xpose.msra.mxu0 0.0
    %3317 = vmatprep.subr.mxu0 0.0
    %3318 = vmatpush2.xpose.msra.mxu0 0.0
    %3319 = vmatprep.subr.mxu0 0.0
    %3320 = vmatpush2.xpose.msra.mxu0 0.0
    %3321 = vmatprep.subr.mxu0 0.0
    %3322 = vmatpush2.xpose.msra.mxu0 0.0
    %3323 = vmatprep.subr.mxu0 0.0
    %3324 = vmatpush2.xpose.msra.mxu0 0.0
    %3325 = vmatprep.mubr.f32.mxu0 0.0
    %v3326 = vand.u32 %v2882, 4294901760
    %3327 = vmatmul.mubr.f32.gmra.mxu0 %v3326
    %v3328 = vpop.f32.mrf.mxu0
    %v3329 = vadd.f32 %v3257, %v3328
    %v3330 = vpop.f32.mrf.mxu0
    %3331 = vdwg.mxu0
    %3332 = vrot.lane.b32.xlu0 %v616, 96
    %v3333 = vpop.permute.xlu0 %3332
    %v3334 = vsel %vm621, %v616, 0
    %v3336 = vsel %vm621, %v3333, 0
    %3338 = vmatprep.subr.mxu0 0.0
    %3339 = vmatpush1.xpose.msra.mxu0 0.0
    %3340 = vmatprep.subr.mxu0 0.0
    %3341 = vmatpush1.xpose.msra.mxu0 0.0
    %3342 = vmatprep.subr.mxu0 0.0
    %3343 = vmatpush1.xpose.msra.mxu0 0.0
    %3344 = vmatprep.subr.mxu0 0.0
    %3345 = vmatpush1.xpose.msra.mxu0 0.0
    %3346 = vmatprep.subr.mxu0 0.0
    %3347 = vmatpush1.xpose.msra.mxu0 0.0
    %3348 = vmatprep.subr.mxu0 0.0
    %3349 = vmatpush1.xpose.msra.mxu0 0.0
    %3350 = vmatprep.subr.mxu0 0.0
    %3351 = vmatpush1.xpose.msra.mxu0 0.0
    %3352 = vmatprep.subr.mxu0 0.0
    %3353 = vmatpush1.xpose.msra.mxu0 0.0
    %3354 = vmatprep.subr.mxu0 0.0
    %3355 = vmatpush1.xpose.msra.mxu0 0.0
    %3356 = vmatprep.subr.mxu0 0.0
    %3357 = vmatpush1.xpose.msra.mxu0 0.0
    %3358 = vmatprep.subr.mxu0 0.0
    %3359 = vmatpush1.xpose.msra.mxu0 0.0
    %3360 = vmatprep.subr.mxu0 0.0
    %3361 = vmatpush1.xpose.msra.mxu0 0.0
    %3362 = vmatprep.subr.mxu0 0.0
    %3363 = vmatpush1.xpose.msra.mxu0 0.0
    %3364 = vmatprep.subr.mxu0 0.0
    %3365 = vmatpush1.xpose.msra.mxu0 0.0
    %3366 = vmatprep.subr.mxu0 0.0
    %3367 = vmatpush1.xpose.msra.mxu0 0.0
    %3368 = vmatprep.subr.mxu0 0.0
    %v3369 = vand.u32 %v3336, 4294901760
    %3370 = vmatpush1.xpose.msra.mxu0 %v3369
    %3371 = vmatprep.subr.mxu0 0.0
    %3372 = vmatpush2.xpose.msra.mxu0 0.0
    %3373 = vmatprep.subr.mxu0 0.0
    %3374 = vmatpush2.xpose.msra.mxu0 0.0
    %3375 = vmatprep.subr.mxu0 0.0
    %3376 = vmatpush2.xpose.msra.mxu0 0.0
    %3377 = vmatprep.subr.mxu0 0.0
    %3378 = vmatpush2.xpose.msra.mxu0 0.0
    %3379 = vmatprep.subr.mxu0 0.0
    %3380 = vmatpush2.xpose.msra.mxu0 0.0
    %3381 = vmatprep.subr.mxu0 0.0
    %3382 = vmatpush2.xpose.msra.mxu0 0.0
    %3383 = vmatprep.subr.mxu0 0.0
    %3384 = vmatpush2.xpose.msra.mxu0 0.0
    %3385 = vmatprep.subr.mxu0 0.0
    %3386 = vmatpush2.xpose.msra.mxu0 0.0
    %3387 = vmatprep.subr.mxu0 0.0
    %3388 = vmatpush2.xpose.msra.mxu0 0.0
    %3389 = vmatprep.subr.mxu0 0.0
    %3390 = vmatpush2.xpose.msra.mxu0 0.0
    %3391 = vmatprep.subr.mxu0 0.0
    %3392 = vmatpush2.xpose.msra.mxu0 0.0
    %3393 = vmatprep.subr.mxu0 0.0
    %3394 = vmatpush2.xpose.msra.mxu0 0.0
    %3395 = vmatprep.subr.mxu0 0.0
    %3396 = vmatpush2.xpose.msra.mxu0 0.0
    %3397 = vmatprep.subr.mxu0 0.0
    %3398 = vmatpush2.xpose.msra.mxu0 0.0
    %3399 = vmatprep.subr.mxu0 0.0
    %3400 = vmatpush2.xpose.msra.mxu0 0.0
    %3401 = vmatprep.subr.mxu0 0.0
    %3402 = vmatpush2.xpose.msra.mxu0 0.0
    %3403 = vmatprep.mubr.f32.mxu0 0.0
    %v3404 = vand.u32 %v3334, 4294901760
    %v3405 = vsub.f32 %v3334, %v3404
    %v3406 = vand.u32 %v3405, 4294901760
    %v3407 = vsub.f32 %v3405, %v3406
    %v3408 = vand.u32 %v3407, 4294901760
    %3409 = vmatmul.mubr.f32.gmra.mxu0 %v3408
    %v3410 = vpop.f32.mrf.mxu0
    %v3411 = vadd.f32 0.0, %v3410
    %v3412 = vpop.f32.mrf.mxu0
    %3413 = vdwg.mxu0
    %3414 = vmatprep.subr.mxu0 0.0
    %3415 = vmatpush1.xpose.msra.mxu0 0.0
    %3416 = vmatprep.subr.mxu0 0.0
    %3417 = vmatpush1.xpose.msra.mxu0 0.0
    %3418 = vmatprep.subr.mxu0 0.0
    %3419 = vmatpush1.xpose.msra.mxu0 0.0
    %3420 = vmatprep.subr.mxu0 0.0
    %3421 = vmatpush1.xpose.msra.mxu0 0.0
    %3422 = vmatprep.subr.mxu0 0.0
    %3423 = vmatpush1.xpose.msra.mxu0 0.0
    %3424 = vmatprep.subr.mxu0 0.0
    %3425 = vmatpush1.xpose.msra.mxu0 0.0
    %3426 = vmatprep.subr.mxu0 0.0
    %3427 = vmatpush1.xpose.msra.mxu0 0.0
    %3428 = vmatprep.subr.mxu0 0.0
    %3429 = vmatpush1.xpose.msra.mxu0 0.0
    %3430 = vmatprep.subr.mxu0 0.0
    %3431 = vmatpush1.xpose.msra.mxu0 0.0
    %3432 = vmatprep.subr.mxu0 0.0
    %3433 = vmatpush1.xpose.msra.mxu0 0.0
    %3434 = vmatprep.subr.mxu0 0.0
    %3435 = vmatpush1.xpose.msra.mxu0 0.0
    %3436 = vmatprep.subr.mxu0 0.0
    %3437 = vmatpush1.xpose.msra.mxu0 0.0
    %3438 = vmatprep.subr.mxu0 0.0
    %3439 = vmatpush1.xpose.msra.mxu0 0.0
    %3440 = vmatprep.subr.mxu0 0.0
    %3441 = vmatpush1.xpose.msra.mxu0 0.0
    %3442 = vmatprep.subr.mxu0 0.0
    %3443 = vmatpush1.xpose.msra.mxu0 0.0
    %3444 = vmatprep.subr.mxu0 0.0
    %v3445 = vand.u32 %v3336, 4294901760
    %v3446 = vsub.f32 %v3336, %v3445
    %v3447 = vand.u32 %v3446, 4294901760
    %v3448 = vsub.f32 %v3446, %v3447
    %v3449 = vand.u32 %v3448, 4294901760
    %3450 = vmatpush1.xpose.msra.mxu0 %v3449
    %3451 = vmatprep.subr.mxu0 0.0
    %3452 = vmatpush2.xpose.msra.mxu0 0.0
    %3453 = vmatprep.subr.mxu0 0.0
    %3454 = vmatpush2.xpose.msra.mxu0 0.0
    %3455 = vmatprep.subr.mxu0 0.0
    %3456 = vmatpush2.xpose.msra.mxu0 0.0
    %3457 = vmatprep.subr.mxu0 0.0
    %3458 = vmatpush2.xpose.msra.mxu0 0.0
    %3459 = vmatprep.subr.mxu0 0.0
    %3460 = vmatpush2.xpose.msra.mxu0 0.0
    %3461 = vmatprep.subr.mxu0 0.0
    %3462 = vmatpush2.xpose.msra.mxu0 0.0
    %3463 = vmatprep.subr.mxu0 0.0
    %3464 = vmatpush2.xpose.msra.mxu0 0.0
    %3465 = vmatprep.subr.mxu0 0.0
    %3466 = vmatpush2.xpose.msra.mxu0 0.0
    %3467 = vmatprep.subr.mxu0 0.0
    %3468 = vmatpush2.xpose.msra.mxu0 0.0
    %3469 = vmatprep.subr.mxu0 0.0
    %3470 = vmatpush2.xpose.msra.mxu0 0.0
    %3471 = vmatprep.subr.mxu0 0.0
    %3472 = vmatpush2.xpose.msra.mxu0 0.0
    %3473 = vmatprep.subr.mxu0 0.0
    %3474 = vmatpush2.xpose.msra.mxu0 0.0
    %3475 = vmatprep.subr.mxu0 0.0
    %3476 = vmatpush2.xpose.msra.mxu0 0.0
    %3477 = vmatprep.subr.mxu0 0.0
    %3478 = vmatpush2.xpose.msra.mxu0 0.0
    %3479 = vmatprep.subr.mxu0 0.0
    %3480 = vmatpush2.xpose.msra.mxu0 0.0
    %3481 = vmatprep.subr.mxu0 0.0
    %3482 = vmatpush2.xpose.msra.mxu0 0.0
    %3483 = vmatprep.mubr.f32.mxu0 0.0
    %v3484 = vand.u32 %v3334, 4294901760
    %3485 = vmatmul.mubr.f32.gmra.mxu0 %v3484
    %v3486 = vpop.f32.mrf.mxu0
    %v3487 = vadd.f32 %v3411, %v3486
    %v3488 = vpop.f32.mrf.mxu0
    %3489 = vdwg.mxu0
    %3490 = vmatprep.subr.mxu0 0.0
    %3491 = vmatpush1.xpose.msra.mxu0 0.0
    %3492 = vmatprep.subr.mxu0 0.0
    %3493 = vmatpush1.xpose.msra.mxu0 0.0
    %3494 = vmatprep.subr.mxu0 0.0
    %3495 = vmatpush1.xpose.msra.mxu0 0.0
    %3496 = vmatprep.subr.mxu0 0.0
    %3497 = vmatpush1.xpose.msra.mxu0 0.0
    %3498 = vmatprep.subr.mxu0 0.0
    %3499 = vmatpush1.xpose.msra.mxu0 0.0
    %3500 = vmatprep.subr.mxu0 0.0
    %3501 = vmatpush1.xpose.msra.mxu0 0.0
    %3502 = vmatprep.subr.mxu0 0.0
    %3503 = vmatpush1.xpose.msra.mxu0 0.0
    %3504 = vmatprep.subr.mxu0 0.0
    %3505 = vmatpush1.xpose.msra.mxu0 0.0
    %3506 = vmatprep.subr.mxu0 0.0
    %3507 = vmatpush1.xpose.msra.mxu0 0.0
    %3508 = vmatprep.subr.mxu0 0.0
    %3509 = vmatpush1.xpose.msra.mxu0 0.0
    %3510 = vmatprep.subr.mxu0 0.0
    %3511 = vmatpush1.xpose.msra.mxu0 0.0
    %3512 = vmatprep.subr.mxu0 0.0
    %3513 = vmatpush1.xpose.msra.mxu0 0.0
    %3514 = vmatprep.subr.mxu0 0.0
    %3515 = vmatpush1.xpose.msra.mxu0 0.0
    %3516 = vmatprep.subr.mxu0 0.0
    %3517 = vmatpush1.xpose.msra.mxu0 0.0
    %3518 = vmatprep.subr.mxu0 0.0
    %3519 = vmatpush1.xpose.msra.mxu0 0.0
    %3520 = vmatprep.subr.mxu0 0.0
    %v3521 = vand.u32 %v3336, 4294901760
    %v3522 = vsub.f32 %v3336, %v3521
    %3523 = vmatpush1.xpose.msra.mxu0 %v3522
    %3524 = vmatprep.subr.mxu0 0.0
    %3525 = vmatpush2.xpose.msra.mxu0 0.0
    %3526 = vmatprep.subr.mxu0 0.0
    %3527 = vmatpush2.xpose.msra.mxu0 0.0
    %3528 = vmatprep.subr.mxu0 0.0
    %3529 = vmatpush2.xpose.msra.mxu0 0.0
    %3530 = vmatprep.subr.mxu0 0.0
    %3531 = vmatpush2.xpose.msra.mxu0 0.0
    %3532 = vmatprep.subr.mxu0 0.0
    %3533 = vmatpush2.xpose.msra.mxu0 0.0
    %3534 = vmatprep.subr.mxu0 0.0
    %3535 = vmatpush2.xpose.msra.mxu0 0.0
    %3536 = vmatprep.subr.mxu0 0.0
    %3537 = vmatpush2.xpose.msra.mxu0 0.0
    %3538 = vmatprep.subr.mxu0 0.0
    %3539 = vmatpush2.xpose.msra.mxu0 0.0
    %3540 = vmatprep.subr.mxu0 0.0
    %3541 = vmatpush2.xpose.msra.mxu0 0.0
    %3542 = vmatprep.subr.mxu0 0.0
    %3543 = vmatpush2.xpose.msra.mxu0 0.0
    %3544 = vmatprep.subr.mxu0 0.0
    %3545 = vmatpush2.xpose.msra.mxu0 0.0
    %3546 = vmatprep.subr.mxu0 0.0
    %3547 = vmatpush2.xpose.msra.mxu0 0.0
    %3548 = vmatprep.subr.mxu0 0.0
    %3549 = vmatpush2.xpose.msra.mxu0 0.0
    %3550 = vmatprep.subr.mxu0 0.0
    %3551 = vmatpush2.xpose.msra.mxu0 0.0
    %3552 = vmatprep.subr.mxu0 0.0
    %3553 = vmatpush2.xpose.msra.mxu0 0.0
    %3554 = vmatprep.subr.mxu0 0.0
    %3555 = vmatpush2.xpose.msra.mxu0 0.0
    %3556 = vmatprep.mubr.f32.mxu0 0.0
    %v3557 = vand.u32 %v3334, 4294901760
    %v3558 = vsub.f32 %v3334, %v3557
    %3559 = vmatmul.mubr.f32.gmra.mxu0 %v3558
    %v3560 = vpop.f32.mrf.mxu0
    %v3561 = vadd.f32 %v3487, %v3560
    %v3562 = vpop.f32.mrf.mxu0
    %3563 = vdwg.mxu0
    %3564 = vmatprep.subr.mxu0 0.0
    %3565 = vmatpush1.xpose.msra.mxu0 0.0
    %3566 = vmatprep.subr.mxu0 0.0
    %3567 = vmatpush1.xpose.msra.mxu0 0.0
    %3568 = vmatprep.subr.mxu0 0.0
    %3569 = vmatpush1.xpose.msra.mxu0 0.0
    %3570 = vmatprep.subr.mxu0 0.0
    %3571 = vmatpush1.xpose.msra.mxu0 0.0
    %3572 = vmatprep.subr.mxu0 0.0
    %3573 = vmatpush1.xpose.msra.mxu0 0.0
    %3574 = vmatprep.subr.mxu0 0.0
    %3575 = vmatpush1.xpose.msra.mxu0 0.0
    %3576 = vmatprep.subr.mxu0 0.0
    %3577 = vmatpush1.xpose.msra.mxu0 0.0
    %3578 = vmatprep.subr.mxu0 0.0
    %3579 = vmatpush1.xpose.msra.mxu0 0.0
    %3580 = vmatprep.subr.mxu0 0.0
    %3581 = vmatpush1.xpose.msra.mxu0 0.0
    %3582 = vmatprep.subr.mxu0 0.0
    %3583 = vmatpush1.xpose.msra.mxu0 0.0
    %3584 = vmatprep.subr.mxu0 0.0
    %3585 = vmatpush1.xpose.msra.mxu0 0.0
    %3586 = vmatprep.subr.mxu0 0.0
    %3587 = vmatpush1.xpose.msra.mxu0 0.0
    %3588 = vmatprep.subr.mxu0 0.0
    %3589 = vmatpush1.xpose.msra.mxu0 0.0
    %3590 = vmatprep.subr.mxu0 0.0
    %3591 = vmatpush1.xpose.msra.mxu0 0.0
    %3592 = vmatprep.subr.mxu0 0.0
    %3593 = vmatpush1.xpose.msra.mxu0 0.0
    %3594 = vmatprep.subr.mxu0 0.0
    %v3595 = vand.u32 %v3336, 4294901760
    %3596 = vmatpush1.xpose.msra.mxu0 %v3595
    %3597 = vmatprep.subr.mxu0 0.0
    %3598 = vmatpush2.xpose.msra.mxu0 0.0
    %3599 = vmatprep.subr.mxu0 0.0
    %3600 = vmatpush2.xpose.msra.mxu0 0.0
    %3601 = vmatprep.subr.mxu0 0.0
    %3602 = vmatpush2.xpose.msra.mxu0 0.0
    %3603 = vmatprep.subr.mxu0 0.0
    %3604 = vmatpush2.xpose.msra.mxu0 0.0
    %3605 = vmatprep.subr.mxu0 0.0
    %3606 = vmatpush2.xpose.msra.mxu0 0.0
    %3607 = vmatprep.subr.mxu0 0.0
    %3608 = vmatpush2.xpose.msra.mxu0 0.0
    %3609 = vmatprep.subr.mxu0 0.0
    %3610 = vmatpush2.xpose.msra.mxu0 0.0
    %3611 = vmatprep.subr.mxu0 0.0
    %3612 = vmatpush2.xpose.msra.mxu0 0.0
    %3613 = vmatprep.subr.mxu0 0.0
    %3614 = vmatpush2.xpose.msra.mxu0 0.0
    %3615 = vmatprep.subr.mxu0 0.0
    %3616 = vmatpush2.xpose.msra.mxu0 0.0
    %3617 = vmatprep.subr.mxu0 0.0
    %3618 = vmatpush2.xpose.msra.mxu0 0.0
    %3619 = vmatprep.subr.mxu0 0.0
    %3620 = vmatpush2.xpose.msra.mxu0 0.0
    %3621 = vmatprep.subr.mxu0 0.0
    %3622 = vmatpush2.xpose.msra.mxu0 0.0
    %3623 = vmatprep.subr.mxu0 0.0
    %3624 = vmatpush2.xpose.msra.mxu0 0.0
    %3625 = vmatprep.subr.mxu0 0.0
    %3626 = vmatpush2.xpose.msra.mxu0 0.0
    %3627 = vmatprep.subr.mxu0 0.0
    %3628 = vmatpush2.xpose.msra.mxu0 0.0
    %3629 = vmatprep.mubr.f32.mxu0 0.0
    %v3630 = vand.u32 %v3334, 4294901760
    %v3631 = vsub.f32 %v3334, %v3630
    %v3632 = vand.u32 %v3631, 4294901760
    %3633 = vmatmul.mubr.f32.gmra.mxu0 %v3632
    %v3634 = vpop.f32.mrf.mxu0
    %v3635 = vadd.f32 %v3561, %v3634
    %v3636 = vpop.f32.mrf.mxu0
    %3637 = vdwg.mxu0
    %3638 = vmatprep.subr.mxu0 0.0
    %3639 = vmatpush1.xpose.msra.mxu0 0.0
    %3640 = vmatprep.subr.mxu0 0.0
    %3641 = vmatpush1.xpose.msra.mxu0 0.0
    %3642 = vmatprep.subr.mxu0 0.0
    %3643 = vmatpush1.xpose.msra.mxu0 0.0
    %3644 = vmatprep.subr.mxu0 0.0
    %3645 = vmatpush1.xpose.msra.mxu0 0.0
    %3646 = vmatprep.subr.mxu0 0.0
    %3647 = vmatpush1.xpose.msra.mxu0 0.0
    %3648 = vmatprep.subr.mxu0 0.0
    %3649 = vmatpush1.xpose.msra.mxu0 0.0
    %3650 = vmatprep.subr.mxu0 0.0
    %3651 = vmatpush1.xpose.msra.mxu0 0.0
    %3652 = vmatprep.subr.mxu0 0.0
    %3653 = vmatpush1.xpose.msra.mxu0 0.0
    %3654 = vmatprep.subr.mxu0 0.0
    %3655 = vmatpush1.xpose.msra.mxu0 0.0
    %3656 = vmatprep.subr.mxu0 0.0
    %3657 = vmatpush1.xpose.msra.mxu0 0.0
    %3658 = vmatprep.subr.mxu0 0.0
    %3659 = vmatpush1.xpose.msra.mxu0 0.0
    %3660 = vmatprep.subr.mxu0 0.0
    %3661 = vmatpush1.xpose.msra.mxu0 0.0
    %3662 = vmatprep.subr.mxu0 0.0
    %3663 = vmatpush1.xpose.msra.mxu0 0.0
    %3664 = vmatprep.subr.mxu0 0.0
    %3665 = vmatpush1.xpose.msra.mxu0 0.0
    %3666 = vmatprep.subr.mxu0 0.0
    %3667 = vmatpush1.xpose.msra.mxu0 0.0
    %3668 = vmatprep.subr.mxu0 0.0
    %v3669 = vand.u32 %v3336, 4294901760
    %v3670 = vsub.f32 %v3336, %v3669
    %v3671 = vand.u32 %v3670, 4294901760
    %3672 = vmatpush1.xpose.msra.mxu0 %v3671
    %3673 = vmatprep.subr.mxu0 0.0
    %3674 = vmatpush2.xpose.msra.mxu0 0.0
    %3675 = vmatprep.subr.mxu0 0.0
    %3676 = vmatpush2.xpose.msra.mxu0 0.0
    %3677 = vmatprep.subr.mxu0 0.0
    %3678 = vmatpush2.xpose.msra.mxu0 0.0
    %3679 = vmatprep.subr.mxu0 0.0
    %3680 = vmatpush2.xpose.msra.mxu0 0.0
    %3681 = vmatprep.subr.mxu0 0.0
    %3682 = vmatpush2.xpose.msra.mxu0 0.0
    %3683 = vmatprep.subr.mxu0 0.0
    %3684 = vmatpush2.xpose.msra.mxu0 0.0
    %3685 = vmatprep.subr.mxu0 0.0
    %3686 = vmatpush2.xpose.msra.mxu0 0.0
    %3687 = vmatprep.subr.mxu0 0.0
    %3688 = vmatpush2.xpose.msra.mxu0 0.0
    %3689 = vmatprep.subr.mxu0 0.0
    %3690 = vmatpush2.xpose.msra.mxu0 0.0
    %3691 = vmatprep.subr.mxu0 0.0
    %3692 = vmatpush2.xpose.msra.mxu0 0.0
    %3693 = vmatprep.subr.mxu0 0.0
    %3694 = vmatpush2.xpose.msra.mxu0 0.0
    %3695 = vmatprep.subr.mxu0 0.0
    %3696 = vmatpush2.xpose.msra.mxu0 0.0
    %3697 = vmatprep.subr.mxu0 0.0
    %3698 = vmatpush2.xpose.msra.mxu0 0.0
    %3699 = vmatprep.subr.mxu0 0.0
    %3700 = vmatpush2.xpose.msra.mxu0 0.0
    %3701 = vmatprep.subr.mxu0 0.0
    %3702 = vmatpush2.xpose.msra.mxu0 0.0
    %3703 = vmatprep.subr.mxu0 0.0
    %3704 = vmatpush2.xpose.msra.mxu0 0.0
    %3705 = vmatprep.mubr.f32.mxu0 0.0
    %v3706 = vand.u32 %v3334, 4294901760
    %3707 = vmatmul.mubr.f32.gmra.mxu0 %v3706
    %v3708 = vpop.f32.mrf.mxu0
    %v3709 = vadd.f32 %v3635, %v3708
    %v3710 = vpop.f32.mrf.mxu0
    %3711 = vdwg.mxu0
    %3712 = vmatprep.subr.mxu0 0.0
    %3713 = vmatpush1.xpose.msra.mxu0 0.0
    %3714 = vmatprep.subr.mxu0 0.0
    %3715 = vmatpush1.xpose.msra.mxu0 0.0
    %3716 = vmatprep.subr.mxu0 0.0
    %3717 = vmatpush1.xpose.msra.mxu0 0.0
    %3718 = vmatprep.subr.mxu0 0.0
    %3719 = vmatpush1.xpose.msra.mxu0 0.0
    %3720 = vmatprep.subr.mxu0 0.0
    %3721 = vmatpush1.xpose.msra.mxu0 0.0
    %3722 = vmatprep.subr.mxu0 0.0
    %3723 = vmatpush1.xpose.msra.mxu0 0.0
    %3724 = vmatprep.subr.mxu0 0.0
    %3725 = vmatpush1.xpose.msra.mxu0 0.0
    %3726 = vmatprep.subr.mxu0 0.0
    %3727 = vmatpush1.xpose.msra.mxu0 0.0
    %3728 = vmatprep.subr.mxu0 0.0
    %3729 = vmatpush1.xpose.msra.mxu0 0.0
    %3730 = vmatprep.subr.mxu0 0.0
    %3731 = vmatpush1.xpose.msra.mxu0 0.0
    %3732 = vmatprep.subr.mxu0 0.0
    %3733 = vmatpush1.xpose.msra.mxu0 0.0
    %3734 = vmatprep.subr.mxu0 0.0
    %3735 = vmatpush1.xpose.msra.mxu0 0.0
    %3736 = vmatprep.subr.mxu0 0.0
    %3737 = vmatpush1.xpose.msra.mxu0 0.0
    %3738 = vmatprep.subr.mxu0 0.0
    %3739 = vmatpush1.xpose.msra.mxu0 0.0
    %3740 = vmatprep.subr.mxu0 0.0
    %3741 = vmatpush1.xpose.msra.mxu0 0.0
    %3742 = vmatprep.subr.mxu0 0.0
    %v3743 = vand.u32 %v3336, 4294901760
    %3744 = vmatpush1.xpose.msra.mxu0 %v3743
    %3745 = vmatprep.subr.mxu0 0.0
    %3746 = vmatpush2.xpose.msra.mxu0 0.0
    %3747 = vmatprep.subr.mxu0 0.0
    %3748 = vmatpush2.xpose.msra.mxu0 0.0
    %3749 = vmatprep.subr.mxu0 0.0
    %3750 = vmatpush2.xpose.msra.mxu0 0.0
    %3751 = vmatprep.subr.mxu0 0.0
    %3752 = vmatpush2.xpose.msra.mxu0 0.0
    %3753 = vmatprep.subr.mxu0 0.0
    %3754 = vmatpush2.xpose.msra.mxu0 0.0
    %3755 = vmatprep.subr.mxu0 0.0
    %3756 = vmatpush2.xpose.msra.mxu0 0.0
    %3757 = vmatprep.subr.mxu0 0.0
    %3758 = vmatpush2.xpose.msra.mxu0 0.0
    %3759 = vmatprep.subr.mxu0 0.0
    %3760 = vmatpush2.xpose.msra.mxu0 0.0
    %3761 = vmatprep.subr.mxu0 0.0
    %3762 = vmatpush2.xpose.msra.mxu0 0.0
    %3763 = vmatprep.subr.mxu0 0.0
    %3764 = vmatpush2.xpose.msra.mxu0 0.0
    %3765 = vmatprep.subr.mxu0 0.0
    %3766 = vmatpush2.xpose.msra.mxu0 0.0
    %3767 = vmatprep.subr.mxu0 0.0
    %3768 = vmatpush2.xpose.msra.mxu0 0.0
    %3769 = vmatprep.subr.mxu0 0.0
    %3770 = vmatpush2.xpose.msra.mxu0 0.0
    %3771 = vmatprep.subr.mxu0 0.0
    %3772 = vmatpush2.xpose.msra.mxu0 0.0
    %3773 = vmatprep.subr.mxu0 0.0
    %3774 = vmatpush2.xpose.msra.mxu0 0.0
    %3775 = vmatprep.subr.mxu0 0.0
    %3776 = vmatpush2.xpose.msra.mxu0 0.0
    %3777 = vmatprep.mubr.f32.mxu0 0.0
    %v3778 = vand.u32 %v3334, 4294901760
    %3779 = vmatmul.mubr.f32.gmra.mxu0 %v3778
    %v3780 = vpop.f32.mrf.mxu0
    %v3781 = vadd.f32 %v3709, %v3780
    %v3782 = vpop.f32.mrf.mxu0
    %3783 = vdwg.mxu0
    %3784 = vrot.lane.b32.xlu0 %v618, 96
    %v3785 = vpop.permute.xlu0 %3784
    %v3786 = vsel %vm621, %v618, 0
    %v3788 = vsel %vm621, %v3785, 0
    %3790 = vmatprep.subr.mxu0 0.0
    %3791 = vmatpush1.xpose.msra.mxu0 0.0
    %3792 = vmatprep.subr.mxu0 0.0
    %3793 = vmatpush1.xpose.msra.mxu0 0.0
    %3794 = vmatprep.subr.mxu0 0.0
    %3795 = vmatpush1.xpose.msra.mxu0 0.0
    %3796 = vmatprep.subr.mxu0 0.0
    %3797 = vmatpush1.xpose.msra.mxu0 0.0
    %3798 = vmatprep.subr.mxu0 0.0
    %3799 = vmatpush1.xpose.msra.mxu0 0.0
    %3800 = vmatprep.subr.mxu0 0.0
    %3801 = vmatpush1.xpose.msra.mxu0 0.0
    %3802 = vmatprep.subr.mxu0 0.0
    %3803 = vmatpush1.xpose.msra.mxu0 0.0
    %3804 = vmatprep.subr.mxu0 0.0
    %3805 = vmatpush1.xpose.msra.mxu0 0.0
    %3806 = vmatprep.subr.mxu0 0.0
    %3807 = vmatpush1.xpose.msra.mxu0 0.0
    %3808 = vmatprep.subr.mxu0 0.0
    %3809 = vmatpush1.xpose.msra.mxu0 0.0
    %3810 = vmatprep.subr.mxu0 0.0
    %3811 = vmatpush1.xpose.msra.mxu0 0.0
    %3812 = vmatprep.subr.mxu0 0.0
    %3813 = vmatpush1.xpose.msra.mxu0 0.0
    %3814 = vmatprep.subr.mxu0 0.0
    %3815 = vmatpush1.xpose.msra.mxu0 0.0
    %3816 = vmatprep.subr.mxu0 0.0
    %3817 = vmatpush1.xpose.msra.mxu0 0.0
    %3818 = vmatprep.subr.mxu0 0.0
    %3819 = vmatpush1.xpose.msra.mxu0 0.0
    %3820 = vmatprep.subr.mxu0 0.0
    %v3821 = vand.u32 %v3788, 4294901760
    %3822 = vmatpush1.xpose.msra.mxu0 %v3821
    %3823 = vmatprep.subr.mxu0 0.0
    %3824 = vmatpush2.xpose.msra.mxu0 0.0
    %3825 = vmatprep.subr.mxu0 0.0
    %3826 = vmatpush2.xpose.msra.mxu0 0.0
    %3827 = vmatprep.subr.mxu0 0.0
    %3828 = vmatpush2.xpose.msra.mxu0 0.0
    %3829 = vmatprep.subr.mxu0 0.0
    %3830 = vmatpush2.xpose.msra.mxu0 0.0
    %3831 = vmatprep.subr.mxu0 0.0
    %3832 = vmatpush2.xpose.msra.mxu0 0.0
    %3833 = vmatprep.subr.mxu0 0.0
    %3834 = vmatpush2.xpose.msra.mxu0 0.0
    %3835 = vmatprep.subr.mxu0 0.0
    %3836 = vmatpush2.xpose.msra.mxu0 0.0
    %3837 = vmatprep.subr.mxu0 0.0
    %3838 = vmatpush2.xpose.msra.mxu0 0.0
    %3839 = vmatprep.subr.mxu0 0.0
    %3840 = vmatpush2.xpose.msra.mxu0 0.0
    %3841 = vmatprep.subr.mxu0 0.0
    %3842 = vmatpush2.xpose.msra.mxu0 0.0
    %3843 = vmatprep.subr.mxu0 0.0
    %3844 = vmatpush2.xpose.msra.mxu0 0.0
    %3845 = vmatprep.subr.mxu0 0.0
    %3846 = vmatpush2.xpose.msra.mxu0 0.0
    %3847 = vmatprep.subr.mxu0 0.0
    %3848 = vmatpush2.xpose.msra.mxu0 0.0
    %3849 = vmatprep.subr.mxu0 0.0
    %3850 = vmatpush2.xpose.msra.mxu0 0.0
    %3851 = vmatprep.subr.mxu0 0.0
    %3852 = vmatpush2.xpose.msra.mxu0 0.0
    %3853 = vmatprep.subr.mxu0 0.0
    %3854 = vmatpush2.xpose.msra.mxu0 0.0
    %3855 = vmatprep.mubr.f32.mxu0 0.0
    %v3856 = vand.u32 %v3786, 4294901760
    %v3857 = vsub.f32 %v3786, %v3856
    %v3858 = vand.u32 %v3857, 4294901760
    %v3859 = vsub.f32 %v3857, %v3858
    %v3860 = vand.u32 %v3859, 4294901760
    %3861 = vmatmul.mubr.f32.gmra.mxu0 %v3860
    %v3862 = vpop.f32.mrf.mxu0
    %v3863 = vadd.f32 0.0, %v3862
    %v3864 = vpop.f32.mrf.mxu0
    %3865 = vdwg.mxu0
    %3866 = vmatprep.subr.mxu0 0.0
    %3867 = vmatpush1.xpose.msra.mxu0 0.0
    %3868 = vmatprep.subr.mxu0 0.0
    %3869 = vmatpush1.xpose.msra.mxu0 0.0
    %3870 = vmatprep.subr.mxu0 0.0
    %3871 = vmatpush1.xpose.msra.mxu0 0.0
    %3872 = vmatprep.subr.mxu0 0.0
    %3873 = vmatpush1.xpose.msra.mxu0 0.0
    %3874 = vmatprep.subr.mxu0 0.0
    %3875 = vmatpush1.xpose.msra.mxu0 0.0
    %3876 = vmatprep.subr.mxu0 0.0
    %3877 = vmatpush1.xpose.msra.mxu0 0.0
    %3878 = vmatprep.subr.mxu0 0.0
    %3879 = vmatpush1.xpose.msra.mxu0 0.0
    %3880 = vmatprep.subr.mxu0 0.0
    %3881 = vmatpush1.xpose.msra.mxu0 0.0
    %3882 = vmatprep.subr.mxu0 0.0
    %3883 = vmatpush1.xpose.msra.mxu0 0.0
    %3884 = vmatprep.subr.mxu0 0.0
    %3885 = vmatpush1.xpose.msra.mxu0 0.0
    %3886 = vmatprep.subr.mxu0 0.0
    %3887 = vmatpush1.xpose.msra.mxu0 0.0
    %3888 = vmatprep.subr.mxu0 0.0
    %3889 = vmatpush1.xpose.msra.mxu0 0.0
    %3890 = vmatprep.subr.mxu0 0.0
    %3891 = vmatpush1.xpose.msra.mxu0 0.0
    %3892 = vmatprep.subr.mxu0 0.0
    %3893 = vmatpush1.xpose.msra.mxu0 0.0
    %3894 = vmatprep.subr.mxu0 0.0
    %3895 = vmatpush1.xpose.msra.mxu0 0.0
    %3896 = vmatprep.subr.mxu0 0.0
    %v3897 = vand.u32 %v3788, 4294901760
    %v3898 = vsub.f32 %v3788, %v3897
    %v3899 = vand.u32 %v3898, 4294901760
    %v3900 = vsub.f32 %v3898, %v3899
    %v3901 = vand.u32 %v3900, 4294901760
    %3902 = vmatpush1.xpose.msra.mxu0 %v3901
    %3903 = vmatprep.subr.mxu0 0.0
    %3904 = vmatpush2.xpose.msra.mxu0 0.0
    %3905 = vmatprep.subr.mxu0 0.0
    %3906 = vmatpush2.xpose.msra.mxu0 0.0
    %3907 = vmatprep.subr.mxu0 0.0
    %3908 = vmatpush2.xpose.msra.mxu0 0.0
    %3909 = vmatprep.subr.mxu0 0.0
    %3910 = vmatpush2.xpose.msra.mxu0 0.0
    %3911 = vmatprep.subr.mxu0 0.0
    %3912 = vmatpush2.xpose.msra.mxu0 0.0
    %3913 = vmatprep.subr.mxu0 0.0
    %3914 = vmatpush2.xpose.msra.mxu0 0.0
    %3915 = vmatprep.subr.mxu0 0.0
    %3916 = vmatpush2.xpose.msra.mxu0 0.0
    %3917 = vmatprep.subr.mxu0 0.0
    %3918 = vmatpush2.xpose.msra.mxu0 0.0
    %3919 = vmatprep.subr.mxu0 0.0
    %3920 = vmatpush2.xpose.msra.mxu0 0.0
    %3921 = vmatprep.subr.mxu0 0.0
    %3922 = vmatpush2.xpose.msra.mxu0 0.0
    %3923 = vmatprep.subr.mxu0 0.0
    %3924 = vmatpush2.xpose.msra.mxu0 0.0
    %3925 = vmatprep.subr.mxu0 0.0
    %3926 = vmatpush2.xpose.msra.mxu0 0.0
    %3927 = vmatprep.subr.mxu0 0.0
    %3928 = vmatpush2.xpose.msra.mxu0 0.0
    %3929 = vmatprep.subr.mxu0 0.0
    %3930 = vmatpush2.xpose.msra.mxu0 0.0
    %3931 = vmatprep.subr.mxu0 0.0
    %3932 = vmatpush2.xpose.msra.mxu0 0.0
    %3933 = vmatprep.subr.mxu0 0.0
    %3934 = vmatpush2.xpose.msra.mxu0 0.0
    %3935 = vmatprep.mubr.f32.mxu0 0.0
    %v3936 = vand.u32 %v3786, 4294901760
    %3937 = vmatmul.mubr.f32.gmra.mxu0 %v3936
    %v3938 = vpop.f32.mrf.mxu0
    %v3939 = vadd.f32 %v3863, %v3938
    %v3940 = vpop.f32.mrf.mxu0
    %3941 = vdwg.mxu0
    %3942 = vmatprep.subr.mxu0 0.0
    %3943 = vmatpush1.xpose.msra.mxu0 0.0
    %3944 = vmatprep.subr.mxu0 0.0
    %3945 = vmatpush1.xpose.msra.mxu0 0.0
    %3946 = vmatprep.subr.mxu0 0.0
    %3947 = vmatpush1.xpose.msra.mxu0 0.0
    %3948 = vmatprep.subr.mxu0 0.0
    %3949 = vmatpush1.xpose.msra.mxu0 0.0
    %3950 = vmatprep.subr.mxu0 0.0
    %3951 = vmatpush1.xpose.msra.mxu0 0.0
    %3952 = vmatprep.subr.mxu0 0.0
    %3953 = vmatpush1.xpose.msra.mxu0 0.0
    %3954 = vmatprep.subr.mxu0 0.0
    %3955 = vmatpush1.xpose.msra.mxu0 0.0
    %3956 = vmatprep.subr.mxu0 0.0
    %3957 = vmatpush1.xpose.msra.mxu0 0.0
    %3958 = vmatprep.subr.mxu0 0.0
    %3959 = vmatpush1.xpose.msra.mxu0 0.0
    %3960 = vmatprep.subr.mxu0 0.0
    %3961 = vmatpush1.xpose.msra.mxu0 0.0
    %3962 = vmatprep.subr.mxu0 0.0
    %3963 = vmatpush1.xpose.msra.mxu0 0.0
    %3964 = vmatprep.subr.mxu0 0.0
    %3965 = vmatpush1.xpose.msra.mxu0 0.0
    %3966 = vmatprep.subr.mxu0 0.0
    %3967 = vmatpush1.xpose.msra.mxu0 0.0
    %3968 = vmatprep.subr.mxu0 0.0
    %3969 = vmatpush1.xpose.msra.mxu0 0.0
    %3970 = vmatprep.subr.mxu0 0.0
    %3971 = vmatpush1.xpose.msra.mxu0 0.0
    %3972 = vmatprep.subr.mxu0 0.0
    %v3973 = vand.u32 %v3788, 4294901760
    %v3974 = vsub.f32 %v3788, %v3973
    %3975 = vmatpush1.xpose.msra.mxu0 %v3974
    %3976 = vmatprep.subr.mxu0 0.0
    %3977 = vmatpush2.xpose.msra.mxu0 0.0
    %3978 = vmatprep.subr.mxu0 0.0
    %3979 = vmatpush2.xpose.msra.mxu0 0.0
    %3980 = vmatprep.subr.mxu0 0.0
    %3981 = vmatpush2.xpose.msra.mxu0 0.0
    %3982 = vmatprep.subr.mxu0 0.0
    %3983 = vmatpush2.xpose.msra.mxu0 0.0
    %3984 = vmatprep.subr.mxu0 0.0
    %3985 = vmatpush2.xpose.msra.mxu0 0.0
    %3986 = vmatprep.subr.mxu0 0.0
    %3987 = vmatpush2.xpose.msra.mxu0 0.0
    %3988 = vmatprep.subr.mxu0 0.0
    %3989 = vmatpush2.xpose.msra.mxu0 0.0
    %3990 = vmatprep.subr.mxu0 0.0
    %3991 = vmatpush2.xpose.msra.mxu0 0.0
    %3992 = vmatprep.subr.mxu0 0.0
    %3993 = vmatpush2.xpose.msra.mxu0 0.0
    %3994 = vmatprep.subr.mxu0 0.0
    %3995 = vmatpush2.xpose.msra.mxu0 0.0
    %3996 = vmatprep.subr.mxu0 0.0
    %3997 = vmatpush2.xpose.msra.mxu0 0.0
    %3998 = vmatprep.subr.mxu0 0.0
    %3999 = vmatpush2.xpose.msra.mxu0 0.0
    %4000 = vmatprep.subr.mxu0 0.0
    %4001 = vmatpush2.xpose.msra.mxu0 0.0
    %4002 = vmatprep.subr.mxu0 0.0
    %4003 = vmatpush2.xpose.msra.mxu0 0.0
    %4004 = vmatprep.subr.mxu0 0.0
    %4005 = vmatpush2.xpose.msra.mxu0 0.0
    %4006 = vmatprep.subr.mxu0 0.0
    %4007 = vmatpush2.xpose.msra.mxu0 0.0
    %4008 = vmatprep.mubr.f32.mxu0 0.0
    %v4009 = vand.u32 %v3786, 4294901760
    %v4010 = vsub.f32 %v3786, %v4009
    %4011 = vmatmul.mubr.f32.gmra.mxu0 %v4010
    %v4012 = vpop.f32.mrf.mxu0
    %v4013 = vadd.f32 %v3939, %v4012
    %v4014 = vpop.f32.mrf.mxu0
    %4015 = vdwg.mxu0
    %4016 = vmatprep.subr.mxu0 0.0
    %4017 = vmatpush1.xpose.msra.mxu0 0.0
    %4018 = vmatprep.subr.mxu0 0.0
    %4019 = vmatpush1.xpose.msra.mxu0 0.0
    %4020 = vmatprep.subr.mxu0 0.0
    %4021 = vmatpush1.xpose.msra.mxu0 0.0
    %4022 = vmatprep.subr.mxu0 0.0
    %4023 = vmatpush1.xpose.msra.mxu0 0.0
    %4024 = vmatprep.subr.mxu0 0.0
    %4025 = vmatpush1.xpose.msra.mxu0 0.0
    %4026 = vmatprep.subr.mxu0 0.0
    %4027 = vmatpush1.xpose.msra.mxu0 0.0
    %4028 = vmatprep.subr.mxu0 0.0
    %4029 = vmatpush1.xpose.msra.mxu0 0.0
    %4030 = vmatprep.subr.mxu0 0.0
    %4031 = vmatpush1.xpose.msra.mxu0 0.0
    %4032 = vmatprep.subr.mxu0 0.0
    %4033 = vmatpush1.xpose.msra.mxu0 0.0
    %4034 = vmatprep.subr.mxu0 0.0
    %4035 = vmatpush1.xpose.msra.mxu0 0.0
    %4036 = vmatprep.subr.mxu0 0.0
    %4037 = vmatpush1.xpose.msra.mxu0 0.0
    %4038 = vmatprep.subr.mxu0 0.0
    %4039 = vmatpush1.xpose.msra.mxu0 0.0
    %4040 = vmatprep.subr.mxu0 0.0
    %4041 = vmatpush1.xpose.msra.mxu0 0.0
    %4042 = vmatprep.subr.mxu0 0.0
    %4043 = vmatpush1.xpose.msra.mxu0 0.0
    %4044 = vmatprep.subr.mxu0 0.0
    %4045 = vmatpush1.xpose.msra.mxu0 0.0
    %4046 = vmatprep.subr.mxu0 0.0
    %v4047 = vand.u32 %v3788, 4294901760
    %4048 = vmatpush1.xpose.msra.mxu0 %v4047
    %4049 = vmatprep.subr.mxu0 0.0
    %4050 = vmatpush2.xpose.msra.mxu0 0.0
    %4051 = vmatprep.subr.mxu0 0.0
    %4052 = vmatpush2.xpose.msra.mxu0 0.0
    %4053 = vmatprep.subr.mxu0 0.0
    %4054 = vmatpush2.xpose.msra.mxu0 0.0
    %4055 = vmatprep.subr.mxu0 0.0
    %4056 = vmatpush2.xpose.msra.mxu0 0.0
    %4057 = vmatprep.subr.mxu0 0.0
    %4058 = vmatpush2.xpose.msra.mxu0 0.0
    %4059 = vmatprep.subr.mxu0 0.0
    %4060 = vmatpush2.xpose.msra.mxu0 0.0
    %4061 = vmatprep.subr.mxu0 0.0
    %4062 = vmatpush2.xpose.msra.mxu0 0.0
    %4063 = vmatprep.subr.mxu0 0.0
    %4064 = vmatpush2.xpose.msra.mxu0 0.0
    %4065 = vmatprep.subr.mxu0 0.0
    %4066 = vmatpush2.xpose.msra.mxu0 0.0
    %4067 = vmatprep.subr.mxu0 0.0
    %4068 = vmatpush2.xpose.msra.mxu0 0.0
    %4069 = vmatprep.subr.mxu0 0.0
    %4070 = vmatpush2.xpose.msra.mxu0 0.0
    %4071 = vmatprep.subr.mxu0 0.0
    %4072 = vmatpush2.xpose.msra.mxu0 0.0
    %4073 = vmatprep.subr.mxu0 0.0
    %4074 = vmatpush2.xpose.msra.mxu0 0.0
    %4075 = vmatprep.subr.mxu0 0.0
    %4076 = vmatpush2.xpose.msra.mxu0 0.0
    %4077 = vmatprep.subr.mxu0 0.0
    %4078 = vmatpush2.xpose.msra.mxu0 0.0
    %4079 = vmatprep.subr.mxu0 0.0
    %4080 = vmatpush2.xpose.msra.mxu0 0.0
    %4081 = vmatprep.mubr.f32.mxu0 0.0
    %v4082 = vand.u32 %v3786, 4294901760
    %v4083 = vsub.f32 %v3786, %v4082
    %v4084 = vand.u32 %v4083, 4294901760
    %4085 = vmatmul.mubr.f32.gmra.mxu0 %v4084
    %v4086 = vpop.f32.mrf.mxu0
    %v4087 = vadd.f32 %v4013, %v4086
    %v4088 = vpop.f32.mrf.mxu0
    %4089 = vdwg.mxu0
    %4090 = vmatprep.subr.mxu0 0.0
    %4091 = vmatpush1.xpose.msra.mxu0 0.0
    %4092 = vmatprep.subr.mxu0 0.0
    %4093 = vmatpush1.xpose.msra.mxu0 0.0
    %4094 = vmatprep.subr.mxu0 0.0
    %4095 = vmatpush1.xpose.msra.mxu0 0.0
    %4096 = vmatprep.subr.mxu0 0.0
    %4097 = vmatpush1.xpose.msra.mxu0 0.0
    %4098 = vmatprep.subr.mxu0 0.0
    %4099 = vmatpush1.xpose.msra.mxu0 0.0
    %4100 = vmatprep.subr.mxu0 0.0
    %4101 = vmatpush1.xpose.msra.mxu0 0.0
    %4102 = vmatprep.subr.mxu0 0.0
    %4103 = vmatpush1.xpose.msra.mxu0 0.0
    %4104 = vmatprep.subr.mxu0 0.0
    %4105 = vmatpush1.xpose.msra.mxu0 0.0
    %4106 = vmatprep.subr.mxu0 0.0
    %4107 = vmatpush1.xpose.msra.mxu0 0.0
    %4108 = vmatprep.subr.mxu0 0.0
    %4109 = vmatpush1.xpose.msra.mxu0 0.0
    %4110 = vmatprep.subr.mxu0 0.0
    %4111 = vmatpush1.xpose.msra.mxu0 0.0
    %4112 = vmatprep.subr.mxu0 0.0
    %4113 = vmatpush1.xpose.msra.mxu0 0.0
    %4114 = vmatprep.subr.mxu0 0.0
    %4115 = vmatpush1.xpose.msra.mxu0 0.0
    %4116 = vmatprep.subr.mxu0 0.0
    %4117 = vmatpush1.xpose.msra.mxu0 0.0
    %4118 = vmatprep.subr.mxu0 0.0
    %4119 = vmatpush1.xpose.msra.mxu0 0.0
    %4120 = vmatprep.subr.mxu0 0.0
    %v4121 = vand.u32 %v3788, 4294901760
    %v4122 = vsub.f32 %v3788, %v4121
    %v4123 = vand.u32 %v4122, 4294901760
    %4124 = vmatpush1.xpose.msra.mxu0 %v4123
    %4125 = vmatprep.subr.mxu0 0.0
    %4126 = vmatpush2.xpose.msra.mxu0 0.0
    %4127 = vmatprep.subr.mxu0 0.0
    %4128 = vmatpush2.xpose.msra.mxu0 0.0
    %4129 = vmatprep.subr.mxu0 0.0
    %4130 = vmatpush2.xpose.msra.mxu0 0.0
    %4131 = vmatprep.subr.mxu0 0.0
    %4132 = vmatpush2.xpose.msra.mxu0 0.0
    %4133 = vmatprep.subr.mxu0 0.0
    %4134 = vmatpush2.xpose.msra.mxu0 0.0
    %4135 = vmatprep.subr.mxu0 0.0
    %4136 = vmatpush2.xpose.msra.mxu0 0.0
    %4137 = vmatprep.subr.mxu0 0.0
    %4138 = vmatpush2.xpose.msra.mxu0 0.0
    %4139 = vmatprep.subr.mxu0 0.0
    %4140 = vmatpush2.xpose.msra.mxu0 0.0
    %4141 = vmatprep.subr.mxu0 0.0
    %4142 = vmatpush2.xpose.msra.mxu0 0.0
    %4143 = vmatprep.subr.mxu0 0.0
    %4144 = vmatpush2.xpose.msra.mxu0 0.0
    %4145 = vmatprep.subr.mxu0 0.0
    %4146 = vmatpush2.xpose.msra.mxu0 0.0
    %4147 = vmatprep.subr.mxu0 0.0
    %4148 = vmatpush2.xpose.msra.mxu0 0.0
    %4149 = vmatprep.subr.mxu0 0.0
    %4150 = vmatpush2.xpose.msra.mxu0 0.0
    %4151 = vmatprep.subr.mxu0 0.0
    %4152 = vmatpush2.xpose.msra.mxu0 0.0
    %4153 = vmatprep.subr.mxu0 0.0
    %4154 = vmatpush2.xpose.msra.mxu0 0.0
    %4155 = vmatprep.subr.mxu0 0.0
    %4156 = vmatpush2.xpose.msra.mxu0 0.0
    %4157 = vmatprep.mubr.f32.mxu0 0.0
    %v4158 = vand.u32 %v3786, 4294901760
    %4159 = vmatmul.mubr.f32.gmra.mxu0 %v4158
    %v4160 = vpop.f32.mrf.mxu0
    %v4161 = vadd.f32 %v4087, %v4160
    %v4162 = vpop.f32.mrf.mxu0
    %4163 = vdwg.mxu0
    %4164 = vmatprep.subr.mxu0 0.0
    %4165 = vmatpush1.xpose.msra.mxu0 0.0
    %4166 = vmatprep.subr.mxu0 0.0
    %4167 = vmatpush1.xpose.msra.mxu0 0.0
    %4168 = vmatprep.subr.mxu0 0.0
    %4169 = vmatpush1.xpose.msra.mxu0 0.0
    %4170 = vmatprep.subr.mxu0 0.0
    %4171 = vmatpush1.xpose.msra.mxu0 0.0
    %4172 = vmatprep.subr.mxu0 0.0
    %4173 = vmatpush1.xpose.msra.mxu0 0.0
    %4174 = vmatprep.subr.mxu0 0.0
    %4175 = vmatpush1.xpose.msra.mxu0 0.0
    %4176 = vmatprep.subr.mxu0 0.0
    %4177 = vmatpush1.xpose.msra.mxu0 0.0
    %4178 = vmatprep.subr.mxu0 0.0
    %4179 = vmatpush1.xpose.msra.mxu0 0.0
    %4180 = vmatprep.subr.mxu0 0.0
    %4181 = vmatpush1.xpose.msra.mxu0 0.0
    %4182 = vmatprep.subr.mxu0 0.0
    %4183 = vmatpush1.xpose.msra.mxu0 0.0
    %4184 = vmatprep.subr.mxu0 0.0
    %4185 = vmatpush1.xpose.msra.mxu0 0.0
    %4186 = vmatprep.subr.mxu0 0.0
    %4187 = vmatpush1.xpose.msra.mxu0 0.0
    %4188 = vmatprep.subr.mxu0 0.0
    %4189 = vmatpush1.xpose.msra.mxu0 0.0
    %4190 = vmatprep.subr.mxu0 0.0
    %4191 = vmatpush1.xpose.msra.mxu0 0.0
    %4192 = vmatprep.subr.mxu0 0.0
    %4193 = vmatpush1.xpose.msra.mxu0 0.0
    %4194 = vmatprep.subr.mxu0 0.0
    %v4195 = vand.u32 %v3788, 4294901760
    %4196 = vmatpush1.xpose.msra.mxu0 %v4195
    %4197 = vmatprep.subr.mxu0 0.0
    %4198 = vmatpush2.xpose.msra.mxu0 0.0
    %4199 = vmatprep.subr.mxu0 0.0
    %4200 = vmatpush2.xpose.msra.mxu0 0.0
    %4201 = vmatprep.subr.mxu0 0.0
    %4202 = vmatpush2.xpose.msra.mxu0 0.0
    %4203 = vmatprep.subr.mxu0 0.0
    %4204 = vmatpush2.xpose.msra.mxu0 0.0
    %4205 = vmatprep.subr.mxu0 0.0
    %4206 = vmatpush2.xpose.msra.mxu0 0.0
    %4207 = vmatprep.subr.mxu0 0.0
    %4208 = vmatpush2.xpose.msra.mxu0 0.0
    %4209 = vmatprep.subr.mxu0 0.0
    %4210 = vmatpush2.xpose.msra.mxu0 0.0
    %4211 = vmatprep.subr.mxu0 0.0
    %4212 = vmatpush2.xpose.msra.mxu0 0.0
    %4213 = vmatprep.subr.mxu0 0.0
    %4214 = vmatpush2.xpose.msra.mxu0 0.0
    %4215 = vmatprep.subr.mxu0 0.0
    %4216 = vmatpush2.xpose.msra.mxu0 0.0
    %4217 = vmatprep.subr.mxu0 0.0
    %4218 = vmatpush2.xpose.msra.mxu0 0.0
    %4219 = vmatprep.subr.mxu0 0.0
    %4220 = vmatpush2.xpose.msra.mxu0 0.0
    %4221 = vmatprep.subr.mxu0 0.0
    %4222 = vmatpush2.xpose.msra.mxu0 0.0
    %4223 = vmatprep.subr.mxu0 0.0
    %4224 = vmatpush2.xpose.msra.mxu0 0.0
    %4225 = vmatprep.subr.mxu0 0.0
    %4226 = vmatpush2.xpose.msra.mxu0 0.0
    %4227 = vmatprep.subr.mxu0 0.0
    %4228 = vmatpush2.xpose.msra.mxu0 0.0
    %4229 = vmatprep.mubr.f32.mxu0 0.0
    %v4230 = vand.u32 %v3786, 4294901760
    %4231 = vmatmul.mubr.f32.gmra.mxu0 %v4230
    %v4232 = vpop.f32.mrf.mxu0
    %v4233 = vadd.f32 %v4161, %v4232
    %v4234 = vpop.f32.mrf.mxu0
    %4235 = vdwg.mxu0
    %v4236 = vlaneseq
    %v4237 = vshrl.u32 %v4236, 7
    %v4238 = vlaneseq
    %v4239 = vand.u32 %v4238, 127
    %vm4240 = vcmp.le.s32.totalorder %v4239, %v4237
    %v4241 = vsel %vm4240, 1, 0
    %vm4242 = vcmp.eq.s32.totalorder %v4241, 1
    %v4243 = vsel %vm4242, %v1069, -inf
    %v4244 = vsel %vm4242, %v1521, -inf
    %v4245 = vsel %vm4242, %v1973, -inf
    %v4246 = vsel %vm4242, %v2425, -inf
    %v4247 = vsel %vm4242, %v2877, -inf
    %v4248 = vsel %vm4242, %v3329, -inf
    %v4249 = vsel %vm4242, %v3781, -inf
    %v4250 = vsel %vm4242, %v4233, -inf
    %v4251 = vsel %vm621, %v4243, -inf
    %4252 = vmax.xlane.f32.xlu0 %v4251
    %v4253 = vpop.xlane.xlu0 %4252
    %v4254 = vsel %vm621, %v4244, -inf
    %4255 = vmax.xlane.f32.xlu0 %v4254
    %v4256 = vpop.xlane.xlu0 %4255
    %v4257 = vsel %vm621, %v4245, -inf
    %4258 = vmax.xlane.f32.xlu0 %v4257
    %v4259 = vpop.xlane.xlu0 %4258
    %v4260 = vsel %vm621, %v4246, -inf
    %4261 = vmax.xlane.f32.xlu0 %v4260
    %v4262 = vpop.xlane.xlu0 %4261
    %v4263 = vsel %vm621, %v4247, -inf
    %4264 = vmax.xlane.f32.xlu0 %v4263
    %v4265 = vpop.xlane.xlu0 %4264
    %v4266 = vsel %vm621, %v4248, -inf
    %4267 = vmax.xlane.f32.xlu0 %v4266
    %v4268 = vpop.xlane.xlu0 %4267
    %v4269 = vsel %vm621, %v4249, -inf
    %4270 = vmax.xlane.f32.xlu0 %v4269
    %v4271 = vpop.xlane.xlu0 %4270
    %v4272 = vsel %vm621, %v4250, -inf
    %4273 = vmax.xlane.f32.xlu0 %v4272
    %v4274 = vpop.xlane.xlu0 %4273
    %v4275 = vsub.f32 %v4243, %v4253
    %v4276 = vsub.f32 %v4244, %v4256
    %v4277 = vsub.f32 %v4245, %v4259
    %v4278 = vsub.f32 %v4246, %v4262
    %v4279 = vsub.f32 %v4247, %v4265
    %v4280 = vsub.f32 %v4248, %v4268
    %v4281 = vsub.f32 %v4249, %v4271
    %v4282 = vsub.f32 %v4250, %v4274
    %v4283 = vmul.f32 %v4275, 1.442695
    %v4284 = vpow.pop %v4283
    %v4285 = vmul.f32 %v4276, 1.442695
    %v4286 = vpow.pop %v4285
    %v4287 = vmul.f32 %v4277, 1.442695
    %v4288 = vpow.pop %v4287
    %v4289 = vmul.f32 %v4278, 1.442695
    %v4290 = vpow.pop %v4289
    %v4291 = vmul.f32 %v4279, 1.442695
    %v4292 = vpow.pop %v4291
    %v4293 = vmul.f32 %v4280, 1.442695
    %v4294 = vpow.pop %v4293
    %v4295 = vmul.f32 %v4281, 1.442695
    %v4296 = vpow.pop %v4295
    %v4297 = vmul.f32 %v4282, 1.442695
    %v4298 = vpow.pop %v4297
    %v4299 = vsel %vm621, %v4284, 0.0
    %4300 = vadd.xlane.f32.xlu0 %v4299
    %v4301 = vpop.xlane.xlu0 %4300
    %v4302 = vsel %vm621, %v4286, 0.0
    %4303 = vadd.xlane.f32.xlu0 %v4302
    %v4304 = vpop.xlane.xlu0 %4303
    %v4305 = vsel %vm621, %v4288, 0.0
    %4306 = vadd.xlane.f32.xlu0 %v4305
    %v4307 = vpop.xlane.xlu0 %4306
    %v4308 = vsel %vm621, %v4290, 0.0
    %4309 = vadd.xlane.f32.xlu0 %v4308
    %v4310 = vpop.xlane.xlu0 %4309
    %v4311 = vsel %vm621, %v4292, 0.0
    %4312 = vadd.xlane.f32.xlu0 %v4311
    %v4313 = vpop.xlane.xlu0 %4312
    %v4314 = vsel %vm621, %v4294, 0.0
    %4315 = vadd.xlane.f32.xlu0 %v4314
    %v4316 = vpop.xlane.xlu0 %4315
    %v4317 = vsel %vm621, %v4296, 0.0
    %4318 = vadd.xlane.f32.xlu0 %v4317
    %v4319 = vpop.xlane.xlu0 %4318
    %v4320 = vsel %vm621, %v4298, 0.0
    %4321 = vadd.xlane.f32.xlu0 %v4320
    %v4322 = vpop.xlane.xlu0 %4321
    %v4323 = vrcp.pop %v4301
    %v4324 = vmul.f32 %v4284, %v4323
    %v4325 = vrcp.pop %v4304
    %v4326 = vmul.f32 %v4286, %v4325
    %v4327 = vrcp.pop %v4307
    %v4328 = vmul.f32 %v4288, %v4327
    %v4329 = vrcp.pop %v4310
    %v4330 = vmul.f32 %v4290, %v4329
    %v4331 = vrcp.pop %v4313
    %v4332 = vmul.f32 %v4292, %v4331
    %v4333 = vrcp.pop %v4316
    %v4334 = vmul.f32 %v4294, %v4333
    %v4335 = vrcp.pop %v4319
    %v4336 = vmul.f32 %v4296, %v4335
    %v4337 = vrcp.pop %v4322
    %v4338 = vmul.f32 %v4298, %v4337
    %4339 = vrot.lane.b32.xlu0 %v596, 64
    %v4340 = vpop.permute.xlu0 %4339
    %v4343 = vsel %vm621, %v4324, 0
    %4345 = vmatprep.subr.mxu0 0.0
    %4346 = vmatpush1.msra.mxu0 0.0
    %4347 = vmatprep.subr.mxu0 0.0
    %4348 = vmatpush1.msra.mxu0 0.0
    %4349 = vmatprep.subr.mxu0 0.0
    %4350 = vmatpush1.msra.mxu0 0.0
    %4351 = vmatprep.subr.mxu0 0.0
    %4352 = vmatpush1.msra.mxu0 0.0
    %4353 = vmatprep.subr.mxu0 0.0
    %4354 = vmatpush1.msra.mxu0 0.0
    %4355 = vmatprep.subr.mxu0 0.0
    %4356 = vmatpush1.msra.mxu0 0.0
    %4357 = vmatprep.subr.mxu0 0.0
    %4358 = vmatpush1.msra.mxu0 0.0
    %4359 = vmatprep.subr.mxu0 0.0
    %4360 = vmatpush1.msra.mxu0 0.0
    %4361 = vmatprep.subr.mxu0 0.0
    %4362 = vmatpush1.msra.mxu0 0.0
    %4363 = vmatprep.subr.mxu0 0.0
    %4364 = vmatpush1.msra.mxu0 0.0
    %4365 = vmatprep.subr.mxu0 0.0
    %4366 = vmatpush1.msra.mxu0 0.0
    %4367 = vmatprep.subr.mxu0 0.0
    %4368 = vmatpush1.msra.mxu0 0.0
    %4369 = vmatprep.subr.mxu0 0.0
    %4370 = vmatpush1.msra.mxu0 0.0
    %4371 = vmatprep.subr.mxu0 0.0
    %4372 = vmatpush1.msra.mxu0 0.0
    %4373 = vmatprep.subr.mxu0 0.0
    %4374 = vmatpush1.msra.mxu0 0.0
    %4375 = vmatprep.subr.mxu0 0.0
    %v4376 = vand.u32 %v4340, 4294901760
    %4377 = vmatpush1.msra.mxu0 %v4376
    %4378 = vmatprep.subr.mxu0 0.0
    %4379 = vmatpush2.msra.mxu0 0.0
    %4380 = vmatprep.subr.mxu0 0.0
    %4381 = vmatpush2.msra.mxu0 0.0
    %4382 = vmatprep.subr.mxu0 0.0
    %4383 = vmatpush2.msra.mxu0 0.0
    %4384 = vmatprep.subr.mxu0 0.0
    %4385 = vmatpush2.msra.mxu0 0.0
    %4386 = vmatprep.subr.mxu0 0.0
    %4387 = vmatpush2.msra.mxu0 0.0
    %4388 = vmatprep.subr.mxu0 0.0
    %4389 = vmatpush2.msra.mxu0 0.0
    %4390 = vmatprep.subr.mxu0 0.0
    %4391 = vmatpush2.msra.mxu0 0.0
    %4392 = vmatprep.subr.mxu0 0.0
    %4393 = vmatpush2.msra.mxu0 0.0
    %4394 = vmatprep.subr.mxu0 0.0
    %4395 = vmatpush2.msra.mxu0 0.0
    %4396 = vmatprep.subr.mxu0 0.0
    %4397 = vmatpush2.msra.mxu0 0.0
    %4398 = vmatprep.subr.mxu0 0.0
    %4399 = vmatpush2.msra.mxu0 0.0
    %4400 = vmatprep.subr.mxu0 0.0
    %4401 = vmatpush2.msra.mxu0 0.0
    %4402 = vmatprep.subr.mxu0 0.0
    %4403 = vmatpush2.msra.mxu0 0.0
    %4404 = vmatprep.subr.mxu0 0.0
    %4405 = vmatpush2.msra.mxu0 0.0
    %4406 = vmatprep.subr.mxu0 0.0
    %4407 = vmatpush2.msra.mxu0 0.0
    %4408 = vmatprep.subr.mxu0 0.0
    %4409 = vmatpush2.msra.mxu0 0.0
    %4410 = vmatprep.mubr.f32.mxu0 0.0
    %v4411 = vand.u32 %v4343, 4294901760
    %v4412 = vsub.f32 %v4343, %v4411
    %v4413 = vand.u32 %v4412, 4294901760
    %v4414 = vsub.f32 %v4412, %v4413
    %v4415 = vand.u32 %v4414, 4294901760
    %4416 = vmatmul.mubr.f32.gmra.mxu0 %v4415
    %v4417 = vpop.f32.mrf.mxu0
    %v4418 = vadd.f32 0.0, %v4417
    %v4419 = vpop.f32.mrf.mxu0
    %4420 = vdwg.mxu0
    %4421 = vmatprep.subr.mxu0 0.0
    %4422 = vmatpush1.msra.mxu0 0.0
    %4423 = vmatprep.subr.mxu0 0.0
    %4424 = vmatpush1.msra.mxu0 0.0
    %4425 = vmatprep.subr.mxu0 0.0
    %4426 = vmatpush1.msra.mxu0 0.0
    %4427 = vmatprep.subr.mxu0 0.0
    %4428 = vmatpush1.msra.mxu0 0.0
    %4429 = vmatprep.subr.mxu0 0.0
    %4430 = vmatpush1.msra.mxu0 0.0
    %4431 = vmatprep.subr.mxu0 0.0
    %4432 = vmatpush1.msra.mxu0 0.0
    %4433 = vmatprep.subr.mxu0 0.0
    %4434 = vmatpush1.msra.mxu0 0.0
    %4435 = vmatprep.subr.mxu0 0.0
    %4436 = vmatpush1.msra.mxu0 0.0
    %4437 = vmatprep.subr.mxu0 0.0
    %4438 = vmatpush1.msra.mxu0 0.0
    %4439 = vmatprep.subr.mxu0 0.0
    %4440 = vmatpush1.msra.mxu0 0.0
    %4441 = vmatprep.subr.mxu0 0.0
    %4442 = vmatpush1.msra.mxu0 0.0
    %4443 = vmatprep.subr.mxu0 0.0
    %4444 = vmatpush1.msra.mxu0 0.0
    %4445 = vmatprep.subr.mxu0 0.0
    %4446 = vmatpush1.msra.mxu0 0.0
    %4447 = vmatprep.subr.mxu0 0.0
    %4448 = vmatpush1.msra.mxu0 0.0
    %4449 = vmatprep.subr.mxu0 0.0
    %4450 = vmatpush1.msra.mxu0 0.0
    %4451 = vmatprep.subr.mxu0 0.0
    %v4452 = vand.u32 %v4340, 4294901760
    %v4453 = vsub.f32 %v4340, %v4452
    %v4454 = vand.u32 %v4453, 4294901760
    %v4455 = vsub.f32 %v4453, %v4454
    %v4456 = vand.u32 %v4455, 4294901760
    %4457 = vmatpush1.msra.mxu0 %v4456
    %4458 = vmatprep.subr.mxu0 0.0
    %4459 = vmatpush2.msra.mxu0 0.0
    %4460 = vmatprep.subr.mxu0 0.0
    %4461 = vmatpush2.msra.mxu0 0.0
    %4462 = vmatprep.subr.mxu0 0.0
    %4463 = vmatpush2.msra.mxu0 0.0
    %4464 = vmatprep.subr.mxu0 0.0
    %4465 = vmatpush2.msra.mxu0 0.0
    %4466 = vmatprep.subr.mxu0 0.0
    %4467 = vmatpush2.msra.mxu0 0.0
    %4468 = vmatprep.subr.mxu0 0.0
    %4469 = vmatpush2.msra.mxu0 0.0
    %4470 = vmatprep.subr.mxu0 0.0
    %4471 = vmatpush2.msra.mxu0 0.0
    %4472 = vmatprep.subr.mxu0 0.0
    %4473 = vmatpush2.msra.mxu0 0.0
    %4474 = vmatprep.subr.mxu0 0.0
    %4475 = vmatpush2.msra.mxu0 0.0
    %4476 = vmatprep.subr.mxu0 0.0
    %4477 = vmatpush2.msra.mxu0 0.0
    %4478 = vmatprep.subr.mxu0 0.0
    %4479 = vmatpush2.msra.mxu0 0.0
    %4480 = vmatprep.subr.mxu0 0.0
    %4481 = vmatpush2.msra.mxu0 0.0
    %4482 = vmatprep.subr.mxu0 0.0
    %4483 = vmatpush2.msra.mxu0 0.0
    %4484 = vmatprep.subr.mxu0 0.0
    %4485 = vmatpush2.msra.mxu0 0.0
    %4486 = vmatprep.subr.mxu0 0.0
    %4487 = vmatpush2.msra.mxu0 0.0
    %4488 = vmatprep.subr.mxu0 0.0
    %4489 = vmatpush2.msra.mxu0 0.0
    %4490 = vmatprep.mubr.f32.mxu0 0.0
    %v4491 = vand.u32 %v4343, 4294901760
    %4492 = vmatmul.mubr.f32.gmra.mxu0 %v4491
    %v4493 = vpop.f32.mrf.mxu0
    %v4494 = vadd.f32 %v4418, %v4493
    %v4495 = vpop.f32.mrf.mxu0
    %4496 = vdwg.mxu0
    %4497 = vmatprep.subr.mxu0 0.0
    %4498 = vmatpush1.msra.mxu0 0.0
    %4499 = vmatprep.subr.mxu0 0.0
    %4500 = vmatpush1.msra.mxu0 0.0
    %4501 = vmatprep.subr.mxu0 0.0
    %4502 = vmatpush1.msra.mxu0 0.0
    %4503 = vmatprep.subr.mxu0 0.0
    %4504 = vmatpush1.msra.mxu0 0.0
    %4505 = vmatprep.subr.mxu0 0.0
    %4506 = vmatpush1.msra.mxu0 0.0
    %4507 = vmatprep.subr.mxu0 0.0
    %4508 = vmatpush1.msra.mxu0 0.0
    %4509 = vmatprep.subr.mxu0 0.0
    %4510 = vmatpush1.msra.mxu0 0.0
    %4511 = vmatprep.subr.mxu0 0.0
    %4512 = vmatpush1.msra.mxu0 0.0
    %4513 = vmatprep.subr.mxu0 0.0
    %4514 = vmatpush1.msra.mxu0 0.0
    %4515 = vmatprep.subr.mxu0 0.0
    %4516 = vmatpush1.msra.mxu0 0.0
    %4517 = vmatprep.subr.mxu0 0.0
    %4518 = vmatpush1.msra.mxu0 0.0
    %4519 = vmatprep.subr.mxu0 0.0
    %4520 = vmatpush1.msra.mxu0 0.0
    %4521 = vmatprep.subr.mxu0 0.0
    %4522 = vmatpush1.msra.mxu0 0.0
    %4523 = vmatprep.subr.mxu0 0.0
    %4524 = vmatpush1.msra.mxu0 0.0
    %4525 = vmatprep.subr.mxu0 0.0
    %4526 = vmatpush1.msra.mxu0 0.0
    %4527 = vmatprep.subr.mxu0 0.0
    %v4528 = vand.u32 %v4340, 4294901760
    %v4529 = vsub.f32 %v4340, %v4528
    %4530 = vmatpush1.msra.mxu0 %v4529
    %4531 = vmatprep.subr.mxu0 0.0
    %4532 = vmatpush2.msra.mxu0 0.0
    %4533 = vmatprep.subr.mxu0 0.0
    %4534 = vmatpush2.msra.mxu0 0.0
    %4535 = vmatprep.subr.mxu0 0.0
    %4536 = vmatpush2.msra.mxu0 0.0
    %4537 = vmatprep.subr.mxu0 0.0
    %4538 = vmatpush2.msra.mxu0 0.0
    %4539 = vmatprep.subr.mxu0 0.0
    %4540 = vmatpush2.msra.mxu0 0.0
    %4541 = vmatprep.subr.mxu0 0.0
    %4542 = vmatpush2.msra.mxu0 0.0
    %4543 = vmatprep.subr.mxu0 0.0
    %4544 = vmatpush2.msra.mxu0 0.0
    %4545 = vmatprep.subr.mxu0 0.0
    %4546 = vmatpush2.msra.mxu0 0.0
    %4547 = vmatprep.subr.mxu0 0.0
    %4548 = vmatpush2.msra.mxu0 0.0
    %4549 = vmatprep.subr.mxu0 0.0
    %4550 = vmatpush2.msra.mxu0 0.0
    %4551 = vmatprep.subr.mxu0 0.0
    %4552 = vmatpush2.msra.mxu0 0.0
    %4553 = vmatprep.subr.mxu0 0.0
    %4554 = vmatpush2.msra.mxu0 0.0
    %4555 = vmatprep.subr.mxu0 0.0
    %4556 = vmatpush2.msra.mxu0 0.0
    %4557 = vmatprep.subr.mxu0 0.0
    %4558 = vmatpush2.msra.mxu0 0.0
    %4559 = vmatprep.subr.mxu0 0.0
    %4560 = vmatpush2.msra.mxu0 0.0
    %4561 = vmatprep.subr.mxu0 0.0
    %4562 = vmatpush2.msra.mxu0 0.0
    %4563 = vmatprep.mubr.f32.mxu0 0.0
    %v4564 = vand.u32 %v4343, 4294901760
    %v4565 = vsub.f32 %v4343, %v4564
    %4566 = vmatmul.mubr.f32.gmra.mxu0 %v4565
    %v4567 = vpop.f32.mrf.mxu0
    %v4568 = vadd.f32 %v4494, %v4567
    %v4569 = vpop.f32.mrf.mxu0
    %4570 = vdwg.mxu0
    %4571 = vmatprep.subr.mxu0 0.0
    %4572 = vmatpush1.msra.mxu0 0.0
    %4573 = vmatprep.subr.mxu0 0.0
    %4574 = vmatpush1.msra.mxu0 0.0
    %4575 = vmatprep.subr.mxu0 0.0
    %4576 = vmatpush1.msra.mxu0 0.0
    %4577 = vmatprep.subr.mxu0 0.0
    %4578 = vmatpush1.msra.mxu0 0.0
    %4579 = vmatprep.subr.mxu0 0.0
    %4580 = vmatpush1.msra.mxu0 0.0
    %4581 = vmatprep.subr.mxu0 0.0
    %4582 = vmatpush1.msra.mxu0 0.0
    %4583 = vmatprep.subr.mxu0 0.0
    %4584 = vmatpush1.msra.mxu0 0.0
    %4585 = vmatprep.subr.mxu0 0.0
    %4586 = vmatpush1.msra.mxu0 0.0
    %4587 = vmatprep.subr.mxu0 0.0
    %4588 = vmatpush1.msra.mxu0 0.0
    %4589 = vmatprep.subr.mxu0 0.0
    %4590 = vmatpush1.msra.mxu0 0.0
    %4591 = vmatprep.subr.mxu0 0.0
    %4592 = vmatpush1.msra.mxu0 0.0
    %4593 = vmatprep.subr.mxu0 0.0
    %4594 = vmatpush1.msra.mxu0 0.0
    %4595 = vmatprep.subr.mxu0 0.0
    %4596 = vmatpush1.msra.mxu0 0.0
    %4597 = vmatprep.subr.mxu0 0.0
    %4598 = vmatpush1.msra.mxu0 0.0
    %4599 = vmatprep.subr.mxu0 0.0
    %4600 = vmatpush1.msra.mxu0 0.0
    %4601 = vmatprep.subr.mxu0 0.0
    %v4602 = vand.u32 %v4340, 4294901760
    %4603 = vmatpush1.msra.mxu0 %v4602
    %4604 = vmatprep.subr.mxu0 0.0
    %4605 = vmatpush2.msra.mxu0 0.0
    %4606 = vmatprep.subr.mxu0 0.0
    %4607 = vmatpush2.msra.mxu0 0.0
    %4608 = vmatprep.subr.mxu0 0.0
    %4609 = vmatpush2.msra.mxu0 0.0
    %4610 = vmatprep.subr.mxu0 0.0
    %4611 = vmatpush2.msra.mxu0 0.0
    %4612 = vmatprep.subr.mxu0 0.0
    %4613 = vmatpush2.msra.mxu0 0.0
    %4614 = vmatprep.subr.mxu0 0.0
    %4615 = vmatpush2.msra.mxu0 0.0
    %4616 = vmatprep.subr.mxu0 0.0
    %4617 = vmatpush2.msra.mxu0 0.0
    %4618 = vmatprep.subr.mxu0 0.0
    %4619 = vmatpush2.msra.mxu0 0.0
    %4620 = vmatprep.subr.mxu0 0.0
    %4621 = vmatpush2.msra.mxu0 0.0
    %4622 = vmatprep.subr.mxu0 0.0
    %4623 = vmatpush2.msra.mxu0 0.0
    %4624 = vmatprep.subr.mxu0 0.0
    %4625 = vmatpush2.msra.mxu0 0.0
    %4626 = vmatprep.subr.mxu0 0.0
    %4627 = vmatpush2.msra.mxu0 0.0
    %4628 = vmatprep.subr.mxu0 0.0
    %4629 = vmatpush2.msra.mxu0 0.0
    %4630 = vmatprep.subr.mxu0 0.0
    %4631 = vmatpush2.msra.mxu0 0.0
    %4632 = vmatprep.subr.mxu0 0.0
    %4633 = vmatpush2.msra.mxu0 0.0
    %4634 = vmatprep.subr.mxu0 0.0
    %4635 = vmatpush2.msra.mxu0 0.0
    %4636 = vmatprep.mubr.f32.mxu0 0.0
    %v4637 = vand.u32 %v4343, 4294901760
    %v4638 = vsub.f32 %v4343, %v4637
    %v4639 = vand.u32 %v4638, 4294901760
    %4640 = vmatmul.mubr.f32.gmra.mxu0 %v4639
    %v4641 = vpop.f32.mrf.mxu0
    %v4642 = vadd.f32 %v4568, %v4641
    %v4643 = vpop.f32.mrf.mxu0
    %4644 = vdwg.mxu0
    %4645 = vmatprep.subr.mxu0 0.0
    %4646 = vmatpush1.msra.mxu0 0.0
    %4647 = vmatprep.subr.mxu0 0.0
    %4648 = vmatpush1.msra.mxu0 0.0
    %4649 = vmatprep.subr.mxu0 0.0
    %4650 = vmatpush1.msra.mxu0 0.0
    %4651 = vmatprep.subr.mxu0 0.0
    %4652 = vmatpush1.msra.mxu0 0.0
    %4653 = vmatprep.subr.mxu0 0.0
    %4654 = vmatpush1.msra.mxu0 0.0
    %4655 = vmatprep.subr.mxu0 0.0
    %4656 = vmatpush1.msra.mxu0 0.0
    %4657 = vmatprep.subr.mxu0 0.0
    %4658 = vmatpush1.msra.mxu0 0.0
    %4659 = vmatprep.subr.mxu0 0.0
    %4660 = vmatpush1.msra.mxu0 0.0
    %4661 = vmatprep.subr.mxu0 0.0
    %4662 = vmatpush1.msra.mxu0 0.0
    %4663 = vmatprep.subr.mxu0 0.0
    %4664 = vmatpush1.msra.mxu0 0.0
    %4665 = vmatprep.subr.mxu0 0.0
    %4666 = vmatpush1.msra.mxu0 0.0
    %4667 = vmatprep.subr.mxu0 0.0
    %4668 = vmatpush1.msra.mxu0 0.0
    %4669 = vmatprep.subr.mxu0 0.0
    %4670 = vmatpush1.msra.mxu0 0.0
    %4671 = vmatprep.subr.mxu0 0.0
    %4672 = vmatpush1.msra.mxu0 0.0
    %4673 = vmatprep.subr.mxu0 0.0
    %4674 = vmatpush1.msra.mxu0 0.0
    %4675 = vmatprep.subr.mxu0 0.0
    %v4676 = vand.u32 %v4340, 4294901760
    %v4677 = vsub.f32 %v4340, %v4676
    %v4678 = vand.u32 %v4677, 4294901760
    %4679 = vmatpush1.msra.mxu0 %v4678
    %4680 = vmatprep.subr.mxu0 0.0
    %4681 = vmatpush2.msra.mxu0 0.0
    %4682 = vmatprep.subr.mxu0 0.0
    %4683 = vmatpush2.msra.mxu0 0.0
    %4684 = vmatprep.subr.mxu0 0.0
    %4685 = vmatpush2.msra.mxu0 0.0
    %4686 = vmatprep.subr.mxu0 0.0
    %4687 = vmatpush2.msra.mxu0 0.0
    %4688 = vmatprep.subr.mxu0 0.0
    %4689 = vmatpush2.msra.mxu0 0.0
    %4690 = vmatprep.subr.mxu0 0.0
    %4691 = vmatpush2.msra.mxu0 0.0
    %4692 = vmatprep.subr.mxu0 0.0
    %4693 = vmatpush2.msra.mxu0 0.0
    %4694 = vmatprep.subr.mxu0 0.0
    %4695 = vmatpush2.msra.mxu0 0.0
    %4696 = vmatprep.subr.mxu0 0.0
    %4697 = vmatpush2.msra.mxu0 0.0
    %4698 = vmatprep.subr.mxu0 0.0
    %4699 = vmatpush2.msra.mxu0 0.0
    %4700 = vmatprep.subr.mxu0 0.0
    %4701 = vmatpush2.msra.mxu0 0.0
    %4702 = vmatprep.subr.mxu0 0.0
    %4703 = vmatpush2.msra.mxu0 0.0
    %4704 = vmatprep.subr.mxu0 0.0
    %4705 = vmatpush2.msra.mxu0 0.0
    %4706 = vmatprep.subr.mxu0 0.0
    %4707 = vmatpush2.msra.mxu0 0.0
    %4708 = vmatprep.subr.mxu0 0.0
    %4709 = vmatpush2.msra.mxu0 0.0
    %4710 = vmatprep.subr.mxu0 0.0
    %4711 = vmatpush2.msra.mxu0 0.0
    %4712 = vmatprep.mubr.f32.mxu0 0.0
    %v4713 = vand.u32 %v4343, 4294901760
    %4714 = vmatmul.mubr.f32.gmra.mxu0 %v4713
    %v4715 = vpop.f32.mrf.mxu0
    %v4716 = vadd.f32 %v4642, %v4715
    %v4717 = vpop.f32.mrf.mxu0
    %4718 = vdwg.mxu0
    %4719 = vmatprep.subr.mxu0 0.0
    %4720 = vmatpush1.msra.mxu0 0.0
    %4721 = vmatprep.subr.mxu0 0.0
    %4722 = vmatpush1.msra.mxu0 0.0
    %4723 = vmatprep.subr.mxu0 0.0
    %4724 = vmatpush1.msra.mxu0 0.0
    %4725 = vmatprep.subr.mxu0 0.0
    %4726 = vmatpush1.msra.mxu0 0.0
    %4727 = vmatprep.subr.mxu0 0.0
    %4728 = vmatpush1.msra.mxu0 0.0
    %4729 = vmatprep.subr.mxu0 0.0
    %4730 = vmatpush1.msra.mxu0 0.0
    %4731 = vmatprep.subr.mxu0 0.0
    %4732 = vmatpush1.msra.mxu0 0.0
    %4733 = vmatprep.subr.mxu0 0.0
    %4734 = vmatpush1.msra.mxu0 0.0
    %4735 = vmatprep.subr.mxu0 0.0
    %4736 = vmatpush1.msra.mxu0 0.0
    %4737 = vmatprep.subr.mxu0 0.0
    %4738 = vmatpush1.msra.mxu0 0.0
    %4739 = vmatprep.subr.mxu0 0.0
    %4740 = vmatpush1.msra.mxu0 0.0
    %4741 = vmatprep.subr.mxu0 0.0
    %4742 = vmatpush1.msra.mxu0 0.0
    %4743 = vmatprep.subr.mxu0 0.0
    %4744 = vmatpush1.msra.mxu0 0.0
    %4745 = vmatprep.subr.mxu0 0.0
    %4746 = vmatpush1.msra.mxu0 0.0
    %4747 = vmatprep.subr.mxu0 0.0
    %4748 = vmatpush1.msra.mxu0 0.0
    %4749 = vmatprep.subr.mxu0 0.0
    %v4750 = vand.u32 %v4340, 4294901760
    %4751 = vmatpush1.msra.mxu0 %v4750
    %4752 = vmatprep.subr.mxu0 0.0
    %4753 = vmatpush2.msra.mxu0 0.0
    %4754 = vmatprep.subr.mxu0 0.0
    %4755 = vmatpush2.msra.mxu0 0.0
    %4756 = vmatprep.subr.mxu0 0.0
    %4757 = vmatpush2.msra.mxu0 0.0
    %4758 = vmatprep.subr.mxu0 0.0
    %4759 = vmatpush2.msra.mxu0 0.0
    %4760 = vmatprep.subr.mxu0 0.0
    %4761 = vmatpush2.msra.mxu0 0.0
    %4762 = vmatprep.subr.mxu0 0.0
    %4763 = vmatpush2.msra.mxu0 0.0
    %4764 = vmatprep.subr.mxu0 0.0
    %4765 = vmatpush2.msra.mxu0 0.0
    %4766 = vmatprep.subr.mxu0 0.0
    %4767 = vmatpush2.msra.mxu0 0.0
    %4768 = vmatprep.subr.mxu0 0.0
    %4769 = vmatpush2.msra.mxu0 0.0
    %4770 = vmatprep.subr.mxu0 0.0
    %4771 = vmatpush2.msra.mxu0 0.0
    %4772 = vmatprep.subr.mxu0 0.0
    %4773 = vmatpush2.msra.mxu0 0.0
    %4774 = vmatprep.subr.mxu0 0.0
    %4775 = vmatpush2.msra.mxu0 0.0
    %4776 = vmatprep.subr.mxu0 0.0
    %4777 = vmatpush2.msra.mxu0 0.0
    %4778 = vmatprep.subr.mxu0 0.0
    %4779 = vmatpush2.msra.mxu0 0.0
    %4780 = vmatprep.subr.mxu0 0.0
    %4781 = vmatpush2.msra.mxu0 0.0
    %4782 = vmatprep.subr.mxu0 0.0
    %4783 = vmatpush2.msra.mxu0 0.0
    %4784 = vmatprep.mubr.f32.mxu0 0.0
    %v4785 = vand.u32 %v4343, 4294901760
    %4786 = vmatmul.mubr.f32.gmra.mxu0 %v4785
    %v4787 = vpop.f32.mrf.mxu0
    %v4788 = vadd.f32 %v4716, %v4787
    %v4789 = vpop.f32.mrf.mxu0
    %4790 = vdwg.mxu0
    %4791 = vrot.lane.b32.xlu0 %v602, 64
    %v4792 = vpop.permute.xlu0 %4791
    %v4795 = vsel %vm621, %v4326, 0
    %4797 = vmatprep.subr.mxu0 0.0
    %4798 = vmatpush1.msra.mxu0 0.0
    %4799 = vmatprep.subr.mxu0 0.0
    %4800 = vmatpush1.msra.mxu0 0.0
    %4801 = vmatprep.subr.mxu0 0.0
    %4802 = vmatpush1.msra.mxu0 0.0
    %4803 = vmatprep.subr.mxu0 0.0
    %4804 = vmatpush1.msra.mxu0 0.0
    %4805 = vmatprep.subr.mxu0 0.0
    %4806 = vmatpush1.msra.mxu0 0.0
    %4807 = vmatprep.subr.mxu0 0.0
    %4808 = vmatpush1.msra.mxu0 0.0
    %4809 = vmatprep.subr.mxu0 0.0
    %4810 = vmatpush1.msra.mxu0 0.0
    %4811 = vmatprep.subr.mxu0 0.0
    %4812 = vmatpush1.msra.mxu0 0.0
    %4813 = vmatprep.subr.mxu0 0.0
    %4814 = vmatpush1.msra.mxu0 0.0
    %4815 = vmatprep.subr.mxu0 0.0
    %4816 = vmatpush1.msra.mxu0 0.0
    %4817 = vmatprep.subr.mxu0 0.0
    %4818 = vmatpush1.msra.mxu0 0.0
    %4819 = vmatprep.subr.mxu0 0.0
    %4820 = vmatpush1.msra.mxu0 0.0
    %4821 = vmatprep.subr.mxu0 0.0
    %4822 = vmatpush1.msra.mxu0 0.0
    %4823 = vmatprep.subr.mxu0 0.0
    %4824 = vmatpush1.msra.mxu0 0.0
    %4825 = vmatprep.subr.mxu0 0.0
    %4826 = vmatpush1.msra.mxu0 0.0
    %4827 = vmatprep.subr.mxu0 0.0
    %v4828 = vand.u32 %v4792, 4294901760
    %4829 = vmatpush1.msra.mxu0 %v4828
    %4830 = vmatprep.subr.mxu0 0.0
    %4831 = vmatpush2.msra.mxu0 0.0
    %4832 = vmatprep.subr.mxu0 0.0
    %4833 = vmatpush2.msra.mxu0 0.0
    %4834 = vmatprep.subr.mxu0 0.0
    %4835 = vmatpush2.msra.mxu0 0.0
    %4836 = vmatprep.subr.mxu0 0.0
    %4837 = vmatpush2.msra.mxu0 0.0
    %4838 = vmatprep.subr.mxu0 0.0
    %4839 = vmatpush2.msra.mxu0 0.0
    %4840 = vmatprep.subr.mxu0 0.0
    %4841 = vmatpush2.msra.mxu0 0.0
    %4842 = vmatprep.subr.mxu0 0.0
    %4843 = vmatpush2.msra.mxu0 0.0
    %4844 = vmatprep.subr.mxu0 0.0
    %4845 = vmatpush2.msra.mxu0 0.0
    %4846 = vmatprep.subr.mxu0 0.0
    %4847 = vmatpush2.msra.mxu0 0.0
    %4848 = vmatprep.subr.mxu0 0.0
    %4849 = vmatpush2.msra.mxu0 0.0
    %4850 = vmatprep.subr.mxu0 0.0
    %4851 = vmatpush2.msra.mxu0 0.0
    %4852 = vmatprep.subr.mxu0 0.0
    %4853 = vmatpush2.msra.mxu0 0.0
    %4854 = vmatprep.subr.mxu0 0.0
    %4855 = vmatpush2.msra.mxu0 0.0
    %4856 = vmatprep.subr.mxu0 0.0
    %4857 = vmatpush2.msra.mxu0 0.0
    %4858 = vmatprep.subr.mxu0 0.0
    %4859 = vmatpush2.msra.mxu0 0.0
    %4860 = vmatprep.subr.mxu0 0.0
    %4861 = vmatpush2.msra.mxu0 0.0
    %4862 = vmatprep.mubr.f32.mxu0 0.0
    %v4863 = vand.u32 %v4795, 4294901760
    %v4864 = vsub.f32 %v4795, %v4863
    %v4865 = vand.u32 %v4864, 4294901760
    %v4866 = vsub.f32 %v4864, %v4865
    %v4867 = vand.u32 %v4866, 4294901760
    %4868 = vmatmul.mubr.f32.gmra.mxu0 %v4867
    %v4869 = vpop.f32.mrf.mxu0
    %v4870 = vadd.f32 0.0, %v4869
    %v4871 = vpop.f32.mrf.mxu0
    %4872 = vdwg.mxu0
    %4873 = vmatprep.subr.mxu0 0.0
    %4874 = vmatpush1.msra.mxu0 0.0
    %4875 = vmatprep.subr.mxu0 0.0
    %4876 = vmatpush1.msra.mxu0 0.0
    %4877 = vmatprep.subr.mxu0 0.0
    %4878 = vmatpush1.msra.mxu0 0.0
    %4879 = vmatprep.subr.mxu0 0.0
    %4880 = vmatpush1.msra.mxu0 0.0
    %4881 = vmatprep.subr.mxu0 0.0
    %4882 = vmatpush1.msra.mxu0 0.0
    %4883 = vmatprep.subr.mxu0 0.0
    %4884 = vmatpush1.msra.mxu0 0.0
    %4885 = vmatprep.subr.mxu0 0.0
    %4886 = vmatpush1.msra.mxu0 0.0
    %4887 = vmatprep.subr.mxu0 0.0
    %4888 = vmatpush1.msra.mxu0 0.0
    %4889 = vmatprep.subr.mxu0 0.0
    %4890 = vmatpush1.msra.mxu0 0.0
    %4891 = vmatprep.subr.mxu0 0.0
    %4892 = vmatpush1.msra.mxu0 0.0
    %4893 = vmatprep.subr.mxu0 0.0
    %4894 = vmatpush1.msra.mxu0 0.0
    %4895 = vmatprep.subr.mxu0 0.0
    %4896 = vmatpush1.msra.mxu0 0.0
    %4897 = vmatprep.subr.mxu0 0.0
    %4898 = vmatpush1.msra.mxu0 0.0
    %4899 = vmatprep.subr.mxu0 0.0
    %4900 = vmatpush1.msra.mxu0 0.0
    %4901 = vmatprep.subr.mxu0 0.0
    %4902 = vmatpush1.msra.mxu0 0.0
    %4903 = vmatprep.subr.mxu0 0.0
    %v4904 = vand.u32 %v4792, 4294901760
    %v4905 = vsub.f32 %v4792, %v4904
    %v4906 = vand.u32 %v4905, 4294901760
    %v4907 = vsub.f32 %v4905, %v4906
    %v4908 = vand.u32 %v4907, 4294901760
    %4909 = vmatpush1.msra.mxu0 %v4908
    %4910 = vmatprep.subr.mxu0 0.0
    %4911 = vmatpush2.msra.mxu0 0.0
    %4912 = vmatprep.subr.mxu0 0.0
    %4913 = vmatpush2.msra.mxu0 0.0
    %4914 = vmatprep.subr.mxu0 0.0
    %4915 = vmatpush2.msra.mxu0 0.0
    %4916 = vmatprep.subr.mxu0 0.0
    %4917 = vmatpush2.msra.mxu0 0.0
    %4918 = vmatprep.subr.mxu0 0.0
    %4919 = vmatpush2.msra.mxu0 0.0
    %4920 = vmatprep.subr.mxu0 0.0
    %4921 = vmatpush2.msra.mxu0 0.0
    %4922 = vmatprep.subr.mxu0 0.0
    %4923 = vmatpush2.msra.mxu0 0.0
    %4924 = vmatprep.subr.mxu0 0.0
    %4925 = vmatpush2.msra.mxu0 0.0
    %4926 = vmatprep.subr.mxu0 0.0
    %4927 = vmatpush2.msra.mxu0 0.0
    %4928 = vmatprep.subr.mxu0 0.0
    %4929 = vmatpush2.msra.mxu0 0.0
    %4930 = vmatprep.subr.mxu0 0.0
    %4931 = vmatpush2.msra.mxu0 0.0
    %4932 = vmatprep.subr.mxu0 0.0
    %4933 = vmatpush2.msra.mxu0 0.0
    %4934 = vmatprep.subr.mxu0 0.0
    %4935 = vmatpush2.msra.mxu0 0.0
    %4936 = vmatprep.subr.mxu0 0.0
    %4937 = vmatpush2.msra.mxu0 0.0
    %4938 = vmatprep.subr.mxu0 0.0
    %4939 = vmatpush2.msra.mxu0 0.0
    %4940 = vmatprep.subr.mxu0 0.0
    %4941 = vmatpush2.msra.mxu0 0.0
    %4942 = vmatprep.mubr.f32.mxu0 0.0
    %v4943 = vand.u32 %v4795, 4294901760
    %4944 = vmatmul.mubr.f32.gmra.mxu0 %v4943
    %v4945 = vpop.f32.mrf.mxu0
    %v4946 = vadd.f32 %v4870, %v4945
    %v4947 = vpop.f32.mrf.mxu0
    %4948 = vdwg.mxu0
    %4949 = vmatprep.subr.mxu0 0.0
    %4950 = vmatpush1.msra.mxu0 0.0
    %4951 = vmatprep.subr.mxu0 0.0
    %4952 = vmatpush1.msra.mxu0 0.0
    %4953 = vmatprep.subr.mxu0 0.0
    %4954 = vmatpush1.msra.mxu0 0.0
    %4955 = vmatprep.subr.mxu0 0.0
    %4956 = vmatpush1.msra.mxu0 0.0
    %4957 = vmatprep.subr.mxu0 0.0
    %4958 = vmatpush1.msra.mxu0 0.0
    %4959 = vmatprep.subr.mxu0 0.0
    %4960 = vmatpush1.msra.mxu0 0.0
    %4961 = vmatprep.subr.mxu0 0.0
    %4962 = vmatpush1.msra.mxu0 0.0
    %4963 = vmatprep.subr.mxu0 0.0
    %4964 = vmatpush1.msra.mxu0 0.0
    %4965 = vmatprep.subr.mxu0 0.0
    %4966 = vmatpush1.msra.mxu0 0.0
    %4967 = vmatprep.subr.mxu0 0.0
    %4968 = vmatpush1.msra.mxu0 0.0
    %4969 = vmatprep.subr.mxu0 0.0
    %4970 = vmatpush1.msra.mxu0 0.0
    %4971 = vmatprep.subr.mxu0 0.0
    %4972 = vmatpush1.msra.mxu0 0.0
    %4973 = vmatprep.subr.mxu0 0.0
    %4974 = vmatpush1.msra.mxu0 0.0
    %4975 = vmatprep.subr.mxu0 0.0
    %4976 = vmatpush1.msra.mxu0 0.0
    %4977 = vmatprep.subr.mxu0 0.0
    %4978 = vmatpush1.msra.mxu0 0.0
    %4979 = vmatprep.subr.mxu0 0.0
    %v4980 = vand.u32 %v4792, 4294901760
    %v4981 = vsub.f32 %v4792, %v4980
    %4982 = vmatpush1.msra.mxu0 %v4981
    %4983 = vmatprep.subr.mxu0 0.0
    %4984 = vmatpush2.msra.mxu0 0.0
    %4985 = vmatprep.subr.mxu0 0.0
    %4986 = vmatpush2.msra.mxu0 0.0
    %4987 = vmatprep.subr.mxu0 0.0
    %4988 = vmatpush2.msra.mxu0 0.0
    %4989 = vmatprep.subr.mxu0 0.0
    %4990 = vmatpush2.msra.mxu0 0.0
    %4991 = vmatprep.subr.mxu0 0.0
    %4992 = vmatpush2.msra.mxu0 0.0
    %4993 = vmatprep.subr.mxu0 0.0
    %4994 = vmatpush2.msra.mxu0 0.0
    %4995 = vmatprep.subr.mxu0 0.0
    %4996 = vmatpush2.msra.mxu0 0.0
    %4997 = vmatprep.subr.mxu0 0.0
    %4998 = vmatpush2.msra.mxu0 0.0
    %4999 = vmatprep.subr.mxu0 0.0
    %5000 = vmatpush2.msra.mxu0 0.0
    %5001 = vmatprep.subr.mxu0 0.0
    %5002 = vmatpush2.msra.mxu0 0.0
    %5003 = vmatprep.subr.mxu0 0.0
    %5004 = vmatpush2.msra.mxu0 0.0
    %5005 = vmatprep.subr.mxu0 0.0
    %5006 = vmatpush2.msra.mxu0 0.0
    %5007 = vmatprep.subr.mxu0 0.0
    %5008 = vmatpush2.msra.mxu0 0.0
    %5009 = vmatprep.subr.mxu0 0.0
    %5010 = vmatpush2.msra.mxu0 0.0
    %5011 = vmatprep.subr.mxu0 0.0
    %5012 = vmatpush2.msra.mxu0 0.0
    %5013 = vmatprep.subr.mxu0 0.0
    %5014 = vmatpush2.msra.mxu0 0.0
    %5015 = vmatprep.mubr.f32.mxu0 0.0
    %v5016 = vand.u32 %v4795, 4294901760
    %v5017 = vsub.f32 %v4795, %v5016
    %5018 = vmatmul.mubr.f32.gmra.mxu0 %v5017
    %v5019 = vpop.f32.mrf.mxu0
    %v5020 = vadd.f32 %v4946, %v5019
    %v5021 = vpop.f32.mrf.mxu0
    %5022 = vdwg.mxu0
    %5023 = vmatprep.subr.mxu0 0.0
    %5024 = vmatpush1.msra.mxu0 0.0
    %5025 = vmatprep.subr.mxu0 0.0
    %5026 = vmatpush1.msra.mxu0 0.0
    %5027 = vmatprep.subr.mxu0 0.0
    %5028 = vmatpush1.msra.mxu0 0.0
    %5029 = vmatprep.subr.mxu0 0.0
    %5030 = vmatpush1.msra.mxu0 0.0
    %5031 = vmatprep.subr.mxu0 0.0
    %5032 = vmatpush1.msra.mxu0 0.0
    %5033 = vmatprep.subr.mxu0 0.0
    %5034 = vmatpush1.msra.mxu0 0.0
    %5035 = vmatprep.subr.mxu0 0.0
    %5036 = vmatpush1.msra.mxu0 0.0
    %5037 = vmatprep.subr.mxu0 0.0
    %5038 = vmatpush1.msra.mxu0 0.0
    %5039 = vmatprep.subr.mxu0 0.0
    %5040 = vmatpush1.msra.mxu0 0.0
    %5041 = vmatprep.subr.mxu0 0.0
    %5042 = vmatpush1.msra.mxu0 0.0
    %5043 = vmatprep.subr.mxu0 0.0
    %5044 = vmatpush1.msra.mxu0 0.0
    %5045 = vmatprep.subr.mxu0 0.0
    %5046 = vmatpush1.msra.mxu0 0.0
    %5047 = vmatprep.subr.mxu0 0.0
    %5048 = vmatpush1.msra.mxu0 0.0
    %5049 = vmatprep.subr.mxu0 0.0
    %5050 = vmatpush1.msra.mxu0 0.0
    %5051 = vmatprep.subr.mxu0 0.0
    %5052 = vmatpush1.msra.mxu0 0.0
    %5053 = vmatprep.subr.mxu0 0.0
    %v5054 = vand.u32 %v4792, 4294901760
    %5055 = vmatpush1.msra.mxu0 %v5054
    %5056 = vmatprep.subr.mxu0 0.0
    %5057 = vmatpush2.msra.mxu0 0.0
    %5058 = vmatprep.subr.mxu0 0.0
    %5059 = vmatpush2.msra.mxu0 0.0
    %5060 = vmatprep.subr.mxu0 0.0
    %5061 = vmatpush2.msra.mxu0 0.0
    %5062 = vmatprep.subr.mxu0 0.0
    %5063 = vmatpush2.msra.mxu0 0.0
    %5064 = vmatprep.subr.mxu0 0.0
    %5065 = vmatpush2.msra.mxu0 0.0
    %5066 = vmatprep.subr.mxu0 0.0
    %5067 = vmatpush2.msra.mxu0 0.0
    %5068 = vmatprep.subr.mxu0 0.0
    %5069 = vmatpush2.msra.mxu0 0.0
    %5070 = vmatprep.subr.mxu0 0.0
    %5071 = vmatpush2.msra.mxu0 0.0
    %5072 = vmatprep.subr.mxu0 0.0
    %5073 = vmatpush2.msra.mxu0 0.0
    %5074 = vmatprep.subr.mxu0 0.0
    %5075 = vmatpush2.msra.mxu0 0.0
    %5076 = vmatprep.subr.mxu0 0.0
    %5077 = vmatpush2.msra.mxu0 0.0
    %5078 = vmatprep.subr.mxu0 0.0
    %5079 = vmatpush2.msra.mxu0 0.0
    %5080 = vmatprep.subr.mxu0 0.0
    %5081 = vmatpush2.msra.mxu0 0.0
    %5082 = vmatprep.subr.mxu0 0.0
    %5083 = vmatpush2.msra.mxu0 0.0
    %5084 = vmatprep.subr.mxu0 0.0
    %5085 = vmatpush2.msra.mxu0 0.0
    %5086 = vmatprep.subr.mxu0 0.0
    %5087 = vmatpush2.msra.mxu0 0.0
    %5088 = vmatprep.mubr.f32.mxu0 0.0
    %v5089 = vand.u32 %v4795, 4294901760
    %v5090 = vsub.f32 %v4795, %v5089
    %v5091 = vand.u32 %v5090, 4294901760
    %5092 = vmatmul.mubr.f32.gmra.mxu0 %v5091
    %v5093 = vpop.f32.mrf.mxu0
    %v5094 = vadd.f32 %v5020, %v5093
    %v5095 = vpop.f32.mrf.mxu0
    %5096 = vdwg.mxu0
    %5097 = vmatprep.subr.mxu0 0.0
    %5098 = vmatpush1.msra.mxu0 0.0
    %5099 = vmatprep.subr.mxu0 0.0
    %5100 = vmatpush1.msra.mxu0 0.0
    %5101 = vmatprep.subr.mxu0 0.0
    %5102 = vmatpush1.msra.mxu0 0.0
    %5103 = vmatprep.subr.mxu0 0.0
    %5104 = vmatpush1.msra.mxu0 0.0
    %5105 = vmatprep.subr.mxu0 0.0
    %5106 = vmatpush1.msra.mxu0 0.0
    %5107 = vmatprep.subr.mxu0 0.0
    %5108 = vmatpush1.msra.mxu0 0.0
    %5109 = vmatprep.subr.mxu0 0.0
    %5110 = vmatpush1.msra.mxu0 0.0
    %5111 = vmatprep.subr.mxu0 0.0
    %5112 = vmatpush1.msra.mxu0 0.0
    %5113 = vmatprep.subr.mxu0 0.0
    %5114 = vmatpush1.msra.mxu0 0.0
    %5115 = vmatprep.subr.mxu0 0.0
    %5116 = vmatpush1.msra.mxu0 0.0
    %5117 = vmatprep.subr.mxu0 0.0
    %5118 = vmatpush1.msra.mxu0 0.0
    %5119 = vmatprep.subr.mxu0 0.0
    %5120 = vmatpush1.msra.mxu0 0.0
    %5121 = vmatprep.subr.mxu0 0.0
    %5122 = vmatpush1.msra.mxu0 0.0
    %5123 = vmatprep.subr.mxu0 0.0
    %5124 = vmatpush1.msra.mxu0 0.0
    %5125 = vmatprep.subr.mxu0 0.0
    %5126 = vmatpush1.msra.mxu0 0.0
    %5127 = vmatprep.subr.mxu0 0.0
    %v5128 = vand.u32 %v4792, 4294901760
    %v5129 = vsub.f32 %v4792, %v5128
    %v5130 = vand.u32 %v5129, 4294901760
    %5131 = vmatpush1.msra.mxu0 %v5130
    %5132 = vmatprep.subr.mxu0 0.0
    %5133 = vmatpush2.msra.mxu0 0.0
    %5134 = vmatprep.subr.mxu0 0.0
    %5135 = vmatpush2.msra.mxu0 0.0
    %5136 = vmatprep.subr.mxu0 0.0
    %5137 = vmatpush2.msra.mxu0 0.0
    %5138 = vmatprep.subr.mxu0 0.0
    %5139 = vmatpush2.msra.mxu0 0.0
    %5140 = vmatprep.subr.mxu0 0.0
    %5141 = vmatpush2.msra.mxu0 0.0
    %5142 = vmatprep.subr.mxu0 0.0
    %5143 = vmatpush2.msra.mxu0 0.0
    %5144 = vmatprep.subr.mxu0 0.0
    %5145 = vmatpush2.msra.mxu0 0.0
    %5146 = vmatprep.subr.mxu0 0.0
    %5147 = vmatpush2.msra.mxu0 0.0
    %5148 = vmatprep.subr.mxu0 0.0
    %5149 = vmatpush2.msra.mxu0 0.0
    %5150 = vmatprep.subr.mxu0 0.0
    %5151 = vmatpush2.msra.mxu0 0.0
    %5152 = vmatprep.subr.mxu0 0.0
    %5153 = vmatpush2.msra.mxu0 0.0
    %5154 = vmatprep.subr.mxu0 0.0
    %5155 = vmatpush2.msra.mxu0 0.0
    %5156 = vmatprep.subr.mxu0 0.0
    %5157 = vmatpush2.msra.mxu0 0.0
    %5158 = vmatprep.subr.mxu0 0.0
    %5159 = vmatpush2.msra.mxu0 0.0
    %5160 = vmatprep.subr.mxu0 0.0
    %5161 = vmatpush2.msra.mxu0 0.0
    %5162 = vmatprep.subr.mxu0 0.0
    %5163 = vmatpush2.msra.mxu0 0.0
    %5164 = vmatprep.mubr.f32.mxu0 0.0
    %v5165 = vand.u32 %v4795, 4294901760
    %5166 = vmatmul.mubr.f32.gmra.mxu0 %v5165
    %v5167 = vpop.f32.mrf.mxu0
    %v5168 = vadd.f32 %v5094, %v5167
    %v5169 = vpop.f32.mrf.mxu0
    %5170 = vdwg.mxu0
    %5171 = vmatprep.subr.mxu0 0.0
    %5172 = vmatpush1.msra.mxu0 0.0
    %5173 = vmatprep.subr.mxu0 0.0
    %5174 = vmatpush1.msra.mxu0 0.0
    %5175 = vmatprep.subr.mxu0 0.0
    %5176 = vmatpush1.msra.mxu0 0.0
    %5177 = vmatprep.subr.mxu0 0.0
    %5178 = vmatpush1.msra.mxu0 0.0
    %5179 = vmatprep.subr.mxu0 0.0
    %5180 = vmatpush1.msra.mxu0 0.0
    %5181 = vmatprep.subr.mxu0 0.0
    %5182 = vmatpush1.msra.mxu0 0.0
    %5183 = vmatprep.subr.mxu0 0.0
    %5184 = vmatpush1.msra.mxu0 0.0
    %5185 = vmatprep.subr.mxu0 0.0
    %5186 = vmatpush1.msra.mxu0 0.0
    %5187 = vmatprep.subr.mxu0 0.0
    %5188 = vmatpush1.msra.mxu0 0.0
    %5189 = vmatprep.subr.mxu0 0.0
    %5190 = vmatpush1.msra.mxu0 0.0
    %5191 = vmatprep.subr.mxu0 0.0
    %5192 = vmatpush1.msra.mxu0 0.0
    %5193 = vmatprep.subr.mxu0 0.0
    %5194 = vmatpush1.msra.mxu0 0.0
    %5195 = vmatprep.subr.mxu0 0.0
    %5196 = vmatpush1.msra.mxu0 0.0
    %5197 = vmatprep.subr.mxu0 0.0
    %5198 = vmatpush1.msra.mxu0 0.0
    %5199 = vmatprep.subr.mxu0 0.0
    %5200 = vmatpush1.msra.mxu0 0.0
    %5201 = vmatprep.subr.mxu0 0.0
    %v5202 = vand.u32 %v4792, 4294901760
    %5203 = vmatpush1.msra.mxu0 %v5202
    %5204 = vmatprep.subr.mxu0 0.0
    %5205 = vmatpush2.msra.mxu0 0.0
    %5206 = vmatprep.subr.mxu0 0.0
    %5207 = vmatpush2.msra.mxu0 0.0
    %5208 = vmatprep.subr.mxu0 0.0
    %5209 = vmatpush2.msra.mxu0 0.0
    %5210 = vmatprep.subr.mxu0 0.0
    %5211 = vmatpush2.msra.mxu0 0.0
    %5212 = vmatprep.subr.mxu0 0.0
    %5213 = vmatpush2.msra.mxu0 0.0
    %5214 = vmatprep.subr.mxu0 0.0
    %5215 = vmatpush2.msra.mxu0 0.0
    %5216 = vmatprep.subr.mxu0 0.0
    %5217 = vmatpush2.msra.mxu0 0.0
    %5218 = vmatprep.subr.mxu0 0.0
    %5219 = vmatpush2.msra.mxu0 0.0
    %5220 = vmatprep.subr.mxu0 0.0
    %5221 = vmatpush2.msra.mxu0 0.0
    %5222 = vmatprep.subr.mxu0 0.0
    %5223 = vmatpush2.msra.mxu0 0.0
    %5224 = vmatprep.subr.mxu0 0.0
    %5225 = vmatpush2.msra.mxu0 0.0
    %5226 = vmatprep.subr.mxu0 0.0
    %5227 = vmatpush2.msra.mxu0 0.0
    %5228 = vmatprep.subr.mxu0 0.0
    %5229 = vmatpush2.msra.mxu0 0.0
    %5230 = vmatprep.subr.mxu0 0.0
    %5231 = vmatpush2.msra.mxu0 0.0
    %5232 = vmatprep.subr.mxu0 0.0
    %5233 = vmatpush2.msra.mxu0 0.0
    %5234 = vmatprep.subr.mxu0 0.0
    %5235 = vmatpush2.msra.mxu0 0.0
    %5236 = vmatprep.mubr.f32.mxu0 0.0
    %v5237 = vand.u32 %v4795, 4294901760
    %5238 = vmatmul.mubr.f32.gmra.mxu0 %v5237
    %v5239 = vpop.f32.mrf.mxu0
    %v5240 = vadd.f32 %v5168, %v5239
    %v5241 = vpop.f32.mrf.mxu0
    %5242 = vdwg.mxu0
    %5243 = vrot.lane.b32.xlu0 %v608, 64
    %v5244 = vpop.permute.xlu0 %5243
    %v5247 = vsel %vm621, %v4328, 0
    %5249 = vmatprep.subr.mxu0 0.0
    %5250 = vmatpush1.msra.mxu0 0.0
    %5251 = vmatprep.subr.mxu0 0.0
    %5252 = vmatpush1.msra.mxu0 0.0
    %5253 = vmatprep.subr.mxu0 0.0
    %5254 = vmatpush1.msra.mxu0 0.0
    %5255 = vmatprep.subr.mxu0 0.0
    %5256 = vmatpush1.msra.mxu0 0.0
    %5257 = vmatprep.subr.mxu0 0.0
    %5258 = vmatpush1.msra.mxu0 0.0
    %5259 = vmatprep.subr.mxu0 0.0
    %5260 = vmatpush1.msra.mxu0 0.0
    %5261 = vmatprep.subr.mxu0 0.0
    %5262 = vmatpush1.msra.mxu0 0.0
    %5263 = vmatprep.subr.mxu0 0.0
    %5264 = vmatpush1.msra.mxu0 0.0
    %5265 = vmatprep.subr.mxu0 0.0
    %5266 = vmatpush1.msra.mxu0 0.0
    %5267 = vmatprep.subr.mxu0 0.0
    %5268 = vmatpush1.msra.mxu0 0.0
    %5269 = vmatprep.subr.mxu0 0.0
    %5270 = vmatpush1.msra.mxu0 0.0
    %5271 = vmatprep.subr.mxu0 0.0
    %5272 = vmatpush1.msra.mxu0 0.0
    %5273 = vmatprep.subr.mxu0 0.0
    %5274 = vmatpush1.msra.mxu0 0.0
    %5275 = vmatprep.subr.mxu0 0.0
    %5276 = vmatpush1.msra.mxu0 0.0
    %5277 = vmatprep.subr.mxu0 0.0
    %5278 = vmatpush1.msra.mxu0 0.0
    %5279 = vmatprep.subr.mxu0 0.0
    %v5280 = vand.u32 %v5244, 4294901760
    %5281 = vmatpush1.msra.mxu0 %v5280
    %5282 = vmatprep.subr.mxu0 0.0
    %5283 = vmatpush2.msra.mxu0 0.0
    %5284 = vmatprep.subr.mxu0 0.0
    %5285 = vmatpush2.msra.mxu0 0.0
    %5286 = vmatprep.subr.mxu0 0.0
    %5287 = vmatpush2.msra.mxu0 0.0
    %5288 = vmatprep.subr.mxu0 0.0
    %5289 = vmatpush2.msra.mxu0 0.0
    %5290 = vmatprep.subr.mxu0 0.0
    %5291 = vmatpush2.msra.mxu0 0.0
    %5292 = vmatprep.subr.mxu0 0.0
    %5293 = vmatpush2.msra.mxu0 0.0
    %5294 = vmatprep.subr.mxu0 0.0
    %5295 = vmatpush2.msra.mxu0 0.0
    %5296 = vmatprep.subr.mxu0 0.0
    %5297 = vmatpush2.msra.mxu0 0.0
    %5298 = vmatprep.subr.mxu0 0.0
    %5299 = vmatpush2.msra.mxu0 0.0
    %5300 = vmatprep.subr.mxu0 0.0
    %5301 = vmatpush2.msra.mxu0 0.0
    %5302 = vmatprep.subr.mxu0 0.0
    %5303 = vmatpush2.msra.mxu0 0.0
    %5304 = vmatprep.subr.mxu0 0.0
    %5305 = vmatpush2.msra.mxu0 0.0
    %5306 = vmatprep.subr.mxu0 0.0
    %5307 = vmatpush2.msra.mxu0 0.0
    %5308 = vmatprep.subr.mxu0 0.0
    %5309 = vmatpush2.msra.mxu0 0.0
    %5310 = vmatprep.subr.mxu0 0.0
    %5311 = vmatpush2.msra.mxu0 0.0
    %5312 = vmatprep.subr.mxu0 0.0
    %5313 = vmatpush2.msra.mxu0 0.0
    %5314 = vmatprep.mubr.f32.mxu0 0.0
    %v5315 = vand.u32 %v5247, 4294901760
    %v5316 = vsub.f32 %v5247, %v5315
    %v5317 = vand.u32 %v5316, 4294901760
    %v5318 = vsub.f32 %v5316, %v5317
    %v5319 = vand.u32 %v5318, 4294901760
    %5320 = vmatmul.mubr.f32.gmra.mxu0 %v5319
    %v5321 = vpop.f32.mrf.mxu0
    %v5322 = vadd.f32 0.0, %v5321
    %v5323 = vpop.f32.mrf.mxu0
    %5324 = vdwg.mxu0
    %5325 = vmatprep.subr.mxu0 0.0
    %5326 = vmatpush1.msra.mxu0 0.0
    %5327 = vmatprep.subr.mxu0 0.0
    %5328 = vmatpush1.msra.mxu0 0.0
    %5329 = vmatprep.subr.mxu0 0.0
    %5330 = vmatpush1.msra.mxu0 0.0
    %5331 = vmatprep.subr.mxu0 0.0
    %5332 = vmatpush1.msra.mxu0 0.0
    %5333 = vmatprep.subr.mxu0 0.0
    %5334 = vmatpush1.msra.mxu0 0.0
    %5335 = vmatprep.subr.mxu0 0.0
    %5336 = vmatpush1.msra.mxu0 0.0
    %5337 = vmatprep.subr.mxu0 0.0
    %5338 = vmatpush1.msra.mxu0 0.0
    %5339 = vmatprep.subr.mxu0 0.0
    %5340 = vmatpush1.msra.mxu0 0.0
    %5341 = vmatprep.subr.mxu0 0.0
    %5342 = vmatpush1.msra.mxu0 0.0
    %5343 = vmatprep.subr.mxu0 0.0
    %5344 = vmatpush1.msra.mxu0 0.0
    %5345 = vmatprep.subr.mxu0 0.0
    %5346 = vmatpush1.msra.mxu0 0.0
    %5347 = vmatprep.subr.mxu0 0.0
    %5348 = vmatpush1.msra.mxu0 0.0
    %5349 = vmatprep.subr.mxu0 0.0
    %5350 = vmatpush1.msra.mxu0 0.0
    %5351 = vmatprep.subr.mxu0 0.0
    %5352 = vmatpush1.msra.mxu0 0.0
    %5353 = vmatprep.subr.mxu0 0.0
    %5354 = vmatpush1.msra.mxu0 0.0
    %5355 = vmatprep.subr.mxu0 0.0
    %v5356 = vand.u32 %v5244, 4294901760
    %v5357 = vsub.f32 %v5244, %v5356
    %v5358 = vand.u32 %v5357, 4294901760
    %v5359 = vsub.f32 %v5357, %v5358
    %v5360 = vand.u32 %v5359, 4294901760
    %5361 = vmatpush1.msra.mxu0 %v5360
    %5362 = vmatprep.subr.mxu0 0.0
    %5363 = vmatpush2.msra.mxu0 0.0
    %5364 = vmatprep.subr.mxu0 0.0
    %5365 = vmatpush2.msra.mxu0 0.0
    %5366 = vmatprep.subr.mxu0 0.0
    %5367 = vmatpush2.msra.mxu0 0.0
    %5368 = vmatprep.subr.mxu0 0.0
    %5369 = vmatpush2.msra.mxu0 0.0
    %5370 = vmatprep.subr.mxu0 0.0
    %5371 = vmatpush2.msra.mxu0 0.0
    %5372 = vmatprep.subr.mxu0 0.0
    %5373 = vmatpush2.msra.mxu0 0.0
    %5374 = vmatprep.subr.mxu0 0.0
    %5375 = vmatpush2.msra.mxu0 0.0
    %5376 = vmatprep.subr.mxu0 0.0
    %5377 = vmatpush2.msra.mxu0 0.0
    %5378 = vmatprep.subr.mxu0 0.0
    %5379 = vmatpush2.msra.mxu0 0.0
    %5380 = vmatprep.subr.mxu0 0.0
    %5381 = vmatpush2.msra.mxu0 0.0
    %5382 = vmatprep.subr.mxu0 0.0
    %5383 = vmatpush2.msra.mxu0 0.0
    %5384 = vmatprep.subr.mxu0 0.0
    %5385 = vmatpush2.msra.mxu0 0.0
    %5386 = vmatprep.subr.mxu0 0.0
    %5387 = vmatpush2.msra.mxu0 0.0
    %5388 = vmatprep.subr.mxu0 0.0
    %5389 = vmatpush2.msra.mxu0 0.0
    %5390 = vmatprep.subr.mxu0 0.0
    %5391 = vmatpush2.msra.mxu0 0.0
    %5392 = vmatprep.subr.mxu0 0.0
    %5393 = vmatpush2.msra.mxu0 0.0
    %5394 = vmatprep.mubr.f32.mxu0 0.0
    %v5395 = vand.u32 %v5247, 4294901760
    %5396 = vmatmul.mubr.f32.gmra.mxu0 %v5395
    %v5397 = vpop.f32.mrf.mxu0
    %v5398 = vadd.f32 %v5322, %v5397
    %v5399 = vpop.f32.mrf.mxu0
    %5400 = vdwg.mxu0
    %5401 = vmatprep.subr.mxu0 0.0
    %5402 = vmatpush1.msra.mxu0 0.0
    %5403 = vmatprep.subr.mxu0 0.0
    %5404 = vmatpush1.msra.mxu0 0.0
    %5405 = vmatprep.subr.mxu0 0.0
    %5406 = vmatpush1.msra.mxu0 0.0
    %5407 = vmatprep.subr.mxu0 0.0
    %5408 = vmatpush1.msra.mxu0 0.0
    %5409 = vmatprep.subr.mxu0 0.0
    %5410 = vmatpush1.msra.mxu0 0.0
    %5411 = vmatprep.subr.mxu0 0.0
    %5412 = vmatpush1.msra.mxu0 0.0
    %5413 = vmatprep.subr.mxu0 0.0
    %5414 = vmatpush1.msra.mxu0 0.0
    %5415 = vmatprep.subr.mxu0 0.0
    %5416 = vmatpush1.msra.mxu0 0.0
    %5417 = vmatprep.subr.mxu0 0.0
    %5418 = vmatpush1.msra.mxu0 0.0
    %5419 = vmatprep.subr.mxu0 0.0
    %5420 = vmatpush1.msra.mxu0 0.0
    %5421 = vmatprep.subr.mxu0 0.0
    %5422 = vmatpush1.msra.mxu0 0.0
    %5423 = vmatprep.subr.mxu0 0.0
    %5424 = vmatpush1.msra.mxu0 0.0
    %5425 = vmatprep.subr.mxu0 0.0
    %5426 = vmatpush1.msra.mxu0 0.0
    %5427 = vmatprep.subr.mxu0 0.0
    %5428 = vmatpush1.msra.mxu0 0.0
    %5429 = vmatprep.subr.mxu0 0.0
    %5430 = vmatpush1.msra.mxu0 0.0
    %5431 = vmatprep.subr.mxu0 0.0
    %v5432 = vand.u32 %v5244, 4294901760
    %v5433 = vsub.f32 %v5244, %v5432
    %5434 = vmatpush1.msra.mxu0 %v5433
    %5435 = vmatprep.subr.mxu0 0.0
    %5436 = vmatpush2.msra.mxu0 0.0
    %5437 = vmatprep.subr.mxu0 0.0
    %5438 = vmatpush2.msra.mxu0 0.0
    %5439 = vmatprep.subr.mxu0 0.0
    %5440 = vmatpush2.msra.mxu0 0.0
    %5441 = vmatprep.subr.mxu0 0.0
    %5442 = vmatpush2.msra.mxu0 0.0
    %5443 = vmatprep.subr.mxu0 0.0
    %5444 = vmatpush2.msra.mxu0 0.0
    %5445 = vmatprep.subr.mxu0 0.0
    %5446 = vmatpush2.msra.mxu0 0.0
    %5447 = vmatprep.subr.mxu0 0.0
    %5448 = vmatpush2.msra.mxu0 0.0
    %5449 = vmatprep.subr.mxu0 0.0
    %5450 = vmatpush2.msra.mxu0 0.0
    %5451 = vmatprep.subr.mxu0 0.0
    %5452 = vmatpush2.msra.mxu0 0.0
    %5453 = vmatprep.subr.mxu0 0.0
    %5454 = vmatpush2.msra.mxu0 0.0
    %5455 = vmatprep.subr.mxu0 0.0
    %5456 = vmatpush2.msra.mxu0 0.0
    %5457 = vmatprep.subr.mxu0 0.0
    %5458 = vmatpush2.msra.mxu0 0.0
    %5459 = vmatprep.subr.mxu0 0.0
    %5460 = vmatpush2.msra.mxu0 0.0
    %5461 = vmatprep.subr.mxu0 0.0
    %5462 = vmatpush2.msra.mxu0 0.0
    %5463 = vmatprep.subr.mxu0 0.0
    %5464 = vmatpush2.msra.mxu0 0.0
    %5465 = vmatprep.subr.mxu0 0.0
    %5466 = vmatpush2.msra.mxu0 0.0
    %5467 = vmatprep.mubr.f32.mxu0 0.0
    %v5468 = vand.u32 %v5247, 4294901760
    %v5469 = vsub.f32 %v5247, %v5468
    %5470 = vmatmul.mubr.f32.gmra.mxu0 %v5469
    %v5471 = vpop.f32.mrf.mxu0
    %v5472 = vadd.f32 %v5398, %v5471
    %v5473 = vpop.f32.mrf.mxu0
    %5474 = vdwg.mxu0
    %5475 = vmatprep.subr.mxu0 0.0
    %5476 = vmatpush1.msra.mxu0 0.0
    %5477 = vmatprep.subr.mxu0 0.0
    %5478 = vmatpush1.msra.mxu0 0.0
    %5479 = vmatprep.subr.mxu0 0.0
    %5480 = vmatpush1.msra.mxu0 0.0
    %5481 = vmatprep.subr.mxu0 0.0
    %5482 = vmatpush1.msra.mxu0 0.0
    %5483 = vmatprep.subr.mxu0 0.0
    %5484 = vmatpush1.msra.mxu0 0.0
    %5485 = vmatprep.subr.mxu0 0.0
    %5486 = vmatpush1.msra.mxu0 0.0
    %5487 = vmatprep.subr.mxu0 0.0
    %5488 = vmatpush1.msra.mxu0 0.0
    %5489 = vmatprep.subr.mxu0 0.0
    %5490 = vmatpush1.msra.mxu0 0.0
    %5491 = vmatprep.subr.mxu0 0.0
    %5492 = vmatpush1.msra.mxu0 0.0
    %5493 = vmatprep.subr.mxu0 0.0
    %5494 = vmatpush1.msra.mxu0 0.0
    %5495 = vmatprep.subr.mxu0 0.0
    %5496 = vmatpush1.msra.mxu0 0.0
    %5497 = vmatprep.subr.mxu0 0.0
    %5498 = vmatpush1.msra.mxu0 0.0
    %5499 = vmatprep.subr.mxu0 0.0
    %5500 = vmatpush1.msra.mxu0 0.0
    %5501 = vmatprep.subr.mxu0 0.0
    %5502 = vmatpush1.msra.mxu0 0.0
    %5503 = vmatprep.subr.mxu0 0.0
    %5504 = vmatpush1.msra.mxu0 0.0
    %5505 = vmatprep.subr.mxu0 0.0
    %v5506 = vand.u32 %v5244, 4294901760
    %5507 = vmatpush1.msra.mxu0 %v5506
    %5508 = vmatprep.subr.mxu0 0.0
    %5509 = vmatpush2.msra.mxu0 0.0
    %5510 = vmatprep.subr.mxu0 0.0
    %5511 = vmatpush2.msra.mxu0 0.0
    %5512 = vmatprep.subr.mxu0 0.0
    %5513 = vmatpush2.msra.mxu0 0.0
    %5514 = vmatprep.subr.mxu0 0.0
    %5515 = vmatpush2.msra.mxu0 0.0
    %5516 = vmatprep.subr.mxu0 0.0
    %5517 = vmatpush2.msra.mxu0 0.0
    %5518 = vmatprep.subr.mxu0 0.0
    %5519 = vmatpush2.msra.mxu0 0.0
    %5520 = vmatprep.subr.mxu0 0.0
    %5521 = vmatpush2.msra.mxu0 0.0
    %5522 = vmatprep.subr.mxu0 0.0
    %5523 = vmatpush2.msra.mxu0 0.0
    %5524 = vmatprep.subr.mxu0 0.0
    %5525 = vmatpush2.msra.mxu0 0.0
    %5526 = vmatprep.subr.mxu0 0.0
    %5527 = vmatpush2.msra.mxu0 0.0
    %5528 = vmatprep.subr.mxu0 0.0
    %5529 = vmatpush2.msra.mxu0 0.0
    %5530 = vmatprep.subr.mxu0 0.0
    %5531 = vmatpush2.msra.mxu0 0.0
    %5532 = vmatprep.subr.mxu0 0.0
    %5533 = vmatpush2.msra.mxu0 0.0
    %5534 = vmatprep.subr.mxu0 0.0
    %5535 = vmatpush2.msra.mxu0 0.0
    %5536 = vmatprep.subr.mxu0 0.0
    %5537 = vmatpush2.msra.mxu0 0.0
    %5538 = vmatprep.subr.mxu0 0.0
    %5539 = vmatpush2.msra.mxu0 0.0
    %5540 = vmatprep.mubr.f32.mxu0 0.0
    %v5541 = vand.u32 %v5247, 4294901760
    %v5542 = vsub.f32 %v5247, %v5541
    %v5543 = vand.u32 %v5542, 4294901760
    %5544 = vmatmul.mubr.f32.gmra.mxu0 %v5543
    %v5545 = vpop.f32.mrf.mxu0
    %v5546 = vadd.f32 %v5472, %v5545
    %v5547 = vpop.f32.mrf.mxu0
    %5548 = vdwg.mxu0
    %5549 = vmatprep.subr.mxu0 0.0
    %5550 = vmatpush1.msra.mxu0 0.0
    %5551 = vmatprep.subr.mxu0 0.0
    %5552 = vmatpush1.msra.mxu0 0.0
    %5553 = vmatprep.subr.mxu0 0.0
    %5554 = vmatpush1.msra.mxu0 0.0
    %5555 = vmatprep.subr.mxu0 0.0
    %5556 = vmatpush1.msra.mxu0 0.0
    %5557 = vmatprep.subr.mxu0 0.0
    %5558 = vmatpush1.msra.mxu0 0.0
    %5559 = vmatprep.subr.mxu0 0.0
    %5560 = vmatpush1.msra.mxu0 0.0
    %5561 = vmatprep.subr.mxu0 0.0
    %5562 = vmatpush1.msra.mxu0 0.0
    %5563 = vmatprep.subr.mxu0 0.0
    %5564 = vmatpush1.msra.mxu0 0.0
    %5565 = vmatprep.subr.mxu0 0.0
    %5566 = vmatpush1.msra.mxu0 0.0
    %5567 = vmatprep.subr.mxu0 0.0
    %5568 = vmatpush1.msra.mxu0 0.0
    %5569 = vmatprep.subr.mxu0 0.0
    %5570 = vmatpush1.msra.mxu0 0.0
    %5571 = vmatprep.subr.mxu0 0.0
    %5572 = vmatpush1.msra.mxu0 0.0
    %5573 = vmatprep.subr.mxu0 0.0
    %5574 = vmatpush1.msra.mxu0 0.0
    %5575 = vmatprep.subr.mxu0 0.0
    %5576 = vmatpush1.msra.mxu0 0.0
    %5577 = vmatprep.subr.mxu0 0.0
    %5578 = vmatpush1.msra.mxu0 0.0
    %5579 = vmatprep.subr.mxu0 0.0
    %v5580 = vand.u32 %v5244, 4294901760
    %v5581 = vsub.f32 %v5244, %v5580
    %v5582 = vand.u32 %v5581, 4294901760
    %5583 = vmatpush1.msra.mxu0 %v5582
    %5584 = vmatprep.subr.mxu0 0.0
    %5585 = vmatpush2.msra.mxu0 0.0
    %5586 = vmatprep.subr.mxu0 0.0
    %5587 = vmatpush2.msra.mxu0 0.0
    %5588 = vmatprep.subr.mxu0 0.0
    %5589 = vmatpush2.msra.mxu0 0.0
    %5590 = vmatprep.subr.mxu0 0.0
    %5591 = vmatpush2.msra.mxu0 0.0
    %5592 = vmatprep.subr.mxu0 0.0
    %5593 = vmatpush2.msra.mxu0 0.0
    %5594 = vmatprep.subr.mxu0 0.0
    %5595 = vmatpush2.msra.mxu0 0.0
    %5596 = vmatprep.subr.mxu0 0.0
    %5597 = vmatpush2.msra.mxu0 0.0
    %5598 = vmatprep.subr.mxu0 0.0
    %5599 = vmatpush2.msra.mxu0 0.0
    %5600 = vmatprep.subr.mxu0 0.0
    %5601 = vmatpush2.msra.mxu0 0.0
    %5602 = vmatprep.subr.mxu0 0.0
    %5603 = vmatpush2.msra.mxu0 0.0
    %5604 = vmatprep.subr.mxu0 0.0
    %5605 = vmatpush2.msra.mxu0 0.0
    %5606 = vmatprep.subr.mxu0 0.0
    %5607 = vmatpush2.msra.mxu0 0.0
    %5608 = vmatprep.subr.mxu0 0.0
    %5609 = vmatpush2.msra.mxu0 0.0
    %5610 = vmatprep.subr.mxu0 0.0
    %5611 = vmatpush2.msra.mxu0 0.0
    %5612 = vmatprep.subr.mxu0 0.0
    %5613 = vmatpush2.msra.mxu0 0.0
    %5614 = vmatprep.subr.mxu0 0.0
    %5615 = vmatpush2.msra.mxu0 0.0
    %5616 = vmatprep.mubr.f32.mxu0 0.0
    %v5617 = vand.u32 %v5247, 4294901760
    %5618 = vmatmul.mubr.f32.gmra.mxu0 %v5617
    %v5619 = vpop.f32.mrf.mxu0
    %v5620 = vadd.f32 %v5546, %v5619
    %v5621 = vpop.f32.mrf.mxu0
    %5622 = vdwg.mxu0
    %5623 = vmatprep.subr.mxu0 0.0
    %5624 = vmatpush1.msra.mxu0 0.0
    %5625 = vmatprep.subr.mxu0 0.0
    %5626 = vmatpush1.msra.mxu0 0.0
    %5627 = vmatprep.subr.mxu0 0.0
    %5628 = vmatpush1.msra.mxu0 0.0
    %5629 = vmatprep.subr.mxu0 0.0
    %5630 = vmatpush1.msra.mxu0 0.0
    %5631 = vmatprep.subr.mxu0 0.0
    %5632 = vmatpush1.msra.mxu0 0.0
    %5633 = vmatprep.subr.mxu0 0.0
    %5634 = vmatpush1.msra.mxu0 0.0
    %5635 = vmatprep.subr.mxu0 0.0
    %5636 = vmatpush1.msra.mxu0 0.0
    %5637 = vmatprep.subr.mxu0 0.0
    %5638 = vmatpush1.msra.mxu0 0.0
    %5639 = vmatprep.subr.mxu0 0.0
    %5640 = vmatpush1.msra.mxu0 0.0
    %5641 = vmatprep.subr.mxu0 0.0
    %5642 = vmatpush1.msra.mxu0 0.0
    %5643 = vmatprep.subr.mxu0 0.0
    %5644 = vmatpush1.msra.mxu0 0.0
    %5645 = vmatprep.subr.mxu0 0.0
    %5646 = vmatpush1.msra.mxu0 0.0
    %5647 = vmatprep.subr.mxu0 0.0
    %5648 = vmatpush1.msra.mxu0 0.0
    %5649 = vmatprep.subr.mxu0 0.0
    %5650 = vmatpush1.msra.mxu0 0.0
    %5651 = vmatprep.subr.mxu0 0.0
    %5652 = vmatpush1.msra.mxu0 0.0
    %5653 = vmatprep.subr.mxu0 0.0
    %v5654 = vand.u32 %v5244, 4294901760
    %5655 = vmatpush1.msra.mxu0 %v5654
    %5656 = vmatprep.subr.mxu0 0.0
    %5657 = vmatpush2.msra.mxu0 0.0
    %5658 = vmatprep.subr.mxu0 0.0
    %5659 = vmatpush2.msra.mxu0 0.0
    %5660 = vmatprep.subr.mxu0 0.0
    %5661 = vmatpush2.msra.mxu0 0.0
    %5662 = vmatprep.subr.mxu0 0.0
    %5663 = vmatpush2.msra.mxu0 0.0
    %5664 = vmatprep.subr.mxu0 0.0
    %5665 = vmatpush2.msra.mxu0 0.0
    %5666 = vmatprep.subr.mxu0 0.0
    %5667 = vmatpush2.msra.mxu0 0.0
    %5668 = vmatprep.subr.mxu0 0.0
    %5669 = vmatpush2.msra.mxu0 0.0
    %5670 = vmatprep.subr.mxu0 0.0
    %5671 = vmatpush2.msra.mxu0 0.0
    %5672 = vmatprep.subr.mxu0 0.0
    %5673 = vmatpush2.msra.mxu0 0.0
    %5674 = vmatprep.subr.mxu0 0.0
    %5675 = vmatpush2.msra.mxu0 0.0
    %5676 = vmatprep.subr.mxu0 0.0
    %5677 = vmatpush2.msra.mxu0 0.0
    %5678 = vmatprep.subr.mxu0 0.0
    %5679 = vmatpush2.msra.mxu0 0.0
    %5680 = vmatprep.subr.mxu0 0.0
    %5681 = vmatpush2.msra.mxu0 0.0
    %5682 = vmatprep.subr.mxu0 0.0
    %5683 = vmatpush2.msra.mxu0 0.0
    %5684 = vmatprep.subr.mxu0 0.0
    %5685 = vmatpush2.msra.mxu0 0.0
    %5686 = vmatprep.subr.mxu0 0.0
    %5687 = vmatpush2.msra.mxu0 0.0
    %5688 = vmatprep.mubr.f32.mxu0 0.0
    %v5689 = vand.u32 %v5247, 4294901760
    %5690 = vmatmul.mubr.f32.gmra.mxu0 %v5689
    %v5691 = vpop.f32.mrf.mxu0
    %v5692 = vadd.f32 %v5620, %v5691
    %v5693 = vpop.f32.mrf.mxu0
    %5694 = vdwg.mxu0
    %5695 = vrot.lane.b32.xlu0 %v610, 64
    %v5696 = vpop.permute.xlu0 %5695
    %v5699 = vsel %vm621, %v4330, 0
    %5701 = vmatprep.subr.mxu0 0.0
    %5702 = vmatpush1.msra.mxu0 0.0
    %5703 = vmatprep.subr.mxu0 0.0
    %5704 = vmatpush1.msra.mxu0 0.0
    %5705 = vmatprep.subr.mxu0 0.0
    %5706 = vmatpush1.msra.mxu0 0.0
    %5707 = vmatprep.subr.mxu0 0.0
    %5708 = vmatpush1.msra.mxu0 0.0
    %5709 = vmatprep.subr.mxu0 0.0
    %5710 = vmatpush1.msra.mxu0 0.0
    %5711 = vmatprep.subr.mxu0 0.0
    %5712 = vmatpush1.msra.mxu0 0.0
    %5713 = vmatprep.subr.mxu0 0.0
    %5714 = vmatpush1.msra.mxu0 0.0
    %5715 = vmatprep.subr.mxu0 0.0
    %5716 = vmatpush1.msra.mxu0 0.0
    %5717 = vmatprep.subr.mxu0 0.0
    %5718 = vmatpush1.msra.mxu0 0.0
    %5719 = vmatprep.subr.mxu0 0.0
    %5720 = vmatpush1.msra.mxu0 0.0
    %5721 = vmatprep.subr.mxu0 0.0
    %5722 = vmatpush1.msra.mxu0 0.0
    %5723 = vmatprep.subr.mxu0 0.0
    %5724 = vmatpush1.msra.mxu0 0.0
    %5725 = vmatprep.subr.mxu0 0.0
    %5726 = vmatpush1.msra.mxu0 0.0
    %5727 = vmatprep.subr.mxu0 0.0
    %5728 = vmatpush1.msra.mxu0 0.0
    %5729 = vmatprep.subr.mxu0 0.0
    %5730 = vmatpush1.msra.mxu0 0.0
    %5731 = vmatprep.subr.mxu0 0.0
    %v5732 = vand.u32 %v5696, 4294901760
    %5733 = vmatpush1.msra.mxu0 %v5732
    %5734 = vmatprep.subr.mxu0 0.0
    %5735 = vmatpush2.msra.mxu0 0.0
    %5736 = vmatprep.subr.mxu0 0.0
    %5737 = vmatpush2.msra.mxu0 0.0
    %5738 = vmatprep.subr.mxu0 0.0
    %5739 = vmatpush2.msra.mxu0 0.0
    %5740 = vmatprep.subr.mxu0 0.0
    %5741 = vmatpush2.msra.mxu0 0.0
    %5742 = vmatprep.subr.mxu0 0.0
    %5743 = vmatpush2.msra.mxu0 0.0
    %5744 = vmatprep.subr.mxu0 0.0
    %5745 = vmatpush2.msra.mxu0 0.0
    %5746 = vmatprep.subr.mxu0 0.0
    %5747 = vmatpush2.msra.mxu0 0.0
    %5748 = vmatprep.subr.mxu0 0.0
    %5749 = vmatpush2.msra.mxu0 0.0
    %5750 = vmatprep.subr.mxu0 0.0
    %5751 = vmatpush2.msra.mxu0 0.0
    %5752 = vmatprep.subr.mxu0 0.0
    %5753 = vmatpush2.msra.mxu0 0.0
    %5754 = vmatprep.subr.mxu0 0.0
    %5755 = vmatpush2.msra.mxu0 0.0
    %5756 = vmatprep.subr.mxu0 0.0
    %5757 = vmatpush2.msra.mxu0 0.0
    %5758 = vmatprep.subr.mxu0 0.0
    %5759 = vmatpush2.msra.mxu0 0.0
    %5760 = vmatprep.subr.mxu0 0.0
    %5761 = vmatpush2.msra.mxu0 0.0
    %5762 = vmatprep.subr.mxu0 0.0
    %5763 = vmatpush2.msra.mxu0 0.0
    %5764 = vmatprep.subr.mxu0 0.0
    %5765 = vmatpush2.msra.mxu0 0.0
    %5766 = vmatprep.mubr.f32.mxu0 0.0
    %v5767 = vand.u32 %v5699, 4294901760
    %v5768 = vsub.f32 %v5699, %v5767
    %v5769 = vand.u32 %v5768, 4294901760
    %v5770 = vsub.f32 %v5768, %v5769
    %v5771 = vand.u32 %v5770, 4294901760
    %5772 = vmatmul.mubr.f32.gmra.mxu0 %v5771
    %v5773 = vpop.f32.mrf.mxu0
    %v5774 = vadd.f32 0.0, %v5773
    %v5775 = vpop.f32.mrf.mxu0
    %5776 = vdwg.mxu0
    %5777 = vmatprep.subr.mxu0 0.0
    %5778 = vmatpush1.msra.mxu0 0.0
    %5779 = vmatprep.subr.mxu0 0.0
    %5780 = vmatpush1.msra.mxu0 0.0
    %5781 = vmatprep.subr.mxu0 0.0
    %5782 = vmatpush1.msra.mxu0 0.0
    %5783 = vmatprep.subr.mxu0 0.0
    %5784 = vmatpush1.msra.mxu0 0.0
    %5785 = vmatprep.subr.mxu0 0.0
    %5786 = vmatpush1.msra.mxu0 0.0
    %5787 = vmatprep.subr.mxu0 0.0
    %5788 = vmatpush1.msra.mxu0 0.0
    %5789 = vmatprep.subr.mxu0 0.0
    %5790 = vmatpush1.msra.mxu0 0.0
    %5791 = vmatprep.subr.mxu0 0.0
    %5792 = vmatpush1.msra.mxu0 0.0
    %5793 = vmatprep.subr.mxu0 0.0
    %5794 = vmatpush1.msra.mxu0 0.0
    %5795 = vmatprep.subr.mxu0 0.0
    %5796 = vmatpush1.msra.mxu0 0.0
    %5797 = vmatprep.subr.mxu0 0.0
    %5798 = vmatpush1.msra.mxu0 0.0
    %5799 = vmatprep.subr.mxu0 0.0
    %5800 = vmatpush1.msra.mxu0 0.0
    %5801 = vmatprep.subr.mxu0 0.0
    %5802 = vmatpush1.msra.mxu0 0.0
    %5803 = vmatprep.subr.mxu0 0.0
    %5804 = vmatpush1.msra.mxu0 0.0
    %5805 = vmatprep.subr.mxu0 0.0
    %5806 = vmatpush1.msra.mxu0 0.0
    %5807 = vmatprep.subr.mxu0 0.0
    %v5808 = vand.u32 %v5696, 4294901760
    %v5809 = vsub.f32 %v5696, %v5808
    %v5810 = vand.u32 %v5809, 4294901760
    %v5811 = vsub.f32 %v5809, %v5810
    %v5812 = vand.u32 %v5811, 4294901760
    %5813 = vmatpush1.msra.mxu0 %v5812
    %5814 = vmatprep.subr.mxu0 0.0
    %5815 = vmatpush2.msra.mxu0 0.0
    %5816 = vmatprep.subr.mxu0 0.0
    %5817 = vmatpush2.msra.mxu0 0.0
    %5818 = vmatprep.subr.mxu0 0.0
    %5819 = vmatpush2.msra.mxu0 0.0
    %5820 = vmatprep.subr.mxu0 0.0
    %5821 = vmatpush2.msra.mxu0 0.0
    %5822 = vmatprep.subr.mxu0 0.0
    %5823 = vmatpush2.msra.mxu0 0.0
    %5824 = vmatprep.subr.mxu0 0.0
    %5825 = vmatpush2.msra.mxu0 0.0
    %5826 = vmatprep.subr.mxu0 0.0
    %5827 = vmatpush2.msra.mxu0 0.0
    %5828 = vmatprep.subr.mxu0 0.0
    %5829 = vmatpush2.msra.mxu0 0.0
    %5830 = vmatprep.subr.mxu0 0.0
    %5831 = vmatpush2.msra.mxu0 0.0
    %5832 = vmatprep.subr.mxu0 0.0
    %5833 = vmatpush2.msra.mxu0 0.0
    %5834 = vmatprep.subr.mxu0 0.0
    %5835 = vmatpush2.msra.mxu0 0.0
    %5836 = vmatprep.subr.mxu0 0.0
    %5837 = vmatpush2.msra.mxu0 0.0
    %5838 = vmatprep.subr.mxu0 0.0
    %5839 = vmatpush2.msra.mxu0 0.0
    %5840 = vmatprep.subr.mxu0 0.0
    %5841 = vmatpush2.msra.mxu0 0.0
    %5842 = vmatprep.subr.mxu0 0.0
    %5843 = vmatpush2.msra.mxu0 0.0
    %5844 = vmatprep.subr.mxu0 0.0
    %5845 = vmatpush2.msra.mxu0 0.0
    %5846 = vmatprep.mubr.f32.mxu0 0.0
    %v5847 = vand.u32 %v5699, 4294901760
    %5848 = vmatmul.mubr.f32.gmra.mxu0 %v5847
    %v5849 = vpop.f32.mrf.mxu0
    %v5850 = vadd.f32 %v5774, %v5849
    %v5851 = vpop.f32.mrf.mxu0
    %5852 = vdwg.mxu0
    %5853 = vmatprep.subr.mxu0 0.0
    %5854 = vmatpush1.msra.mxu0 0.0
    %5855 = vmatprep.subr.mxu0 0.0
    %5856 = vmatpush1.msra.mxu0 0.0
    %5857 = vmatprep.subr.mxu0 0.0
    %5858 = vmatpush1.msra.mxu0 0.0
    %5859 = vmatprep.subr.mxu0 0.0
    %5860 = vmatpush1.msra.mxu0 0.0
    %5861 = vmatprep.subr.mxu0 0.0
    %5862 = vmatpush1.msra.mxu0 0.0
    %5863 = vmatprep.subr.mxu0 0.0
    %5864 = vmatpush1.msra.mxu0 0.0
    %5865 = vmatprep.subr.mxu0 0.0
    %5866 = vmatpush1.msra.mxu0 0.0
    %5867 = vmatprep.subr.mxu0 0.0
    %5868 = vmatpush1.msra.mxu0 0.0
    %5869 = vmatprep.subr.mxu0 0.0
    %5870 = vmatpush1.msra.mxu0 0.0
    %5871 = vmatprep.subr.mxu0 0.0
    %5872 = vmatpush1.msra.mxu0 0.0
    %5873 = vmatprep.subr.mxu0 0.0
    %5874 = vmatpush1.msra.mxu0 0.0
    %5875 = vmatprep.subr.mxu0 0.0
    %5876 = vmatpush1.msra.mxu0 0.0
    %5877 = vmatprep.subr.mxu0 0.0
    %5878 = vmatpush1.msra.mxu0 0.0
    %5879 = vmatprep.subr.mxu0 0.0
    %5880 = vmatpush1.msra.mxu0 0.0
    %5881 = vmatprep.subr.mxu0 0.0
    %5882 = vmatpush1.msra.mxu0 0.0
    %5883 = vmatprep.subr.mxu0 0.0
    %v5884 = vand.u32 %v5696, 4294901760
    %v5885 = vsub.f32 %v5696, %v5884
    %5886 = vmatpush1.msra.mxu0 %v5885
    %5887 = vmatprep.subr.mxu0 0.0
    %5888 = vmatpush2.msra.mxu0 0.0
    %5889 = vmatprep.subr.mxu0 0.0
    %5890 = vmatpush2.msra.mxu0 0.0
    %5891 = vmatprep.subr.mxu0 0.0
    %5892 = vmatpush2.msra.mxu0 0.0
    %5893 = vmatprep.subr.mxu0 0.0
    %5894 = vmatpush2.msra.mxu0 0.0
    %5895 = vmatprep.subr.mxu0 0.0
    %5896 = vmatpush2.msra.mxu0 0.0
    %5897 = vmatprep.subr.mxu0 0.0
    %5898 = vmatpush2.msra.mxu0 0.0
    %5899 = vmatprep.subr.mxu0 0.0
    %5900 = vmatpush2.msra.mxu0 0.0
    %5901 = vmatprep.subr.mxu0 0.0
    %5902 = vmatpush2.msra.mxu0 0.0
    %5903 = vmatprep.subr.mxu0 0.0
    %5904 = vmatpush2.msra.mxu0 0.0
    %5905 = vmatprep.subr.mxu0 0.0
    %5906 = vmatpush2.msra.mxu0 0.0
    %5907 = vmatprep.subr.mxu0 0.0
    %5908 = vmatpush2.msra.mxu0 0.0
    %5909 = vmatprep.subr.mxu0 0.0
    %5910 = vmatpush2.msra.mxu0 0.0
    %5911 = vmatprep.subr.mxu0 0.0
    %5912 = vmatpush2.msra.mxu0 0.0
    %5913 = vmatprep.subr.mxu0 0.0
    %5914 = vmatpush2.msra.mxu0 0.0
    %5915 = vmatprep.subr.mxu0 0.0
    %5916 = vmatpush2.msra.mxu0 0.0
    %5917 = vmatprep.subr.mxu0 0.0
    %5918 = vmatpush2.msra.mxu0 0.0
    %5919 = vmatprep.mubr.f32.mxu0 0.0
    %v5920 = vand.u32 %v5699, 4294901760
    %v5921 = vsub.f32 %v5699, %v5920
    %5922 = vmatmul.mubr.f32.gmra.mxu0 %v5921
    %v5923 = vpop.f32.mrf.mxu0
    %v5924 = vadd.f32 %v5850, %v5923
    %v5925 = vpop.f32.mrf.mxu0
    %5926 = vdwg.mxu0
    %5927 = vmatprep.subr.mxu0 0.0
    %5928 = vmatpush1.msra.mxu0 0.0
    %5929 = vmatprep.subr.mxu0 0.0
    %5930 = vmatpush1.msra.mxu0 0.0
    %5931 = vmatprep.subr.mxu0 0.0
    %5932 = vmatpush1.msra.mxu0 0.0
    %5933 = vmatprep.subr.mxu0 0.0
    %5934 = vmatpush1.msra.mxu0 0.0
    %5935 = vmatprep.subr.mxu0 0.0
    %5936 = vmatpush1.msra.mxu0 0.0
    %5937 = vmatprep.subr.mxu0 0.0
    %5938 = vmatpush1.msra.mxu0 0.0
    %5939 = vmatprep.subr.mxu0 0.0
    %5940 = vmatpush1.msra.mxu0 0.0
    %5941 = vmatprep.subr.mxu0 0.0
    %5942 = vmatpush1.msra.mxu0 0.0
    %5943 = vmatprep.subr.mxu0 0.0
    %5944 = vmatpush1.msra.mxu0 0.0
    %5945 = vmatprep.subr.mxu0 0.0
    %5946 = vmatpush1.msra.mxu0 0.0
    %5947 = vmatprep.subr.mxu0 0.0
    %5948 = vmatpush1.msra.mxu0 0.0
    %5949 = vmatprep.subr.mxu0 0.0
    %5950 = vmatpush1.msra.mxu0 0.0
    %5951 = vmatprep.subr.mxu0 0.0
    %5952 = vmatpush1.msra.mxu0 0.0
    %5953 = vmatprep.subr.mxu0 0.0
    %5954 = vmatpush1.msra.mxu0 0.0
    %5955 = vmatprep.subr.mxu0 0.0
    %5956 = vmatpush1.msra.mxu0 0.0
    %5957 = vmatprep.subr.mxu0 0.0
    %v5958 = vand.u32 %v5696, 4294901760
    %5959 = vmatpush1.msra.mxu0 %v5958
    %5960 = vmatprep.subr.mxu0 0.0
    %5961 = vmatpush2.msra.mxu0 0.0
    %5962 = vmatprep.subr.mxu0 0.0
    %5963 = vmatpush2.msra.mxu0 0.0
    %5964 = vmatprep.subr.mxu0 0.0
    %5965 = vmatpush2.msra.mxu0 0.0
    %5966 = vmatprep.subr.mxu0 0.0
    %5967 = vmatpush2.msra.mxu0 0.0
    %5968 = vmatprep.subr.mxu0 0.0
    %5969 = vmatpush2.msra.mxu0 0.0
    %5970 = vmatprep.subr.mxu0 0.0
    %5971 = vmatpush2.msra.mxu0 0.0
    %5972 = vmatprep.subr.mxu0 0.0
    %5973 = vmatpush2.msra.mxu0 0.0
    %5974 = vmatprep.subr.mxu0 0.0
    %5975 = vmatpush2.msra.mxu0 0.0
    %5976 = vmatprep.subr.mxu0 0.0
    %5977 = vmatpush2.msra.mxu0 0.0
    %5978 = vmatprep.subr.mxu0 0.0
    %5979 = vmatpush2.msra.mxu0 0.0
    %5980 = vmatprep.subr.mxu0 0.0
    %5981 = vmatpush2.msra.mxu0 0.0
    %5982 = vmatprep.subr.mxu0 0.0
    %5983 = vmatpush2.msra.mxu0 0.0
    %5984 = vmatprep.subr.mxu0 0.0
    %5985 = vmatpush2.msra.mxu0 0.0
    %5986 = vmatprep.subr.mxu0 0.0
    %5987 = vmatpush2.msra.mxu0 0.0
    %5988 = vmatprep.subr.mxu0 0.0
    %5989 = vmatpush2.msra.mxu0 0.0
    %5990 = vmatprep.subr.mxu0 0.0
    %5991 = vmatpush2.msra.mxu0 0.0
    %5992 = vmatprep.mubr.f32.mxu0 0.0
    %v5993 = vand.u32 %v5699, 4294901760
    %v5994 = vsub.f32 %v5699, %v5993
    %v5995 = vand.u32 %v5994, 4294901760
    %5996 = vmatmul.mubr.f32.gmra.mxu0 %v5995
    %v5997 = vpop.f32.mrf.mxu0
    %v5998 = vadd.f32 %v5924, %v5997
    %v5999 = vpop.f32.mrf.mxu0
    %6000 = vdwg.mxu0
    %6001 = vmatprep.subr.mxu0 0.0
    %6002 = vmatpush1.msra.mxu0 0.0
    %6003 = vmatprep.subr.mxu0 0.0
    %6004 = vmatpush1.msra.mxu0 0.0
    %6005 = vmatprep.subr.mxu0 0.0
    %6006 = vmatpush1.msra.mxu0 0.0
    %6007 = vmatprep.subr.mxu0 0.0
    %6008 = vmatpush1.msra.mxu0 0.0
    %6009 = vmatprep.subr.mxu0 0.0
    %6010 = vmatpush1.msra.mxu0 0.0
    %6011 = vmatprep.subr.mxu0 0.0
    %6012 = vmatpush1.msra.mxu0 0.0
    %6013 = vmatprep.subr.mxu0 0.0
    %6014 = vmatpush1.msra.mxu0 0.0
    %6015 = vmatprep.subr.mxu0 0.0
    %6016 = vmatpush1.msra.mxu0 0.0
    %6017 = vmatprep.subr.mxu0 0.0
    %6018 = vmatpush1.msra.mxu0 0.0
    %6019 = vmatprep.subr.mxu0 0.0
    %6020 = vmatpush1.msra.mxu0 0.0
    %6021 = vmatprep.subr.mxu0 0.0
    %6022 = vmatpush1.msra.mxu0 0.0
    %6023 = vmatprep.subr.mxu0 0.0
    %6024 = vmatpush1.msra.mxu0 0.0
    %6025 = vmatprep.subr.mxu0 0.0
    %6026 = vmatpush1.msra.mxu0 0.0
    %6027 = vmatprep.subr.mxu0 0.0
    %6028 = vmatpush1.msra.mxu0 0.0
    %6029 = vmatprep.subr.mxu0 0.0
    %6030 = vmatpush1.msra.mxu0 0.0
    %6031 = vmatprep.subr.mxu0 0.0
    %v6032 = vand.u32 %v5696, 4294901760
    %v6033 = vsub.f32 %v5696, %v6032
    %v6034 = vand.u32 %v6033, 4294901760
    %6035 = vmatpush1.msra.mxu0 %v6034
    %6036 = vmatprep.subr.mxu0 0.0
    %6037 = vmatpush2.msra.mxu0 0.0
    %6038 = vmatprep.subr.mxu0 0.0
    %6039 = vmatpush2.msra.mxu0 0.0
    %6040 = vmatprep.subr.mxu0 0.0
    %6041 = vmatpush2.msra.mxu0 0.0
    %6042 = vmatprep.subr.mxu0 0.0
    %6043 = vmatpush2.msra.mxu0 0.0
    %6044 = vmatprep.subr.mxu0 0.0
    %6045 = vmatpush2.msra.mxu0 0.0
    %6046 = vmatprep.subr.mxu0 0.0
    %6047 = vmatpush2.msra.mxu0 0.0
    %6048 = vmatprep.subr.mxu0 0.0
    %6049 = vmatpush2.msra.mxu0 0.0
    %6050 = vmatprep.subr.mxu0 0.0
    %6051 = vmatpush2.msra.mxu0 0.0
    %6052 = vmatprep.subr.mxu0 0.0
    %6053 = vmatpush2.msra.mxu0 0.0
    %6054 = vmatprep.subr.mxu0 0.0
    %6055 = vmatpush2.msra.mxu0 0.0
    %6056 = vmatprep.subr.mxu0 0.0
    %6057 = vmatpush2.msra.mxu0 0.0
    %6058 = vmatprep.subr.mxu0 0.0
    %6059 = vmatpush2.msra.mxu0 0.0
    %6060 = vmatprep.subr.mxu0 0.0
    %6061 = vmatpush2.msra.mxu0 0.0
    %6062 = vmatprep.subr.mxu0 0.0
    %6063 = vmatpush2.msra.mxu0 0.0
    %6064 = vmatprep.subr.mxu0 0.0
    %6065 = vmatpush2.msra.mxu0 0.0
    %6066 = vmatprep.subr.mxu0 0.0
    %6067 = vmatpush2.msra.mxu0 0.0
    %6068 = vmatprep.mubr.f32.mxu0 0.0
    %v6069 = vand.u32 %v5699, 4294901760
    %6070 = vmatmul.mubr.f32.gmra.mxu0 %v6069
    %v6071 = vpop.f32.mrf.mxu0
    %v6072 = vadd.f32 %v5998, %v6071
    %v6073 = vpop.f32.mrf.mxu0
    %6074 = vdwg.mxu0
    %6075 = vmatprep.subr.mxu0 0.0
    %6076 = vmatpush1.msra.mxu0 0.0
    %6077 = vmatprep.subr.mxu0 0.0
    %6078 = vmatpush1.msra.mxu0 0.0
    %6079 = vmatprep.subr.mxu0 0.0
    %6080 = vmatpush1.msra.mxu0 0.0
    %6081 = vmatprep.subr.mxu0 0.0
    %6082 = vmatpush1.msra.mxu0 0.0
    %6083 = vmatprep.subr.mxu0 0.0
    %6084 = vmatpush1.msra.mxu0 0.0
    %6085 = vmatprep.subr.mxu0 0.0
    %6086 = vmatpush1.msra.mxu0 0.0
    %6087 = vmatprep.subr.mxu0 0.0
    %6088 = vmatpush1.msra.mxu0 0.0
    %6089 = vmatprep.subr.mxu0 0.0
    %6090 = vmatpush1.msra.mxu0 0.0
    %6091 = vmatprep.subr.mxu0 0.0
    %6092 = vmatpush1.msra.mxu0 0.0
    %6093 = vmatprep.subr.mxu0 0.0
    %6094 = vmatpush1.msra.mxu0 0.0
    %6095 = vmatprep.subr.mxu0 0.0
    %6096 = vmatpush1.msra.mxu0 0.0
    %6097 = vmatprep.subr.mxu0 0.0
    %6098 = vmatpush1.msra.mxu0 0.0
    %6099 = vmatprep.subr.mxu0 0.0
    %6100 = vmatpush1.msra.mxu0 0.0
    %6101 = vmatprep.subr.mxu0 0.0
    %6102 = vmatpush1.msra.mxu0 0.0
    %6103 = vmatprep.subr.mxu0 0.0
    %6104 = vmatpush1.msra.mxu0 0.0
    %6105 = vmatprep.subr.mxu0 0.0
    %v6106 = vand.u32 %v5696, 4294901760
    %6107 = vmatpush1.msra.mxu0 %v6106
    %6108 = vmatprep.subr.mxu0 0.0
    %6109 = vmatpush2.msra.mxu0 0.0
    %6110 = vmatprep.subr.mxu0 0.0
    %6111 = vmatpush2.msra.mxu0 0.0
    %6112 = vmatprep.subr.mxu0 0.0
    %6113 = vmatpush2.msra.mxu0 0.0
    %6114 = vmatprep.subr.mxu0 0.0
    %6115 = vmatpush2.msra.mxu0 0.0
    %6116 = vmatprep.subr.mxu0 0.0
    %6117 = vmatpush2.msra.mxu0 0.0
    %6118 = vmatprep.subr.mxu0 0.0
    %6119 = vmatpush2.msra.mxu0 0.0
    %6120 = vmatprep.subr.mxu0 0.0
    %6121 = vmatpush2.msra.mxu0 0.0
    %6122 = vmatprep.subr.mxu0 0.0
    %6123 = vmatpush2.msra.mxu0 0.0
    %6124 = vmatprep.subr.mxu0 0.0
    %6125 = vmatpush2.msra.mxu0 0.0
    %6126 = vmatprep.subr.mxu0 0.0
    %6127 = vmatpush2.msra.mxu0 0.0
    %6128 = vmatprep.subr.mxu0 0.0
    %6129 = vmatpush2.msra.mxu0 0.0
    %6130 = vmatprep.subr.mxu0 0.0
    %6131 = vmatpush2.msra.mxu0 0.0
    %6132 = vmatprep.subr.mxu0 0.0
    %6133 = vmatpush2.msra.mxu0 0.0
    %6134 = vmatprep.subr.mxu0 0.0
    %6135 = vmatpush2.msra.mxu0 0.0
    %6136 = vmatprep.subr.mxu0 0.0
    %6137 = vmatpush2.msra.mxu0 0.0
    %6138 = vmatprep.subr.mxu0 0.0
    %6139 = vmatpush2.msra.mxu0 0.0
    %6140 = vmatprep.mubr.f32.mxu0 0.0
    %v6141 = vand.u32 %v5699, 4294901760
    %6142 = vmatmul.mubr.f32.gmra.mxu0 %v6141
    %v6143 = vpop.f32.mrf.mxu0
    %v6144 = vadd.f32 %v6072, %v6143
    %v6145 = vpop.f32.mrf.mxu0
    %6146 = vdwg.mxu0
    %6147 = vrot.lane.b32.xlu0 %v612, 64
    %v6148 = vpop.permute.xlu0 %6147
    %v6151 = vsel %vm621, %v4332, 0
    %6153 = vmatprep.subr.mxu0 0.0
    %6154 = vmatpush1.msra.mxu0 0.0
    %6155 = vmatprep.subr.mxu0 0.0
    %6156 = vmatpush1.msra.mxu0 0.0
    %6157 = vmatprep.subr.mxu0 0.0
    %6158 = vmatpush1.msra.mxu0 0.0
    %6159 = vmatprep.subr.mxu0 0.0
    %6160 = vmatpush1.msra.mxu0 0.0
    %6161 = vmatprep.subr.mxu0 0.0
    %6162 = vmatpush1.msra.mxu0 0.0
    %6163 = vmatprep.subr.mxu0 0.0
    %6164 = vmatpush1.msra.mxu0 0.0
    %6165 = vmatprep.subr.mxu0 0.0
    %6166 = vmatpush1.msra.mxu0 0.0
    %6167 = vmatprep.subr.mxu0 0.0
    %6168 = vmatpush1.msra.mxu0 0.0
    %6169 = vmatprep.subr.mxu0 0.0
    %6170 = vmatpush1.msra.mxu0 0.0
    %6171 = vmatprep.subr.mxu0 0.0
    %6172 = vmatpush1.msra.mxu0 0.0
    %6173 = vmatprep.subr.mxu0 0.0
    %6174 = vmatpush1.msra.mxu0 0.0
    %6175 = vmatprep.subr.mxu0 0.0
    %6176 = vmatpush1.msra.mxu0 0.0
    %6177 = vmatprep.subr.mxu0 0.0
    %6178 = vmatpush1.msra.mxu0 0.0
    %6179 = vmatprep.subr.mxu0 0.0
    %6180 = vmatpush1.msra.mxu0 0.0
    %6181 = vmatprep.subr.mxu0 0.0
    %6182 = vmatpush1.msra.mxu0 0.0
    %6183 = vmatprep.subr.mxu0 0.0
    %v6184 = vand.u32 %v6148, 4294901760
    %6185 = vmatpush1.msra.mxu0 %v6184
    %6186 = vmatprep.subr.mxu0 0.0
    %6187 = vmatpush2.msra.mxu0 0.0
    %6188 = vmatprep.subr.mxu0 0.0
    %6189 = vmatpush2.msra.mxu0 0.0
    %6190 = vmatprep.subr.mxu0 0.0
    %6191 = vmatpush2.msra.mxu0 0.0
    %6192 = vmatprep.subr.mxu0 0.0
    %6193 = vmatpush2.msra.mxu0 0.0
    %6194 = vmatprep.subr.mxu0 0.0
    %6195 = vmatpush2.msra.mxu0 0.0
    %6196 = vmatprep.subr.mxu0 0.0
    %6197 = vmatpush2.msra.mxu0 0.0
    %6198 = vmatprep.subr.mxu0 0.0
    %6199 = vmatpush2.msra.mxu0 0.0
    %6200 = vmatprep.subr.mxu0 0.0
    %6201 = vmatpush2.msra.mxu0 0.0
    %6202 = vmatprep.subr.mxu0 0.0
    %6203 = vmatpush2.msra.mxu0 0.0
    %6204 = vmatprep.subr.mxu0 0.0
    %6205 = vmatpush2.msra.mxu0 0.0
    %6206 = vmatprep.subr.mxu0 0.0
    %6207 = vmatpush2.msra.mxu0 0.0
    %6208 = vmatprep.subr.mxu0 0.0
    %6209 = vmatpush2.msra.mxu0 0.0
    %6210 = vmatprep.subr.mxu0 0.0
    %6211 = vmatpush2.msra.mxu0 0.0
    %6212 = vmatprep.subr.mxu0 0.0
    %6213 = vmatpush2.msra.mxu0 0.0
    %6214 = vmatprep.subr.mxu0 0.0
    %6215 = vmatpush2.msra.mxu0 0.0
    %6216 = vmatprep.subr.mxu0 0.0
    %6217 = vmatpush2.msra.mxu0 0.0
    %6218 = vmatprep.mubr.f32.mxu0 0.0
    %v6219 = vand.u32 %v6151, 4294901760
    %v6220 = vsub.f32 %v6151, %v6219
    %v6221 = vand.u32 %v6220, 4294901760
    %v6222 = vsub.f32 %v6220, %v6221
    %v6223 = vand.u32 %v6222, 4294901760
    %6224 = vmatmul.mubr.f32.gmra.mxu0 %v6223
    %v6225 = vpop.f32.mrf.mxu0
    %v6226 = vadd.f32 0.0, %v6225
    %v6227 = vpop.f32.mrf.mxu0
    %6228 = vdwg.mxu0
    %6229 = vmatprep.subr.mxu0 0.0
    %6230 = vmatpush1.msra.mxu0 0.0
    %6231 = vmatprep.subr.mxu0 0.0
    %6232 = vmatpush1.msra.mxu0 0.0
    %6233 = vmatprep.subr.mxu0 0.0
    %6234 = vmatpush1.msra.mxu0 0.0
    %6235 = vmatprep.subr.mxu0 0.0
    %6236 = vmatpush1.msra.mxu0 0.0
    %6237 = vmatprep.subr.mxu0 0.0
    %6238 = vmatpush1.msra.mxu0 0.0
    %6239 = vmatprep.subr.mxu0 0.0
    %6240 = vmatpush1.msra.mxu0 0.0
    %6241 = vmatprep.subr.mxu0 0.0
    %6242 = vmatpush1.msra.mxu0 0.0
    %6243 = vmatprep.subr.mxu0 0.0
    %6244 = vmatpush1.msra.mxu0 0.0
    %6245 = vmatprep.subr.mxu0 0.0
    %6246 = vmatpush1.msra.mxu0 0.0
    %6247 = vmatprep.subr.mxu0 0.0
    %6248 = vmatpush1.msra.mxu0 0.0
    %6249 = vmatprep.subr.mxu0 0.0
    %6250 = vmatpush1.msra.mxu0 0.0
    %6251 = vmatprep.subr.mxu0 0.0
    %6252 = vmatpush1.msra.mxu0 0.0
    %6253 = vmatprep.subr.mxu0 0.0
    %6254 = vmatpush1.msra.mxu0 0.0
    %6255 = vmatprep.subr.mxu0 0.0
    %6256 = vmatpush1.msra.mxu0 0.0
    %6257 = vmatprep.subr.mxu0 0.0
    %6258 = vmatpush1.msra.mxu0 0.0
    %6259 = vmatprep.subr.mxu0 0.0
    %v6260 = vand.u32 %v6148, 4294901760
    %v6261 = vsub.f32 %v6148, %v6260
    %v6262 = vand.u32 %v6261, 4294901760
    %v6263 = vsub.f32 %v6261, %v6262
    %v6264 = vand.u32 %v6263, 4294901760
    %6265 = vmatpush1.msra.mxu0 %v6264
    %6266 = vmatprep.subr.mxu0 0.0
    %6267 = vmatpush2.msra.mxu0 0.0
    %6268 = vmatprep.subr.mxu0 0.0
    %6269 = vmatpush2.msra.mxu0 0.0
    %6270 = vmatprep.subr.mxu0 0.0
    %6271 = vmatpush2.msra.mxu0 0.0
    %6272 = vmatprep.subr.mxu0 0.0
    %6273 = vmatpush2.msra.mxu0 0.0
    %6274 = vmatprep.subr.mxu0 0.0
    %6275 = vmatpush2.msra.mxu0 0.0
    %6276 = vmatprep.subr.mxu0 0.0
    %6277 = vmatpush2.msra.mxu0 0.0
    %6278 = vmatprep.subr.mxu0 0.0
    %6279 = vmatpush2.msra.mxu0 0.0
    %6280 = vmatprep.subr.mxu0 0.0
    %6281 = vmatpush2.msra.mxu0 0.0
    %6282 = vmatprep.subr.mxu0 0.0
    %6283 = vmatpush2.msra.mxu0 0.0
    %6284 = vmatprep.subr.mxu0 0.0
    %6285 = vmatpush2.msra.mxu0 0.0
    %6286 = vmatprep.subr.mxu0 0.0
    %6287 = vmatpush2.msra.mxu0 0.0
    %6288 = vmatprep.subr.mxu0 0.0
    %6289 = vmatpush2.msra.mxu0 0.0
    %6290 = vmatprep.subr.mxu0 0.0
    %6291 = vmatpush2.msra.mxu0 0.0
    %6292 = vmatprep.subr.mxu0 0.0
    %6293 = vmatpush2.msra.mxu0 0.0
    %6294 = vmatprep.subr.mxu0 0.0
    %6295 = vmatpush2.msra.mxu0 0.0
    %6296 = vmatprep.subr.mxu0 0.0
    %6297 = vmatpush2.msra.mxu0 0.0
    %6298 = vmatprep.mubr.f32.mxu0 0.0
    %v6299 = vand.u32 %v6151, 4294901760
    %6300 = vmatmul.mubr.f32.gmra.mxu0 %v6299
    %v6301 = vpop.f32.mrf.mxu0
    %v6302 = vadd.f32 %v6226, %v6301
    %v6303 = vpop.f32.mrf.mxu0
    %6304 = vdwg.mxu0
    %6305 = vmatprep.subr.mxu0 0.0
    %6306 = vmatpush1.msra.mxu0 0.0
    %6307 = vmatprep.subr.mxu0 0.0
    %6308 = vmatpush1.msra.mxu0 0.0
    %6309 = vmatprep.subr.mxu0 0.0
    %6310 = vmatpush1.msra.mxu0 0.0
    %6311 = vmatprep.subr.mxu0 0.0
    %6312 = vmatpush1.msra.mxu0 0.0
    %6313 = vmatprep.subr.mxu0 0.0
    %6314 = vmatpush1.msra.mxu0 0.0
    %6315 = vmatprep.subr.mxu0 0.0
    %6316 = vmatpush1.msra.mxu0 0.0
    %6317 = vmatprep.subr.mxu0 0.0
    %6318 = vmatpush1.msra.mxu0 0.0
    %6319 = vmatprep.subr.mxu0 0.0
    %6320 = vmatpush1.msra.mxu0 0.0
    %6321 = vmatprep.subr.mxu0 0.0
    %6322 = vmatpush1.msra.mxu0 0.0
    %6323 = vmatprep.subr.mxu0 0.0
    %6324 = vmatpush1.msra.mxu0 0.0
    %6325 = vmatprep.subr.mxu0 0.0
    %6326 = vmatpush1.msra.mxu0 0.0
    %6327 = vmatprep.subr.mxu0 0.0
    %6328 = vmatpush1.msra.mxu0 0.0
    %6329 = vmatprep.subr.mxu0 0.0
    %6330 = vmatpush1.msra.mxu0 0.0
    %6331 = vmatprep.subr.mxu0 0.0
    %6332 = vmatpush1.msra.mxu0 0.0
    %6333 = vmatprep.subr.mxu0 0.0
    %6334 = vmatpush1.msra.mxu0 0.0
    %6335 = vmatprep.subr.mxu0 0.0
    %v6336 = vand.u32 %v6148, 4294901760
    %v6337 = vsub.f32 %v6148, %v6336
    %6338 = vmatpush1.msra.mxu0 %v6337
    %6339 = vmatprep.subr.mxu0 0.0
    %6340 = vmatpush2.msra.mxu0 0.0
    %6341 = vmatprep.subr.mxu0 0.0
    %6342 = vmatpush2.msra.mxu0 0.0
    %6343 = vmatprep.subr.mxu0 0.0
    %6344 = vmatpush2.msra.mxu0 0.0
    %6345 = vmatprep.subr.mxu0 0.0
    %6346 = vmatpush2.msra.mxu0 0.0
    %6347 = vmatprep.subr.mxu0 0.0
    %6348 = vmatpush2.msra.mxu0 0.0
    %6349 = vmatprep.subr.mxu0 0.0
    %6350 = vmatpush2.msra.mxu0 0.0
    %6351 = vmatprep.subr.mxu0 0.0
    %6352 = vmatpush2.msra.mxu0 0.0
    %6353 = vmatprep.subr.mxu0 0.0
    %6354 = vmatpush2.msra.mxu0 0.0
    %6355 = vmatprep.subr.mxu0 0.0
    %6356 = vmatpush2.msra.mxu0 0.0
    %6357 = vmatprep.subr.mxu0 0.0
    %6358 = vmatpush2.msra.mxu0 0.0
    %6359 = vmatprep.subr.mxu0 0.0
    %6360 = vmatpush2.msra.mxu0 0.0
    %6361 = vmatprep.subr.mxu0 0.0
    %6362 = vmatpush2.msra.mxu0 0.0
    %6363 = vmatprep.subr.mxu0 0.0
    %6364 = vmatpush2.msra.mxu0 0.0
    %6365 = vmatprep.subr.mxu0 0.0
    %6366 = vmatpush2.msra.mxu0 0.0
    %6367 = vmatprep.subr.mxu0 0.0
    %6368 = vmatpush2.msra.mxu0 0.0
    %6369 = vmatprep.subr.mxu0 0.0
    %6370 = vmatpush2.msra.mxu0 0.0
    %6371 = vmatprep.mubr.f32.mxu0 0.0
    %v6372 = vand.u32 %v6151, 4294901760
    %v6373 = vsub.f32 %v6151, %v6372
    %6374 = vmatmul.mubr.f32.gmra.mxu0 %v6373
    %v6375 = vpop.f32.mrf.mxu0
    %v6376 = vadd.f32 %v6302, %v6375
    %v6377 = vpop.f32.mrf.mxu0
    %6378 = vdwg.mxu0
    %6379 = vmatprep.subr.mxu0 0.0
    %6380 = vmatpush1.msra.mxu0 0.0
    %6381 = vmatprep.subr.mxu0 0.0
    %6382 = vmatpush1.msra.mxu0 0.0
    %6383 = vmatprep.subr.mxu0 0.0
    %6384 = vmatpush1.msra.mxu0 0.0
    %6385 = vmatprep.subr.mxu0 0.0
    %6386 = vmatpush1.msra.mxu0 0.0
    %6387 = vmatprep.subr.mxu0 0.0
    %6388 = vmatpush1.msra.mxu0 0.0
    %6389 = vmatprep.subr.mxu0 0.0
    %6390 = vmatpush1.msra.mxu0 0.0
    %6391 = vmatprep.subr.mxu0 0.0
    %6392 = vmatpush1.msra.mxu0 0.0
    %6393 = vmatprep.subr.mxu0 0.0
    %6394 = vmatpush1.msra.mxu0 0.0
    %6395 = vmatprep.subr.mxu0 0.0
    %6396 = vmatpush1.msra.mxu0 0.0
    %6397 = vmatprep.subr.mxu0 0.0
    %6398 = vmatpush1.msra.mxu0 0.0
    %6399 = vmatprep.subr.mxu0 0.0
    %6400 = vmatpush1.msra.mxu0 0.0
    %6401 = vmatprep.subr.mxu0 0.0
    %6402 = vmatpush1.msra.mxu0 0.0
    %6403 = vmatprep.subr.mxu0 0.0
    %6404 = vmatpush1.msra.mxu0 0.0
    %6405 = vmatprep.subr.mxu0 0.0
    %6406 = vmatpush1.msra.mxu0 0.0
    %6407 = vmatprep.subr.mxu0 0.0
    %6408 = vmatpush1.msra.mxu0 0.0
    %6409 = vmatprep.subr.mxu0 0.0
    %v6410 = vand.u32 %v6148, 4294901760
    %6411 = vmatpush1.msra.mxu0 %v6410
    %6412 = vmatprep.subr.mxu0 0.0
    %6413 = vmatpush2.msra.mxu0 0.0
    %6414 = vmatprep.subr.mxu0 0.0
    %6415 = vmatpush2.msra.mxu0 0.0
    %6416 = vmatprep.subr.mxu0 0.0
    %6417 = vmatpush2.msra.mxu0 0.0
    %6418 = vmatprep.subr.mxu0 0.0
    %6419 = vmatpush2.msra.mxu0 0.0
    %6420 = vmatprep.subr.mxu0 0.0
    %6421 = vmatpush2.msra.mxu0 0.0
    %6422 = vmatprep.subr.mxu0 0.0
    %6423 = vmatpush2.msra.mxu0 0.0
    %6424 = vmatprep.subr.mxu0 0.0
    %6425 = vmatpush2.msra.mxu0 0.0
    %6426 = vmatprep.subr.mxu0 0.0
    %6427 = vmatpush2.msra.mxu0 0.0
    %6428 = vmatprep.subr.mxu0 0.0
    %6429 = vmatpush2.msra.mxu0 0.0
    %6430 = vmatprep.subr.mxu0 0.0
    %6431 = vmatpush2.msra.mxu0 0.0
    %6432 = vmatprep.subr.mxu0 0.0
    %6433 = vmatpush2.msra.mxu0 0.0
    %6434 = vmatprep.subr.mxu0 0.0
    %6435 = vmatpush2.msra.mxu0 0.0
    %6436 = vmatprep.subr.mxu0 0.0
    %6437 = vmatpush2.msra.mxu0 0.0
    %6438 = vmatprep.subr.mxu0 0.0
    %6439 = vmatpush2.msra.mxu0 0.0
    %6440 = vmatprep.subr.mxu0 0.0
    %6441 = vmatpush2.msra.mxu0 0.0
    %6442 = vmatprep.subr.mxu0 0.0
    %6443 = vmatpush2.msra.mxu0 0.0
    %6444 = vmatprep.mubr.f32.mxu0 0.0
    %v6445 = vand.u32 %v6151, 4294901760
    %v6446 = vsub.f32 %v6151, %v6445
    %v6447 = vand.u32 %v6446, 4294901760
    %6448 = vmatmul.mubr.f32.gmra.mxu0 %v6447
    %v6449 = vpop.f32.mrf.mxu0
    %v6450 = vadd.f32 %v6376, %v6449
    %v6451 = vpop.f32.mrf.mxu0
    %6452 = vdwg.mxu0
    %6453 = vmatprep.subr.mxu0 0.0
    %6454 = vmatpush1.msra.mxu0 0.0
    %6455 = vmatprep.subr.mxu0 0.0
    %6456 = vmatpush1.msra.mxu0 0.0
    %6457 = vmatprep.subr.mxu0 0.0
    %6458 = vmatpush1.msra.mxu0 0.0
    %6459 = vmatprep.subr.mxu0 0.0
    %6460 = vmatpush1.msra.mxu0 0.0
    %6461 = vmatprep.subr.mxu0 0.0
    %6462 = vmatpush1.msra.mxu0 0.0
    %6463 = vmatprep.subr.mxu0 0.0
    %6464 = vmatpush1.msra.mxu0 0.0
    %6465 = vmatprep.subr.mxu0 0.0
    %6466 = vmatpush1.msra.mxu0 0.0
    %6467 = vmatprep.subr.mxu0 0.0
    %6468 = vmatpush1.msra.mxu0 0.0
    %6469 = vmatprep.subr.mxu0 0.0
    %6470 = vmatpush1.msra.mxu0 0.0
    %6471 = vmatprep.subr.mxu0 0.0
    %6472 = vmatpush1.msra.mxu0 0.0
    %6473 = vmatprep.subr.mxu0 0.0
    %6474 = vmatpush1.msra.mxu0 0.0
    %6475 = vmatprep.subr.mxu0 0.0
    %6476 = vmatpush1.msra.mxu0 0.0
    %6477 = vmatprep.subr.mxu0 0.0
    %6478 = vmatpush1.msra.mxu0 0.0
    %6479 = vmatprep.subr.mxu0 0.0
    %6480 = vmatpush1.msra.mxu0 0.0
    %6481 = vmatprep.subr.mxu0 0.0
    %6482 = vmatpush1.msra.mxu0 0.0
    %6483 = vmatprep.subr.mxu0 0.0
    %v6484 = vand.u32 %v6148, 4294901760
    %v6485 = vsub.f32 %v6148, %v6484
    %v6486 = vand.u32 %v6485, 4294901760
    %6487 = vmatpush1.msra.mxu0 %v6486
    %6488 = vmatprep.subr.mxu0 0.0
    %6489 = vmatpush2.msra.mxu0 0.0
    %6490 = vmatprep.subr.mxu0 0.0
    %6491 = vmatpush2.msra.mxu0 0.0
    %6492 = vmatprep.subr.mxu0 0.0
    %6493 = vmatpush2.msra.mxu0 0.0
    %6494 = vmatprep.subr.mxu0 0.0
    %6495 = vmatpush2.msra.mxu0 0.0
    %6496 = vmatprep.subr.mxu0 0.0
    %6497 = vmatpush2.msra.mxu0 0.0
    %6498 = vmatprep.subr.mxu0 0.0
    %6499 = vmatpush2.msra.mxu0 0.0
    %6500 = vmatprep.subr.mxu0 0.0
    %6501 = vmatpush2.msra.mxu0 0.0
    %6502 = vmatprep.subr.mxu0 0.0
    %6503 = vmatpush2.msra.mxu0 0.0
    %6504 = vmatprep.subr.mxu0 0.0
    %6505 = vmatpush2.msra.mxu0 0.0
    %6506 = vmatprep.subr.mxu0 0.0
    %6507 = vmatpush2.msra.mxu0 0.0
    %6508 = vmatprep.subr.mxu0 0.0
    %6509 = vmatpush2.msra.mxu0 0.0
    %6510 = vmatprep.subr.mxu0 0.0
    %6511 = vmatpush2.msra.mxu0 0.0
    %6512 = vmatprep.subr.mxu0 0.0
    %6513 = vmatpush2.msra.mxu0 0.0
    %6514 = vmatprep.subr.mxu0 0.0
    %6515 = vmatpush2.msra.mxu0 0.0
    %6516 = vmatprep.subr.mxu0 0.0
    %6517 = vmatpush2.msra.mxu0 0.0
    %6518 = vmatprep.subr.mxu0 0.0
    %6519 = vmatpush2.msra.mxu0 0.0
    %6520 = vmatprep.mubr.f32.mxu0 0.0
    %v6521 = vand.u32 %v6151, 4294901760
    %6522 = vmatmul.mubr.f32.gmra.mxu0 %v6521
    %v6523 = vpop.f32.mrf.mxu0
    %v6524 = vadd.f32 %v6450, %v6523
    %v6525 = vpop.f32.mrf.mxu0
    %6526 = vdwg.mxu0
    %6527 = vmatprep.subr.mxu0 0.0
    %6528 = vmatpush1.msra.mxu0 0.0
    %6529 = vmatprep.subr.mxu0 0.0
    %6530 = vmatpush1.msra.mxu0 0.0
    %6531 = vmatprep.subr.mxu0 0.0
    %6532 = vmatpush1.msra.mxu0 0.0
    %6533 = vmatprep.subr.mxu0 0.0
    %6534 = vmatpush1.msra.mxu0 0.0
    %6535 = vmatprep.subr.mxu0 0.0
    %6536 = vmatpush1.msra.mxu0 0.0
    %6537 = vmatprep.subr.mxu0 0.0
    %6538 = vmatpush1.msra.mxu0 0.0
    %6539 = vmatprep.subr.mxu0 0.0
    %6540 = vmatpush1.msra.mxu0 0.0
    %6541 = vmatprep.subr.mxu0 0.0
    %6542 = vmatpush1.msra.mxu0 0.0
    %6543 = vmatprep.subr.mxu0 0.0
    %6544 = vmatpush1.msra.mxu0 0.0
    %6545 = vmatprep.subr.mxu0 0.0
    %6546 = vmatpush1.msra.mxu0 0.0
    %6547 = vmatprep.subr.mxu0 0.0
    %6548 = vmatpush1.msra.mxu0 0.0
    %6549 = vmatprep.subr.mxu0 0.0
    %6550 = vmatpush1.msra.mxu0 0.0
    %6551 = vmatprep.subr.mxu0 0.0
    %6552 = vmatpush1.msra.mxu0 0.0
    %6553 = vmatprep.subr.mxu0 0.0
    %6554 = vmatpush1.msra.mxu0 0.0
    %6555 = vmatprep.subr.mxu0 0.0
    %6556 = vmatpush1.msra.mxu0 0.0
    %6557 = vmatprep.subr.mxu0 0.0
    %v6558 = vand.u32 %v6148, 4294901760
    %6559 = vmatpush1.msra.mxu0 %v6558
    %6560 = vmatprep.subr.mxu0 0.0
    %6561 = vmatpush2.msra.mxu0 0.0
    %6562 = vmatprep.subr.mxu0 0.0
    %6563 = vmatpush2.msra.mxu0 0.0
    %6564 = vmatprep.subr.mxu0 0.0
    %6565 = vmatpush2.msra.mxu0 0.0
    %6566 = vmatprep.subr.mxu0 0.0
    %6567 = vmatpush2.msra.mxu0 0.0
    %6568 = vmatprep.subr.mxu0 0.0
    %6569 = vmatpush2.msra.mxu0 0.0
    %6570 = vmatprep.subr.mxu0 0.0
    %6571 = vmatpush2.msra.mxu0 0.0
    %6572 = vmatprep.subr.mxu0 0.0
    %6573 = vmatpush2.msra.mxu0 0.0
    %6574 = vmatprep.subr.mxu0 0.0
    %6575 = vmatpush2.msra.mxu0 0.0
    %6576 = vmatprep.subr.mxu0 0.0
    %6577 = vmatpush2.msra.mxu0 0.0
    %6578 = vmatprep.subr.mxu0 0.0
    %6579 = vmatpush2.msra.mxu0 0.0
    %6580 = vmatprep.subr.mxu0 0.0
    %6581 = vmatpush2.msra.mxu0 0.0
    %6582 = vmatprep.subr.mxu0 0.0
    %6583 = vmatpush2.msra.mxu0 0.0
    %6584 = vmatprep.subr.mxu0 0.0
    %6585 = vmatpush2.msra.mxu0 0.0
    %6586 = vmatprep.subr.mxu0 0.0
    %6587 = vmatpush2.msra.mxu0 0.0
    %6588 = vmatprep.subr.mxu0 0.0
    %6589 = vmatpush2.msra.mxu0 0.0
    %6590 = vmatprep.subr.mxu0 0.0
    %6591 = vmatpush2.msra.mxu0 0.0
    %6592 = vmatprep.mubr.f32.mxu0 0.0
    %v6593 = vand.u32 %v6151, 4294901760
    %6594 = vmatmul.mubr.f32.gmra.mxu0 %v6593
    %v6595 = vpop.f32.mrf.mxu0
    %v6596 = vadd.f32 %v6524, %v6595
    %v6597 = vpop.f32.mrf.mxu0
    %6598 = vdwg.mxu0
    %6599 = vrot.lane.b32.xlu0 %v614, 64
    %v6600 = vpop.permute.xlu0 %6599
    %v6603 = vsel %vm621, %v4334, 0
    %6605 = vmatprep.subr.mxu0 0.0
    %6606 = vmatpush1.msra.mxu0 0.0
    %6607 = vmatprep.subr.mxu0 0.0
    %6608 = vmatpush1.msra.mxu0 0.0
    %6609 = vmatprep.subr.mxu0 0.0
    %6610 = vmatpush1.msra.mxu0 0.0
    %6611 = vmatprep.subr.mxu0 0.0
    %6612 = vmatpush1.msra.mxu0 0.0
    %6613 = vmatprep.subr.mxu0 0.0
    %6614 = vmatpush1.msra.mxu0 0.0
    %6615 = vmatprep.subr.mxu0 0.0
    %6616 = vmatpush1.msra.mxu0 0.0
    %6617 = vmatprep.subr.mxu0 0.0
    %6618 = vmatpush1.msra.mxu0 0.0
    %6619 = vmatprep.subr.mxu0 0.0
    %6620 = vmatpush1.msra.mxu0 0.0
    %6621 = vmatprep.subr.mxu0 0.0
    %6622 = vmatpush1.msra.mxu0 0.0
    %6623 = vmatprep.subr.mxu0 0.0
    %6624 = vmatpush1.msra.mxu0 0.0
    %6625 = vmatprep.subr.mxu0 0.0
    %6626 = vmatpush1.msra.mxu0 0.0
    %6627 = vmatprep.subr.mxu0 0.0
    %6628 = vmatpush1.msra.mxu0 0.0
    %6629 = vmatprep.subr.mxu0 0.0
    %6630 = vmatpush1.msra.mxu0 0.0
    %6631 = vmatprep.subr.mxu0 0.0
    %6632 = vmatpush1.msra.mxu0 0.0
    %6633 = vmatprep.subr.mxu0 0.0
    %6634 = vmatpush1.msra.mxu0 0.0
    %6635 = vmatprep.subr.mxu0 0.0
    %v6636 = vand.u32 %v6600, 4294901760
    %6637 = vmatpush1.msra.mxu0 %v6636
    %6638 = vmatprep.subr.mxu0 0.0
    %6639 = vmatpush2.msra.mxu0 0.0
    %6640 = vmatprep.subr.mxu0 0.0
    %6641 = vmatpush2.msra.mxu0 0.0
    %6642 = vmatprep.subr.mxu0 0.0
    %6643 = vmatpush2.msra.mxu0 0.0
    %6644 = vmatprep.subr.mxu0 0.0
    %6645 = vmatpush2.msra.mxu0 0.0
    %6646 = vmatprep.subr.mxu0 0.0
    %6647 = vmatpush2.msra.mxu0 0.0
    %6648 = vmatprep.subr.mxu0 0.0
    %6649 = vmatpush2.msra.mxu0 0.0
    %6650 = vmatprep.subr.mxu0 0.0
    %6651 = vmatpush2.msra.mxu0 0.0
    %6652 = vmatprep.subr.mxu0 0.0
    %6653 = vmatpush2.msra.mxu0 0.0
    %6654 = vmatprep.subr.mxu0 0.0
    %6655 = vmatpush2.msra.mxu0 0.0
    %6656 = vmatprep.subr.mxu0 0.0
    %6657 = vmatpush2.msra.mxu0 0.0
    %6658 = vmatprep.subr.mxu0 0.0
    %6659 = vmatpush2.msra.mxu0 0.0
    %6660 = vmatprep.subr.mxu0 0.0
    %6661 = vmatpush2.msra.mxu0 0.0
    %6662 = vmatprep.subr.mxu0 0.0
    %6663 = vmatpush2.msra.mxu0 0.0
    %6664 = vmatprep.subr.mxu0 0.0
    %6665 = vmatpush2.msra.mxu0 0.0
    %6666 = vmatprep.subr.mxu0 0.0
    %6667 = vmatpush2.msra.mxu0 0.0
    %6668 = vmatprep.subr.mxu0 0.0
    %6669 = vmatpush2.msra.mxu0 0.0
    %6670 = vmatprep.mubr.f32.mxu0 0.0
    %v6671 = vand.u32 %v6603, 4294901760
    %v6672 = vsub.f32 %v6603, %v6671
    %v6673 = vand.u32 %v6672, 4294901760
    %v6674 = vsub.f32 %v6672, %v6673
    %v6675 = vand.u32 %v6674, 4294901760
    %6676 = vmatmul.mubr.f32.gmra.mxu0 %v6675
    %v6677 = vpop.f32.mrf.mxu0
    %v6678 = vadd.f32 0.0, %v6677
    %v6679 = vpop.f32.mrf.mxu0
    %6680 = vdwg.mxu0
    %6681 = vmatprep.subr.mxu0 0.0
    %6682 = vmatpush1.msra.mxu0 0.0
    %6683 = vmatprep.subr.mxu0 0.0
    %6684 = vmatpush1.msra.mxu0 0.0
    %6685 = vmatprep.subr.mxu0 0.0
    %6686 = vmatpush1.msra.mxu0 0.0
    %6687 = vmatprep.subr.mxu0 0.0
    %6688 = vmatpush1.msra.mxu0 0.0
    %6689 = vmatprep.subr.mxu0 0.0
    %6690 = vmatpush1.msra.mxu0 0.0
    %6691 = vmatprep.subr.mxu0 0.0
    %6692 = vmatpush1.msra.mxu0 0.0
    %6693 = vmatprep.subr.mxu0 0.0
    %6694 = vmatpush1.msra.mxu0 0.0
    %6695 = vmatprep.subr.mxu0 0.0
    %6696 = vmatpush1.msra.mxu0 0.0
    %6697 = vmatprep.subr.mxu0 0.0
    %6698 = vmatpush1.msra.mxu0 0.0
    %6699 = vmatprep.subr.mxu0 0.0
    %6700 = vmatpush1.msra.mxu0 0.0
    %6701 = vmatprep.subr.mxu0 0.0
    %6702 = vmatpush1.msra.mxu0 0.0
    %6703 = vmatprep.subr.mxu0 0.0
    %6704 = vmatpush1.msra.mxu0 0.0
    %6705 = vmatprep.subr.mxu0 0.0
    %6706 = vmatpush1.msra.mxu0 0.0
    %6707 = vmatprep.subr.mxu0 0.0
    %6708 = vmatpush1.msra.mxu0 0.0
    %6709 = vmatprep.subr.mxu0 0.0
    %6710 = vmatpush1.msra.mxu0 0.0
    %6711 = vmatprep.subr.mxu0 0.0
    %v6712 = vand.u32 %v6600, 4294901760
    %v6713 = vsub.f32 %v6600, %v6712
    %v6714 = vand.u32 %v6713, 4294901760
    %v6715 = vsub.f32 %v6713, %v6714
    %v6716 = vand.u32 %v6715, 4294901760
    %6717 = vmatpush1.msra.mxu0 %v6716
    %6718 = vmatprep.subr.mxu0 0.0
    %6719 = vmatpush2.msra.mxu0 0.0
    %6720 = vmatprep.subr.mxu0 0.0
    %6721 = vmatpush2.msra.mxu0 0.0
    %6722 = vmatprep.subr.mxu0 0.0
    %6723 = vmatpush2.msra.mxu0 0.0
    %6724 = vmatprep.subr.mxu0 0.0
    %6725 = vmatpush2.msra.mxu0 0.0
    %6726 = vmatprep.subr.mxu0 0.0
    %6727 = vmatpush2.msra.mxu0 0.0
    %6728 = vmatprep.subr.mxu0 0.0
    %6729 = vmatpush2.msra.mxu0 0.0
    %6730 = vmatprep.subr.mxu0 0.0
    %6731 = vmatpush2.msra.mxu0 0.0
    %6732 = vmatprep.subr.mxu0 0.0
    %6733 = vmatpush2.msra.mxu0 0.0
    %6734 = vmatprep.subr.mxu0 0.0
    %6735 = vmatpush2.msra.mxu0 0.0
    %6736 = vmatprep.subr.mxu0 0.0
    %6737 = vmatpush2.msra.mxu0 0.0
    %6738 = vmatprep.subr.mxu0 0.0
    %6739 = vmatpush2.msra.mxu0 0.0
    %6740 = vmatprep.subr.mxu0 0.0
    %6741 = vmatpush2.msra.mxu0 0.0
    %6742 = vmatprep.subr.mxu0 0.0
    %6743 = vmatpush2.msra.mxu0 0.0
    %6744 = vmatprep.subr.mxu0 0.0
    %6745 = vmatpush2.msra.mxu0 0.0
    %6746 = vmatprep.subr.mxu0 0.0
    %6747 = vmatpush2.msra.mxu0 0.0
    %6748 = vmatprep.subr.mxu0 0.0
    %6749 = vmatpush2.msra.mxu0 0.0
    %6750 = vmatprep.mubr.f32.mxu0 0.0
    %v6751 = vand.u32 %v6603, 4294901760
    %6752 = vmatmul.mubr.f32.gmra.mxu0 %v6751
    %v6753 = vpop.f32.mrf.mxu0
    %v6754 = vadd.f32 %v6678, %v6753
    %v6755 = vpop.f32.mrf.mxu0
    %6756 = vdwg.mxu0
    %6757 = vmatprep.subr.mxu0 0.0
    %6758 = vmatpush1.msra.mxu0 0.0
    %6759 = vmatprep.subr.mxu0 0.0
    %6760 = vmatpush1.msra.mxu0 0.0
    %6761 = vmatprep.subr.mxu0 0.0
    %6762 = vmatpush1.msra.mxu0 0.0
    %6763 = vmatprep.subr.mxu0 0.0
    %6764 = vmatpush1.msra.mxu0 0.0
    %6765 = vmatprep.subr.mxu0 0.0
    %6766 = vmatpush1.msra.mxu0 0.0
    %6767 = vmatprep.subr.mxu0 0.0
    %6768 = vmatpush1.msra.mxu0 0.0
    %6769 = vmatprep.subr.mxu0 0.0
    %6770 = vmatpush1.msra.mxu0 0.0
    %6771 = vmatprep.subr.mxu0 0.0
    %6772 = vmatpush1.msra.mxu0 0.0
    %6773 = vmatprep.subr.mxu0 0.0
    %6774 = vmatpush1.msra.mxu0 0.0
    %6775 = vmatprep.subr.mxu0 0.0
    %6776 = vmatpush1.msra.mxu0 0.0
    %6777 = vmatprep.subr.mxu0 0.0
    %6778 = vmatpush1.msra.mxu0 0.0
    %6779 = vmatprep.subr.mxu0 0.0
    %6780 = vmatpush1.msra.mxu0 0.0
    %6781 = vmatprep.subr.mxu0 0.0
    %6782 = vmatpush1.msra.mxu0 0.0
    %6783 = vmatprep.subr.mxu0 0.0
    %6784 = vmatpush1.msra.mxu0 0.0
    %6785 = vmatprep.subr.mxu0 0.0
    %6786 = vmatpush1.msra.mxu0 0.0
    %6787 = vmatprep.subr.mxu0 0.0
    %v6788 = vand.u32 %v6600, 4294901760
    %v6789 = vsub.f32 %v6600, %v6788
    %6790 = vmatpush1.msra.mxu0 %v6789
    %6791 = vmatprep.subr.mxu0 0.0
    %6792 = vmatpush2.msra.mxu0 0.0
    %6793 = vmatprep.subr.mxu0 0.0
    %6794 = vmatpush2.msra.mxu0 0.0
    %6795 = vmatprep.subr.mxu0 0.0
    %6796 = vmatpush2.msra.mxu0 0.0
    %6797 = vmatprep.subr.mxu0 0.0
    %6798 = vmatpush2.msra.mxu0 0.0
    %6799 = vmatprep.subr.mxu0 0.0
    %6800 = vmatpush2.msra.mxu0 0.0
    %6801 = vmatprep.subr.mxu0 0.0
    %6802 = vmatpush2.msra.mxu0 0.0
    %6803 = vmatprep.subr.mxu0 0.0
    %6804 = vmatpush2.msra.mxu0 0.0
    %6805 = vmatprep.subr.mxu0 0.0
    %6806 = vmatpush2.msra.mxu0 0.0
    %6807 = vmatprep.subr.mxu0 0.0
    %6808 = vmatpush2.msra.mxu0 0.0
    %6809 = vmatprep.subr.mxu0 0.0
    %6810 = vmatpush2.msra.mxu0 0.0
    %6811 = vmatprep.subr.mxu0 0.0
    %6812 = vmatpush2.msra.mxu0 0.0
    %6813 = vmatprep.subr.mxu0 0.0
    %6814 = vmatpush2.msra.mxu0 0.0
    %6815 = vmatprep.subr.mxu0 0.0
    %6816 = vmatpush2.msra.mxu0 0.0
    %6817 = vmatprep.subr.mxu0 0.0
    %6818 = vmatpush2.msra.mxu0 0.0
    %6819 = vmatprep.subr.mxu0 0.0
    %6820 = vmatpush2.msra.mxu0 0.0
    %6821 = vmatprep.subr.mxu0 0.0
    %6822 = vmatpush2.msra.mxu0 0.0
    %6823 = vmatprep.mubr.f32.mxu0 0.0
    %v6824 = vand.u32 %v6603, 4294901760
    %v6825 = vsub.f32 %v6603, %v6824
    %6826 = vmatmul.mubr.f32.gmra.mxu0 %v6825
    %v6827 = vpop.f32.mrf.mxu0
    %v6828 = vadd.f32 %v6754, %v6827
    %v6829 = vpop.f32.mrf.mxu0
    %6830 = vdwg.mxu0
    %6831 = vmatprep.subr.mxu0 0.0
    %6832 = vmatpush1.msra.mxu0 0.0
    %6833 = vmatprep.subr.mxu0 0.0
    %6834 = vmatpush1.msra.mxu0 0.0
    %6835 = vmatprep.subr.mxu0 0.0
    %6836 = vmatpush1.msra.mxu0 0.0
    %6837 = vmatprep.subr.mxu0 0.0
    %6838 = vmatpush1.msra.mxu0 0.0
    %6839 = vmatprep.subr.mxu0 0.0
    %6840 = vmatpush1.msra.mxu0 0.0
    %6841 = vmatprep.subr.mxu0 0.0
    %6842 = vmatpush1.msra.mxu0 0.0
    %6843 = vmatprep.subr.mxu0 0.0
    %6844 = vmatpush1.msra.mxu0 0.0
    %6845 = vmatprep.subr.mxu0 0.0
    %6846 = vmatpush1.msra.mxu0 0.0
    %6847 = vmatprep.subr.mxu0 0.0
    %6848 = vmatpush1.msra.mxu0 0.0
    %6849 = vmatprep.subr.mxu0 0.0
    %6850 = vmatpush1.msra.mxu0 0.0
    %6851 = vmatprep.subr.mxu0 0.0
    %6852 = vmatpush1.msra.mxu0 0.0
    %6853 = vmatprep.subr.mxu0 0.0
    %6854 = vmatpush1.msra.mxu0 0.0
    %6855 = vmatprep.subr.mxu0 0.0
    %6856 = vmatpush1.msra.mxu0 0.0
    %6857 = vmatprep.subr.mxu0 0.0
    %6858 = vmatpush1.msra.mxu0 0.0
    %6859 = vmatprep.subr.mxu0 0.0
    %6860 = vmatpush1.msra.mxu0 0.0
    %6861 = vmatprep.subr.mxu0 0.0
    %v6862 = vand.u32 %v6600, 4294901760
    %6863 = vmatpush1.msra.mxu0 %v6862
    %6864 = vmatprep.subr.mxu0 0.0
    %6865 = vmatpush2.msra.mxu0 0.0
    %6866 = vmatprep.subr.mxu0 0.0
    %6867 = vmatpush2.msra.mxu0 0.0
    %6868 = vmatprep.subr.mxu0 0.0
    %6869 = vmatpush2.msra.mxu0 0.0
    %6870 = vmatprep.subr.mxu0 0.0
    %6871 = vmatpush2.msra.mxu0 0.0
    %6872 = vmatprep.subr.mxu0 0.0
    %6873 = vmatpush2.msra.mxu0 0.0
    %6874 = vmatprep.subr.mxu0 0.0
    %6875 = vmatpush2.msra.mxu0 0.0
    %6876 = vmatprep.subr.mxu0 0.0
    %6877 = vmatpush2.msra.mxu0 0.0
    %6878 = vmatprep.subr.mxu0 0.0
    %6879 = vmatpush2.msra.mxu0 0.0
    %6880 = vmatprep.subr.mxu0 0.0
    %6881 = vmatpush2.msra.mxu0 0.0
    %6882 = vmatprep.subr.mxu0 0.0
    %6883 = vmatpush2.msra.mxu0 0.0
    %6884 = vmatprep.subr.mxu0 0.0
    %6885 = vmatpush2.msra.mxu0 0.0
    %6886 = vmatprep.subr.mxu0 0.0
    %6887 = vmatpush2.msra.mxu0 0.0
    %6888 = vmatprep.subr.mxu0 0.0
    %6889 = vmatpush2.msra.mxu0 0.0
    %6890 = vmatprep.subr.mxu0 0.0
    %6891 = vmatpush2.msra.mxu0 0.0
    %6892 = vmatprep.subr.mxu0 0.0
    %6893 = vmatpush2.msra.mxu0 0.0
    %6894 = vmatprep.subr.mxu0 0.0
    %6895 = vmatpush2.msra.mxu0 0.0
    %6896 = vmatprep.mubr.f32.mxu0 0.0
    %v6897 = vand.u32 %v6603, 4294901760
    %v6898 = vsub.f32 %v6603, %v6897
    %v6899 = vand.u32 %v6898, 4294901760
    %6900 = vmatmul.mubr.f32.gmra.mxu0 %v6899
    %v6901 = vpop.f32.mrf.mxu0
    %v6902 = vadd.f32 %v6828, %v6901
    %v6903 = vpop.f32.mrf.mxu0
    %6904 = vdwg.mxu0
    %6905 = vmatprep.subr.mxu0 0.0
    %6906 = vmatpush1.msra.mxu0 0.0
    %6907 = vmatprep.subr.mxu0 0.0
    %6908 = vmatpush1.msra.mxu0 0.0
    %6909 = vmatprep.subr.mxu0 0.0
    %6910 = vmatpush1.msra.mxu0 0.0
    %6911 = vmatprep.subr.mxu0 0.0
    %6912 = vmatpush1.msra.mxu0 0.0
    %6913 = vmatprep.subr.mxu0 0.0
    %6914 = vmatpush1.msra.mxu0 0.0
    %6915 = vmatprep.subr.mxu0 0.0
    %6916 = vmatpush1.msra.mxu0 0.0
    %6917 = vmatprep.subr.mxu0 0.0
    %6918 = vmatpush1.msra.mxu0 0.0
    %6919 = vmatprep.subr.mxu0 0.0
    %6920 = vmatpush1.msra.mxu0 0.0
    %6921 = vmatprep.subr.mxu0 0.0
    %6922 = vmatpush1.msra.mxu0 0.0
    %6923 = vmatprep.subr.mxu0 0.0
    %6924 = vmatpush1.msra.mxu0 0.0
    %6925 = vmatprep.subr.mxu0 0.0
    %6926 = vmatpush1.msra.mxu0 0.0
    %6927 = vmatprep.subr.mxu0 0.0
    %6928 = vmatpush1.msra.mxu0 0.0
    %6929 = vmatprep.subr.mxu0 0.0
    %6930 = vmatpush1.msra.mxu0 0.0
    %6931 = vmatprep.subr.mxu0 0.0
    %6932 = vmatpush1.msra.mxu0 0.0
    %6933 = vmatprep.subr.mxu0 0.0
    %6934 = vmatpush1.msra.mxu0 0.0
    %6935 = vmatprep.subr.mxu0 0.0
    %v6936 = vand.u32 %v6600, 4294901760
    %v6937 = vsub.f32 %v6600, %v6936
    %v6938 = vand.u32 %v6937, 4294901760
    %6939 = vmatpush1.msra.mxu0 %v6938
    %6940 = vmatprep.subr.mxu0 0.0
    %6941 = vmatpush2.msra.mxu0 0.0
    %6942 = vmatprep.subr.mxu0 0.0
    %6943 = vmatpush2.msra.mxu0 0.0
    %6944 = vmatprep.subr.mxu0 0.0
    %6945 = vmatpush2.msra.mxu0 0.0
    %6946 = vmatprep.subr.mxu0 0.0
    %6947 = vmatpush2.msra.mxu0 0.0
    %6948 = vmatprep.subr.mxu0 0.0
    %6949 = vmatpush2.msra.mxu0 0.0
    %6950 = vmatprep.subr.mxu0 0.0
    %6951 = vmatpush2.msra.mxu0 0.0
    %6952 = vmatprep.subr.mxu0 0.0
    %6953 = vmatpush2.msra.mxu0 0.0
    %6954 = vmatprep.subr.mxu0 0.0
    %6955 = vmatpush2.msra.mxu0 0.0
    %6956 = vmatprep.subr.mxu0 0.0
    %6957 = vmatpush2.msra.mxu0 0.0
    %6958 = vmatprep.subr.mxu0 0.0
    %6959 = vmatpush2.msra.mxu0 0.0
    %6960 = vmatprep.subr.mxu0 0.0
    %6961 = vmatpush2.msra.mxu0 0.0
    %6962 = vmatprep.subr.mxu0 0.0
    %6963 = vmatpush2.msra.mxu0 0.0
    %6964 = vmatprep.subr.mxu0 0.0
    %6965 = vmatpush2.msra.mxu0 0.0
    %6966 = vmatprep.subr.mxu0 0.0
    %6967 = vmatpush2.msra.mxu0 0.0
    %6968 = vmatprep.subr.mxu0 0.0
    %6969 = vmatpush2.msra.mxu0 0.0
    %6970 = vmatprep.subr.mxu0 0.0
    %6971 = vmatpush2.msra.mxu0 0.0
    %6972 = vmatprep.mubr.f32.mxu0 0.0
    %v6973 = vand.u32 %v6603, 4294901760
    %6974 = vmatmul.mubr.f32.gmra.mxu0 %v6973
    %v6975 = vpop.f32.mrf.mxu0
    %v6976 = vadd.f32 %v6902, %v6975
    %v6977 = vpop.f32.mrf.mxu0
    %6978 = vdwg.mxu0
    %6979 = vmatprep.subr.mxu0 0.0
    %6980 = vmatpush1.msra.mxu0 0.0
    %6981 = vmatprep.subr.mxu0 0.0
    %6982 = vmatpush1.msra.mxu0 0.0
    %6983 = vmatprep.subr.mxu0 0.0
    %6984 = vmatpush1.msra.mxu0 0.0
    %6985 = vmatprep.subr.mxu0 0.0
    %6986 = vmatpush1.msra.mxu0 0.0
    %6987 = vmatprep.subr.mxu0 0.0
    %6988 = vmatpush1.msra.mxu0 0.0
    %6989 = vmatprep.subr.mxu0 0.0
    %6990 = vmatpush1.msra.mxu0 0.0
    %6991 = vmatprep.subr.mxu0 0.0
    %6992 = vmatpush1.msra.mxu0 0.0
    %6993 = vmatprep.subr.mxu0 0.0
    %6994 = vmatpush1.msra.mxu0 0.0
    %6995 = vmatprep.subr.mxu0 0.0
    %6996 = vmatpush1.msra.mxu0 0.0
    %6997 = vmatprep.subr.mxu0 0.0
    %6998 = vmatpush1.msra.mxu0 0.0
    %6999 = vmatprep.subr.mxu0 0.0
    %7000 = vmatpush1.msra.mxu0 0.0
    %7001 = vmatprep.subr.mxu0 0.0
    %7002 = vmatpush1.msra.mxu0 0.0
    %7003 = vmatprep.subr.mxu0 0.0
    %7004 = vmatpush1.msra.mxu0 0.0
    %7005 = vmatprep.subr.mxu0 0.0
    %7006 = vmatpush1.msra.mxu0 0.0
    %7007 = vmatprep.subr.mxu0 0.0
    %7008 = vmatpush1.msra.mxu0 0.0
    %7009 = vmatprep.subr.mxu0 0.0
    %v7010 = vand.u32 %v6600, 4294901760
    %7011 = vmatpush1.msra.mxu0 %v7010
    %7012 = vmatprep.subr.mxu0 0.0
    %7013 = vmatpush2.msra.mxu0 0.0
    %7014 = vmatprep.subr.mxu0 0.0
    %7015 = vmatpush2.msra.mxu0 0.0
    %7016 = vmatprep.subr.mxu0 0.0
    %7017 = vmatpush2.msra.mxu0 0.0
    %7018 = vmatprep.subr.mxu0 0.0
    %7019 = vmatpush2.msra.mxu0 0.0
    %7020 = vmatprep.subr.mxu0 0.0
    %7021 = vmatpush2.msra.mxu0 0.0
    %7022 = vmatprep.subr.mxu0 0.0
    %7023 = vmatpush2.msra.mxu0 0.0
    %7024 = vmatprep.subr.mxu0 0.0
    %7025 = vmatpush2.msra.mxu0 0.0
    %7026 = vmatprep.subr.mxu0 0.0
    %7027 = vmatpush2.msra.mxu0 0.0
    %7028 = vmatprep.subr.mxu0 0.0
    %7029 = vmatpush2.msra.mxu0 0.0
    %7030 = vmatprep.subr.mxu0 0.0
    %7031 = vmatpush2.msra.mxu0 0.0
    %7032 = vmatprep.subr.mxu0 0.0
    %7033 = vmatpush2.msra.mxu0 0.0
    %7034 = vmatprep.subr.mxu0 0.0
    %7035 = vmatpush2.msra.mxu0 0.0
    %7036 = vmatprep.subr.mxu0 0.0
    %7037 = vmatpush2.msra.mxu0 0.0
    %7038 = vmatprep.subr.mxu0 0.0
    %7039 = vmatpush2.msra.mxu0 0.0
    %7040 = vmatprep.subr.mxu0 0.0
    %7041 = vmatpush2.msra.mxu0 0.0
    %7042 = vmatprep.subr.mxu0 0.0
    %7043 = vmatpush2.msra.mxu0 0.0
    %7044 = vmatprep.mubr.f32.mxu0 0.0
    %v7045 = vand.u32 %v6603, 4294901760
    %7046 = vmatmul.mubr.f32.gmra.mxu0 %v7045
    %v7047 = vpop.f32.mrf.mxu0
    %v7048 = vadd.f32 %v6976, %v7047
    %v7049 = vpop.f32.mrf.mxu0
    %7050 = vdwg.mxu0
    %7051 = vrot.lane.b32.xlu0 %v616, 64
    %v7052 = vpop.permute.xlu0 %7051
    %v7055 = vsel %vm621, %v4336, 0
    %7057 = vmatprep.subr.mxu0 0.0
    %7058 = vmatpush1.msra.mxu0 0.0
    %7059 = vmatprep.subr.mxu0 0.0
    %7060 = vmatpush1.msra.mxu0 0.0
    %7061 = vmatprep.subr.mxu0 0.0
    %7062 = vmatpush1.msra.mxu0 0.0
    %7063 = vmatprep.subr.mxu0 0.0
    %7064 = vmatpush1.msra.mxu0 0.0
    %7065 = vmatprep.subr.mxu0 0.0
    %7066 = vmatpush1.msra.mxu0 0.0
    %7067 = vmatprep.subr.mxu0 0.0
    %7068 = vmatpush1.msra.mxu0 0.0
    %7069 = vmatprep.subr.mxu0 0.0
    %7070 = vmatpush1.msra.mxu0 0.0
    %7071 = vmatprep.subr.mxu0 0.0
    %7072 = vmatpush1.msra.mxu0 0.0
    %7073 = vmatprep.subr.mxu0 0.0
    %7074 = vmatpush1.msra.mxu0 0.0
    %7075 = vmatprep.subr.mxu0 0.0
    %7076 = vmatpush1.msra.mxu0 0.0
    %7077 = vmatprep.subr.mxu0 0.0
    %7078 = vmatpush1.msra.mxu0 0.0
    %7079 = vmatprep.subr.mxu0 0.0
    %7080 = vmatpush1.msra.mxu0 0.0
    %7081 = vmatprep.subr.mxu0 0.0
    %7082 = vmatpush1.msra.mxu0 0.0
    %7083 = vmatprep.subr.mxu0 0.0
    %7084 = vmatpush1.msra.mxu0 0.0
    %7085 = vmatprep.subr.mxu0 0.0
    %7086 = vmatpush1.msra.mxu0 0.0
    %7087 = vmatprep.subr.mxu0 0.0
    %v7088 = vand.u32 %v7052, 4294901760
    %7089 = vmatpush1.msra.mxu0 %v7088
    %7090 = vmatprep.subr.mxu0 0.0
    %7091 = vmatpush2.msra.mxu0 0.0
    %7092 = vmatprep.subr.mxu0 0.0
    %7093 = vmatpush2.msra.mxu0 0.0
    %7094 = vmatprep.subr.mxu0 0.0
    %7095 = vmatpush2.msra.mxu0 0.0
    %7096 = vmatprep.subr.mxu0 0.0
    %7097 = vmatpush2.msra.mxu0 0.0
    %7098 = vmatprep.subr.mxu0 0.0
    %7099 = vmatpush2.msra.mxu0 0.0
    %7100 = vmatprep.subr.mxu0 0.0
    %7101 = vmatpush2.msra.mxu0 0.0
    %7102 = vmatprep.subr.mxu0 0.0
    %7103 = vmatpush2.msra.mxu0 0.0
    %7104 = vmatprep.subr.mxu0 0.0
    %7105 = vmatpush2.msra.mxu0 0.0
    %7106 = vmatprep.subr.mxu0 0.0
    %7107 = vmatpush2.msra.mxu0 0.0
    %7108 = vmatprep.subr.mxu0 0.0
    %7109 = vmatpush2.msra.mxu0 0.0
    %7110 = vmatprep.subr.mxu0 0.0
    %7111 = vmatpush2.msra.mxu0 0.0
    %7112 = vmatprep.subr.mxu0 0.0
    %7113 = vmatpush2.msra.mxu0 0.0
    %7114 = vmatprep.subr.mxu0 0.0
    %7115 = vmatpush2.msra.mxu0 0.0
    %7116 = vmatprep.subr.mxu0 0.0
    %7117 = vmatpush2.msra.mxu0 0.0
    %7118 = vmatprep.subr.mxu0 0.0
    %7119 = vmatpush2.msra.mxu0 0.0
    %7120 = vmatprep.subr.mxu0 0.0
    %7121 = vmatpush2.msra.mxu0 0.0
    %7122 = vmatprep.mubr.f32.mxu0 0.0
    %v7123 = vand.u32 %v7055, 4294901760
    %v7124 = vsub.f32 %v7055, %v7123
    %v7125 = vand.u32 %v7124, 4294901760
    %v7126 = vsub.f32 %v7124, %v7125
    %v7127 = vand.u32 %v7126, 4294901760
    %7128 = vmatmul.mubr.f32.gmra.mxu0 %v7127
    %v7129 = vpop.f32.mrf.mxu0
    %v7130 = vadd.f32 0.0, %v7129
    %v7131 = vpop.f32.mrf.mxu0
    %7132 = vdwg.mxu0
    %7133 = vmatprep.subr.mxu0 0.0
    %7134 = vmatpush1.msra.mxu0 0.0
    %7135 = vmatprep.subr.mxu0 0.0
    %7136 = vmatpush1.msra.mxu0 0.0
    %7137 = vmatprep.subr.mxu0 0.0
    %7138 = vmatpush1.msra.mxu0 0.0
    %7139 = vmatprep.subr.mxu0 0.0
    %7140 = vmatpush1.msra.mxu0 0.0
    %7141 = vmatprep.subr.mxu0 0.0
    %7142 = vmatpush1.msra.mxu0 0.0
    %7143 = vmatprep.subr.mxu0 0.0
    %7144 = vmatpush1.msra.mxu0 0.0
    %7145 = vmatprep.subr.mxu0 0.0
    %7146 = vmatpush1.msra.mxu0 0.0
    %7147 = vmatprep.subr.mxu0 0.0
    %7148 = vmatpush1.msra.mxu0 0.0
    %7149 = vmatprep.subr.mxu0 0.0
    %7150 = vmatpush1.msra.mxu0 0.0
    %7151 = vmatprep.subr.mxu0 0.0
    %7152 = vmatpush1.msra.mxu0 0.0
    %7153 = vmatprep.subr.mxu0 0.0
    %7154 = vmatpush1.msra.mxu0 0.0
    %7155 = vmatprep.subr.mxu0 0.0
    %7156 = vmatpush1.msra.mxu0 0.0
    %7157 = vmatprep.subr.mxu0 0.0
    %7158 = vmatpush1.msra.mxu0 0.0
    %7159 = vmatprep.subr.mxu0 0.0
    %7160 = vmatpush1.msra.mxu0 0.0
    %7161 = vmatprep.subr.mxu0 0.0
    %7162 = vmatpush1.msra.mxu0 0.0
    %7163 = vmatprep.subr.mxu0 0.0
    %v7164 = vand.u32 %v7052, 4294901760
    %v7165 = vsub.f32 %v7052, %v7164
    %v7166 = vand.u32 %v7165, 4294901760
    %v7167 = vsub.f32 %v7165, %v7166
    %v7168 = vand.u32 %v7167, 4294901760
    %7169 = vmatpush1.msra.mxu0 %v7168
    %7170 = vmatprep.subr.mxu0 0.0
    %7171 = vmatpush2.msra.mxu0 0.0
    %7172 = vmatprep.subr.mxu0 0.0
    %7173 = vmatpush2.msra.mxu0 0.0
    %7174 = vmatprep.subr.mxu0 0.0
    %7175 = vmatpush2.msra.mxu0 0.0
    %7176 = vmatprep.subr.mxu0 0.0
    %7177 = vmatpush2.msra.mxu0 0.0
    %7178 = vmatprep.subr.mxu0 0.0
    %7179 = vmatpush2.msra.mxu0 0.0
    %7180 = vmatprep.subr.mxu0 0.0
    %7181 = vmatpush2.msra.mxu0 0.0
    %7182 = vmatprep.subr.mxu0 0.0
    %7183 = vmatpush2.msra.mxu0 0.0
    %7184 = vmatprep.subr.mxu0 0.0
    %7185 = vmatpush2.msra.mxu0 0.0
    %7186 = vmatprep.subr.mxu0 0.0
    %7187 = vmatpush2.msra.mxu0 0.0
    %7188 = vmatprep.subr.mxu0 0.0
    %7189 = vmatpush2.msra.mxu0 0.0
    %7190 = vmatprep.subr.mxu0 0.0
    %7191 = vmatpush2.msra.mxu0 0.0
    %7192 = vmatprep.subr.mxu0 0.0
    %7193 = vmatpush2.msra.mxu0 0.0
    %7194 = vmatprep.subr.mxu0 0.0
    %7195 = vmatpush2.msra.mxu0 0.0
    %7196 = vmatprep.subr.mxu0 0.0
    %7197 = vmatpush2.msra.mxu0 0.0
    %7198 = vmatprep.subr.mxu0 0.0
    %7199 = vmatpush2.msra.mxu0 0.0
    %7200 = vmatprep.subr.mxu0 0.0
    %7201 = vmatpush2.msra.mxu0 0.0
    %7202 = vmatprep.mubr.f32.mxu0 0.0
    %v7203 = vand.u32 %v7055, 4294901760
    %7204 = vmatmul.mubr.f32.gmra.mxu0 %v7203
    %v7205 = vpop.f32.mrf.mxu0
    %v7206 = vadd.f32 %v7130, %v7205
    %v7207 = vpop.f32.mrf.mxu0
    %7208 = vdwg.mxu0
    %7209 = vmatprep.subr.mxu0 0.0
    %7210 = vmatpush1.msra.mxu0 0.0
    %7211 = vmatprep.subr.mxu0 0.0
    %7212 = vmatpush1.msra.mxu0 0.0
    %7213 = vmatprep.subr.mxu0 0.0
    %7214 = vmatpush1.msra.mxu0 0.0
    %7215 = vmatprep.subr.mxu0 0.0
    %7216 = vmatpush1.msra.mxu0 0.0
    %7217 = vmatprep.subr.mxu0 0.0
    %7218 = vmatpush1.msra.mxu0 0.0
    %7219 = vmatprep.subr.mxu0 0.0
    %7220 = vmatpush1.msra.mxu0 0.0
    %7221 = vmatprep.subr.mxu0 0.0
    %7222 = vmatpush1.msra.mxu0 0.0
    %7223 = vmatprep.subr.mxu0 0.0
    %7224 = vmatpush1.msra.mxu0 0.0
    %7225 = vmatprep.subr.mxu0 0.0
    %7226 = vmatpush1.msra.mxu0 0.0
    %7227 = vmatprep.subr.mxu0 0.0
    %7228 = vmatpush1.msra.mxu0 0.0
    %7229 = vmatprep.subr.mxu0 0.0
    %7230 = vmatpush1.msra.mxu0 0.0
    %7231 = vmatprep.subr.mxu0 0.0
    %7232 = vmatpush1.msra.mxu0 0.0
    %7233 = vmatprep.subr.mxu0 0.0
    %7234 = vmatpush1.msra.mxu0 0.0
    %7235 = vmatprep.subr.mxu0 0.0
    %7236 = vmatpush1.msra.mxu0 0.0
    %7237 = vmatprep.subr.mxu0 0.0
    %7238 = vmatpush1.msra.mxu0 0.0
    %7239 = vmatprep.subr.mxu0 0.0
    %v7240 = vand.u32 %v7052, 4294901760
    %v7241 = vsub.f32 %v7052, %v7240
    %7242 = vmatpush1.msra.mxu0 %v7241
    %7243 = vmatprep.subr.mxu0 0.0
    %7244 = vmatpush2.msra.mxu0 0.0
    %7245 = vmatprep.subr.mxu0 0.0
    %7246 = vmatpush2.msra.mxu0 0.0
    %7247 = vmatprep.subr.mxu0 0.0
    %7248 = vmatpush2.msra.mxu0 0.0
    %7249 = vmatprep.subr.mxu0 0.0
    %7250 = vmatpush2.msra.mxu0 0.0
    %7251 = vmatprep.subr.mxu0 0.0
    %7252 = vmatpush2.msra.mxu0 0.0
    %7253 = vmatprep.subr.mxu0 0.0
    %7254 = vmatpush2.msra.mxu0 0.0
    %7255 = vmatprep.subr.mxu0 0.0
    %7256 = vmatpush2.msra.mxu0 0.0
    %7257 = vmatprep.subr.mxu0 0.0
    %7258 = vmatpush2.msra.mxu0 0.0
    %7259 = vmatprep.subr.mxu0 0.0
    %7260 = vmatpush2.msra.mxu0 0.0
    %7261 = vmatprep.subr.mxu0 0.0
    %7262 = vmatpush2.msra.mxu0 0.0
    %7263 = vmatprep.subr.mxu0 0.0
    %7264 = vmatpush2.msra.mxu0 0.0
    %7265 = vmatprep.subr.mxu0 0.0
    %7266 = vmatpush2.msra.mxu0 0.0
    %7267 = vmatprep.subr.mxu0 0.0
    %7268 = vmatpush2.msra.mxu0 0.0
    %7269 = vmatprep.subr.mxu0 0.0
    %7270 = vmatpush2.msra.mxu0 0.0
    %7271 = vmatprep.subr.mxu0 0.0
    %7272 = vmatpush2.msra.mxu0 0.0
    %7273 = vmatprep.subr.mxu0 0.0
    %7274 = vmatpush2.msra.mxu0 0.0
    %7275 = vmatprep.mubr.f32.mxu0 0.0
    %v7276 = vand.u32 %v7055, 4294901760
    %v7277 = vsub.f32 %v7055, %v7276
    %7278 = vmatmul.mubr.f32.gmra.mxu0 %v7277
    %v7279 = vpop.f32.mrf.mxu0
    %v7280 = vadd.f32 %v7206, %v7279
    %v7281 = vpop.f32.mrf.mxu0
    %7282 = vdwg.mxu0
    %7283 = vmatprep.subr.mxu0 0.0
    %7284 = vmatpush1.msra.mxu0 0.0
    %7285 = vmatprep.subr.mxu0 0.0
    %7286 = vmatpush1.msra.mxu0 0.0
    %7287 = vmatprep.subr.mxu0 0.0
    %7288 = vmatpush1.msra.mxu0 0.0
    %7289 = vmatprep.subr.mxu0 0.0
    %7290 = vmatpush1.msra.mxu0 0.0
    %7291 = vmatprep.subr.mxu0 0.0
    %7292 = vmatpush1.msra.mxu0 0.0
    %7293 = vmatprep.subr.mxu0 0.0
    %7294 = vmatpush1.msra.mxu0 0.0
    %7295 = vmatprep.subr.mxu0 0.0
    %7296 = vmatpush1.msra.mxu0 0.0
    %7297 = vmatprep.subr.mxu0 0.0
    %7298 = vmatpush1.msra.mxu0 0.0
    %7299 = vmatprep.subr.mxu0 0.0
    %7300 = vmatpush1.msra.mxu0 0.0
    %7301 = vmatprep.subr.mxu0 0.0
    %7302 = vmatpush1.msra.mxu0 0.0
    %7303 = vmatprep.subr.mxu0 0.0
    %7304 = vmatpush1.msra.mxu0 0.0
    %7305 = vmatprep.subr.mxu0 0.0
    %7306 = vmatpush1.msra.mxu0 0.0
    %7307 = vmatprep.subr.mxu0 0.0
    %7308 = vmatpush1.msra.mxu0 0.0
    %7309 = vmatprep.subr.mxu0 0.0
    %7310 = vmatpush1.msra.mxu0 0.0
    %7311 = vmatprep.subr.mxu0 0.0
    %7312 = vmatpush1.msra.mxu0 0.0
    %7313 = vmatprep.subr.mxu0 0.0
    %v7314 = vand.u32 %v7052, 4294901760
    %7315 = vmatpush1.msra.mxu0 %v7314
    %7316 = vmatprep.subr.mxu0 0.0
    %7317 = vmatpush2.msra.mxu0 0.0
    %7318 = vmatprep.subr.mxu0 0.0
    %7319 = vmatpush2.msra.mxu0 0.0
    %7320 = vmatprep.subr.mxu0 0.0
    %7321 = vmatpush2.msra.mxu0 0.0
    %7322 = vmatprep.subr.mxu0 0.0
    %7323 = vmatpush2.msra.mxu0 0.0
    %7324 = vmatprep.subr.mxu0 0.0
    %7325 = vmatpush2.msra.mxu0 0.0
    %7326 = vmatprep.subr.mxu0 0.0
    %7327 = vmatpush2.msra.mxu0 0.0
    %7328 = vmatprep.subr.mxu0 0.0
    %7329 = vmatpush2.msra.mxu0 0.0
    %7330 = vmatprep.subr.mxu0 0.0
    %7331 = vmatpush2.msra.mxu0 0.0
    %7332 = vmatprep.subr.mxu0 0.0
    %7333 = vmatpush2.msra.mxu0 0.0
    %7334 = vmatprep.subr.mxu0 0.0
    %7335 = vmatpush2.msra.mxu0 0.0
    %7336 = vmatprep.subr.mxu0 0.0
    %7337 = vmatpush2.msra.mxu0 0.0
    %7338 = vmatprep.subr.mxu0 0.0
    %7339 = vmatpush2.msra.mxu0 0.0
    %7340 = vmatprep.subr.mxu0 0.0
    %7341 = vmatpush2.msra.mxu0 0.0
    %7342 = vmatprep.subr.mxu0 0.0
    %7343 = vmatpush2.msra.mxu0 0.0
    %7344 = vmatprep.subr.mxu0 0.0
    %7345 = vmatpush2.msra.mxu0 0.0
    %7346 = vmatprep.subr.mxu0 0.0
    %7347 = vmatpush2.msra.mxu0 0.0
    %7348 = vmatprep.mubr.f32.mxu0 0.0
    %v7349 = vand.u32 %v7055, 4294901760
    %v7350 = vsub.f32 %v7055, %v7349
    %v7351 = vand.u32 %v7350, 4294901760
    %7352 = vmatmul.mubr.f32.gmra.mxu0 %v7351
    %v7353 = vpop.f32.mrf.mxu0
    %v7354 = vadd.f32 %v7280, %v7353
    %v7355 = vpop.f32.mrf.mxu0
    %7356 = vdwg.mxu0
    %7357 = vmatprep.subr.mxu0 0.0
    %7358 = vmatpush1.msra.mxu0 0.0
    %7359 = vmatprep.subr.mxu0 0.0
    %7360 = vmatpush1.msra.mxu0 0.0
    %7361 = vmatprep.subr.mxu0 0.0
    %7362 = vmatpush1.msra.mxu0 0.0
    %7363 = vmatprep.subr.mxu0 0.0
    %7364 = vmatpush1.msra.mxu0 0.0
    %7365 = vmatprep.subr.mxu0 0.0
    %7366 = vmatpush1.msra.mxu0 0.0
    %7367 = vmatprep.subr.mxu0 0.0
    %7368 = vmatpush1.msra.mxu0 0.0
    %7369 = vmatprep.subr.mxu0 0.0
    %7370 = vmatpush1.msra.mxu0 0.0
    %7371 = vmatprep.subr.mxu0 0.0
    %7372 = vmatpush1.msra.mxu0 0.0
    %7373 = vmatprep.subr.mxu0 0.0
    %7374 = vmatpush1.msra.mxu0 0.0
    %7375 = vmatprep.subr.mxu0 0.0
    %7376 = vmatpush1.msra.mxu0 0.0
    %7377 = vmatprep.subr.mxu0 0.0
    %7378 = vmatpush1.msra.mxu0 0.0
    %7379 = vmatprep.subr.mxu0 0.0
    %7380 = vmatpush1.msra.mxu0 0.0
    %7381 = vmatprep.subr.mxu0 0.0
    %7382 = vmatpush1.msra.mxu0 0.0
    %7383 = vmatprep.subr.mxu0 0.0
    %7384 = vmatpush1.msra.mxu0 0.0
    %7385 = vmatprep.subr.mxu0 0.0
    %7386 = vmatpush1.msra.mxu0 0.0
    %7387 = vmatprep.subr.mxu0 0.0
    %v7388 = vand.u32 %v7052, 4294901760
    %v7389 = vsub.f32 %v7052, %v7388
    %v7390 = vand.u32 %v7389, 4294901760
    %7391 = vmatpush1.msra.mxu0 %v7390
    %7392 = vmatprep.subr.mxu0 0.0
    %7393 = vmatpush2.msra.mxu0 0.0
    %7394 = vmatprep.subr.mxu0 0.0
    %7395 = vmatpush2.msra.mxu0 0.0
    %7396 = vmatprep.subr.mxu0 0.0
    %7397 = vmatpush2.msra.mxu0 0.0
    %7398 = vmatprep.subr.mxu0 0.0
    %7399 = vmatpush2.msra.mxu0 0.0
    %7400 = vmatprep.subr.mxu0 0.0
    %7401 = vmatpush2.msra.mxu0 0.0
    %7402 = vmatprep.subr.mxu0 0.0
    %7403 = vmatpush2.msra.mxu0 0.0
    %7404 = vmatprep.subr.mxu0 0.0
    %7405 = vmatpush2.msra.mxu0 0.0
    %7406 = vmatprep.subr.mxu0 0.0
    %7407 = vmatpush2.msra.mxu0 0.0
    %7408 = vmatprep.subr.mxu0 0.0
    %7409 = vmatpush2.msra.mxu0 0.0
    %7410 = vmatprep.subr.mxu0 0.0
    %7411 = vmatpush2.msra.mxu0 0.0
    %7412 = vmatprep.subr.mxu0 0.0
    %7413 = vmatpush2.msra.mxu0 0.0
    %7414 = vmatprep.subr.mxu0 0.0
    %7415 = vmatpush2.msra.mxu0 0.0
    %7416 = vmatprep.subr.mxu0 0.0
    %7417 = vmatpush2.msra.mxu0 0.0
    %7418 = vmatprep.subr.mxu0 0.0
    %7419 = vmatpush2.msra.mxu0 0.0
    %7420 = vmatprep.subr.mxu0 0.0
    %7421 = vmatpush2.msra.mxu0 0.0
    %7422 = vmatprep.subr.mxu0 0.0
    %7423 = vmatpush2.msra.mxu0 0.0
    %7424 = vmatprep.mubr.f32.mxu0 0.0
    %v7425 = vand.u32 %v7055, 4294901760
    %7426 = vmatmul.mubr.f32.gmra.mxu0 %v7425
    %v7427 = vpop.f32.mrf.mxu0
    %v7428 = vadd.f32 %v7354, %v7427
    %v7429 = vpop.f32.mrf.mxu0
    %7430 = vdwg.mxu0
    %7431 = vmatprep.subr.mxu0 0.0
    %7432 = vmatpush1.msra.mxu0 0.0
    %7433 = vmatprep.subr.mxu0 0.0
    %7434 = vmatpush1.msra.mxu0 0.0
    %7435 = vmatprep.subr.mxu0 0.0
    %7436 = vmatpush1.msra.mxu0 0.0
    %7437 = vmatprep.subr.mxu0 0.0
    %7438 = vmatpush1.msra.mxu0 0.0
    %7439 = vmatprep.subr.mxu0 0.0
    %7440 = vmatpush1.msra.mxu0 0.0
    %7441 = vmatprep.subr.mxu0 0.0
    %7442 = vmatpush1.msra.mxu0 0.0
    %7443 = vmatprep.subr.mxu0 0.0
    %7444 = vmatpush1.msra.mxu0 0.0
    %7445 = vmatprep.subr.mxu0 0.0
    %7446 = vmatpush1.msra.mxu0 0.0
    %7447 = vmatprep.subr.mxu0 0.0
    %7448 = vmatpush1.msra.mxu0 0.0
    %7449 = vmatprep.subr.mxu0 0.0
    %7450 = vmatpush1.msra.mxu0 0.0
    %7451 = vmatprep.subr.mxu0 0.0
    %7452 = vmatpush1.msra.mxu0 0.0
    %7453 = vmatprep.subr.mxu0 0.0
    %7454 = vmatpush1.msra.mxu0 0.0
    %7455 = vmatprep.subr.mxu0 0.0
    %7456 = vmatpush1.msra.mxu0 0.0
    %7457 = vmatprep.subr.mxu0 0.0
    %7458 = vmatpush1.msra.mxu0 0.0
    %7459 = vmatprep.subr.mxu0 0.0
    %7460 = vmatpush1.msra.mxu0 0.0
    %7461 = vmatprep.subr.mxu0 0.0
    %v7462 = vand.u32 %v7052, 4294901760
    %7463 = vmatpush1.msra.mxu0 %v7462
    %7464 = vmatprep.subr.mxu0 0.0
    %7465 = vmatpush2.msra.mxu0 0.0
    %7466 = vmatprep.subr.mxu0 0.0
    %7467 = vmatpush2.msra.mxu0 0.0
    %7468 = vmatprep.subr.mxu0 0.0
    %7469 = vmatpush2.msra.mxu0 0.0
    %7470 = vmatprep.subr.mxu0 0.0
    %7471 = vmatpush2.msra.mxu0 0.0
    %7472 = vmatprep.subr.mxu0 0.0
    %7473 = vmatpush2.msra.mxu0 0.0
    %7474 = vmatprep.subr.mxu0 0.0
    %7475 = vmatpush2.msra.mxu0 0.0
    %7476 = vmatprep.subr.mxu0 0.0
    %7477 = vmatpush2.msra.mxu0 0.0
    %7478 = vmatprep.subr.mxu0 0.0
    %7479 = vmatpush2.msra.mxu0 0.0
    %7480 = vmatprep.subr.mxu0 0.0
    %7481 = vmatpush2.msra.mxu0 0.0
    %7482 = vmatprep.subr.mxu0 0.0
    %7483 = vmatpush2.msra.mxu0 0.0
    %7484 = vmatprep.subr.mxu0 0.0
    %7485 = vmatpush2.msra.mxu0 0.0
    %7486 = vmatprep.subr.mxu0 0.0
    %7487 = vmatpush2.msra.mxu0 0.0
    %7488 = vmatprep.subr.mxu0 0.0
    %7489 = vmatpush2.msra.mxu0 0.0
    %7490 = vmatprep.subr.mxu0 0.0
    %7491 = vmatpush2.msra.mxu0 0.0
    %7492 = vmatprep.subr.mxu0 0.0
    %7493 = vmatpush2.msra.mxu0 0.0
    %7494 = vmatprep.subr.mxu0 0.0
    %7495 = vmatpush2.msra.mxu0 0.0
    %7496 = vmatprep.mubr.f32.mxu0 0.0
    %v7497 = vand.u32 %v7055, 4294901760
    %7498 = vmatmul.mubr.f32.gmra.mxu0 %v7497
    %v7499 = vpop.f32.mrf.mxu0
    %v7500 = vadd.f32 %v7428, %v7499
    %v7501 = vpop.f32.mrf.mxu0
    %7502 = vdwg.mxu0
    %7503 = vrot.lane.b32.xlu0 %v618, 64
    %v7504 = vpop.permute.xlu0 %7503
    %v7507 = vsel %vm621, %v4338, 0
    %7509 = vmatprep.subr.mxu0 0.0
    %7510 = vmatpush1.msra.mxu0 0.0
    %7511 = vmatprep.subr.mxu0 0.0
    %7512 = vmatpush1.msra.mxu0 0.0
    %7513 = vmatprep.subr.mxu0 0.0
    %7514 = vmatpush1.msra.mxu0 0.0
    %7515 = vmatprep.subr.mxu0 0.0
    %7516 = vmatpush1.msra.mxu0 0.0
    %7517 = vmatprep.subr.mxu0 0.0
    %7518 = vmatpush1.msra.mxu0 0.0
    %7519 = vmatprep.subr.mxu0 0.0
    %7520 = vmatpush1.msra.mxu0 0.0
    %7521 = vmatprep.subr.mxu0 0.0
    %7522 = vmatpush1.msra.mxu0 0.0
    %7523 = vmatprep.subr.mxu0 0.0
    %7524 = vmatpush1.msra.mxu0 0.0
    %7525 = vmatprep.subr.mxu0 0.0
    %7526 = vmatpush1.msra.mxu0 0.0
    %7527 = vmatprep.subr.mxu0 0.0
    %7528 = vmatpush1.msra.mxu0 0.0
    %7529 = vmatprep.subr.mxu0 0.0
    %7530 = vmatpush1.msra.mxu0 0.0
    %7531 = vmatprep.subr.mxu0 0.0
    %7532 = vmatpush1.msra.mxu0 0.0
    %7533 = vmatprep.subr.mxu0 0.0
    %7534 = vmatpush1.msra.mxu0 0.0
    %7535 = vmatprep.subr.mxu0 0.0
    %7536 = vmatpush1.msra.mxu0 0.0
    %7537 = vmatprep.subr.mxu0 0.0
    %7538 = vmatpush1.msra.mxu0 0.0
    %7539 = vmatprep.subr.mxu0 0.0
    %v7540 = vand.u32 %v7504, 4294901760
    %7541 = vmatpush1.msra.mxu0 %v7540
    %7542 = vmatprep.subr.mxu0 0.0
    %7543 = vmatpush2.msra.mxu0 0.0
    %7544 = vmatprep.subr.mxu0 0.0
    %7545 = vmatpush2.msra.mxu0 0.0
    %7546 = vmatprep.subr.mxu0 0.0
    %7547 = vmatpush2.msra.mxu0 0.0
    %7548 = vmatprep.subr.mxu0 0.0
    %7549 = vmatpush2.msra.mxu0 0.0
    %7550 = vmatprep.subr.mxu0 0.0
    %7551 = vmatpush2.msra.mxu0 0.0
    %7552 = vmatprep.subr.mxu0 0.0
    %7553 = vmatpush2.msra.mxu0 0.0
    %7554 = vmatprep.subr.mxu0 0.0
    %7555 = vmatpush2.msra.mxu0 0.0
    %7556 = vmatprep.subr.mxu0 0.0
    %7557 = vmatpush2.msra.mxu0 0.0
    %7558 = vmatprep.subr.mxu0 0.0
    %7559 = vmatpush2.msra.mxu0 0.0
    %7560 = vmatprep.subr.mxu0 0.0
    %7561 = vmatpush2.msra.mxu0 0.0
    %7562 = vmatprep.subr.mxu0 0.0
    %7563 = vmatpush2.msra.mxu0 0.0
    %7564 = vmatprep.subr.mxu0 0.0
    %7565 = vmatpush2.msra.mxu0 0.0
    %7566 = vmatprep.subr.mxu0 0.0
    %7567 = vmatpush2.msra.mxu0 0.0
    %7568 = vmatprep.subr.mxu0 0.0
    %7569 = vmatpush2.msra.mxu0 0.0
    %7570 = vmatprep.subr.mxu0 0.0
    %7571 = vmatpush2.msra.mxu0 0.0
    %7572 = vmatprep.subr.mxu0 0.0
    %7573 = vmatpush2.msra.mxu0 0.0
    %7574 = vmatprep.mubr.f32.mxu0 0.0
    %v7575 = vand.u32 %v7507, 4294901760
    %v7576 = vsub.f32 %v7507, %v7575
    %v7577 = vand.u32 %v7576, 4294901760
    %v7578 = vsub.f32 %v7576, %v7577
    %v7579 = vand.u32 %v7578, 4294901760
    %7580 = vmatmul.mubr.f32.gmra.mxu0 %v7579
    %v7581 = vpop.f32.mrf.mxu0
    %v7582 = vadd.f32 0.0, %v7581
    %v7583 = vpop.f32.mrf.mxu0
    %7584 = vdwg.mxu0
    %7585 = vmatprep.subr.mxu0 0.0
    %7586 = vmatpush1.msra.mxu0 0.0
    %7587 = vmatprep.subr.mxu0 0.0
    %7588 = vmatpush1.msra.mxu0 0.0
    %7589 = vmatprep.subr.mxu0 0.0
    %7590 = vmatpush1.msra.mxu0 0.0
    %7591 = vmatprep.subr.mxu0 0.0
    %7592 = vmatpush1.msra.mxu0 0.0
    %7593 = vmatprep.subr.mxu0 0.0
    %7594 = vmatpush1.msra.mxu0 0.0
    %7595 = vmatprep.subr.mxu0 0.0
    %7596 = vmatpush1.msra.mxu0 0.0
    %7597 = vmatprep.subr.mxu0 0.0
    %7598 = vmatpush1.msra.mxu0 0.0
    %7599 = vmatprep.subr.mxu0 0.0
    %7600 = vmatpush1.msra.mxu0 0.0
    %7601 = vmatprep.subr.mxu0 0.0
    %7602 = vmatpush1.msra.mxu0 0.0
    %7603 = vmatprep.subr.mxu0 0.0
    %7604 = vmatpush1.msra.mxu0 0.0
    %7605 = vmatprep.subr.mxu0 0.0
    %7606 = vmatpush1.msra.mxu0 0.0
    %7607 = vmatprep.subr.mxu0 0.0
    %7608 = vmatpush1.msra.mxu0 0.0
    %7609 = vmatprep.subr.mxu0 0.0
    %7610 = vmatpush1.msra.mxu0 0.0
    %7611 = vmatprep.subr.mxu0 0.0
    %7612 = vmatpush1.msra.mxu0 0.0
    %7613 = vmatprep.subr.mxu0 0.0
    %7614 = vmatpush1.msra.mxu0 0.0
    %7615 = vmatprep.subr.mxu0 0.0
    %v7616 = vand.u32 %v7504, 4294901760
    %v7617 = vsub.f32 %v7504, %v7616
    %v7618 = vand.u32 %v7617, 4294901760
    %v7619 = vsub.f32 %v7617, %v7618
    %v7620 = vand.u32 %v7619, 4294901760
    %7621 = vmatpush1.msra.mxu0 %v7620
    %7622 = vmatprep.subr.mxu0 0.0
    %7623 = vmatpush2.msra.mxu0 0.0
    %7624 = vmatprep.subr.mxu0 0.0
    %7625 = vmatpush2.msra.mxu0 0.0
    %7626 = vmatprep.subr.mxu0 0.0
    %7627 = vmatpush2.msra.mxu0 0.0
    %7628 = vmatprep.subr.mxu0 0.0
    %7629 = vmatpush2.msra.mxu0 0.0
    %7630 = vmatprep.subr.mxu0 0.0
    %7631 = vmatpush2.msra.mxu0 0.0
    %7632 = vmatprep.subr.mxu0 0.0
    %7633 = vmatpush2.msra.mxu0 0.0
    %7634 = vmatprep.subr.mxu0 0.0
    %7635 = vmatpush2.msra.mxu0 0.0
    %7636 = vmatprep.subr.mxu0 0.0
    %7637 = vmatpush2.msra.mxu0 0.0
    %7638 = vmatprep.subr.mxu0 0.0
    %7639 = vmatpush2.msra.mxu0 0.0
    %7640 = vmatprep.subr.mxu0 0.0
    %7641 = vmatpush2.msra.mxu0 0.0
    %7642 = vmatprep.subr.mxu0 0.0
    %7643 = vmatpush2.msra.mxu0 0.0
    %7644 = vmatprep.subr.mxu0 0.0
    %7645 = vmatpush2.msra.mxu0 0.0
    %7646 = vmatprep.subr.mxu0 0.0
    %7647 = vmatpush2.msra.mxu0 0.0
    %7648 = vmatprep.subr.mxu0 0.0
    %7649 = vmatpush2.msra.mxu0 0.0
    %7650 = vmatprep.subr.mxu0 0.0
    %7651 = vmatpush2.msra.mxu0 0.0
    %7652 = vmatprep.subr.mxu0 0.0
    %7653 = vmatpush2.msra.mxu0 0.0
    %7654 = vmatprep.mubr.f32.mxu0 0.0
    %v7655 = vand.u32 %v7507, 4294901760
    %7656 = vmatmul.mubr.f32.gmra.mxu0 %v7655
    %v7657 = vpop.f32.mrf.mxu0
    %v7658 = vadd.f32 %v7582, %v7657
    %v7659 = vpop.f32.mrf.mxu0
    %7660 = vdwg.mxu0
    %7661 = vmatprep.subr.mxu0 0.0
    %7662 = vmatpush1.msra.mxu0 0.0
    %7663 = vmatprep.subr.mxu0 0.0
    %7664 = vmatpush1.msra.mxu0 0.0
    %7665 = vmatprep.subr.mxu0 0.0
    %7666 = vmatpush1.msra.mxu0 0.0
    %7667 = vmatprep.subr.mxu0 0.0
    %7668 = vmatpush1.msra.mxu0 0.0
    %7669 = vmatprep.subr.mxu0 0.0
    %7670 = vmatpush1.msra.mxu0 0.0
    %7671 = vmatprep.subr.mxu0 0.0
    %7672 = vmatpush1.msra.mxu0 0.0
    %7673 = vmatprep.subr.mxu0 0.0
    %7674 = vmatpush1.msra.mxu0 0.0
    %7675 = vmatprep.subr.mxu0 0.0
    %7676 = vmatpush1.msra.mxu0 0.0
    %7677 = vmatprep.subr.mxu0 0.0
    %7678 = vmatpush1.msra.mxu0 0.0
    %7679 = vmatprep.subr.mxu0 0.0
    %7680 = vmatpush1.msra.mxu0 0.0
    %7681 = vmatprep.subr.mxu0 0.0
    %7682 = vmatpush1.msra.mxu0 0.0
    %7683 = vmatprep.subr.mxu0 0.0
    %7684 = vmatpush1.msra.mxu0 0.0
    %7685 = vmatprep.subr.mxu0 0.0
    %7686 = vmatpush1.msra.mxu0 0.0
    %7687 = vmatprep.subr.mxu0 0.0
    %7688 = vmatpush1.msra.mxu0 0.0
    %7689 = vmatprep.subr.mxu0 0.0
    %7690 = vmatpush1.msra.mxu0 0.0
    %7691 = vmatprep.subr.mxu0 0.0
    %v7692 = vand.u32 %v7504, 4294901760
    %v7693 = vsub.f32 %v7504, %v7692
    %7694 = vmatpush1.msra.mxu0 %v7693
    %7695 = vmatprep.subr.mxu0 0.0
    %7696 = vmatpush2.msra.mxu0 0.0
    %7697 = vmatprep.subr.mxu0 0.0
    %7698 = vmatpush2.msra.mxu0 0.0
    %7699 = vmatprep.subr.mxu0 0.0
    %7700 = vmatpush2.msra.mxu0 0.0
    %7701 = vmatprep.subr.mxu0 0.0
    %7702 = vmatpush2.msra.mxu0 0.0
    %7703 = vmatprep.subr.mxu0 0.0
    %7704 = vmatpush2.msra.mxu0 0.0
    %7705 = vmatprep.subr.mxu0 0.0
    %7706 = vmatpush2.msra.mxu0 0.0
    %7707 = vmatprep.subr.mxu0 0.0
    %7708 = vmatpush2.msra.mxu0 0.0
    %7709 = vmatprep.subr.mxu0 0.0
    %7710 = vmatpush2.msra.mxu0 0.0
    %7711 = vmatprep.subr.mxu0 0.0
    %7712 = vmatpush2.msra.mxu0 0.0
    %7713 = vmatprep.subr.mxu0 0.0
    %7714 = vmatpush2.msra.mxu0 0.0
    %7715 = vmatprep.subr.mxu0 0.0
    %7716 = vmatpush2.msra.mxu0 0.0
    %7717 = vmatprep.subr.mxu0 0.0
    %7718 = vmatpush2.msra.mxu0 0.0
    %7719 = vmatprep.subr.mxu0 0.0
    %7720 = vmatpush2.msra.mxu0 0.0
    %7721 = vmatprep.subr.mxu0 0.0
    %7722 = vmatpush2.msra.mxu0 0.0
    %7723 = vmatprep.subr.mxu0 0.0
    %7724 = vmatpush2.msra.mxu0 0.0
    %7725 = vmatprep.subr.mxu0 0.0
    %7726 = vmatpush2.msra.mxu0 0.0
    %7727 = vmatprep.mubr.f32.mxu0 0.0
    %v7728 = vand.u32 %v7507, 4294901760
    %v7729 = vsub.f32 %v7507, %v7728
    %7730 = vmatmul.mubr.f32.gmra.mxu0 %v7729
    %v7731 = vpop.f32.mrf.mxu0
    %v7732 = vadd.f32 %v7658, %v7731
    %v7733 = vpop.f32.mrf.mxu0
    %7734 = vdwg.mxu0
    %7735 = vmatprep.subr.mxu0 0.0
    %7736 = vmatpush1.msra.mxu0 0.0
    %7737 = vmatprep.subr.mxu0 0.0
    %7738 = vmatpush1.msra.mxu0 0.0
    %7739 = vmatprep.subr.mxu0 0.0
    %7740 = vmatpush1.msra.mxu0 0.0
    %7741 = vmatprep.subr.mxu0 0.0
    %7742 = vmatpush1.msra.mxu0 0.0
    %7743 = vmatprep.subr.mxu0 0.0
    %7744 = vmatpush1.msra.mxu0 0.0
    %7745 = vmatprep.subr.mxu0 0.0
    %7746 = vmatpush1.msra.mxu0 0.0
    %7747 = vmatprep.subr.mxu0 0.0
    %7748 = vmatpush1.msra.mxu0 0.0
    %7749 = vmatprep.subr.mxu0 0.0
    %7750 = vmatpush1.msra.mxu0 0.0
    %7751 = vmatprep.subr.mxu0 0.0
    %7752 = vmatpush1.msra.mxu0 0.0
    %7753 = vmatprep.subr.mxu0 0.0
    %7754 = vmatpush1.msra.mxu0 0.0
    %7755 = vmatprep.subr.mxu0 0.0
    %7756 = vmatpush1.msra.mxu0 0.0
    %7757 = vmatprep.subr.mxu0 0.0
    %7758 = vmatpush1.msra.mxu0 0.0
    %7759 = vmatprep.subr.mxu0 0.0
    %7760 = vmatpush1.msra.mxu0 0.0
    %7761 = vmatprep.subr.mxu0 0.0
    %7762 = vmatpush1.msra.mxu0 0.0
    %7763 = vmatprep.subr.mxu0 0.0
    %7764 = vmatpush1.msra.mxu0 0.0
    %7765 = vmatprep.subr.mxu0 0.0
    %v7766 = vand.u32 %v7504, 4294901760
    %7767 = vmatpush1.msra.mxu0 %v7766
    %7768 = vmatprep.subr.mxu0 0.0
    %7769 = vmatpush2.msra.mxu0 0.0
    %7770 = vmatprep.subr.mxu0 0.0
    %7771 = vmatpush2.msra.mxu0 0.0
    %7772 = vmatprep.subr.mxu0 0.0
    %7773 = vmatpush2.msra.mxu0 0.0
    %7774 = vmatprep.subr.mxu0 0.0
    %7775 = vmatpush2.msra.mxu0 0.0
    %7776 = vmatprep.subr.mxu0 0.0
    %7777 = vmatpush2.msra.mxu0 0.0
    %7778 = vmatprep.subr.mxu0 0.0
    %7779 = vmatpush2.msra.mxu0 0.0
    %7780 = vmatprep.subr.mxu0 0.0
    %7781 = vmatpush2.msra.mxu0 0.0
    %7782 = vmatprep.subr.mxu0 0.0
    %7783 = vmatpush2.msra.mxu0 0.0
    %7784 = vmatprep.subr.mxu0 0.0
    %7785 = vmatpush2.msra.mxu0 0.0
    %7786 = vmatprep.subr.mxu0 0.0
    %7787 = vmatpush2.msra.mxu0 0.0
    %7788 = vmatprep.subr.mxu0 0.0
    %7789 = vmatpush2.msra.mxu0 0.0
    %7790 = vmatprep.subr.mxu0 0.0
    %7791 = vmatpush2.msra.mxu0 0.0
    %7792 = vmatprep.subr.mxu0 0.0
    %7793 = vmatpush2.msra.mxu0 0.0
    %7794 = vmatprep.subr.mxu0 0.0
    %7795 = vmatpush2.msra.mxu0 0.0
    %7796 = vmatprep.subr.mxu0 0.0
    %7797 = vmatpush2.msra.mxu0 0.0
    %7798 = vmatprep.subr.mxu0 0.0
    %7799 = vmatpush2.msra.mxu0 0.0
    %7800 = vmatprep.mubr.f32.mxu0 0.0
    %v7801 = vand.u32 %v7507, 4294901760
    %v7802 = vsub.f32 %v7507, %v7801
    %v7803 = vand.u32 %v7802, 4294901760
    %7804 = vmatmul.mubr.f32.gmra.mxu0 %v7803
    %v7805 = vpop.f32.mrf.mxu0
    %v7806 = vadd.f32 %v7732, %v7805
    %v7807 = vpop.f32.mrf.mxu0
    %7808 = vdwg.mxu0
    %7809 = vmatprep.subr.mxu0 0.0
    %7810 = vmatpush1.msra.mxu0 0.0
    %7811 = vmatprep.subr.mxu0 0.0
    %7812 = vmatpush1.msra.mxu0 0.0
    %7813 = vmatprep.subr.mxu0 0.0
    %7814 = vmatpush1.msra.mxu0 0.0
    %7815 = vmatprep.subr.mxu0 0.0
    %7816 = vmatpush1.msra.mxu0 0.0
    %7817 = vmatprep.subr.mxu0 0.0
    %7818 = vmatpush1.msra.mxu0 0.0
    %7819 = vmatprep.subr.mxu0 0.0
    %7820 = vmatpush1.msra.mxu0 0.0
    %7821 = vmatprep.subr.mxu0 0.0
    %7822 = vmatpush1.msra.mxu0 0.0
    %7823 = vmatprep.subr.mxu0 0.0
    %7824 = vmatpush1.msra.mxu0 0.0
    %7825 = vmatprep.subr.mxu0 0.0
    %7826 = vmatpush1.msra.mxu0 0.0
    %7827 = vmatprep.subr.mxu0 0.0
    %7828 = vmatpush1.msra.mxu0 0.0
    %7829 = vmatprep.subr.mxu0 0.0
    %7830 = vmatpush1.msra.mxu0 0.0
    %7831 = vmatprep.subr.mxu0 0.0
    %7832 = vmatpush1.msra.mxu0 0.0
    %7833 = vmatprep.subr.mxu0 0.0
    %7834 = vmatpush1.msra.mxu0 0.0
    %7835 = vmatprep.subr.mxu0 0.0
    %7836 = vmatpush1.msra.mxu0 0.0
    %7837 = vmatprep.subr.mxu0 0.0
    %7838 = vmatpush1.msra.mxu0 0.0
    %7839 = vmatprep.subr.mxu0 0.0
    %v7840 = vand.u32 %v7504, 4294901760
    %v7841 = vsub.f32 %v7504, %v7840
    %v7842 = vand.u32 %v7841, 4294901760
    %7843 = vmatpush1.msra.mxu0 %v7842
    %7844 = vmatprep.subr.mxu0 0.0
    %7845 = vmatpush2.msra.mxu0 0.0
    %7846 = vmatprep.subr.mxu0 0.0
    %7847 = vmatpush2.msra.mxu0 0.0
    %7848 = vmatprep.subr.mxu0 0.0
    %7849 = vmatpush2.msra.mxu0 0.0
    %7850 = vmatprep.subr.mxu0 0.0
    %7851 = vmatpush2.msra.mxu0 0.0
    %7852 = vmatprep.subr.mxu0 0.0
    %7853 = vmatpush2.msra.mxu0 0.0
    %7854 = vmatprep.subr.mxu0 0.0
    %7855 = vmatpush2.msra.mxu0 0.0
    %7856 = vmatprep.subr.mxu0 0.0
    %7857 = vmatpush2.msra.mxu0 0.0
    %7858 = vmatprep.subr.mxu0 0.0
    %7859 = vmatpush2.msra.mxu0 0.0
    %7860 = vmatprep.subr.mxu0 0.0
    %7861 = vmatpush2.msra.mxu0 0.0
    %7862 = vmatprep.subr.mxu0 0.0
    %7863 = vmatpush2.msra.mxu0 0.0
    %7864 = vmatprep.subr.mxu0 0.0
    %7865 = vmatpush2.msra.mxu0 0.0
    %7866 = vmatprep.subr.mxu0 0.0
    %7867 = vmatpush2.msra.mxu0 0.0
    %7868 = vmatprep.subr.mxu0 0.0
    %7869 = vmatpush2.msra.mxu0 0.0
    %7870 = vmatprep.subr.mxu0 0.0
    %7871 = vmatpush2.msra.mxu0 0.0
    %7872 = vmatprep.subr.mxu0 0.0
    %7873 = vmatpush2.msra.mxu0 0.0
    %7874 = vmatprep.subr.mxu0 0.0
    %7875 = vmatpush2.msra.mxu0 0.0
    %7876 = vmatprep.mubr.f32.mxu0 0.0
    %v7877 = vand.u32 %v7507, 4294901760
    %7878 = vmatmul.mubr.f32.gmra.mxu0 %v7877
    %v7879 = vpop.f32.mrf.mxu0
    %v7880 = vadd.f32 %v7806, %v7879
    %v7881 = vpop.f32.mrf.mxu0
    %7882 = vdwg.mxu0
    %7883 = vmatprep.subr.mxu0 0.0
    %7884 = vmatpush1.msra.mxu0 0.0
    %7885 = vmatprep.subr.mxu0 0.0
    %7886 = vmatpush1.msra.mxu0 0.0
    %7887 = vmatprep.subr.mxu0 0.0
    %7888 = vmatpush1.msra.mxu0 0.0
    %7889 = vmatprep.subr.mxu0 0.0
    %7890 = vmatpush1.msra.mxu0 0.0
    %7891 = vmatprep.subr.mxu0 0.0
    %7892 = vmatpush1.msra.mxu0 0.0
    %7893 = vmatprep.subr.mxu0 0.0
    %7894 = vmatpush1.msra.mxu0 0.0
    %7895 = vmatprep.subr.mxu0 0.0
    %7896 = vmatpush1.msra.mxu0 0.0
    %7897 = vmatprep.subr.mxu0 0.0
    %7898 = vmatpush1.msra.mxu0 0.0
    %7899 = vmatprep.subr.mxu0 0.0
    %7900 = vmatpush1.msra.mxu0 0.0
    %7901 = vmatprep.subr.mxu0 0.0
    %7902 = vmatpush1.msra.mxu0 0.0
    %7903 = vmatprep.subr.mxu0 0.0
    %7904 = vmatpush1.msra.mxu0 0.0
    %7905 = vmatprep.subr.mxu0 0.0
    %7906 = vmatpush1.msra.mxu0 0.0
    %7907 = vmatprep.subr.mxu0 0.0
    %7908 = vmatpush1.msra.mxu0 0.0
    %7909 = vmatprep.subr.mxu0 0.0
    %7910 = vmatpush1.msra.mxu0 0.0
    %7911 = vmatprep.subr.mxu0 0.0
    %7912 = vmatpush1.msra.mxu0 0.0
    %7913 = vmatprep.subr.mxu0 0.0
    %v7914 = vand.u32 %v7504, 4294901760
    %7915 = vmatpush1.msra.mxu0 %v7914
    %7916 = vmatprep.subr.mxu0 0.0
    %7917 = vmatpush2.msra.mxu0 0.0
    %7918 = vmatprep.subr.mxu0 0.0
    %7919 = vmatpush2.msra.mxu0 0.0
    %7920 = vmatprep.subr.mxu0 0.0
    %7921 = vmatpush2.msra.mxu0 0.0
    %7922 = vmatprep.subr.mxu0 0.0
    %7923 = vmatpush2.msra.mxu0 0.0
    %7924 = vmatprep.subr.mxu0 0.0
    %7925 = vmatpush2.msra.mxu0 0.0
    %7926 = vmatprep.subr.mxu0 0.0
    %7927 = vmatpush2.msra.mxu0 0.0
    %7928 = vmatprep.subr.mxu0 0.0
    %7929 = vmatpush2.msra.mxu0 0.0
    %7930 = vmatprep.subr.mxu0 0.0
    %7931 = vmatpush2.msra.mxu0 0.0
    %7932 = vmatprep.subr.mxu0 0.0
    %7933 = vmatpush2.msra.mxu0 0.0
    %7934 = vmatprep.subr.mxu0 0.0
    %7935 = vmatpush2.msra.mxu0 0.0
    %7936 = vmatprep.subr.mxu0 0.0
    %7937 = vmatpush2.msra.mxu0 0.0
    %7938 = vmatprep.subr.mxu0 0.0
    %7939 = vmatpush2.msra.mxu0 0.0
    %7940 = vmatprep.subr.mxu0 0.0
    %7941 = vmatpush2.msra.mxu0 0.0
    %7942 = vmatprep.subr.mxu0 0.0
    %7943 = vmatpush2.msra.mxu0 0.0
    %7944 = vmatprep.subr.mxu0 0.0
    %7945 = vmatpush2.msra.mxu0 0.0
    %7946 = vmatprep.subr.mxu0 0.0
    %7947 = vmatpush2.msra.mxu0 0.0
    %7948 = vmatprep.mubr.f32.mxu0 0.0
    %v7949 = vand.u32 %v7507, 4294901760
    %7950 = vmatmul.mubr.f32.gmra.mxu0 %v7949
    %v7951 = vpop.f32.mrf.mxu0
    %v7952 = vadd.f32 %v7880, %v7951
    %v7953 = vpop.f32.mrf.mxu0
    %7954 = vdwg.mxu0
    %7957 = vrot.lane.b32.xlu0 %v5692, 8
    %v7958 = vpop.permute.xlu0 %7957
    %7959 = vrot.lane.b32.xlu0 %v6144, 8
    %v7960 = vpop.permute.xlu0 %7959
    %7965 = vrot.lane.b32.xlu0 %v6596, 16
    %v7966 = vpop.permute.xlu0 %7965
    %7967 = vrot.lane.b32.xlu0 %v7048, 16
    %v7968 = vpop.permute.xlu0 %7967
    %7973 = vrot.lane.b32.xlu0 %v7500, 24
    %v7974 = vpop.permute.xlu0 %7973
    %7975 = vrot.lane.b32.xlu0 %v7952, 24
    %v7976 = vpop.permute.xlu0 %7975
    %v7979 = vsel %vm621, %v4788, %v7958
    %v7980 = vsel %vm621, %v5240, %v7960
    %vm7981 = vcmask 130048
    %v7982 = vsel %vm7981, %v7979, %v7966
    %v7983 = vsel %vm7981, %v7980, %v7968
    %vm7984 = vcmask 195584
    %v7985 = vsel %vm7984, %v7982, %v7974
    %v7986 = vsel %vm7984, %v7983, %v7976
    %v7988 = vlaneseq
    %v7989 = vshrl.u32 %v7988, 7
    %v7990 = vsub.s32 0, %v7989
    %v7991 = vrot.slane %v69, %v7990
    %v7994 = vsel %vm70, %v7985, 0
    %v7997 = vsel %vm70, %v7986, 0
    %7999 = vmatprep.subr.mxu0 0.0
    %8000 = vmatpush1.msra.mxu0 0.0
    %8001 = vmatprep.subr.mxu0 0.0
    %8002 = vmatpush1.msra.mxu0 0.0
    %8003 = vmatprep.subr.mxu0 0.0
    %8004 = vmatpush1.msra.mxu0 0.0
    %8005 = vmatprep.subr.mxu0 0.0
    %8006 = vmatpush1.msra.mxu0 0.0
    %8007 = vmatprep.subr.mxu0 0.0
    %8008 = vmatpush1.msra.mxu0 0.0
    %8009 = vmatprep.subr.mxu0 0.0
    %8010 = vmatpush1.msra.mxu0 0.0
    %8011 = vmatprep.subr.mxu0 0.0
    %8012 = vmatpush1.msra.mxu0 0.0
    %8013 = vmatprep.subr.mxu0 0.0
    %8014 = vmatpush1.msra.mxu0 0.0
    %8015 = vmatprep.subr.mxu0 0.0
    %8016 = vmatpush1.msra.mxu0 0.0
    %8017 = vmatprep.subr.mxu0 0.0
    %8018 = vmatpush1.msra.mxu0 0.0
    %8019 = vmatprep.subr.mxu0 0.0
    %8020 = vmatpush1.msra.mxu0 0.0
    %8021 = vmatprep.subr.mxu0 0.0
    %8022 = vmatpush1.msra.mxu0 0.0
    %8023 = vmatprep.subr.mxu0 0.0
    %v8024 = vand.u32 %v68, 4294901760
    %8025 = vmatpush1.msra.mxu0 %v8024
    %8026 = vmatprep.subr.mxu0 0.0
    %v8027 = vand.u32 %v67, 4294901760
    %8028 = vmatpush1.msra.mxu0 %v8027
    %8029 = vmatprep.subr.mxu0 0.0
    %v8030 = vand.u32 %v66, 4294901760
    %8031 = vmatpush1.msra.mxu0 %v8030
    %8032 = vmatprep.subr.mxu0 0.0
    %v8033 = vand.u32 %v65, 4294901760
    %8034 = vmatpush1.msra.mxu0 %v8033
    %8035 = vmatprep.subr.mxu0 0.0
    %8036 = vmatpush2.msra.mxu0 0.0
    %8037 = vmatprep.subr.mxu0 0.0
    %8038 = vmatpush2.msra.mxu0 0.0
    %8039 = vmatprep.subr.mxu0 0.0
    %8040 = vmatpush2.msra.mxu0 0.0
    %8041 = vmatprep.subr.mxu0 0.0
    %8042 = vmatpush2.msra.mxu0 0.0
    %8043 = vmatprep.subr.mxu0 0.0
    %8044 = vmatpush2.msra.mxu0 0.0
    %8045 = vmatprep.subr.mxu0 0.0
    %8046 = vmatpush2.msra.mxu0 0.0
    %8047 = vmatprep.subr.mxu0 0.0
    %8048 = vmatpush2.msra.mxu0 0.0
    %8049 = vmatprep.subr.mxu0 0.0
    %8050 = vmatpush2.msra.mxu0 0.0
    %8051 = vmatprep.subr.mxu0 0.0
    %8052 = vmatpush2.msra.mxu0 0.0
    %8053 = vmatprep.subr.mxu0 0.0
    %8054 = vmatpush2.msra.mxu0 0.0
    %8055 = vmatprep.subr.mxu0 0.0
    %8056 = vmatpush2.msra.mxu0 0.0
    %8057 = vmatprep.subr.mxu0 0.0
    %8058 = vmatpush2.msra.mxu0 0.0
    %8059 = vmatprep.subr.mxu0 0.0
    %8060 = vmatpush2.msra.mxu0 0.0
    %8061 = vmatprep.subr.mxu0 0.0
    %8062 = vmatpush2.msra.mxu0 0.0
    %8063 = vmatprep.subr.mxu0 0.0
    %8064 = vmatpush2.msra.mxu0 0.0
    %8065 = vmatprep.subr.mxu0 0.0
    %8066 = vmatpush2.msra.mxu0 0.0
    %8067 = vmatprep.mubr.f32.mxu0 0.0
    %v8068 = vand.u32 %v7994, 4294901760
    %v8069 = vsub.f32 %v7994, %v8068
    %v8070 = vand.u32 %v8069, 4294901760
    %v8071 = vsub.f32 %v8069, %v8070
    %v8072 = vand.u32 %v8071, 4294901760
    %8073 = vmatmul.mubr.f32.gmra.mxu0 %v8072
    %v8074 = vpop.f32.mrf.mxu0
    %v8075 = vadd.f32 %v7991, %v8074
    %v8076 = vpop.f32.mrf.mxu0
    %8077 = vmatprep.mubr.f32.mxu0 0.0
    %v8078 = vand.u32 %v7997, 4294901760
    %v8079 = vsub.f32 %v7997, %v8078
    %v8080 = vand.u32 %v8079, 4294901760
    %v8081 = vsub.f32 %v8079, %v8080
    %v8082 = vand.u32 %v8081, 4294901760
    %8083 = vmatmul.mubr.f32.gmra.mxu0 %v8082
    %v8084 = vpop.f32.mrf.mxu0
    %v8085 = vadd.f32 %v7991, %v8084
    %v8086 = vpop.f32.mrf.mxu0
    %8087 = vdwg.mxu0
    %8088 = vmatprep.subr.mxu0 0.0
    %8089 = vmatpush1.msra.mxu0 0.0
    %8090 = vmatprep.subr.mxu0 0.0
    %8091 = vmatpush1.msra.mxu0 0.0
    %8092 = vmatprep.subr.mxu0 0.0
    %8093 = vmatpush1.msra.mxu0 0.0
    %8094 = vmatprep.subr.mxu0 0.0
    %8095 = vmatpush1.msra.mxu0 0.0
    %8096 = vmatprep.subr.mxu0 0.0
    %8097 = vmatpush1.msra.mxu0 0.0
    %8098 = vmatprep.subr.mxu0 0.0
    %8099 = vmatpush1.msra.mxu0 0.0
    %8100 = vmatprep.subr.mxu0 0.0
    %8101 = vmatpush1.msra.mxu0 0.0
    %8102 = vmatprep.subr.mxu0 0.0
    %8103 = vmatpush1.msra.mxu0 0.0
    %8104 = vmatprep.subr.mxu0 0.0
    %8105 = vmatpush1.msra.mxu0 0.0
    %8106 = vmatprep.subr.mxu0 0.0
    %8107 = vmatpush1.msra.mxu0 0.0
    %8108 = vmatprep.subr.mxu0 0.0
    %8109 = vmatpush1.msra.mxu0 0.0
    %8110 = vmatprep.subr.mxu0 0.0
    %8111 = vmatpush1.msra.mxu0 0.0
    %8112 = vmatprep.subr.mxu0 0.0
    %v8113 = vand.u32 %v68, 4294901760
    %v8114 = vsub.f32 %v68, %v8113
    %v8115 = vand.u32 %v8114, 4294901760
    %v8116 = vsub.f32 %v8114, %v8115
    %v8117 = vand.u32 %v8116, 4294901760
    %8118 = vmatpush1.msra.mxu0 %v8117
    %8119 = vmatprep.subr.mxu0 0.0
    %v8120 = vand.u32 %v67, 4294901760
    %v8121 = vsub.f32 %v67, %v8120
    %v8122 = vand.u32 %v8121, 4294901760
    %v8123 = vsub.f32 %v8121, %v8122
    %v8124 = vand.u32 %v8123, 4294901760
    %8125 = vmatpush1.msra.mxu0 %v8124
    %8126 = vmatprep.subr.mxu0 0.0
    %v8127 = vand.u32 %v66, 4294901760
    %v8128 = vsub.f32 %v66, %v8127
    %v8129 = vand.u32 %v8128, 4294901760
    %v8130 = vsub.f32 %v8128, %v8129
    %v8131 = vand.u32 %v8130, 4294901760
    %8132 = vmatpush1.msra.mxu0 %v8131
    %8133 = vmatprep.subr.mxu0 0.0
    %v8134 = vand.u32 %v65, 4294901760
    %v8135 = vsub.f32 %v65, %v8134
    %v8136 = vand.u32 %v8135, 4294901760
    %v8137 = vsub.f32 %v8135, %v8136
    %v8138 = vand.u32 %v8137, 4294901760
    %8139 = vmatpush1.msra.mxu0 %v8138
    %8140 = vmatprep.subr.mxu0 0.0
    %8141 = vmatpush2.msra.mxu0 0.0
    %8142 = vmatprep.subr.mxu0 0.0
    %8143 = vmatpush2.msra.mxu0 0.0
    %8144 = vmatprep.subr.mxu0 0.0
    %8145 = vmatpush2.msra.mxu0 0.0
    %8146 = vmatprep.subr.mxu0 0.0
    %8147 = vmatpush2.msra.mxu0 0.0
    %8148 = vmatprep.subr.mxu0 0.0
    %8149 = vmatpush2.msra.mxu0 0.0
    %8150 = vmatprep.subr.mxu0 0.0
    %8151 = vmatpush2.msra.mxu0 0.0
    %8152 = vmatprep.subr.mxu0 0.0
    %8153 = vmatpush2.msra.mxu0 0.0
    %8154 = vmatprep.subr.mxu0 0.0
    %8155 = vmatpush2.msra.mxu0 0.0
    %8156 = vmatprep.subr.mxu0 0.0
    %8157 = vmatpush2.msra.mxu0 0.0
    %8158 = vmatprep.subr.mxu0 0.0
    %8159 = vmatpush2.msra.mxu0 0.0
    %8160 = vmatprep.subr.mxu0 0.0
    %8161 = vmatpush2.msra.mxu0 0.0
    %8162 = vmatprep.subr.mxu0 0.0
    %8163 = vmatpush2.msra.mxu0 0.0
    %8164 = vmatprep.subr.mxu0 0.0
    %8165 = vmatpush2.msra.mxu0 0.0
    %8166 = vmatprep.subr.mxu0 0.0
    %8167 = vmatpush2.msra.mxu0 0.0
    %8168 = vmatprep.subr.mxu0 0.0
    %8169 = vmatpush2.msra.mxu0 0.0
    %8170 = vmatprep.subr.mxu0 0.0
    %8171 = vmatpush2.msra.mxu0 0.0
    %8172 = vmatprep.mubr.f32.mxu0 0.0
    %v8173 = vand.u32 %v7994, 4294901760
    %8174 = vmatmul.mubr.f32.gmra.mxu0 %v8173
    %v8175 = vpop.f32.mrf.mxu0
    %v8176 = vadd.f32 %v8075, %v8175
    %v8177 = vpop.f32.mrf.mxu0
    %8178 = vmatprep.mubr.f32.mxu0 0.0
    %v8179 = vand.u32 %v7997, 4294901760
    %8180 = vmatmul.mubr.f32.gmra.mxu0 %v8179
    %v8181 = vpop.f32.mrf.mxu0
    %v8182 = vadd.f32 %v8085, %v8181
    %v8183 = vpop.f32.mrf.mxu0
    %8184 = vdwg.mxu0
    %8185 = vmatprep.subr.mxu0 0.0
    %8186 = vmatpush1.msra.mxu0 0.0
    %8187 = vmatprep.subr.mxu0 0.0
    %8188 = vmatpush1.msra.mxu0 0.0
    %8189 = vmatprep.subr.mxu0 0.0
    %8190 = vmatpush1.msra.mxu0 0.0
    %8191 = vmatprep.subr.mxu0 0.0
    %8192 = vmatpush1.msra.mxu0 0.0
    %8193 = vmatprep.subr.mxu0 0.0
    %8194 = vmatpush1.msra.mxu0 0.0
    %8195 = vmatprep.subr.mxu0 0.0
    %8196 = vmatpush1.msra.mxu0 0.0
    %8197 = vmatprep.subr.mxu0 0.0
    %8198 = vmatpush1.msra.mxu0 0.0
    %8199 = vmatprep.subr.mxu0 0.0
    %8200 = vmatpush1.msra.mxu0 0.0
    %8201 = vmatprep.subr.mxu0 0.0
    %8202 = vmatpush1.msra.mxu0 0.0
    %8203 = vmatprep.subr.mxu0 0.0
    %8204 = vmatpush1.msra.mxu0 0.0
    %8205 = vmatprep.subr.mxu0 0.0
    %8206 = vmatpush1.msra.mxu0 0.0
    %8207 = vmatprep.subr.mxu0 0.0
    %8208 = vmatpush1.msra.mxu0 0.0
    %8209 = vmatprep.subr.mxu0 0.0
    %v8210 = vand.u32 %v68, 4294901760
    %v8211 = vsub.f32 %v68, %v8210
    %8212 = vmatpush1.msra.mxu0 %v8211
    %8213 = vmatprep.subr.mxu0 0.0
    %v8214 = vand.u32 %v67, 4294901760
    %v8215 = vsub.f32 %v67, %v8214
    %8216 = vmatpush1.msra.mxu0 %v8215
    %8217 = vmatprep.subr.mxu0 0.0
    %v8218 = vand.u32 %v66, 4294901760
    %v8219 = vsub.f32 %v66, %v8218
    %8220 = vmatpush1.msra.mxu0 %v8219
    %8221 = vmatprep.subr.mxu0 0.0
    %v8222 = vand.u32 %v65, 4294901760
    %v8223 = vsub.f32 %v65, %v8222
    %8224 = vmatpush1.msra.mxu0 %v8223
    %8225 = vmatprep.subr.mxu0 0.0
    %8226 = vmatpush2.msra.mxu0 0.0
    %8227 = vmatprep.subr.mxu0 0.0
    %8228 = vmatpush2.msra.mxu0 0.0
    %8229 = vmatprep.subr.mxu0 0.0
    %8230 = vmatpush2.msra.mxu0 0.0
    %8231 = vmatprep.subr.mxu0 0.0
    %8232 = vmatpush2.msra.mxu0 0.0
    %8233 = vmatprep.subr.mxu0 0.0
    %8234 = vmatpush2.msra.mxu0 0.0
    %8235 = vmatprep.subr.mxu0 0.0
    %8236 = vmatpush2.msra.mxu0 0.0
    %8237 = vmatprep.subr.mxu0 0.0
    %8238 = vmatpush2.msra.mxu0 0.0
    %8239 = vmatprep.subr.mxu0 0.0
    %8240 = vmatpush2.msra.mxu0 0.0
    %8241 = vmatprep.subr.mxu0 0.0
    %8242 = vmatpush2.msra.mxu0 0.0
    %8243 = vmatprep.subr.mxu0 0.0
    %8244 = vmatpush2.msra.mxu0 0.0
    %8245 = vmatprep.subr.mxu0 0.0
    %8246 = vmatpush2.msra.mxu0 0.0
    %8247 = vmatprep.subr.mxu0 0.0
    %8248 = vmatpush2.msra.mxu0 0.0
    %8249 = vmatprep.subr.mxu0 0.0
    %8250 = vmatpush2.msra.mxu0 0.0
    %8251 = vmatprep.subr.mxu0 0.0
    %8252 = vmatpush2.msra.mxu0 0.0
    %8253 = vmatprep.subr.mxu0 0.0
    %8254 = vmatpush2.msra.mxu0 0.0
    %8255 = vmatprep.subr.mxu0 0.0
    %8256 = vmatpush2.msra.mxu0 0.0
    %8257 = vmatprep.mubr.f32.mxu0 0.0
    %v8258 = vand.u32 %v7994, 4294901760
    %v8259 = vsub.f32 %v7994, %v8258
    %8260 = vmatmul.mubr.f32.gmra.mxu0 %v8259
    %v8261 = vpop.f32.mrf.mxu0
    %v8262 = vadd.f32 %v8176, %v8261
    %v8263 = vpop.f32.mrf.mxu0
    %8264 = vmatprep.mubr.f32.mxu0 0.0
    %v8265 = vand.u32 %v7997, 4294901760
    %v8266 = vsub.f32 %v7997, %v8265
    %8267 = vmatmul.mubr.f32.gmra.mxu0 %v8266
    %v8268 = vpop.f32.mrf.mxu0
    %v8269 = vadd.f32 %v8182, %v8268
    %v8270 = vpop.f32.mrf.mxu0
    %8271 = vdwg.mxu0
    %8272 = vmatprep.subr.mxu0 0.0
    %8273 = vmatpush1.msra.mxu0 0.0
    %8274 = vmatprep.subr.mxu0 0.0
    %8275 = vmatpush1.msra.mxu0 0.0
    %8276 = vmatprep.subr.mxu0 0.0
    %8277 = vmatpush1.msra.mxu0 0.0
    %8278 = vmatprep.subr.mxu0 0.0
    %8279 = vmatpush1.msra.mxu0 0.0
    %8280 = vmatprep.subr.mxu0 0.0
    %8281 = vmatpush1.msra.mxu0 0.0
    %8282 = vmatprep.subr.mxu0 0.0
    %8283 = vmatpush1.msra.mxu0 0.0
    %8284 = vmatprep.subr.mxu0 0.0
    %8285 = vmatpush1.msra.mxu0 0.0
    %8286 = vmatprep.subr.mxu0 0.0
    %8287 = vmatpush1.msra.mxu0 0.0
    %8288 = vmatprep.subr.mxu0 0.0
    %8289 = vmatpush1.msra.mxu0 0.0
    %8290 = vmatprep.subr.mxu0 0.0
    %8291 = vmatpush1.msra.mxu0 0.0
    %8292 = vmatprep.subr.mxu0 0.0
    %8293 = vmatpush1.msra.mxu0 0.0
    %8294 = vmatprep.subr.mxu0 0.0
    %8295 = vmatpush1.msra.mxu0 0.0
    %8296 = vmatprep.subr.mxu0 0.0
    %v8297 = vand.u32 %v68, 4294901760
    %8298 = vmatpush1.msra.mxu0 %v8297
    %8299 = vmatprep.subr.mxu0 0.0
    %v8300 = vand.u32 %v67, 4294901760
    %8301 = vmatpush1.msra.mxu0 %v8300
    %8302 = vmatprep.subr.mxu0 0.0
    %v8303 = vand.u32 %v66, 4294901760
    %8304 = vmatpush1.msra.mxu0 %v8303
    %8305 = vmatprep.subr.mxu0 0.0
    %v8306 = vand.u32 %v65, 4294901760
    %8307 = vmatpush1.msra.mxu0 %v8306
    %8308 = vmatprep.subr.mxu0 0.0
    %8309 = vmatpush2.msra.mxu0 0.0
    %8310 = vmatprep.subr.mxu0 0.0
    %8311 = vmatpush2.msra.mxu0 0.0
    %8312 = vmatprep.subr.mxu0 0.0
    %8313 = vmatpush2.msra.mxu0 0.0
    %8314 = vmatprep.subr.mxu0 0.0
    %8315 = vmatpush2.msra.mxu0 0.0
    %8316 = vmatprep.subr.mxu0 0.0
    %8317 = vmatpush2.msra.mxu0 0.0
    %8318 = vmatprep.subr.mxu0 0.0
    %8319 = vmatpush2.msra.mxu0 0.0
    %8320 = vmatprep.subr.mxu0 0.0
    %8321 = vmatpush2.msra.mxu0 0.0
    %8322 = vmatprep.subr.mxu0 0.0
    %8323 = vmatpush2.msra.mxu0 0.0
    %8324 = vmatprep.subr.mxu0 0.0
    %8325 = vmatpush2.msra.mxu0 0.0
    %8326 = vmatprep.subr.mxu0 0.0
    %8327 = vmatpush2.msra.mxu0 0.0
    %8328 = vmatprep.subr.mxu0 0.0
    %8329 = vmatpush2.msra.mxu0 0.0
    %8330 = vmatprep.subr.mxu0 0.0
    %8331 = vmatpush2.msra.mxu0 0.0
    %8332 = vmatprep.subr.mxu0 0.0
    %8333 = vmatpush2.msra.mxu0 0.0
    %8334 = vmatprep.subr.mxu0 0.0
    %8335 = vmatpush2.msra.mxu0 0.0
    %8336 = vmatprep.subr.mxu0 0.0
    %8337 = vmatpush2.msra.mxu0 0.0
    %8338 = vmatprep.subr.mxu0 0.0
    %8339 = vmatpush2.msra.mxu0 0.0
    %8340 = vmatprep.mubr.f32.mxu0 0.0
    %v8341 = vand.u32 %v7994, 4294901760
    %v8342 = vsub.f32 %v7994, %v8341
    %v8343 = vand.u32 %v8342, 4294901760
    %8344 = vmatmul.mubr.f32.gmra.mxu0 %v8343
    %v8345 = vpop.f32.mrf.mxu0
    %v8346 = vadd.f32 %v8262, %v8345
    %v8347 = vpop.f32.mrf.mxu0
    %8348 = vmatprep.mubr.f32.mxu0 0.0
    %v8349 = vand.u32 %v7997, 4294901760
    %v8350 = vsub.f32 %v7997, %v8349
    %v8351 = vand.u32 %v8350, 4294901760
    %8352 = vmatmul.mubr.f32.gmra.mxu0 %v8351
    %v8353 = vpop.f32.mrf.mxu0
    %v8354 = vadd.f32 %v8269, %v8353
    %v8355 = vpop.f32.mrf.mxu0
    %8356 = vdwg.mxu0
    %8357 = vmatprep.subr.mxu0 0.0
    %8358 = vmatpush1.msra.mxu0 0.0
    %8359 = vmatprep.subr.mxu0 0.0
    %8360 = vmatpush1.msra.mxu0 0.0
    %8361 = vmatprep.subr.mxu0 0.0
    %8362 = vmatpush1.msra.mxu0 0.0
    %8363 = vmatprep.subr.mxu0 0.0
    %8364 = vmatpush1.msra.mxu0 0.0
    %8365 = vmatprep.subr.mxu0 0.0
    %8366 = vmatpush1.msra.mxu0 0.0
    %8367 = vmatprep.subr.mxu0 0.0
    %8368 = vmatpush1.msra.mxu0 0.0
    %8369 = vmatprep.subr.mxu0 0.0
    %8370 = vmatpush1.msra.mxu0 0.0
    %8371 = vmatprep.subr.mxu0 0.0
    %8372 = vmatpush1.msra.mxu0 0.0
    %8373 = vmatprep.subr.mxu0 0.0
    %8374 = vmatpush1.msra.mxu0 0.0
    %8375 = vmatprep.subr.mxu0 0.0
    %8376 = vmatpush1.msra.mxu0 0.0
    %8377 = vmatprep.subr.mxu0 0.0
    %8378 = vmatpush1.msra.mxu0 0.0
    %8379 = vmatprep.subr.mxu0 0.0
    %8380 = vmatpush1.msra.mxu0 0.0
    %8381 = vmatprep.subr.mxu0 0.0
    %v8382 = vand.u32 %v68, 4294901760
    %v8383 = vsub.f32 %v68, %v8382
    %v8384 = vand.u32 %v8383, 4294901760
    %8385 = vmatpush1.msra.mxu0 %v8384
    %8386 = vmatprep.subr.mxu0 0.0
    %v8387 = vand.u32 %v67, 4294901760
    %v8388 = vsub.f32 %v67, %v8387
    %v8389 = vand.u32 %v8388, 4294901760
    %8390 = vmatpush1.msra.mxu0 %v8389
    %8391 = vmatprep.subr.mxu0 0.0
    %v8392 = vand.u32 %v66, 4294901760
    %v8393 = vsub.f32 %v66, %v8392
    %v8394 = vand.u32 %v8393, 4294901760
    %8395 = vmatpush1.msra.mxu0 %v8394
    %8396 = vmatprep.subr.mxu0 0.0
    %v8397 = vand.u32 %v65, 4294901760
    %v8398 = vsub.f32 %v65, %v8397
    %v8399 = vand.u32 %v8398, 4294901760
    %8400 = vmatpush1.msra.mxu0 %v8399
    %8401 = vmatprep.subr.mxu0 0.0
    %8402 = vmatpush2.msra.mxu0 0.0
    %8403 = vmatprep.subr.mxu0 0.0
    %8404 = vmatpush2.msra.mxu0 0.0
    %8405 = vmatprep.subr.mxu0 0.0
    %8406 = vmatpush2.msra.mxu0 0.0
    %8407 = vmatprep.subr.mxu0 0.0
    %8408 = vmatpush2.msra.mxu0 0.0
    %8409 = vmatprep.subr.mxu0 0.0
    %8410 = vmatpush2.msra.mxu0 0.0
    %8411 = vmatprep.subr.mxu0 0.0
    %8412 = vmatpush2.msra.mxu0 0.0
    %8413 = vmatprep.subr.mxu0 0.0
    %8414 = vmatpush2.msra.mxu0 0.0
    %8415 = vmatprep.subr.mxu0 0.0
    %8416 = vmatpush2.msra.mxu0 0.0
    %8417 = vmatprep.subr.mxu0 0.0
    %8418 = vmatpush2.msra.mxu0 0.0
    %8419 = vmatprep.subr.mxu0 0.0
    %8420 = vmatpush2.msra.mxu0 0.0
    %8421 = vmatprep.subr.mxu0 0.0
    %8422 = vmatpush2.msra.mxu0 0.0
    %8423 = vmatprep.subr.mxu0 0.0
    %8424 = vmatpush2.msra.mxu0 0.0
    %8425 = vmatprep.subr.mxu0 0.0
    %8426 = vmatpush2.msra.mxu0 0.0
    %8427 = vmatprep.subr.mxu0 0.0
    %8428 = vmatpush2.msra.mxu0 0.0
    %8429 = vmatprep.subr.mxu0 0.0
    %8430 = vmatpush2.msra.mxu0 0.0
    %8431 = vmatprep.subr.mxu0 0.0
    %8432 = vmatpush2.msra.mxu0 0.0
    %8433 = vmatprep.mubr.f32.mxu0 0.0
    %v8434 = vand.u32 %v7994, 4294901760
    %8435 = vmatmul.mubr.f32.gmra.mxu0 %v8434
    %v8436 = vpop.f32.mrf.mxu0
    %v8437 = vadd.f32 %v8346, %v8436
    %v8438 = vpop.f32.mrf.mxu0
    %8439 = vmatprep.mubr.f32.mxu0 0.0
    %v8440 = vand.u32 %v7997, 4294901760
    %8441 = vmatmul.mubr.f32.gmra.mxu0 %v8440
    %v8442 = vpop.f32.mrf.mxu0
    %v8443 = vadd.f32 %v8354, %v8442
    %v8444 = vpop.f32.mrf.mxu0
    %8445 = vdwg.mxu0
    %8446 = vmatprep.subr.mxu0 0.0
    %8447 = vmatpush1.msra.mxu0 0.0
    %8448 = vmatprep.subr.mxu0 0.0
    %8449 = vmatpush1.msra.mxu0 0.0
    %8450 = vmatprep.subr.mxu0 0.0
    %8451 = vmatpush1.msra.mxu0 0.0
    %8452 = vmatprep.subr.mxu0 0.0
    %8453 = vmatpush1.msra.mxu0 0.0
    %8454 = vmatprep.subr.mxu0 0.0
    %8455 = vmatpush1.msra.mxu0 0.0
    %8456 = vmatprep.subr.mxu0 0.0
    %8457 = vmatpush1.msra.mxu0 0.0
    %8458 = vmatprep.subr.mxu0 0.0
    %8459 = vmatpush1.msra.mxu0 0.0
    %8460 = vmatprep.subr.mxu0 0.0
    %8461 = vmatpush1.msra.mxu0 0.0
    %8462 = vmatprep.subr.mxu0 0.0
    %8463 = vmatpush1.msra.mxu0 0.0
    %8464 = vmatprep.subr.mxu0 0.0
    %8465 = vmatpush1.msra.mxu0 0.0
    %8466 = vmatprep.subr.mxu0 0.0
    %8467 = vmatpush1.msra.mxu0 0.0
    %8468 = vmatprep.subr.mxu0 0.0
    %8469 = vmatpush1.msra.mxu0 0.0
    %8470 = vmatprep.subr.mxu0 0.0
    %v8471 = vand.u32 %v68, 4294901760
    %8472 = vmatpush1.msra.mxu0 %v8471
    %8473 = vmatprep.subr.mxu0 0.0
    %v8474 = vand.u32 %v67, 4294901760
    %8475 = vmatpush1.msra.mxu0 %v8474
    %8476 = vmatprep.subr.mxu0 0.0
    %v8477 = vand.u32 %v66, 4294901760
    %8478 = vmatpush1.msra.mxu0 %v8477
    %8479 = vmatprep.subr.mxu0 0.0
    %v8480 = vand.u32 %v65, 4294901760
    %8481 = vmatpush1.msra.mxu0 %v8480
    %8482 = vmatprep.subr.mxu0 0.0
    %8483 = vmatpush2.msra.mxu0 0.0
    %8484 = vmatprep.subr.mxu0 0.0
    %8485 = vmatpush2.msra.mxu0 0.0
    %8486 = vmatprep.subr.mxu0 0.0
    %8487 = vmatpush2.msra.mxu0 0.0
    %8488 = vmatprep.subr.mxu0 0.0
    %8489 = vmatpush2.msra.mxu0 0.0
    %8490 = vmatprep.subr.mxu0 0.0
    %8491 = vmatpush2.msra.mxu0 0.0
    %8492 = vmatprep.subr.mxu0 0.0
    %8493 = vmatpush2.msra.mxu0 0.0
    %8494 = vmatprep.subr.mxu0 0.0
    %8495 = vmatpush2.msra.mxu0 0.0
    %8496 = vmatprep.subr.mxu0 0.0
    %8497 = vmatpush2.msra.mxu0 0.0
    %8498 = vmatprep.subr.mxu0 0.0
    %8499 = vmatpush2.msra.mxu0 0.0
    %8500 = vmatprep.subr.mxu0 0.0
    %8501 = vmatpush2.msra.mxu0 0.0
    %8502 = vmatprep.subr.mxu0 0.0
    %8503 = vmatpush2.msra.mxu0 0.0
    %8504 = vmatprep.subr.mxu0 0.0
    %8505 = vmatpush2.msra.mxu0 0.0
    %8506 = vmatprep.subr.mxu0 0.0
    %8507 = vmatpush2.msra.mxu0 0.0
    %8508 = vmatprep.subr.mxu0 0.0
    %8509 = vmatpush2.msra.mxu0 0.0
    %8510 = vmatprep.subr.mxu0 0.0
    %8511 = vmatpush2.msra.mxu0 0.0
    %8512 = vmatprep.subr.mxu0 0.0
    %8513 = vmatpush2.msra.mxu0 0.0
    %8514 = vmatprep.mubr.f32.mxu0 0.0
    %v8515 = vand.u32 %v7994, 4294901760
    %8516 = vmatmul.mubr.f32.gmra.mxu0 %v8515
    %v8517 = vpop.f32.mrf.mxu0
    %v8518 = vadd.f32 %v8437, %v8517
    %v8519 = vpop.f32.mrf.mxu0
    %8520 = vmatprep.mubr.f32.mxu0 0.0
    %v8521 = vand.u32 %v7997, 4294901760
    %8522 = vmatmul.mubr.f32.gmra.mxu0 %v8521
    %v8523 = vpop.f32.mrf.mxu0
    %v8524 = vadd.f32 %v8443, %v8523
    %v8525 = vpop.f32.mrf.mxu0
    %8526 = vdwg.mxu0
    %8527 = vst.msk [vmem:[#allocation8] sm:$0xff] %vm70, %v8518
    %8528 = vst.msk [vmem:[#allocation8 + $0x8] sm:$0xff] %vm70, %v8524
    // Predicated region
    $region30: #{multi_head_attention.1} parent=1 // pred_check
      _
    $region31: #{multi_head_attention.1} parent=1 // pred_check_branch
      %8530 = sbr.rel (0) target = $region33
    $region32: #{multi_head_attention.1} parent=1 // pred_region
      %s8532 = ssub.s32 256, 256
      %8533 = vsyncadd [#allocation4], %s8532
      %s8534 = sshll.u32 [#allocation8], 4
      %s8535 = int_to_ptr.vmem [resolvable:$true] %s8534
      %8540 = dma.vmem_to_hbm [thread:$0]  %s8535, 256, %s4, [#allocation4], 128, 128, 8
    $region33: #{multi_head_attention.1} parent=1 // pred_fallthru
      _
    // Predicated region
    $region34: #{multi_head_attention.1} parent=1 // pred_check
      _
    $region35: #{multi_head_attention.1} parent=1 // pred_check_branch
      %8542 = sbr.rel (0) target = $region37
    $region36: #{multi_head_attention.1} parent=1 // pred_region
      %8543 = dma.done [#allocation4], 256
    $region37: #{multi_head_attention.1} parent=1 // pred_fallthru
      _
    %8544 = vsyncpa [#allocation3], 1
    %8545 = vsyncpa [#allocation6], 1
    %8546 = vsyncpa [#allocation4], 1

</llo_original>
